<compile_context>
chip_gen: v6e
topology: v6e:2x2x1
jax: 0.10.0
libtpu: 0.0.40
codegen_flags: <defaults>
</compile_context>

<pallas_src>
import functools

import jax
import jax.numpy as jnp
from jax import lax
from jax.experimental import pallas as pl
from jax.experimental.pallas import tpu as pltpu

LANE = 128


def _round_up(x, m):
    return (x + m - 1) // m * m


def _pad_to(a, shape):
    pads = [(0, t - s) for s, t in zip(a.shape, shape)]
    return jnp.pad(a.astype(jnp.float32), pads)


def _spec(shape):
    nd = len(shape)
    return pl.BlockSpec(shape, lambda i, _nd=nd: (0,) * _nd)


# ----------------------------------------------------------------------------
# Fused kernel: GRU pair + feature assembly + 8-layer MLP message-passing stack.
#
#   GRU gate layout (lane-aligned): [ R | Z | N ], each slab GP = round_up(2H,128)
#   lanes wide; inside each slab the first H lanes are the "map" GRU, the next H
#   lanes the "memlet" GRU, the rest zero padding.
#   MP feature widths are zero-padded to HP / DP2 (128-lane multiples).
# ----------------------------------------------------------------------------
def _gnn_fused_kernel(emb_ref, wih_ref, whh_ref, bih_ref, bhh_ref,
                      proj_ref, types_ref, adj_ref,
                      wm_n_ref, ws_n_ref, wa_n_ref, b_n_ref,
                      wm_rs_ref, wm_rc_ref, ws_rs_ref, ws_rc_ref,
                      wa_r_ref, b_r_ref,
                      out_ref, *, T, NP, H, GP, HP, DP2, K):
    NEG = jnp.float32(-1e30)

    # ---- stage 1: fused map+memlet GRU over T timesteps (fully unrolled) ------
    # Hoisted input-side matmul: one (T*NP,E)x(E,3GP) matmul instead of T tiny ones.
    gi_all = jnp.dot(emb_ref[...], wih_ref[...],
                     preferred_element_type=jnp.float32) + bih_ref[...]   # (T*NP, 3GP)
    whh = whh_ref[...]                                                    # (GP, 3GP)
    bhh = bhh_ref[...]                                                    # (1, 3GP)

    h = jnp.zeros((NP, GP), jnp.float32)      # [h_map | h_memlet | zero pad]
    for t in range(T):                        # T small & static: unrolled
        gi = gi_all[t * NP:(t + 1) * NP, :]                               # (NP, 3GP)
        gh = jnp.dot(h, whh, preferred_element_type=jnp.float32) + bhh    # (NP, 3GP)
        r = jax.nn.sigmoid(gi[:, 0:GP] + gh[:, 0:GP])
        z = jax.nn.sigmoid(gi[:, GP:2 * GP] + gh[:, GP:2 * GP])
        n = jnp.tanh(gi[:, 2 * GP:3 * GP] + r * gh[:, 2 * GP:3 * GP])
        h = (1.0 - z) * n + z * h

    # ---- stage 2: node features = [one-hot type | selected GRU hidden] --------
    types = types_ref[...]                                                # (NP, HP)
    is_map = types[:, 0:1] == 1.0
    is_mem = jnp.logical_and(jnp.logical_not(is_map), types[:, 5:6] == 1.0)
    lane = lax.broadcasted_iota(jnp.int32, (1, GP), 1)
    map_lanes = (lane < H).astype(jnp.float32)
    mem_lanes = jnp.logical_and(lane >= H, lane < 2 * H).astype(jnp.float32)
    sel = jnp.where(is_map, map_lanes, jnp.where(is_mem, mem_lanes, 0.0))  # (NP, GP)
    # placement matmul puts the selected hidden into state lanes [6:6+H]
    state = types + jnp.dot(h * sel, proj_ref[...],
                            preferred_element_type=jnp.float32)           # (NP, HP)

    # ---- stage 3: 8-layer MLP message-passing stack (state resident on-chip) --
    adjf = adj_ref[...]                                                   # (K, NP, NP)
    adj_exp = [adjf[k][:, :, None] > 0.5 for k in range(K)]               # hoisted
    has_msg = jnp.max(jnp.max(adjf, axis=0), axis=1, keepdims=True) > 0.5  # (NP, 1)

    def aggregate(msgs, dmsg):
        # msgs: (N_src, K*dmsg) -> masked max over incoming edges of all types.
        agg = jnp.full((NP, dmsg), NEG, jnp.float32)
        for k in range(K):
            m_k = msgs[:, k * dmsg:(k + 1) * dmsg]                        # (Ns, dmsg)
            masked = jnp.where(adj_exp[k], m_k[None, :, :], NEG)          # (Nt, Ns, dmsg)
            agg = jnp.maximum(agg, jnp.max(masked, axis=1))
        return jnp.where(has_msg, agg, 0.0)

    def normal_layer(l, cur):
        msgs = jnp.dot(cur, wm_n_ref[l], preferred_element_type=jnp.float32)
        agg = aggregate(msgs, HP)
        return (jnp.dot(cur, ws_n_ref[l], preferred_element_type=jnp.float32)
                + jnp.dot(agg, wa_n_ref[l], preferred_element_type=jnp.float32)
                + b_n_ref[l])

    def residual_layer(r, saved, cur):
        # operates on the implicit concat([saved, cur]) via split weight slabs
        msgs = (jnp.dot(saved, wm_rs_ref[r], preferred_element_type=jnp.float32)
                + jnp.dot(cur, wm_rc_ref[r], preferred_element_type=jnp.float32))
        agg = aggregate(msgs, DP2)
        return jnp.tanh(
            jnp.dot(saved, ws_rs_ref[r], preferred_element_type=jnp.float32)
            + jnp.dot(cur, ws_rc_ref[r], preferred_element_type=jnp.float32)
            + jnp.dot(agg, wa_r_ref[r], preferred_element_type=jnp.float32)
            + b_r_ref[r])

    saved = state
    for l in range(3):
        state = normal_layer(l, state)
    state = residual_layer(0, saved, state)
    saved = state
    for l in range(3, 6):
        state = normal_layer(l, state)
    state = residual_layer(1, saved, state)
    out_ref[...] = state


def gnn_fused(emb2d, prep, adj, types_pad, *, T, NP, H, GP, HP, DP2, K):
    args = (emb2d, prep["wih_c"], prep["whh_c"], prep["bih_c"], prep["bhh_c"],
            prep["proj"], types_pad, adj,
            prep["wm_n"], prep["ws_n"], prep["wa_n"], prep["b_n"],
            prep["wm_rs"], prep["wm_rc"], prep["ws_rs"], prep["ws_rc"],
            prep["wa_r"], prep["b_r"])
    kernel = functools.partial(_gnn_fused_kernel, T=T, NP=NP, H=H, GP=GP,
                               HP=HP, DP2=DP2, K=K)
    return pl.pallas_call(
        kernel,
        grid=(1,),
        in_specs=[_spec(a.shape) for a in args],
        out_specs=_spec((NP, HP)),
        out_shape=jax.ShapeDtypeStruct((NP, HP), jnp.float32),
        compiler_params=pltpu.CompilerParams(dimension_semantics=("arbitrary",)),
    )(*args)


# ----------------------------------------------------------------------------
# Parameter construction (PyTorch layout) and kernel-ready preparation
# (pre-transpose / zero-pad / stack; done once outside the jitted forward).
# ----------------------------------------------------------------------------
def _uniform(key, shape, scale=0.1):
    return jax.random.uniform(key, shape, jnp.float32, -scale, scale)


def build_params(key, dim_in, embedding_dim, dim_hidden, num_edge_types, transforms):
    H_g = dim_hidden + 6
    keys = iter(jax.random.split(key, 64))
    params = {}
    params["embedding"] = _uniform(next(keys), (dim_in, embedding_dim))

    def gru_params():
        return (_uniform(next(keys), (3 * dim_hidden, embedding_dim)),   # weight_ih
                _uniform(next(keys), (3 * dim_hidden, dim_hidden)),      # weight_hh
                _uniform(next(keys), (3 * dim_hidden,)),                 # bias_ih
                _uniform(next(keys), (3 * dim_hidden,)))                 # bias_hh

    params["map"] = gru_params()
    params["memlet"] = gru_params()

    def mp_params(din):
        return (_uniform(next(keys), (num_edge_types, din, din)),   # per-edge msg weights
                _uniform(next(keys), (H_g, 2 * din)),               # state-update weight
                jnp.zeros((H_g,), jnp.float32))                     # state-update bias

    params["mp"] = [mp_params(H_g) for _ in range(6)]
    params["mp_res"] = [mp_params(2 * H_g) for _ in range(2)]

    heads = []
    for mult in transforms:
        l = mult * H_g
        heads.append((_uniform(next(keys), (l, l)),
                      jnp.zeros((l,), jnp.float32),
                      _uniform(next(keys), (2, l)),
                      jnp.zeros((2,), jnp.float32)))
    params["heads"] = heads
    return params


def prepare_params(params):
    H = params["map"][1].shape[1]          # dim_hidden
    E = params["embedding"].shape[1]
    Hg = H + 6
    K = params["mp"][0][0].shape[0]
    GP = _round_up(2 * H, LANE)
    HP = _round_up(Hg, LANE)
    DP2 = _round_up(2 * Hg, LANE)
    prep = {"embedding": params["embedding"]}

    # --- fused GRU weights: per-gate slabs [R|Z|N], each GP lanes wide,
    #     lanes [0:H] = map GRU, [H:2H] = memlet GRU, rest zero.
    wih_m, whh_m, bih_m, bhh_m = params["map"]
    wih_e, whh_e, bih_e, bhh_e = params["memlet"]
    wih_c = jnp.zeros((E, 3 * GP), jnp.float32)
    whh_c = jnp.zeros((GP, 3 * GP), jnp.float32)
    bih_c = jnp.zeros((1, 3 * GP), jnp.float32)
    bhh_c = jnp.zeros((1, 3 * GP), jnp.float32)
    for g in range(3):                          # PyTorch gate order [r | z | n]
        o = g * GP
        wih_c = wih_c.at[:, o:o + H].set(wih_m[g * H:(g + 1) * H, :].T)
        wih_c = wih_c.at[:, o + H:o + 2 * H].set(wih_e[g * H:(g + 1) * H, :].T)
        whh_c = whh_c.at[:H, o:o + H].set(whh_m[g * H:(g + 1) * H, :].T)
        whh_c = whh_c.at[H:2 * H, o + H:o + 2 * H].set(whh_e[g * H:(g + 1) * H, :].T)
        bih_c = bih_c.at[0, o:o + H].set(bih_m[g * H:(g + 1) * H])
        bih_c = bih_c.at[0, o + H:o + 2 * H].set(bih_e[g * H:(g + 1) * H])
        bhh_c = bhh_c.at[0, o:o + H].set(bhh_m[g * H:(g + 1) * H])
        bhh_c = bhh_c.at[0, o + H:o + 2 * H].set(bhh_e[g * H:(g + 1) * H])
    prep["wih_c"], prep["whh_c"] = wih_c, whh_c
    prep["bih_c"], prep["bhh_c"] = bih_c, bhh_c

    # --- constant placement matrix: GRU hidden lanes [0:H] (map) and [H:2H]
    #     (memlet) both map into state lanes [6:6+H]
    proj = jnp.zeros((GP, HP), jnp.float32)
    proj = proj.at[jnp.arange(H), 6 + jnp.arange(H)].set(1.0)
    proj = proj.at[H + jnp.arange(H), 6 + jnp.arange(H)].set(1.0)
    prep["proj"] = proj

    # --- MP stack weights: transposed, split (state/agg and saved/cur), padded, stacked
    def prep_normal(layer):
        msg_w, upd_w, upd_b = layer      # (K,Hg,Hg), (Hg,2Hg), (Hg,)
        wm = jnp.concatenate([_pad_to(msg_w[k].T, (HP, HP)) for k in range(K)], axis=1)
        ws = _pad_to(upd_w[:, :Hg].T, (HP, HP))
        wa = _pad_to(upd_w[:, Hg:].T, (HP, HP))
        b = _pad_to(upd_b.reshape(1, -1), (1, HP))
        return wm, ws, wa, b

    def prep_residual(layer):
        msg_w, upd_w, upd_b = layer      # (K,2Hg,2Hg), (Hg,4Hg), (Hg,)
        wm_s, wm_c = [], []
        for k in range(K):
            wt = msg_w[k].T              # (2Hg in, 2Hg out)
            wm_s.append(_pad_to(wt[:Hg], (HP, DP2)))
            wm_c.append(_pad_to(wt[Hg:], (HP, DP2)))
        ws_t = upd_w[:, :2 * Hg].T       # (2Hg, Hg)
        wa_t = upd_w[:, 2 * Hg:].T       # (2Hg, Hg)
        return (jnp.concatenate(wm_s, axis=1), jnp.concatenate(wm_c, axis=1),
                _pad_to(ws_t[:Hg], (HP, HP)), _pad_to(ws_t[Hg:], (HP, HP)),
                _pad_to(wa_t, (DP2, HP)), _pad_to(upd_b.reshape(1, -1), (1, HP)))

    normals = [prep_normal(p) for p in params["mp"]]
    prep["wm_n"] = jnp.stack([n[0] for n in normals])    # (6, HP, K*HP)
    prep["ws_n"] = jnp.stack([n[1] for n in normals])    # (6, HP, HP)
    prep["wa_n"] = jnp.stack([n[2] for n in normals])    # (6, HP, HP)
    prep["b_n"] = jnp.stack([n[3] for n in normals])     # (6, 1, HP)
    residuals = [prep_residual(p) for p in params["mp_res"]]
    prep["wm_rs"] = jnp.stack([r[0] for r in residuals])  # (2, HP, K*DP2)
    prep["wm_rc"] = jnp.stack([r[1] for r in residuals])
    prep["ws_rs"] = jnp.stack([r[2] for r in residuals])  # (2, HP, HP)
    prep["ws_rc"] = jnp.stack([r[3] for r in residuals])
    prep["wa_r"] = jnp.stack([r[4] for r in residuals])   # (2, DP2, HP)
    prep["b_r"] = jnp.stack([r[5] for r in residuals])    # (2, 1, HP)

    prep["heads"] = [(w1.T, b1, w2.T, b2) for (w1, b1, w2, b2) in params["heads"]]
    return prep


# ----------------------------------------------------------------------------
# Full forward pass (embedding gather + tiny heads in XLA, everything else in
# one Pallas kernel).
# ----------------------------------------------------------------------------
def gnn_forward(prep, node_types, node_tokens, adj, targets, *, dim_hidden):
    H = dim_hidden
    Hg = H + 6
    GP = prep["whh_c"].shape[0]
    HP = prep["ws_n"].shape[2]
    DP2 = prep["wa_r"].shape[1]
    K = adj.shape[0]
    N = node_types.shape[0]
    T = node_tokens.shape[1]

    # Pad node count to a sublane multiple; padded nodes are isolated (zero type,
    # zero tokens, no edges) so they never influence real nodes.
    NP = _round_up(N, 8)
    if NP != N:
        p = NP - N
        node_types = jnp.pad(node_types, ((0, p), (0, 0)))
        node_tokens = jnp.pad(node_tokens, ((0, p), (0, 0)))
        adj = jnp.pad(adj, ((0, 0), (0, p), (0, p)))

    # --- token embeddings (gather in XLA), sequence-major rows for the kernel --
    emb = jnp.take(prep["embedding"], node_tokens, axis=0)                 # (NP, T, E)
    emb2d = jnp.transpose(emb, (1, 0, 2)).reshape(T * NP, -1).astype(jnp.float32)

    # one-hot node types placed into state lanes [0:6] (zero padded to HP)
    types_pad = jnp.pad(node_types.astype(jnp.float32), ((0, 0), (0, HP - 6)))

    # --- one fused Pallas kernel: GRU pair + feature assembly + 8 MP layers ----
    result = gnn_fused(emb2d, prep, adj.astype(jnp.float32), types_pad,
                       T=T, NP=NP, H=H, GP=GP, HP=HP, DP2=DP2, K=K)[:N, :Hg]

    # --- per-transform heads (tiny; plain XLA) ----------------------------------
    outs = []
    for (w1t, b1, w2t, b2), idx in zip(prep["heads"], targets):
        gathered = result[idx.reshape(-1)]                                 # (M*mult, Hg)
        x = gathered.reshape(idx.shape[0], -1)                             # (M, mult*Hg)
        hh = jnp.maximum(jnp.dot(x, w1t) + b1, 0.0)
        outs.append(jnp.dot(hh, w2t) + b2)
    return tuple(outs)


if __name__ == "__main__":
    # Small shapes consistent with the module's forward.
    DIM_IN = 16          # vocab size for word_embeddings
    EMBEDDING_DIM = 8
    DIM_HIDDEN = 26      # hidden_state_size for the GNN = 26 + 6 = 32
    N_NODES = 16
    SEQ_LEN = 8
    NUM_EDGE_TYPES = 2
    TRANSFORMS = [1, 2]

    key = jax.random.PRNGKey(0)
    k_param, k_tok, k_e0, k_e1 = jax.random.split(key, 4)

    params = build_params(k_param, DIM_IN, EMBEDDING_DIM, DIM_HIDDEN,
                          NUM_EDGE_TYPES, TRANSFORMS)
    prep = prepare_params(params)

    # Node types: one-hot of 6 categories (type 0 -> "map" GRU, type 5 -> "memlet" GRU).
    type_ids = jnp.arange(N_NODES) % 6
    node_types = jax.nn.one_hot(type_ids, 6, dtype=jnp.float32)              # (N, 6)
    node_tokens = jax.random.randint(k_tok, (N_NODES, SEQ_LEN), 0, DIM_IN)   # (N, T)

    # Adjacency lists -> dense per-edge-type masks adj[k, tgt, src] = 1.0
    src0 = jnp.arange(N_NODES - 1)
    tgt0 = jnp.arange(1, N_NODES)
    src1 = jax.random.randint(k_e0, (N_NODES,), 0, N_NODES)
    tgt1 = jax.random.randint(k_e1, (N_NODES,), 0, N_NODES)
    adj = jnp.zeros((NUM_EDGE_TYPES, N_NODES, N_NODES), jnp.float32)
    adj = adj.at[0, tgt0, src0].set(1.0)
    adj = adj.at[1, tgt1, src1].set(1.0)

    # Targets: head 0 uses single-node groups; head 1 uses 2-node groups.
    targets = (jnp.array([[0], [3], [7], [10]], dtype=jnp.int32),
               jnp.array([[1, 2], [4, 5], [8, 9]], dtype=jnp.int32))

    fwd = jax.jit(functools.partial(gnn_forward, dim_hidden=DIM_HIDDEN))
    outs = fwd(prep, node_types, node_tokens, adj, targets)
    outs = jax.block_until_ready(outs)

    assert outs[0].shape == (4, 2) and outs[1].shape == (3, 2)
    assert all(bool(jnp.all(jnp.isfinite(o))) for o in outs)
    print("KERNEL_OK")
</pallas_src>

<mosaic_0001>
module attributes {stable_mosaic.version = 11 : i64} {
  func.func @_gnn_fused_kernel(%arg0: i32, %arg1: memref<128x8xf32, #tpu.memory_space<vmem>>, %arg2: memref<8x384xf32, #tpu.memory_space<vmem>>, %arg3: memref<128x384xf32, #tpu.memory_space<vmem>>, %arg4: memref<1x384xf32, #tpu.memory_space<vmem>>, %arg5: memref<1x384xf32, #tpu.memory_space<vmem>>, %arg6: memref<128x128xf32, #tpu.memory_space<vmem>>, %arg7: memref<16x128xf32, #tpu.memory_space<vmem>>, %arg8: memref<2x16x16xf32, #tpu.memory_space<vmem>>, %arg9: memref<6x128x256xf32, #tpu.memory_space<vmem>>, %arg10: memref<6x128x128xf32, #tpu.memory_space<vmem>>, %arg11: memref<6x128x128xf32, #tpu.memory_space<vmem>>, %arg12: memref<6x1x128xf32, #tpu.memory_space<vmem>>, %arg13: memref<2x128x256xf32, #tpu.memory_space<vmem>>, %arg14: memref<2x128x256xf32, #tpu.memory_space<vmem>>, %arg15: memref<2x128x128xf32, #tpu.memory_space<vmem>>, %arg16: memref<2x128x128xf32, #tpu.memory_space<vmem>>, %arg17: memref<2x128x128xf32, #tpu.memory_space<vmem>>, %arg18: memref<2x1x128xf32, #tpu.memory_space<vmem>>, %arg19: memref<16x128xf32, #tpu.memory_space<vmem>>) attributes {dimension_semantics = [#tpu.dimension_semantics<arbitrary>], iteration_bounds = array<i64: 1>, scalar_prefetch = 0 : i64, scratch_operands = 0 : i64, tpu.core_type = #tpu.core_type<tc>, window_params = [{pipeline_mode = #tpu.pipeline_mode<synchronous>, transform_indices = @transform_0, window_bounds = array<i64: 128, 8>}, {pipeline_mode = #tpu.pipeline_mode<synchronous>, transform_indices = @transform_1, window_bounds = array<i64: 8, 384>}, {pipeline_mode = #tpu.pipeline_mode<synchronous>, transform_indices = @transform_2, window_bounds = array<i64: 128, 384>}, {pipeline_mode = #tpu.pipeline_mode<synchronous>, transform_indices = @transform_3, window_bounds = array<i64: 1, 384>}, {pipeline_mode = #tpu.pipeline_mode<synchronous>, transform_indices = @transform_4, window_bounds = array<i64: 1, 384>}, {pipeline_mode = #tpu.pipeline_mode<synchronous>, transform_indices = @transform_5, window_bounds = array<i64: 128, 128>}, {pipeline_mode = #tpu.pipeline_mode<synchronous>, transform_indices = @transform_6, window_bounds = array<i64: 16, 128>}, {pipeline_mode = #tpu.pipeline_mode<synchronous>, transform_indices = @transform_7, window_bounds = array<i64: 2, 16, 16>}, {pipeline_mode = #tpu.pipeline_mode<synchronous>, transform_indices = @transform_8, window_bounds = array<i64: 6, 128, 256>}, {pipeline_mode = #tpu.pipeline_mode<synchronous>, transform_indices = @transform_9, window_bounds = array<i64: 6, 128, 128>}, {pipeline_mode = #tpu.pipeline_mode<synchronous>, transform_indices = @transform_10, window_bounds = array<i64: 6, 128, 128>}, {pipeline_mode = #tpu.pipeline_mode<synchronous>, transform_indices = @transform_11, window_bounds = array<i64: 6, 1, 128>}, {pipeline_mode = #tpu.pipeline_mode<synchronous>, transform_indices = @transform_12, window_bounds = array<i64: 2, 128, 256>}, {pipeline_mode = #tpu.pipeline_mode<synchronous>, transform_indices = @transform_13, window_bounds = array<i64: 2, 128, 256>}, {pipeline_mode = #tpu.pipeline_mode<synchronous>, transform_indices = @transform_14, window_bounds = array<i64: 2, 128, 128>}, {pipeline_mode = #tpu.pipeline_mode<synchronous>, transform_indices = @transform_15, window_bounds = array<i64: 2, 128, 128>}, {pipeline_mode = #tpu.pipeline_mode<synchronous>, transform_indices = @transform_16, window_bounds = array<i64: 2, 128, 128>}, {pipeline_mode = #tpu.pipeline_mode<synchronous>, transform_indices = @transform_17, window_bounds = array<i64: 2, 1, 128>}, {pipeline_mode = #tpu.pipeline_mode<synchronous>, transform_indices = @transform_18, window_bounds = array<i64: 16, 128>}]} {
    %c0 = arith.constant 0 : index
    %c0_0 = arith.constant 0 : index
    %0 = vector.load %arg1[%c0, %c0_0] : memref<128x8xf32, #tpu.memory_space<vmem>>, vector<128x8xf32>
    %c0_1 = arith.constant 0 : index
    %c0_2 = arith.constant 0 : index
    %1 = vector.load %arg2[%c0_1, %c0_2] : memref<8x384xf32, #tpu.memory_space<vmem>>, vector<8x384xf32>
    %cst = arith.constant dense<0.000000e+00> : vector<128x384xf32>
    %2 = tpu.matmul %0, %1, %cst {dimension_numbers = #tpu.dot_dimension_numbers<[1], [0], [0], [1], [0, 0, 1, 1], [], []>} : vector<128x8xf32>, vector<8x384xf32>, vector<128x384xf32> -> vector<128x384xf32>
    %c0_3 = arith.constant 0 : index
    %c0_4 = arith.constant 0 : index
    %3 = vector.load %arg4[%c0_3, %c0_4] : memref<1x384xf32, #tpu.memory_space<vmem>>, vector<1x384xf32>
    %4 = vector.broadcast %3 : vector<1x384xf32> to vector<128x384xf32>
    %5 = arith.addf %2, %4 : vector<128x384xf32>
    %c0_5 = arith.constant 0 : index
    %c0_6 = arith.constant 0 : index
    %6 = vector.load %arg3[%c0_5, %c0_6] : memref<128x384xf32, #tpu.memory_space<vmem>>, vector<128x384xf32>
    %c0_7 = arith.constant 0 : index
    %c0_8 = arith.constant 0 : index
    %7 = vector.load %arg5[%c0_7, %c0_8] : memref<1x384xf32, #tpu.memory_space<vmem>>, vector<1x384xf32>
    %cst_9 = arith.constant 0.000000e+00 : f32
    %8 = vector.broadcast %cst_9 : f32 to vector<16x128xf32>
    %9 = vector.extract_strided_slice %5 {offsets = [0, 0], sizes = [16, 384], strides = [1, 1]} : vector<128x384xf32> to vector<16x384xf32>
    %cst_10 = arith.constant dense<0.000000e+00> : vector<16x384xf32>
    %10 = tpu.matmul %8, %6, %cst_10 {dimension_numbers = #tpu.dot_dimension_numbers<[1], [0], [0], [1], [0, 0, 1, 1], [], []>} : vector<16x128xf32>, vector<128x384xf32>, vector<16x384xf32> -> vector<16x384xf32>
    %11 = vector.broadcast %7 : vector<1x384xf32> to vector<16x384xf32>
    %12 = arith.addf %10, %11 : vector<16x384xf32>
    %13 = vector.extract_strided_slice %9 {offsets = [0, 0], sizes = [16, 128], strides = [1, 1]} : vector<16x384xf32> to vector<16x128xf32>
    %14 = vector.extract_strided_slice %12 {offsets = [0, 0], sizes = [16, 128], strides = [1, 1]} : vector<16x384xf32> to vector<16x128xf32>
    %15 = arith.addf %13, %14 : vector<16x128xf32>
    %16 = arith.negf %15 : vector<16x128xf32>
    %17 = math.exp %16 : vector<16x128xf32>
    %cst_11 = arith.constant 1.000000e+00 : f32
    %18 = vector.broadcast %cst_11 : f32 to vector<16x128xf32>
    %19 = arith.addf %18, %17 : vector<16x128xf32>
    %20 = arith.divf %18, %19 : vector<16x128xf32>
    %21 = vector.extract_strided_slice %9 {offsets = [0, 128], sizes = [16, 128], strides = [1, 1]} : vector<16x384xf32> to vector<16x128xf32>
    %22 = vector.extract_strided_slice %12 {offsets = [0, 128], sizes = [16, 128], strides = [1, 1]} : vector<16x384xf32> to vector<16x128xf32>
    %23 = arith.addf %21, %22 : vector<16x128xf32>
    %24 = arith.negf %23 : vector<16x128xf32>
    %25 = math.exp %24 : vector<16x128xf32>
    %cst_12 = arith.constant 1.000000e+00 : f32
    %26 = vector.broadcast %cst_12 : f32 to vector<16x128xf32>
    %27 = arith.addf %26, %25 : vector<16x128xf32>
    %28 = arith.divf %26, %27 : vector<16x128xf32>
    %29 = vector.extract_strided_slice %9 {offsets = [0, 256], sizes = [16, 128], strides = [1, 1]} : vector<16x384xf32> to vector<16x128xf32>
    %30 = vector.extract_strided_slice %12 {offsets = [0, 256], sizes = [16, 128], strides = [1, 1]} : vector<16x384xf32> to vector<16x128xf32>
    %31 = arith.mulf %20, %30 : vector<16x128xf32>
    %32 = arith.addf %29, %31 : vector<16x128xf32>
    %33 = math.tanh %32 : vector<16x128xf32>
    %cst_13 = arith.constant 1.000000e+00 : f32
    %34 = vector.broadcast %cst_13 : f32 to vector<16x128xf32>
    %35 = arith.subf %34, %28 : vector<16x128xf32>
    %36 = arith.mulf %35, %33 : vector<16x128xf32>
    %37 = arith.mulf %28, %8 : vector<16x128xf32>
    %38 = arith.addf %36, %37 : vector<16x128xf32>
    %39 = vector.extract_strided_slice %5 {offsets = [16, 0], sizes = [16, 384], strides = [1, 1]} : vector<128x384xf32> to vector<16x384xf32>
    %cst_14 = arith.constant dense<0.000000e+00> : vector<16x384xf32>
    %40 = tpu.matmul %38, %6, %cst_14 {dimension_numbers = #tpu.dot_dimension_numbers<[1], [0], [0], [1], [0, 0, 1, 1], [], []>} : vector<16x128xf32>, vector<128x384xf32>, vector<16x384xf32> -> vector<16x384xf32>
    %41 = vector.broadcast %7 : vector<1x384xf32> to vector<16x384xf32>
    %42 = arith.addf %40, %41 : vector<16x384xf32>
    %43 = vector.extract_strided_slice %39 {offsets = [0, 0], sizes = [16, 128], strides = [1, 1]} : vector<16x384xf32> to vector<16x128xf32>
    %44 = vector.extract_strided_slice %42 {offsets = [0, 0], sizes = [16, 128], strides = [1, 1]} : vector<16x384xf32> to vector<16x128xf32>
    %45 = arith.addf %43, %44 : vector<16x128xf32>
    %46 = arith.negf %45 : vector<16x128xf32>
    %47 = math.exp %46 : vector<16x128xf32>
    %cst_15 = arith.constant 1.000000e+00 : f32
    %48 = vector.broadcast %cst_15 : f32 to vector<16x128xf32>
    %49 = arith.addf %48, %47 : vector<16x128xf32>
    %50 = arith.divf %48, %49 : vector<16x128xf32>
    %51 = vector.extract_strided_slice %39 {offsets = [0, 128], sizes = [16, 128], strides = [1, 1]} : vector<16x384xf32> to vector<16x128xf32>
    %52 = vector.extract_strided_slice %42 {offsets = [0, 128], sizes = [16, 128], strides = [1, 1]} : vector<16x384xf32> to vector<16x128xf32>
    %53 = arith.addf %51, %52 : vector<16x128xf32>
    %54 = arith.negf %53 : vector<16x128xf32>
    %55 = math.exp %54 : vector<16x128xf32>
    %cst_16 = arith.constant 1.000000e+00 : f32
    %56 = vector.broadcast %cst_16 : f32 to vector<16x128xf32>
    %57 = arith.addf %56, %55 : vector<16x128xf32>
    %58 = arith.divf %56, %57 : vector<16x128xf32>
    %59 = vector.extract_strided_slice %39 {offsets = [0, 256], sizes = [16, 128], strides = [1, 1]} : vector<16x384xf32> to vector<16x128xf32>
    %60 = vector.extract_strided_slice %42 {offsets = [0, 256], sizes = [16, 128], strides = [1, 1]} : vector<16x384xf32> to vector<16x128xf32>
    %61 = arith.mulf %50, %60 : vector<16x128xf32>
    %62 = arith.addf %59, %61 : vector<16x128xf32>
    %63 = math.tanh %62 : vector<16x128xf32>
    %cst_17 = arith.constant 1.000000e+00 : f32
    %64 = vector.broadcast %cst_17 : f32 to vector<16x128xf32>
    %65 = arith.subf %64, %58 : vector<16x128xf32>
    %66 = arith.mulf %65, %63 : vector<16x128xf32>
    %67 = arith.mulf %58, %38 : vector<16x128xf32>
    %68 = arith.addf %66, %67 : vector<16x128xf32>
    %69 = vector.extract_strided_slice %5 {offsets = [32, 0], sizes = [16, 384], strides = [1, 1]} : vector<128x384xf32> to vector<16x384xf32>
    %cst_18 = arith.constant dense<0.000000e+00> : vector<16x384xf32>
    %70 = tpu.matmul %68, %6, %cst_18 {dimension_numbers = #tpu.dot_dimension_numbers<[1], [0], [0], [1], [0, 0, 1, 1], [], []>} : vector<16x128xf32>, vector<128x384xf32>, vector<16x384xf32> -> vector<16x384xf32>
    %71 = vector.broadcast %7 : vector<1x384xf32> to vector<16x384xf32>
    %72 = arith.addf %70, %71 : vector<16x384xf32>
    %73 = vector.extract_strided_slice %69 {offsets = [0, 0], sizes = [16, 128], strides = [1, 1]} : vector<16x384xf32> to vector<16x128xf32>
    %74 = vector.extract_strided_slice %72 {offsets = [0, 0], sizes = [16, 128], strides = [1, 1]} : vector<16x384xf32> to vector<16x128xf32>
    %75 = arith.addf %73, %74 : vector<16x128xf32>
    %76 = arith.negf %75 : vector<16x128xf32>
    %77 = math.exp %76 : vector<16x128xf32>
    %cst_19 = arith.constant 1.000000e+00 : f32
    %78 = vector.broadcast %cst_19 : f32 to vector<16x128xf32>
    %79 = arith.addf %78, %77 : vector<16x128xf32>
    %80 = arith.divf %78, %79 : vector<16x128xf32>
    %81 = vector.extract_strided_slice %69 {offsets = [0, 128], sizes = [16, 128], strides = [1, 1]} : vector<16x384xf32> to vector<16x128xf32>
    %82 = vector.extract_strided_slice %72 {offsets = [0, 128], sizes = [16, 128], strides = [1, 1]} : vector<16x384xf32> to vector<16x128xf32>
    %83 = arith.addf %81, %82 : vector<16x128xf32>
    %84 = arith.negf %83 : vector<16x128xf32>
    %85 = math.exp %84 : vector<16x128xf32>
    %cst_20 = arith.constant 1.000000e+00 : f32
    %86 = vector.broadcast %cst_20 : f32 to vector<16x128xf32>
    %87 = arith.addf %86, %85 : vector<16x128xf32>
    %88 = arith.divf %86, %87 : vector<16x128xf32>
    %89 = vector.extract_strided_slice %69 {offsets = [0, 256], sizes = [16, 128], strides = [1, 1]} : vector<16x384xf32> to vector<16x128xf32>
    %90 = vector.extract_strided_slice %72 {offsets = [0, 256], sizes = [16, 128], strides = [1, 1]} : vector<16x384xf32> to vector<16x128xf32>
    %91 = arith.mulf %80, %90 : vector<16x128xf32>
    %92 = arith.addf %89, %91 : vector<16x128xf32>
    %93 = math.tanh %92 : vector<16x128xf32>
    %cst_21 = arith.constant 1.000000e+00 : f32
    %94 = vector.broadcast %cst_21 : f32 to vector<16x128xf32>
    %95 = arith.subf %94, %88 : vector<16x128xf32>
    %96 = arith.mulf %95, %93 : vector<16x128xf32>
    %97 = arith.mulf %88, %68 : vector<16x128xf32>
    %98 = arith.addf %96, %97 : vector<16x128xf32>
    %99 = vector.extract_strided_slice %5 {offsets = [48, 0], sizes = [16, 384], strides = [1, 1]} : vector<128x384xf32> to vector<16x384xf32>
    %cst_22 = arith.constant dense<0.000000e+00> : vector<16x384xf32>
    %100 = tpu.matmul %98, %6, %cst_22 {dimension_numbers = #tpu.dot_dimension_numbers<[1], [0], [0], [1], [0, 0, 1, 1], [], []>} : vector<16x128xf32>, vector<128x384xf32>, vector<16x384xf32> -> vector<16x384xf32>
    %101 = vector.broadcast %7 : vector<1x384xf32> to vector<16x384xf32>
    %102 = arith.addf %100, %101 : vector<16x384xf32>
    %103 = vector.extract_strided_slice %99 {offsets = [0, 0], sizes = [16, 128], strides = [1, 1]} : vector<16x384xf32> to vector<16x128xf32>
    %104 = vector.extract_strided_slice %102 {offsets = [0, 0], sizes = [16, 128], strides = [1, 1]} : vector<16x384xf32> to vector<16x128xf32>
    %105 = arith.addf %103, %104 : vector<16x128xf32>
    %106 = arith.negf %105 : vector<16x128xf32>
    %107 = math.exp %106 : vector<16x128xf32>
    %cst_23 = arith.constant 1.000000e+00 : f32
    %108 = vector.broadcast %cst_23 : f32 to vector<16x128xf32>
    %109 = arith.addf %108, %107 : vector<16x128xf32>
    %110 = arith.divf %108, %109 : vector<16x128xf32>
    %111 = vector.extract_strided_slice %99 {offsets = [0, 128], sizes = [16, 128], strides = [1, 1]} : vector<16x384xf32> to vector<16x128xf32>
    %112 = vector.extract_strided_slice %102 {offsets = [0, 128], sizes = [16, 128], strides = [1, 1]} : vector<16x384xf32> to vector<16x128xf32>
    %113 = arith.addf %111, %112 : vector<16x128xf32>
    %114 = arith.negf %113 : vector<16x128xf32>
    %115 = math.exp %114 : vector<16x128xf32>
    %cst_24 = arith.constant 1.000000e+00 : f32
    %116 = vector.broadcast %cst_24 : f32 to vector<16x128xf32>
    %117 = arith.addf %116, %115 : vector<16x128xf32>
    %118 = arith.divf %116, %117 : vector<16x128xf32>
    %119 = vector.extract_strided_slice %99 {offsets = [0, 256], sizes = [16, 128], strides = [1, 1]} : vector<16x384xf32> to vector<16x128xf32>
    %120 = vector.extract_strided_slice %102 {offsets = [0, 256], sizes = [16, 128], strides = [1, 1]} : vector<16x384xf32> to vector<16x128xf32>
    %121 = arith.mulf %110, %120 : vector<16x128xf32>
    %122 = arith.addf %119, %121 : vector<16x128xf32>
    %123 = math.tanh %122 : vector<16x128xf32>
    %cst_25 = arith.constant 1.000000e+00 : f32
    %124 = vector.broadcast %cst_25 : f32 to vector<16x128xf32>
    %125 = arith.subf %124, %118 : vector<16x128xf32>
    %126 = arith.mulf %125, %123 : vector<16x128xf32>
    %127 = arith.mulf %118, %98 : vector<16x128xf32>
    %128 = arith.addf %126, %127 : vector<16x128xf32>
    %129 = vector.extract_strided_slice %5 {offsets = [64, 0], sizes = [16, 384], strides = [1, 1]} : vector<128x384xf32> to vector<16x384xf32>
    %cst_26 = arith.constant dense<0.000000e+00> : vector<16x384xf32>
    %130 = tpu.matmul %128, %6, %cst_26 {dimension_numbers = #tpu.dot_dimension_numbers<[1], [0], [0], [1], [0, 0, 1, 1], [], []>} : vector<16x128xf32>, vector<128x384xf32>, vector<16x384xf32> -> vector<16x384xf32>
    %131 = vector.broadcast %7 : vector<1x384xf32> to vector<16x384xf32>
    %132 = arith.addf %130, %131 : vector<16x384xf32>
    %133 = vector.extract_strided_slice %129 {offsets = [0, 0], sizes = [16, 128], strides = [1, 1]} : vector<16x384xf32> to vector<16x128xf32>
    %134 = vector.extract_strided_slice %132 {offsets = [0, 0], sizes = [16, 128], strides = [1, 1]} : vector<16x384xf32> to vector<16x128xf32>
    %135 = arith.addf %133, %134 : vector<16x128xf32>
    %136 = arith.negf %135 : vector<16x128xf32>
    %137 = math.exp %136 : vector<16x128xf32>
    %cst_27 = arith.constant 1.000000e+00 : f32
    %138 = vector.broadcast %cst_27 : f32 to vector<16x128xf32>
    %139 = arith.addf %138, %137 : vector<16x128xf32>
    %140 = arith.divf %138, %139 : vector<16x128xf32>
    %141 = vector.extract_strided_slice %129 {offsets = [0, 128], sizes = [16, 128], strides = [1, 1]} : vector<16x384xf32> to vector<16x128xf32>
    %142 = vector.extract_strided_slice %132 {offsets = [0, 128], sizes = [16, 128], strides = [1, 1]} : vector<16x384xf32> to vector<16x128xf32>
    %143 = arith.addf %141, %142 : vector<16x128xf32>
    %144 = arith.negf %143 : vector<16x128xf32>
    %145 = math.exp %144 : vector<16x128xf32>
    %cst_28 = arith.constant 1.000000e+00 : f32
    %146 = vector.broadcast %cst_28 : f32 to vector<16x128xf32>
    %147 = arith.addf %146, %145 : vector<16x128xf32>
    %148 = arith.divf %146, %147 : vector<16x128xf32>
    %149 = vector.extract_strided_slice %129 {offsets = [0, 256], sizes = [16, 128], strides = [1, 1]} : vector<16x384xf32> to vector<16x128xf32>
    %150 = vector.extract_strided_slice %132 {offsets = [0, 256], sizes = [16, 128], strides = [1, 1]} : vector<16x384xf32> to vector<16x128xf32>
    %151 = arith.mulf %140, %150 : vector<16x128xf32>
    %152 = arith.addf %149, %151 : vector<16x128xf32>
    %153 = math.tanh %152 : vector<16x128xf32>
    %cst_29 = arith.constant 1.000000e+00 : f32
    %154 = vector.broadcast %cst_29 : f32 to vector<16x128xf32>
    %155 = arith.subf %154, %148 : vector<16x128xf32>
    %156 = arith.mulf %155, %153 : vector<16x128xf32>
    %157 = arith.mulf %148, %128 : vector<16x128xf32>
    %158 = arith.addf %156, %157 : vector<16x128xf32>
    %159 = vector.extract_strided_slice %5 {offsets = [80, 0], sizes = [16, 384], strides = [1, 1]} : vector<128x384xf32> to vector<16x384xf32>
    %cst_30 = arith.constant dense<0.000000e+00> : vector<16x384xf32>
    %160 = tpu.matmul %158, %6, %cst_30 {dimension_numbers = #tpu.dot_dimension_numbers<[1], [0], [0], [1], [0, 0, 1, 1], [], []>} : vector<16x128xf32>, vector<128x384xf32>, vector<16x384xf32> -> vector<16x384xf32>
    %161 = vector.broadcast %7 : vector<1x384xf32> to vector<16x384xf32>
    %162 = arith.addf %160, %161 : vector<16x384xf32>
    %163 = vector.extract_strided_slice %159 {offsets = [0, 0], sizes = [16, 128], strides = [1, 1]} : vector<16x384xf32> to vector<16x128xf32>
    %164 = vector.extract_strided_slice %162 {offsets = [0, 0], sizes = [16, 128], strides = [1, 1]} : vector<16x384xf32> to vector<16x128xf32>
    %165 = arith.addf %163, %164 : vector<16x128xf32>
    %166 = arith.negf %165 : vector<16x128xf32>
    %167 = math.exp %166 : vector<16x128xf32>
    %cst_31 = arith.constant 1.000000e+00 : f32
    %168 = vector.broadcast %cst_31 : f32 to vector<16x128xf32>
    %169 = arith.addf %168, %167 : vector<16x128xf32>
    %170 = arith.divf %168, %169 : vector<16x128xf32>
    %171 = vector.extract_strided_slice %159 {offsets = [0, 128], sizes = [16, 128], strides = [1, 1]} : vector<16x384xf32> to vector<16x128xf32>
    %172 = vector.extract_strided_slice %162 {offsets = [0, 128], sizes = [16, 128], strides = [1, 1]} : vector<16x384xf32> to vector<16x128xf32>
    %173 = arith.addf %171, %172 : vector<16x128xf32>
    %174 = arith.negf %173 : vector<16x128xf32>
    %175 = math.exp %174 : vector<16x128xf32>
    %cst_32 = arith.constant 1.000000e+00 : f32
    %176 = vector.broadcast %cst_32 : f32 to vector<16x128xf32>
    %177 = arith.addf %176, %175 : vector<16x128xf32>
    %178 = arith.divf %176, %177 : vector<16x128xf32>
    %179 = vector.extract_strided_slice %159 {offsets = [0, 256], sizes = [16, 128], strides = [1, 1]} : vector<16x384xf32> to vector<16x128xf32>
    %180 = vector.extract_strided_slice %162 {offsets = [0, 256], sizes = [16, 128], strides = [1, 1]} : vector<16x384xf32> to vector<16x128xf32>
    %181 = arith.mulf %170, %180 : vector<16x128xf32>
    %182 = arith.addf %179, %181 : vector<16x128xf32>
    %183 = math.tanh %182 : vector<16x128xf32>
    %cst_33 = arith.constant 1.000000e+00 : f32
    %184 = vector.broadcast %cst_33 : f32 to vector<16x128xf32>
    %185 = arith.subf %184, %178 : vector<16x128xf32>
    %186 = arith.mulf %185, %183 : vector<16x128xf32>
    %187 = arith.mulf %178, %158 : vector<16x128xf32>
    %188 = arith.addf %186, %187 : vector<16x128xf32>
    %189 = vector.extract_strided_slice %5 {offsets = [96, 0], sizes = [16, 384], strides = [1, 1]} : vector<128x384xf32> to vector<16x384xf32>
    %cst_34 = arith.constant dense<0.000000e+00> : vector<16x384xf32>
    %190 = tpu.matmul %188, %6, %cst_34 {dimension_numbers = #tpu.dot_dimension_numbers<[1], [0], [0], [1], [0, 0, 1, 1], [], []>} : vector<16x128xf32>, vector<128x384xf32>, vector<16x384xf32> -> vector<16x384xf32>
    %191 = vector.broadcast %7 : vector<1x384xf32> to vector<16x384xf32>
    %192 = arith.addf %190, %191 : vector<16x384xf32>
    %193 = vector.extract_strided_slice %189 {offsets = [0, 0], sizes = [16, 128], strides = [1, 1]} : vector<16x384xf32> to vector<16x128xf32>
    %194 = vector.extract_strided_slice %192 {offsets = [0, 0], sizes = [16, 128], strides = [1, 1]} : vector<16x384xf32> to vector<16x128xf32>
    %195 = arith.addf %193, %194 : vector<16x128xf32>
    %196 = arith.negf %195 : vector<16x128xf32>
    %197 = math.exp %196 : vector<16x128xf32>
    %cst_35 = arith.constant 1.000000e+00 : f32
    %198 = vector.broadcast %cst_35 : f32 to vector<16x128xf32>
    %199 = arith.addf %198, %197 : vector<16x128xf32>
    %200 = arith.divf %198, %199 : vector<16x128xf32>
    %201 = vector.extract_strided_slice %189 {offsets = [0, 128], sizes = [16, 128], strides = [1, 1]} : vector<16x384xf32> to vector<16x128xf32>
    %202 = vector.extract_strided_slice %192 {offsets = [0, 128], sizes = [16, 128], strides = [1, 1]} : vector<16x384xf32> to vector<16x128xf32>
    %203 = arith.addf %201, %202 : vector<16x128xf32>
    %204 = arith.negf %203 : vector<16x128xf32>
    %205 = math.exp %204 : vector<16x128xf32>
    %cst_36 = arith.constant 1.000000e+00 : f32
    %206 = vector.broadcast %cst_36 : f32 to vector<16x128xf32>
    %207 = arith.addf %206, %205 : vector<16x128xf32>
    %208 = arith.divf %206, %207 : vector<16x128xf32>
    %209 = vector.extract_strided_slice %189 {offsets = [0, 256], sizes = [16, 128], strides = [1, 1]} : vector<16x384xf32> to vector<16x128xf32>
    %210 = vector.extract_strided_slice %192 {offsets = [0, 256], sizes = [16, 128], strides = [1, 1]} : vector<16x384xf32> to vector<16x128xf32>
    %211 = arith.mulf %200, %210 : vector<16x128xf32>
    %212 = arith.addf %209, %211 : vector<16x128xf32>
    %213 = math.tanh %212 : vector<16x128xf32>
    %cst_37 = arith.constant 1.000000e+00 : f32
    %214 = vector.broadcast %cst_37 : f32 to vector<16x128xf32>
    %215 = arith.subf %214, %208 : vector<16x128xf32>
    %216 = arith.mulf %215, %213 : vector<16x128xf32>
    %217 = arith.mulf %208, %188 : vector<16x128xf32>
    %218 = arith.addf %216, %217 : vector<16x128xf32>
    %219 = vector.extract_strided_slice %5 {offsets = [112, 0], sizes = [16, 384], strides = [1, 1]} : vector<128x384xf32> to vector<16x384xf32>
    %cst_38 = arith.constant dense<0.000000e+00> : vector<16x384xf32>
    %220 = tpu.matmul %218, %6, %cst_38 {dimension_numbers = #tpu.dot_dimension_numbers<[1], [0], [0], [1], [0, 0, 1, 1], [], []>} : vector<16x128xf32>, vector<128x384xf32>, vector<16x384xf32> -> vector<16x384xf32>
    %221 = vector.broadcast %7 : vector<1x384xf32> to vector<16x384xf32>
    %222 = arith.addf %220, %221 : vector<16x384xf32>
    %223 = vector.extract_strided_slice %219 {offsets = [0, 0], sizes = [16, 128], strides = [1, 1]} : vector<16x384xf32> to vector<16x128xf32>
    %224 = vector.extract_strided_slice %222 {offsets = [0, 0], sizes = [16, 128], strides = [1, 1]} : vector<16x384xf32> to vector<16x128xf32>
    %225 = arith.addf %223, %224 : vector<16x128xf32>
    %226 = arith.negf %225 : vector<16x128xf32>
    %227 = math.exp %226 : vector<16x128xf32>
    %cst_39 = arith.constant 1.000000e+00 : f32
    %228 = vector.broadcast %cst_39 : f32 to vector<16x128xf32>
    %229 = arith.addf %228, %227 : vector<16x128xf32>
    %230 = arith.divf %228, %229 : vector<16x128xf32>
    %231 = vector.extract_strided_slice %219 {offsets = [0, 128], sizes = [16, 128], strides = [1, 1]} : vector<16x384xf32> to vector<16x128xf32>
    %232 = vector.extract_strided_slice %222 {offsets = [0, 128], sizes = [16, 128], strides = [1, 1]} : vector<16x384xf32> to vector<16x128xf32>
    %233 = arith.addf %231, %232 : vector<16x128xf32>
    %234 = arith.negf %233 : vector<16x128xf32>
    %235 = math.exp %234 : vector<16x128xf32>
    %cst_40 = arith.constant 1.000000e+00 : f32
    %236 = vector.broadcast %cst_40 : f32 to vector<16x128xf32>
    %237 = arith.addf %236, %235 : vector<16x128xf32>
    %238 = arith.divf %236, %237 : vector<16x128xf32>
    %239 = vector.extract_strided_slice %219 {offsets = [0, 256], sizes = [16, 128], strides = [1, 1]} : vector<16x384xf32> to vector<16x128xf32>
    %240 = vector.extract_strided_slice %222 {offsets = [0, 256], sizes = [16, 128], strides = [1, 1]} : vector<16x384xf32> to vector<16x128xf32>
    %241 = arith.mulf %230, %240 : vector<16x128xf32>
    %242 = arith.addf %239, %241 : vector<16x128xf32>
    %243 = math.tanh %242 : vector<16x128xf32>
    %cst_41 = arith.constant 1.000000e+00 : f32
    %244 = vector.broadcast %cst_41 : f32 to vector<16x128xf32>
    %245 = arith.subf %244, %238 : vector<16x128xf32>
    %246 = arith.mulf %245, %243 : vector<16x128xf32>
    %247 = arith.mulf %238, %218 : vector<16x128xf32>
    %248 = arith.addf %246, %247 : vector<16x128xf32>
    %c0_42 = arith.constant 0 : index
    %c0_43 = arith.constant 0 : index
    %249 = vector.load %arg7[%c0_42, %c0_43] : memref<16x128xf32, #tpu.memory_space<vmem>>, vector<16x128xf32>
    %250 = vector.extract_strided_slice %249 {offsets = [0, 0], sizes = [16, 1], strides = [1, 1]} : vector<16x128xf32> to vector<16x1xf32>
    %cst_44 = arith.constant 1.000000e+00 : f32
    %251 = vector.broadcast %cst_44 : f32 to vector<16x1xf32>
    %252 = arith.cmpf oeq, %250, %251 : vector<16x1xf32>
    %cst_45 = arith.constant dense<true> : vector<16x1xi1>
    %253 = arith.xori %252, %cst_45 : vector<16x1xi1>
    %254 = vector.extract_strided_slice %249 {offsets = [0, 5], sizes = [16, 1], strides = [1, 1]} : vector<16x128xf32> to vector<16x1xf32>
    %cst_46 = arith.constant 1.000000e+00 : f32
    %255 = vector.broadcast %cst_46 : f32 to vector<16x1xf32>
    %256 = arith.cmpf oeq, %254, %255 : vector<16x1xf32>
    %257 = arith.andi %253, %256 : vector<16x1xi1>
    %258 = tpu.iota {dimensions = array<i32: 1>} : vector<1x128xi32>
    %c26_i32 = arith.constant 26 : i32
    %259 = vector.broadcast %c26_i32 : i32 to vector<1x128xi32>
    %260 = arith.cmpi slt, %258, %259 : vector<1x128xi32>
    %261 = arith.extui %260 : vector<1x128xi1> to vector<1x128xi32>
    %262 = arith.sitofp %261 : vector<1x128xi32> to vector<1x128xf32>
    %c26_i32_47 = arith.constant 26 : i32
    %263 = vector.broadcast %c26_i32_47 : i32 to vector<1x128xi32>
    %264 = arith.cmpi sge, %258, %263 : vector<1x128xi32>
    %c52_i32 = arith.constant 52 : i32
    %265 = vector.broadcast %c52_i32 : i32 to vector<1x128xi32>
    %266 = arith.cmpi slt, %258, %265 : vector<1x128xi32>
    %267 = arith.andi %264, %266 : vector<1x128xi1>
    %268 = arith.extui %267 : vector<1x128xi1> to vector<1x128xi32>
    %269 = arith.sitofp %268 : vector<1x128xi32> to vector<1x128xf32>
    %cst_48 = arith.constant 0.000000e+00 : f32
    %270 = vector.shape_cast %257 : vector<16x1xi1> to vector<16x1xi1>
    %271 = vector.broadcast %270 : vector<16x1xi1> to vector<16x128xi1>
    %272 = vector.shape_cast %269 : vector<1x128xf32> to vector<1x128xf32>
    %273 = vector.broadcast %272 : vector<1x128xf32> to vector<16x128xf32>
    %274 = vector.broadcast %cst_48 : f32 to vector<16x128xf32>
    %275 = arith.select %271, %273, %274 : vector<16x128xi1>, vector<16x128xf32>
    %276 = vector.shape_cast %252 : vector<16x1xi1> to vector<16x1xi1>
    %277 = vector.broadcast %276 : vector<16x1xi1> to vector<16x128xi1>
    %278 = vector.shape_cast %262 : vector<1x128xf32> to vector<1x128xf32>
    %279 = vector.broadcast %278 : vector<1x128xf32> to vector<16x128xf32>
    %280 = arith.select %277, %279, %275 : vector<16x128xi1>, vector<16x128xf32>
    %281 = arith.mulf %248, %280 : vector<16x128xf32>
    %c0_49 = arith.constant 0 : index
    %c0_50 = arith.constant 0 : index
    %282 = vector.load %arg6[%c0_49, %c0_50] : memref<128x128xf32, #tpu.memory_space<vmem>>, vector<128x128xf32>
    %cst_51 = arith.constant dense<0.000000e+00> : vector<16x128xf32>
    %283 = tpu.matmul %281, %282, %cst_51 {dimension_numbers = #tpu.dot_dimension_numbers<[1], [0], [0], [1], [0, 0, 1, 1], [], []>} : vector<16x128xf32>, vector<128x128xf32>, vector<16x128xf32> -> vector<16x128xf32>
    %284 = arith.addf %249, %283 : vector<16x128xf32>
    %c0_52 = arith.constant 0 : index
    %c0_53 = arith.constant 0 : index
    %c0_54 = arith.constant 0 : index
    %285 = vector.load %arg8[%c0_52, %c0_53, %c0_54] : memref<2x16x16xf32, #tpu.memory_space<vmem>>, vector<2x16x16xf32>
    %286 = vector.extract_strided_slice %285 {offsets = [0, 0, 0], sizes = [1, 16, 16], strides = [1, 1, 1]} : vector<2x16x16xf32> to vector<1x16x16xf32>
    %287 = vector.shape_cast %286 : vector<1x16x16xf32> to vector<16x16xf32>
    %288 = vector.shape_cast %287 : vector<16x16xf32> to vector<16x16x1xf32>
    %cst_55 = arith.constant 5.000000e-01 : f32
    %289 = vector.broadcast %cst_55 : f32 to vector<16x16x1xf32>
    %290 = arith.cmpf ogt, %288, %289 : vector<16x16x1xf32>
    %291 = vector.extract_strided_slice %285 {offsets = [1, 0, 0], sizes = [1, 16, 16], strides = [1, 1, 1]} : vector<2x16x16xf32> to vector<1x16x16xf32>
    %292 = vector.shape_cast %291 : vector<1x16x16xf32> to vector<16x16xf32>
    %293 = vector.shape_cast %292 : vector<16x16xf32> to vector<16x16x1xf32>
    %cst_56 = arith.constant 5.000000e-01 : f32
    %294 = vector.broadcast %cst_56 : f32 to vector<16x16x1xf32>
    %295 = arith.cmpf ogt, %293, %294 : vector<16x16x1xf32>
    %cst_57 = arith.constant dense<0xFF800000> : vector<16x16xf32>
    %296 = vector.multi_reduction <maximumf>, %285, %cst_57 [0] : vector<2x16x16xf32> to vector<16x16xf32>
    %cst_58 = arith.constant dense<0xFF800000> : vector<16xf32>
    %297 = vector.multi_reduction <maximumf>, %296, %cst_58 [1] : vector<16x16xf32> to vector<16xf32>
    %298 = vector.shape_cast %297 : vector<16xf32> to vector<16x1xf32>
    %cst_59 = arith.constant 5.000000e-01 : f32
    %299 = vector.broadcast %cst_59 : f32 to vector<16x1xf32>
    %300 = arith.cmpf ogt, %298, %299 : vector<16x1xf32>
    %c0_60 = arith.constant 0 : index
    %c0_61 = arith.constant 0 : index
    %c0_62 = arith.constant 0 : index
    %301 = vector.load %arg9[%c0_60, %c0_61, %c0_62] : memref<6x128x256xf32, #tpu.memory_space<vmem>>, vector<1x128x256xf32>
    %302 = vector.shape_cast %301 : vector<1x128x256xf32> to vector<128x256xf32>
    %cst_63 = arith.constant dense<0.000000e+00> : vector<16x256xf32>
    %303 = tpu.matmul %284, %302, %cst_63 {dimension_numbers = #tpu.dot_dimension_numbers<[1], [0], [0], [1], [0, 0, 1, 1], [], []>} : vector<16x128xf32>, vector<128x256xf32>, vector<16x256xf32> -> vector<16x256xf32>
    %cst_64 = arith.constant -1.000000e+30 : f32
    %304 = vector.broadcast %cst_64 : f32 to vector<16x128xf32>
    %305 = vector.extract_strided_slice %303 {offsets = [0, 0], sizes = [16, 128], strides = [1, 1]} : vector<16x256xf32> to vector<16x128xf32>
    %306 = vector.shape_cast %305 : vector<16x128xf32> to vector<1x16x128xf32>
    %cst_65 = arith.constant -1.000000e+30 : f32
    %307 = vector.shape_cast %290 : vector<16x16x1xi1> to vector<16x16x1xi1>
    %308 = vector.broadcast %307 : vector<16x16x1xi1> to vector<16x16x128xi1>
    %309 = vector.shape_cast %306 : vector<1x16x128xf32> to vector<1x16x128xf32>
    %310 = vector.broadcast %309 : vector<1x16x128xf32> to vector<16x16x128xf32>
    %311 = vector.broadcast %cst_65 : f32 to vector<16x16x128xf32>
    %312 = arith.select %308, %310, %311 : vector<16x16x128xi1>, vector<16x16x128xf32>
    %cst_66 = arith.constant dense<0xFF800000> : vector<16x128xf32>
    %313 = vector.multi_reduction <maximumf>, %312, %cst_66 [1] : vector<16x16x128xf32> to vector<16x128xf32>
    %314 = arith.maximumf %304, %313 : vector<16x128xf32>
    %315 = vector.extract_strided_slice %303 {offsets = [0, 128], sizes = [16, 128], strides = [1, 1]} : vector<16x256xf32> to vector<16x128xf32>
    %316 = vector.shape_cast %315 : vector<16x128xf32> to vector<1x16x128xf32>
    %cst_67 = arith.constant -1.000000e+30 : f32
    %317 = vector.shape_cast %295 : vector<16x16x1xi1> to vector<16x16x1xi1>
    %318 = vector.broadcast %317 : vector<16x16x1xi1> to vector<16x16x128xi1>
    %319 = vector.shape_cast %316 : vector<1x16x128xf32> to vector<1x16x128xf32>
    %320 = vector.broadcast %319 : vector<1x16x128xf32> to vector<16x16x128xf32>
    %321 = vector.broadcast %cst_67 : f32 to vector<16x16x128xf32>
    %322 = arith.select %318, %320, %321 : vector<16x16x128xi1>, vector<16x16x128xf32>
    %cst_68 = arith.constant dense<0xFF800000> : vector<16x128xf32>
    %323 = vector.multi_reduction <maximumf>, %322, %cst_68 [1] : vector<16x16x128xf32> to vector<16x128xf32>
    %324 = arith.maximumf %314, %323 : vector<16x128xf32>
    %cst_69 = arith.constant 0.000000e+00 : f32
    %325 = vector.shape_cast %300 : vector<16x1xi1> to vector<16x1xi1>
    %326 = vector.broadcast %325 : vector<16x1xi1> to vector<16x128xi1>
    %327 = vector.broadcast %cst_69 : f32 to vector<16x128xf32>
    %328 = arith.select %326, %324, %327 : vector<16x128xi1>, vector<16x128xf32>
    %c0_70 = arith.constant 0 : index
    %c0_71 = arith.constant 0 : index
    %c0_72 = arith.constant 0 : index
    %329 = vector.load %arg10[%c0_70, %c0_71, %c0_72] : memref<6x128x128xf32, #tpu.memory_space<vmem>>, vector<1x128x128xf32>
    %330 = vector.shape_cast %329 : vector<1x128x128xf32> to vector<128x128xf32>
    %cst_73 = arith.constant dense<0.000000e+00> : vector<16x128xf32>
    %331 = tpu.matmul %284, %330, %cst_73 {dimension_numbers = #tpu.dot_dimension_numbers<[1], [0], [0], [1], [0, 0, 1, 1], [], []>} : vector<16x128xf32>, vector<128x128xf32>, vector<16x128xf32> -> vector<16x128xf32>
    %c0_74 = arith.constant 0 : index
    %c0_75 = arith.constant 0 : index
    %c0_76 = arith.constant 0 : index
    %332 = vector.load %arg11[%c0_74, %c0_75, %c0_76] : memref<6x128x128xf32, #tpu.memory_space<vmem>>, vector<1x128x128xf32>
    %333 = vector.shape_cast %332 : vector<1x128x128xf32> to vector<128x128xf32>
    %cst_77 = arith.constant dense<0.000000e+00> : vector<16x128xf32>
    %334 = tpu.matmul %328, %333, %cst_77 {dimension_numbers = #tpu.dot_dimension_numbers<[1], [0], [0], [1], [0, 0, 1, 1], [], []>} : vector<16x128xf32>, vector<128x128xf32>, vector<16x128xf32> -> vector<16x128xf32>
    %335 = arith.addf %331, %334 : vector<16x128xf32>
    %c0_78 = arith.constant 0 : index
    %c0_79 = arith.constant 0 : index
    %c0_80 = arith.constant 0 : index
    %336 = vector.load %arg12[%c0_78, %c0_79, %c0_80] : memref<6x1x128xf32, #tpu.memory_space<vmem>>, vector<1x1x128xf32>
    %337 = vector.shape_cast %336 : vector<1x1x128xf32> to vector<1x128xf32>
    %338 = vector.broadcast %337 : vector<1x128xf32> to vector<16x128xf32>
    %339 = arith.addf %335, %338 : vector<16x128xf32>
    %c1 = arith.constant 1 : index
    %c0_81 = arith.constant 0 : index
    %c0_82 = arith.constant 0 : index
    %340 = vector.load %arg9[%c1, %c0_81, %c0_82] : memref<6x128x256xf32, #tpu.memory_space<vmem>>, vector<1x128x256xf32>
    %341 = vector.shape_cast %340 : vector<1x128x256xf32> to vector<128x256xf32>
    %cst_83 = arith.constant dense<0.000000e+00> : vector<16x256xf32>
    %342 = tpu.matmul %339, %341, %cst_83 {dimension_numbers = #tpu.dot_dimension_numbers<[1], [0], [0], [1], [0, 0, 1, 1], [], []>} : vector<16x128xf32>, vector<128x256xf32>, vector<16x256xf32> -> vector<16x256xf32>
    %cst_84 = arith.constant -1.000000e+30 : f32
    %343 = vector.broadcast %cst_84 : f32 to vector<16x128xf32>
    %344 = vector.extract_strided_slice %342 {offsets = [0, 0], sizes = [16, 128], strides = [1, 1]} : vector<16x256xf32> to vector<16x128xf32>
    %345 = vector.shape_cast %344 : vector<16x128xf32> to vector<1x16x128xf32>
    %cst_85 = arith.constant -1.000000e+30 : f32
    %346 = vector.shape_cast %290 : vector<16x16x1xi1> to vector<16x16x1xi1>
    %347 = vector.broadcast %346 : vector<16x16x1xi1> to vector<16x16x128xi1>
    %348 = vector.shape_cast %345 : vector<1x16x128xf32> to vector<1x16x128xf32>
    %349 = vector.broadcast %348 : vector<1x16x128xf32> to vector<16x16x128xf32>
    %350 = vector.broadcast %cst_85 : f32 to vector<16x16x128xf32>
    %351 = arith.select %347, %349, %350 : vector<16x16x128xi1>, vector<16x16x128xf32>
    %cst_86 = arith.constant dense<0xFF800000> : vector<16x128xf32>
    %352 = vector.multi_reduction <maximumf>, %351, %cst_86 [1] : vector<16x16x128xf32> to vector<16x128xf32>
    %353 = arith.maximumf %343, %352 : vector<16x128xf32>
    %354 = vector.extract_strided_slice %342 {offsets = [0, 128], sizes = [16, 128], strides = [1, 1]} : vector<16x256xf32> to vector<16x128xf32>
    %355 = vector.shape_cast %354 : vector<16x128xf32> to vector<1x16x128xf32>
    %cst_87 = arith.constant -1.000000e+30 : f32
    %356 = vector.shape_cast %295 : vector<16x16x1xi1> to vector<16x16x1xi1>
    %357 = vector.broadcast %356 : vector<16x16x1xi1> to vector<16x16x128xi1>
    %358 = vector.shape_cast %355 : vector<1x16x128xf32> to vector<1x16x128xf32>
    %359 = vector.broadcast %358 : vector<1x16x128xf32> to vector<16x16x128xf32>
    %360 = vector.broadcast %cst_87 : f32 to vector<16x16x128xf32>
    %361 = arith.select %357, %359, %360 : vector<16x16x128xi1>, vector<16x16x128xf32>
    %cst_88 = arith.constant dense<0xFF800000> : vector<16x128xf32>
    %362 = vector.multi_reduction <maximumf>, %361, %cst_88 [1] : vector<16x16x128xf32> to vector<16x128xf32>
    %363 = arith.maximumf %353, %362 : vector<16x128xf32>
    %cst_89 = arith.constant 0.000000e+00 : f32
    %364 = vector.shape_cast %300 : vector<16x1xi1> to vector<16x1xi1>
    %365 = vector.broadcast %364 : vector<16x1xi1> to vector<16x128xi1>
    %366 = vector.broadcast %cst_89 : f32 to vector<16x128xf32>
    %367 = arith.select %365, %363, %366 : vector<16x128xi1>, vector<16x128xf32>
    %c1_90 = arith.constant 1 : index
    %c0_91 = arith.constant 0 : index
    %c0_92 = arith.constant 0 : index
    %368 = vector.load %arg10[%c1_90, %c0_91, %c0_92] : memref<6x128x128xf32, #tpu.memory_space<vmem>>, vector<1x128x128xf32>
    %369 = vector.shape_cast %368 : vector<1x128x128xf32> to vector<128x128xf32>
    %cst_93 = arith.constant dense<0.000000e+00> : vector<16x128xf32>
    %370 = tpu.matmul %339, %369, %cst_93 {dimension_numbers = #tpu.dot_dimension_numbers<[1], [0], [0], [1], [0, 0, 1, 1], [], []>} : vector<16x128xf32>, vector<128x128xf32>, vector<16x128xf32> -> vector<16x128xf32>
    %c1_94 = arith.constant 1 : index
    %c0_95 = arith.constant 0 : index
    %c0_96 = arith.constant 0 : index
    %371 = vector.load %arg11[%c1_94, %c0_95, %c0_96] : memref<6x128x128xf32, #tpu.memory_space<vmem>>, vector<1x128x128xf32>
    %372 = vector.shape_cast %371 : vector<1x128x128xf32> to vector<128x128xf32>
    %cst_97 = arith.constant dense<0.000000e+00> : vector<16x128xf32>
    %373 = tpu.matmul %367, %372, %cst_97 {dimension_numbers = #tpu.dot_dimension_numbers<[1], [0], [0], [1], [0, 0, 1, 1], [], []>} : vector<16x128xf32>, vector<128x128xf32>, vector<16x128xf32> -> vector<16x128xf32>
    %374 = arith.addf %370, %373 : vector<16x128xf32>
    %c1_98 = arith.constant 1 : index
    %c0_99 = arith.constant 0 : index
    %c0_100 = arith.constant 0 : index
    %375 = vector.load %arg12[%c1_98, %c0_99, %c0_100] : memref<6x1x128xf32, #tpu.memory_space<vmem>>, vector<1x1x128xf32>
    %376 = vector.shape_cast %375 : vector<1x1x128xf32> to vector<1x128xf32>
    %377 = vector.broadcast %376 : vector<1x128xf32> to vector<16x128xf32>
    %378 = arith.addf %374, %377 : vector<16x128xf32>
    %c2 = arith.constant 2 : index
    %c0_101 = arith.constant 0 : index
    %c0_102 = arith.constant 0 : index
    %379 = vector.load %arg9[%c2, %c0_101, %c0_102] : memref<6x128x256xf32, #tpu.memory_space<vmem>>, vector<1x128x256xf32>
    %380 = vector.shape_cast %379 : vector<1x128x256xf32> to vector<128x256xf32>
    %cst_103 = arith.constant dense<0.000000e+00> : vector<16x256xf32>
    %381 = tpu.matmul %378, %380, %cst_103 {dimension_numbers = #tpu.dot_dimension_numbers<[1], [0], [0], [1], [0, 0, 1, 1], [], []>} : vector<16x128xf32>, vector<128x256xf32>, vector<16x256xf32> -> vector<16x256xf32>
    %cst_104 = arith.constant -1.000000e+30 : f32
    %382 = vector.broadcast %cst_104 : f32 to vector<16x128xf32>
    %383 = vector.extract_strided_slice %381 {offsets = [0, 0], sizes = [16, 128], strides = [1, 1]} : vector<16x256xf32> to vector<16x128xf32>
    %384 = vector.shape_cast %383 : vector<16x128xf32> to vector<1x16x128xf32>
    %cst_105 = arith.constant -1.000000e+30 : f32
    %385 = vector.shape_cast %290 : vector<16x16x1xi1> to vector<16x16x1xi1>
    %386 = vector.broadcast %385 : vector<16x16x1xi1> to vector<16x16x128xi1>
    %387 = vector.shape_cast %384 : vector<1x16x128xf32> to vector<1x16x128xf32>
    %388 = vector.broadcast %387 : vector<1x16x128xf32> to vector<16x16x128xf32>
    %389 = vector.broadcast %cst_105 : f32 to vector<16x16x128xf32>
    %390 = arith.select %386, %388, %389 : vector<16x16x128xi1>, vector<16x16x128xf32>
    %cst_106 = arith.constant dense<0xFF800000> : vector<16x128xf32>
    %391 = vector.multi_reduction <maximumf>, %390, %cst_106 [1] : vector<16x16x128xf32> to vector<16x128xf32>
    %392 = arith.maximumf %382, %391 : vector<16x128xf32>
    %393 = vector.extract_strided_slice %381 {offsets = [0, 128], sizes = [16, 128], strides = [1, 1]} : vector<16x256xf32> to vector<16x128xf32>
    %394 = vector.shape_cast %393 : vector<16x128xf32> to vector<1x16x128xf32>
    %cst_107 = arith.constant -1.000000e+30 : f32
    %395 = vector.shape_cast %295 : vector<16x16x1xi1> to vector<16x16x1xi1>
    %396 = vector.broadcast %395 : vector<16x16x1xi1> to vector<16x16x128xi1>
    %397 = vector.shape_cast %394 : vector<1x16x128xf32> to vector<1x16x128xf32>
    %398 = vector.broadcast %397 : vector<1x16x128xf32> to vector<16x16x128xf32>
    %399 = vector.broadcast %cst_107 : f32 to vector<16x16x128xf32>
    %400 = arith.select %396, %398, %399 : vector<16x16x128xi1>, vector<16x16x128xf32>
    %cst_108 = arith.constant dense<0xFF800000> : vector<16x128xf32>
    %401 = vector.multi_reduction <maximumf>, %400, %cst_108 [1] : vector<16x16x128xf32> to vector<16x128xf32>
    %402 = arith.maximumf %392, %401 : vector<16x128xf32>
    %cst_109 = arith.constant 0.000000e+00 : f32
    %403 = vector.shape_cast %300 : vector<16x1xi1> to vector<16x1xi1>
    %404 = vector.broadcast %403 : vector<16x1xi1> to vector<16x128xi1>
    %405 = vector.broadcast %cst_109 : f32 to vector<16x128xf32>
    %406 = arith.select %404, %402, %405 : vector<16x128xi1>, vector<16x128xf32>
    %c2_110 = arith.constant 2 : index
    %c0_111 = arith.constant 0 : index
    %c0_112 = arith.constant 0 : index
    %407 = vector.load %arg10[%c2_110, %c0_111, %c0_112] : memref<6x128x128xf32, #tpu.memory_space<vmem>>, vector<1x128x128xf32>
    %408 = vector.shape_cast %407 : vector<1x128x128xf32> to vector<128x128xf32>
    %cst_113 = arith.constant dense<0.000000e+00> : vector<16x128xf32>
    %409 = tpu.matmul %378, %408, %cst_113 {dimension_numbers = #tpu.dot_dimension_numbers<[1], [0], [0], [1], [0, 0, 1, 1], [], []>} : vector<16x128xf32>, vector<128x128xf32>, vector<16x128xf32> -> vector<16x128xf32>
    %c2_114 = arith.constant 2 : index
    %c0_115 = arith.constant 0 : index
    %c0_116 = arith.constant 0 : index
    %410 = vector.load %arg11[%c2_114, %c0_115, %c0_116] : memref<6x128x128xf32, #tpu.memory_space<vmem>>, vector<1x128x128xf32>
    %411 = vector.shape_cast %410 : vector<1x128x128xf32> to vector<128x128xf32>
    %cst_117 = arith.constant dense<0.000000e+00> : vector<16x128xf32>
    %412 = tpu.matmul %406, %411, %cst_117 {dimension_numbers = #tpu.dot_dimension_numbers<[1], [0], [0], [1], [0, 0, 1, 1], [], []>} : vector<16x128xf32>, vector<128x128xf32>, vector<16x128xf32> -> vector<16x128xf32>
    %413 = arith.addf %409, %412 : vector<16x128xf32>
    %c2_118 = arith.constant 2 : index
    %c0_119 = arith.constant 0 : index
    %c0_120 = arith.constant 0 : index
    %414 = vector.load %arg12[%c2_118, %c0_119, %c0_120] : memref<6x1x128xf32, #tpu.memory_space<vmem>>, vector<1x1x128xf32>
    %415 = vector.shape_cast %414 : vector<1x1x128xf32> to vector<1x128xf32>
    %416 = vector.broadcast %415 : vector<1x128xf32> to vector<16x128xf32>
    %417 = arith.addf %413, %416 : vector<16x128xf32>
    %c0_121 = arith.constant 0 : index
    %c0_122 = arith.constant 0 : index
    %c0_123 = arith.constant 0 : index
    %418 = vector.load %arg13[%c0_121, %c0_122, %c0_123] : memref<2x128x256xf32, #tpu.memory_space<vmem>>, vector<1x128x256xf32>
    %419 = vector.shape_cast %418 : vector<1x128x256xf32> to vector<128x256xf32>
    %cst_124 = arith.constant dense<0.000000e+00> : vector<16x256xf32>
    %420 = tpu.matmul %284, %419, %cst_124 {dimension_numbers = #tpu.dot_dimension_numbers<[1], [0], [0], [1], [0, 0, 1, 1], [], []>} : vector<16x128xf32>, vector<128x256xf32>, vector<16x256xf32> -> vector<16x256xf32>
    %c0_125 = arith.constant 0 : index
    %c0_126 = arith.constant 0 : index
    %c0_127 = arith.constant 0 : index
    %421 = vector.load %arg14[%c0_125, %c0_126, %c0_127] : memref<2x128x256xf32, #tpu.memory_space<vmem>>, vector<1x128x256xf32>
    %422 = vector.shape_cast %421 : vector<1x128x256xf32> to vector<128x256xf32>
    %cst_128 = arith.constant dense<0.000000e+00> : vector<16x256xf32>
    %423 = tpu.matmul %417, %422, %cst_128 {dimension_numbers = #tpu.dot_dimension_numbers<[1], [0], [0], [1], [0, 0, 1, 1], [], []>} : vector<16x128xf32>, vector<128x256xf32>, vector<16x256xf32> -> vector<16x256xf32>
    %424 = arith.addf %420, %423 : vector<16x256xf32>
    %cst_129 = arith.constant -1.000000e+30 : f32
    %425 = vector.broadcast %cst_129 : f32 to vector<16x128xf32>
    %426 = vector.extract_strided_slice %424 {offsets = [0, 0], sizes = [16, 128], strides = [1, 1]} : vector<16x256xf32> to vector<16x128xf32>
    %427 = vector.shape_cast %426 : vector<16x128xf32> to vector<1x16x128xf32>
    %cst_130 = arith.constant -1.000000e+30 : f32
    %428 = vector.shape_cast %290 : vector<16x16x1xi1> to vector<16x16x1xi1>
    %429 = vector.broadcast %428 : vector<16x16x1xi1> to vector<16x16x128xi1>
    %430 = vector.shape_cast %427 : vector<1x16x128xf32> to vector<1x16x128xf32>
    %431 = vector.broadcast %430 : vector<1x16x128xf32> to vector<16x16x128xf32>
    %432 = vector.broadcast %cst_130 : f32 to vector<16x16x128xf32>
    %433 = arith.select %429, %431, %432 : vector<16x16x128xi1>, vector<16x16x128xf32>
    %cst_131 = arith.constant dense<0xFF800000> : vector<16x128xf32>
    %434 = vector.multi_reduction <maximumf>, %433, %cst_131 [1] : vector<16x16x128xf32> to vector<16x128xf32>
    %435 = arith.maximumf %425, %434 : vector<16x128xf32>
    %436 = vector.extract_strided_slice %424 {offsets = [0, 128], sizes = [16, 128], strides = [1, 1]} : vector<16x256xf32> to vector<16x128xf32>
    %437 = vector.shape_cast %436 : vector<16x128xf32> to vector<1x16x128xf32>
    %cst_132 = arith.constant -1.000000e+30 : f32
    %438 = vector.shape_cast %295 : vector<16x16x1xi1> to vector<16x16x1xi1>
    %439 = vector.broadcast %438 : vector<16x16x1xi1> to vector<16x16x128xi1>
    %440 = vector.shape_cast %437 : vector<1x16x128xf32> to vector<1x16x128xf32>
    %441 = vector.broadcast %440 : vector<1x16x128xf32> to vector<16x16x128xf32>
    %442 = vector.broadcast %cst_132 : f32 to vector<16x16x128xf32>
    %443 = arith.select %439, %441, %442 : vector<16x16x128xi1>, vector<16x16x128xf32>
    %cst_133 = arith.constant dense<0xFF800000> : vector<16x128xf32>
    %444 = vector.multi_reduction <maximumf>, %443, %cst_133 [1] : vector<16x16x128xf32> to vector<16x128xf32>
    %445 = arith.maximumf %435, %444 : vector<16x128xf32>
    %cst_134 = arith.constant 0.000000e+00 : f32
    %446 = vector.shape_cast %300 : vector<16x1xi1> to vector<16x1xi1>
    %447 = vector.broadcast %446 : vector<16x1xi1> to vector<16x128xi1>
    %448 = vector.broadcast %cst_134 : f32 to vector<16x128xf32>
    %449 = arith.select %447, %445, %448 : vector<16x128xi1>, vector<16x128xf32>
    %c0_135 = arith.constant 0 : index
    %c0_136 = arith.constant 0 : index
    %c0_137 = arith.constant 0 : index
    %450 = vector.load %arg15[%c0_135, %c0_136, %c0_137] : memref<2x128x128xf32, #tpu.memory_space<vmem>>, vector<1x128x128xf32>
    %451 = vector.shape_cast %450 : vector<1x128x128xf32> to vector<128x128xf32>
    %cst_138 = arith.constant dense<0.000000e+00> : vector<16x128xf32>
    %452 = tpu.matmul %284, %451, %cst_138 {dimension_numbers = #tpu.dot_dimension_numbers<[1], [0], [0], [1], [0, 0, 1, 1], [], []>} : vector<16x128xf32>, vector<128x128xf32>, vector<16x128xf32> -> vector<16x128xf32>
    %c0_139 = arith.constant 0 : index
    %c0_140 = arith.constant 0 : index
    %c0_141 = arith.constant 0 : index
    %453 = vector.load %arg16[%c0_139, %c0_140, %c0_141] : memref<2x128x128xf32, #tpu.memory_space<vmem>>, vector<1x128x128xf32>
    %454 = vector.shape_cast %453 : vector<1x128x128xf32> to vector<128x128xf32>
    %cst_142 = arith.constant dense<0.000000e+00> : vector<16x128xf32>
    %455 = tpu.matmul %417, %454, %cst_142 {dimension_numbers = #tpu.dot_dimension_numbers<[1], [0], [0], [1], [0, 0, 1, 1], [], []>} : vector<16x128xf32>, vector<128x128xf32>, vector<16x128xf32> -> vector<16x128xf32>
    %456 = arith.addf %452, %455 : vector<16x128xf32>
    %c0_143 = arith.constant 0 : index
    %c0_144 = arith.constant 0 : index
    %c0_145 = arith.constant 0 : index
    %457 = vector.load %arg17[%c0_143, %c0_144, %c0_145] : memref<2x128x128xf32, #tpu.memory_space<vmem>>, vector<1x128x128xf32>
    %458 = vector.shape_cast %457 : vector<1x128x128xf32> to vector<128x128xf32>
    %cst_146 = arith.constant dense<0.000000e+00> : vector<16x128xf32>
    %459 = tpu.matmul %449, %458, %cst_146 {dimension_numbers = #tpu.dot_dimension_numbers<[1], [0], [0], [1], [0, 0, 1, 1], [], []>} : vector<16x128xf32>, vector<128x128xf32>, vector<16x128xf32> -> vector<16x128xf32>
    %460 = arith.addf %456, %459 : vector<16x128xf32>
    %c0_147 = arith.constant 0 : index
    %c0_148 = arith.constant 0 : index
    %c0_149 = arith.constant 0 : index
    %461 = vector.load %arg18[%c0_147, %c0_148, %c0_149] : memref<2x1x128xf32, #tpu.memory_space<vmem>>, vector<1x1x128xf32>
    %462 = vector.shape_cast %461 : vector<1x1x128xf32> to vector<1x128xf32>
    %463 = vector.broadcast %462 : vector<1x128xf32> to vector<16x128xf32>
    %464 = arith.addf %460, %463 : vector<16x128xf32>
    %465 = math.tanh %464 : vector<16x128xf32>
    %c3 = arith.constant 3 : index
    %c0_150 = arith.constant 0 : index
    %c0_151 = arith.constant 0 : index
    %466 = vector.load %arg9[%c3, %c0_150, %c0_151] : memref<6x128x256xf32, #tpu.memory_space<vmem>>, vector<1x128x256xf32>
    %467 = vector.shape_cast %466 : vector<1x128x256xf32> to vector<128x256xf32>
    %cst_152 = arith.constant dense<0.000000e+00> : vector<16x256xf32>
    %468 = tpu.matmul %465, %467, %cst_152 {dimension_numbers = #tpu.dot_dimension_numbers<[1], [0], [0], [1], [0, 0, 1, 1], [], []>} : vector<16x128xf32>, vector<128x256xf32>, vector<16x256xf32> -> vector<16x256xf32>
    %cst_153 = arith.constant -1.000000e+30 : f32
    %469 = vector.broadcast %cst_153 : f32 to vector<16x128xf32>
    %470 = vector.extract_strided_slice %468 {offsets = [0, 0], sizes = [16, 128], strides = [1, 1]} : vector<16x256xf32> to vector<16x128xf32>
    %471 = vector.shape_cast %470 : vector<16x128xf32> to vector<1x16x128xf32>
    %cst_154 = arith.constant -1.000000e+30 : f32
    %472 = vector.shape_cast %290 : vector<16x16x1xi1> to vector<16x16x1xi1>
    %473 = vector.broadcast %472 : vector<16x16x1xi1> to vector<16x16x128xi1>
    %474 = vector.shape_cast %471 : vector<1x16x128xf32> to vector<1x16x128xf32>
    %475 = vector.broadcast %474 : vector<1x16x128xf32> to vector<16x16x128xf32>
    %476 = vector.broadcast %cst_154 : f32 to vector<16x16x128xf32>
    %477 = arith.select %473, %475, %476 : vector<16x16x128xi1>, vector<16x16x128xf32>
    %cst_155 = arith.constant dense<0xFF800000> : vector<16x128xf32>
    %478 = vector.multi_reduction <maximumf>, %477, %cst_155 [1] : vector<16x16x128xf32> to vector<16x128xf32>
    %479 = arith.maximumf %469, %478 : vector<16x128xf32>
    %480 = vector.extract_strided_slice %468 {offsets = [0, 128], sizes = [16, 128], strides = [1, 1]} : vector<16x256xf32> to vector<16x128xf32>
    %481 = vector.shape_cast %480 : vector<16x128xf32> to vector<1x16x128xf32>
    %cst_156 = arith.constant -1.000000e+30 : f32
    %482 = vector.shape_cast %295 : vector<16x16x1xi1> to vector<16x16x1xi1>
    %483 = vector.broadcast %482 : vector<16x16x1xi1> to vector<16x16x128xi1>
    %484 = vector.shape_cast %481 : vector<1x16x128xf32> to vector<1x16x128xf32>
    %485 = vector.broadcast %484 : vector<1x16x128xf32> to vector<16x16x128xf32>
    %486 = vector.broadcast %cst_156 : f32 to vector<16x16x128xf32>
    %487 = arith.select %483, %485, %486 : vector<16x16x128xi1>, vector<16x16x128xf32>
    %cst_157 = arith.constant dense<0xFF800000> : vector<16x128xf32>
    %488 = vector.multi_reduction <maximumf>, %487, %cst_157 [1] : vector<16x16x128xf32> to vector<16x128xf32>
    %489 = arith.maximumf %479, %488 : vector<16x128xf32>
    %cst_158 = arith.constant 0.000000e+00 : f32
    %490 = vector.shape_cast %300 : vector<16x1xi1> to vector<16x1xi1>
    %491 = vector.broadcast %490 : vector<16x1xi1> to vector<16x128xi1>
    %492 = vector.broadcast %cst_158 : f32 to vector<16x128xf32>
    %493 = arith.select %491, %489, %492 : vector<16x128xi1>, vector<16x128xf32>
    %c3_159 = arith.constant 3 : index
    %c0_160 = arith.constant 0 : index
    %c0_161 = arith.constant 0 : index
    %494 = vector.load %arg10[%c3_159, %c0_160, %c0_161] : memref<6x128x128xf32, #tpu.memory_space<vmem>>, vector<1x128x128xf32>
    %495 = vector.shape_cast %494 : vector<1x128x128xf32> to vector<128x128xf32>
    %cst_162 = arith.constant dense<0.000000e+00> : vector<16x128xf32>
    %496 = tpu.matmul %465, %495, %cst_162 {dimension_numbers = #tpu.dot_dimension_numbers<[1], [0], [0], [1], [0, 0, 1, 1], [], []>} : vector<16x128xf32>, vector<128x128xf32>, vector<16x128xf32> -> vector<16x128xf32>
    %c3_163 = arith.constant 3 : index
    %c0_164 = arith.constant 0 : index
    %c0_165 = arith.constant 0 : index
    %497 = vector.load %arg11[%c3_163, %c0_164, %c0_165] : memref<6x128x128xf32, #tpu.memory_space<vmem>>, vector<1x128x128xf32>
    %498 = vector.shape_cast %497 : vector<1x128x128xf32> to vector<128x128xf32>
    %cst_166 = arith.constant dense<0.000000e+00> : vector<16x128xf32>
    %499 = tpu.matmul %493, %498, %cst_166 {dimension_numbers = #tpu.dot_dimension_numbers<[1], [0], [0], [1], [0, 0, 1, 1], [], []>} : vector<16x128xf32>, vector<128x128xf32>, vector<16x128xf32> -> vector<16x128xf32>
    %500 = arith.addf %496, %499 : vector<16x128xf32>
    %c3_167 = arith.constant 3 : index
    %c0_168 = arith.constant 0 : index
    %c0_169 = arith.constant 0 : index
    %501 = vector.load %arg12[%c3_167, %c0_168, %c0_169] : memref<6x1x128xf32, #tpu.memory_space<vmem>>, vector<1x1x128xf32>
    %502 = vector.shape_cast %501 : vector<1x1x128xf32> to vector<1x128xf32>
    %503 = vector.broadcast %502 : vector<1x128xf32> to vector<16x128xf32>
    %504 = arith.addf %500, %503 : vector<16x128xf32>
    %c4 = arith.constant 4 : index
    %c0_170 = arith.constant 0 : index
    %c0_171 = arith.constant 0 : index
    %505 = vector.load %arg9[%c4, %c0_170, %c0_171] : memref<6x128x256xf32, #tpu.memory_space<vmem>>, vector<1x128x256xf32>
    %506 = vector.shape_cast %505 : vector<1x128x256xf32> to vector<128x256xf32>
    %cst_172 = arith.constant dense<0.000000e+00> : vector<16x256xf32>
    %507 = tpu.matmul %504, %506, %cst_172 {dimension_numbers = #tpu.dot_dimension_numbers<[1], [0], [0], [1], [0, 0, 1, 1], [], []>} : vector<16x128xf32>, vector<128x256xf32>, vector<16x256xf32> -> vector<16x256xf32>
    %cst_173 = arith.constant -1.000000e+30 : f32
    %508 = vector.broadcast %cst_173 : f32 to vector<16x128xf32>
    %509 = vector.extract_strided_slice %507 {offsets = [0, 0], sizes = [16, 128], strides = [1, 1]} : vector<16x256xf32> to vector<16x128xf32>
    %510 = vector.shape_cast %509 : vector<16x128xf32> to vector<1x16x128xf32>
    %cst_174 = arith.constant -1.000000e+30 : f32
    %511 = vector.shape_cast %290 : vector<16x16x1xi1> to vector<16x16x1xi1>
    %512 = vector.broadcast %511 : vector<16x16x1xi1> to vector<16x16x128xi1>
    %513 = vector.shape_cast %510 : vector<1x16x128xf32> to vector<1x16x128xf32>
    %514 = vector.broadcast %513 : vector<1x16x128xf32> to vector<16x16x128xf32>
    %515 = vector.broadcast %cst_174 : f32 to vector<16x16x128xf32>
    %516 = arith.select %512, %514, %515 : vector<16x16x128xi1>, vector<16x16x128xf32>
    %cst_175 = arith.constant dense<0xFF800000> : vector<16x128xf32>
    %517 = vector.multi_reduction <maximumf>, %516, %cst_175 [1] : vector<16x16x128xf32> to vector<16x128xf32>
    %518 = arith.maximumf %508, %517 : vector<16x128xf32>
    %519 = vector.extract_strided_slice %507 {offsets = [0, 128], sizes = [16, 128], strides = [1, 1]} : vector<16x256xf32> to vector<16x128xf32>
    %520 = vector.shape_cast %519 : vector<16x128xf32> to vector<1x16x128xf32>
    %cst_176 = arith.constant -1.000000e+30 : f32
    %521 = vector.shape_cast %295 : vector<16x16x1xi1> to vector<16x16x1xi1>
    %522 = vector.broadcast %521 : vector<16x16x1xi1> to vector<16x16x128xi1>
    %523 = vector.shape_cast %520 : vector<1x16x128xf32> to vector<1x16x128xf32>
    %524 = vector.broadcast %523 : vector<1x16x128xf32> to vector<16x16x128xf32>
    %525 = vector.broadcast %cst_176 : f32 to vector<16x16x128xf32>
    %526 = arith.select %522, %524, %525 : vector<16x16x128xi1>, vector<16x16x128xf32>
    %cst_177 = arith.constant dense<0xFF800000> : vector<16x128xf32>
    %527 = vector.multi_reduction <maximumf>, %526, %cst_177 [1] : vector<16x16x128xf32> to vector<16x128xf32>
    %528 = arith.maximumf %518, %527 : vector<16x128xf32>
    %cst_178 = arith.constant 0.000000e+00 : f32
    %529 = vector.shape_cast %300 : vector<16x1xi1> to vector<16x1xi1>
    %530 = vector.broadcast %529 : vector<16x1xi1> to vector<16x128xi1>
    %531 = vector.broadcast %cst_178 : f32 to vector<16x128xf32>
    %532 = arith.select %530, %528, %531 : vector<16x128xi1>, vector<16x128xf32>
    %c4_179 = arith.constant 4 : index
    %c0_180 = arith.constant 0 : index
    %c0_181 = arith.constant 0 : index
    %533 = vector.load %arg10[%c4_179, %c0_180, %c0_181] : memref<6x128x128xf32, #tpu.memory_space<vmem>>, vector<1x128x128xf32>
    %534 = vector.shape_cast %533 : vector<1x128x128xf32> to vector<128x128xf32>
    %cst_182 = arith.constant dense<0.000000e+00> : vector<16x128xf32>
    %535 = tpu.matmul %504, %534, %cst_182 {dimension_numbers = #tpu.dot_dimension_numbers<[1], [0], [0], [1], [0, 0, 1, 1], [], []>} : vector<16x128xf32>, vector<128x128xf32>, vector<16x128xf32> -> vector<16x128xf32>
    %c4_183 = arith.constant 4 : index
    %c0_184 = arith.constant 0 : index
    %c0_185 = arith.constant 0 : index
    %536 = vector.load %arg11[%c4_183, %c0_184, %c0_185] : memref<6x128x128xf32, #tpu.memory_space<vmem>>, vector<1x128x128xf32>
    %537 = vector.shape_cast %536 : vector<1x128x128xf32> to vector<128x128xf32>
    %cst_186 = arith.constant dense<0.000000e+00> : vector<16x128xf32>
    %538 = tpu.matmul %532, %537, %cst_186 {dimension_numbers = #tpu.dot_dimension_numbers<[1], [0], [0], [1], [0, 0, 1, 1], [], []>} : vector<16x128xf32>, vector<128x128xf32>, vector<16x128xf32> -> vector<16x128xf32>
    %539 = arith.addf %535, %538 : vector<16x128xf32>
    %c4_187 = arith.constant 4 : index
    %c0_188 = arith.constant 0 : index
    %c0_189 = arith.constant 0 : index
    %540 = vector.load %arg12[%c4_187, %c0_188, %c0_189] : memref<6x1x128xf32, #tpu.memory_space<vmem>>, vector<1x1x128xf32>
    %541 = vector.shape_cast %540 : vector<1x1x128xf32> to vector<1x128xf32>
    %542 = vector.broadcast %541 : vector<1x128xf32> to vector<16x128xf32>
    %543 = arith.addf %539, %542 : vector<16x128xf32>
    %c5 = arith.constant 5 : index
    %c0_190 = arith.constant 0 : index
    %c0_191 = arith.constant 0 : index
    %544 = vector.load %arg9[%c5, %c0_190, %c0_191] : memref<6x128x256xf32, #tpu.memory_space<vmem>>, vector<1x128x256xf32>
    %545 = vector.shape_cast %544 : vector<1x128x256xf32> to vector<128x256xf32>
    %cst_192 = arith.constant dense<0.000000e+00> : vector<16x256xf32>
    %546 = tpu.matmul %543, %545, %cst_192 {dimension_numbers = #tpu.dot_dimension_numbers<[1], [0], [0], [1], [0, 0, 1, 1], [], []>} : vector<16x128xf32>, vector<128x256xf32>, vector<16x256xf32> -> vector<16x256xf32>
    %cst_193 = arith.constant -1.000000e+30 : f32
    %547 = vector.broadcast %cst_193 : f32 to vector<16x128xf32>
    %548 = vector.extract_strided_slice %546 {offsets = [0, 0], sizes = [16, 128], strides = [1, 1]} : vector<16x256xf32> to vector<16x128xf32>
    %549 = vector.shape_cast %548 : vector<16x128xf32> to vector<1x16x128xf32>
    %cst_194 = arith.constant -1.000000e+30 : f32
    %550 = vector.shape_cast %290 : vector<16x16x1xi1> to vector<16x16x1xi1>
    %551 = vector.broadcast %550 : vector<16x16x1xi1> to vector<16x16x128xi1>
    %552 = vector.shape_cast %549 : vector<1x16x128xf32> to vector<1x16x128xf32>
    %553 = vector.broadcast %552 : vector<1x16x128xf32> to vector<16x16x128xf32>
    %554 = vector.broadcast %cst_194 : f32 to vector<16x16x128xf32>
    %555 = arith.select %551, %553, %554 : vector<16x16x128xi1>, vector<16x16x128xf32>
    %cst_195 = arith.constant dense<0xFF800000> : vector<16x128xf32>
    %556 = vector.multi_reduction <maximumf>, %555, %cst_195 [1] : vector<16x16x128xf32> to vector<16x128xf32>
    %557 = arith.maximumf %547, %556 : vector<16x128xf32>
    %558 = vector.extract_strided_slice %546 {offsets = [0, 128], sizes = [16, 128], strides = [1, 1]} : vector<16x256xf32> to vector<16x128xf32>
    %559 = vector.shape_cast %558 : vector<16x128xf32> to vector<1x16x128xf32>
    %cst_196 = arith.constant -1.000000e+30 : f32
    %560 = vector.shape_cast %295 : vector<16x16x1xi1> to vector<16x16x1xi1>
    %561 = vector.broadcast %560 : vector<16x16x1xi1> to vector<16x16x128xi1>
    %562 = vector.shape_cast %559 : vector<1x16x128xf32> to vector<1x16x128xf32>
    %563 = vector.broadcast %562 : vector<1x16x128xf32> to vector<16x16x128xf32>
    %564 = vector.broadcast %cst_196 : f32 to vector<16x16x128xf32>
    %565 = arith.select %561, %563, %564 : vector<16x16x128xi1>, vector<16x16x128xf32>
    %cst_197 = arith.constant dense<0xFF800000> : vector<16x128xf32>
    %566 = vector.multi_reduction <maximumf>, %565, %cst_197 [1] : vector<16x16x128xf32> to vector<16x128xf32>
    %567 = arith.maximumf %557, %566 : vector<16x128xf32>
    %cst_198 = arith.constant 0.000000e+00 : f32
    %568 = vector.shape_cast %300 : vector<16x1xi1> to vector<16x1xi1>
    %569 = vector.broadcast %568 : vector<16x1xi1> to vector<16x128xi1>
    %570 = vector.broadcast %cst_198 : f32 to vector<16x128xf32>
    %571 = arith.select %569, %567, %570 : vector<16x128xi1>, vector<16x128xf32>
    %c5_199 = arith.constant 5 : index
    %c0_200 = arith.constant 0 : index
    %c0_201 = arith.constant 0 : index
    %572 = vector.load %arg10[%c5_199, %c0_200, %c0_201] : memref<6x128x128xf32, #tpu.memory_space<vmem>>, vector<1x128x128xf32>
    %573 = vector.shape_cast %572 : vector<1x128x128xf32> to vector<128x128xf32>
    %cst_202 = arith.constant dense<0.000000e+00> : vector<16x128xf32>
    %574 = tpu.matmul %543, %573, %cst_202 {dimension_numbers = #tpu.dot_dimension_numbers<[1], [0], [0], [1], [0, 0, 1, 1], [], []>} : vector<16x128xf32>, vector<128x128xf32>, vector<16x128xf32> -> vector<16x128xf32>
    %c5_203 = arith.constant 5 : index
    %c0_204 = arith.constant 0 : index
    %c0_205 = arith.constant 0 : index
    %575 = vector.load %arg11[%c5_203, %c0_204, %c0_205] : memref<6x128x128xf32, #tpu.memory_space<vmem>>, vector<1x128x128xf32>
    %576 = vector.shape_cast %575 : vector<1x128x128xf32> to vector<128x128xf32>
    %cst_206 = arith.constant dense<0.000000e+00> : vector<16x128xf32>
    %577 = tpu.matmul %571, %576, %cst_206 {dimension_numbers = #tpu.dot_dimension_numbers<[1], [0], [0], [1], [0, 0, 1, 1], [], []>} : vector<16x128xf32>, vector<128x128xf32>, vector<16x128xf32> -> vector<16x128xf32>
    %578 = arith.addf %574, %577 : vector<16x128xf32>
    %c5_207 = arith.constant 5 : index
    %c0_208 = arith.constant 0 : index
    %c0_209 = arith.constant 0 : index
    %579 = vector.load %arg12[%c5_207, %c0_208, %c0_209] : memref<6x1x128xf32, #tpu.memory_space<vmem>>, vector<1x1x128xf32>
    %580 = vector.shape_cast %579 : vector<1x1x128xf32> to vector<1x128xf32>
    %581 = vector.broadcast %580 : vector<1x128xf32> to vector<16x128xf32>
    %582 = arith.addf %578, %581 : vector<16x128xf32>
    %c1_210 = arith.constant 1 : index
    %c0_211 = arith.constant 0 : index
    %c0_212 = arith.constant 0 : index
    %583 = vector.load %arg13[%c1_210, %c0_211, %c0_212] : memref<2x128x256xf32, #tpu.memory_space<vmem>>, vector<1x128x256xf32>
    %584 = vector.shape_cast %583 : vector<1x128x256xf32> to vector<128x256xf32>
    %cst_213 = arith.constant dense<0.000000e+00> : vector<16x256xf32>
    %585 = tpu.matmul %465, %584, %cst_213 {dimension_numbers = #tpu.dot_dimension_numbers<[1], [0], [0], [1], [0, 0, 1, 1], [], []>} : vector<16x128xf32>, vector<128x256xf32>, vector<16x256xf32> -> vector<16x256xf32>
    %c1_214 = arith.constant 1 : index
    %c0_215 = arith.constant 0 : index
    %c0_216 = arith.constant 0 : index
    %586 = vector.load %arg14[%c1_214, %c0_215, %c0_216] : memref<2x128x256xf32, #tpu.memory_space<vmem>>, vector<1x128x256xf32>
    %587 = vector.shape_cast %586 : vector<1x128x256xf32> to vector<128x256xf32>
    %cst_217 = arith.constant dense<0.000000e+00> : vector<16x256xf32>
    %588 = tpu.matmul %582, %587, %cst_217 {dimension_numbers = #tpu.dot_dimension_numbers<[1], [0], [0], [1], [0, 0, 1, 1], [], []>} : vector<16x128xf32>, vector<128x256xf32>, vector<16x256xf32> -> vector<16x256xf32>
    %589 = arith.addf %585, %588 : vector<16x256xf32>
    %cst_218 = arith.constant -1.000000e+30 : f32
    %590 = vector.broadcast %cst_218 : f32 to vector<16x128xf32>
    %591 = vector.extract_strided_slice %589 {offsets = [0, 0], sizes = [16, 128], strides = [1, 1]} : vector<16x256xf32> to vector<16x128xf32>
    %592 = vector.shape_cast %591 : vector<16x128xf32> to vector<1x16x128xf32>
    %cst_219 = arith.constant -1.000000e+30 : f32
    %593 = vector.shape_cast %290 : vector<16x16x1xi1> to vector<16x16x1xi1>
    %594 = vector.broadcast %593 : vector<16x16x1xi1> to vector<16x16x128xi1>
    %595 = vector.shape_cast %592 : vector<1x16x128xf32> to vector<1x16x128xf32>
    %596 = vector.broadcast %595 : vector<1x16x128xf32> to vector<16x16x128xf32>
    %597 = vector.broadcast %cst_219 : f32 to vector<16x16x128xf32>
    %598 = arith.select %594, %596, %597 : vector<16x16x128xi1>, vector<16x16x128xf32>
    %cst_220 = arith.constant dense<0xFF800000> : vector<16x128xf32>
    %599 = vector.multi_reduction <maximumf>, %598, %cst_220 [1] : vector<16x16x128xf32> to vector<16x128xf32>
    %600 = arith.maximumf %590, %599 : vector<16x128xf32>
    %601 = vector.extract_strided_slice %589 {offsets = [0, 128], sizes = [16, 128], strides = [1, 1]} : vector<16x256xf32> to vector<16x128xf32>
    %602 = vector.shape_cast %601 : vector<16x128xf32> to vector<1x16x128xf32>
    %cst_221 = arith.constant -1.000000e+30 : f32
    %603 = vector.shape_cast %295 : vector<16x16x1xi1> to vector<16x16x1xi1>
    %604 = vector.broadcast %603 : vector<16x16x1xi1> to vector<16x16x128xi1>
    %605 = vector.shape_cast %602 : vector<1x16x128xf32> to vector<1x16x128xf32>
    %606 = vector.broadcast %605 : vector<1x16x128xf32> to vector<16x16x128xf32>
    %607 = vector.broadcast %cst_221 : f32 to vector<16x16x128xf32>
    %608 = arith.select %604, %606, %607 : vector<16x16x128xi1>, vector<16x16x128xf32>
    %cst_222 = arith.constant dense<0xFF800000> : vector<16x128xf32>
    %609 = vector.multi_reduction <maximumf>, %608, %cst_222 [1] : vector<16x16x128xf32> to vector<16x128xf32>
    %610 = arith.maximumf %600, %609 : vector<16x128xf32>
    %cst_223 = arith.constant 0.000000e+00 : f32
    %611 = vector.shape_cast %300 : vector<16x1xi1> to vector<16x1xi1>
    %612 = vector.broadcast %611 : vector<16x1xi1> to vector<16x128xi1>
    %613 = vector.broadcast %cst_223 : f32 to vector<16x128xf32>
    %614 = arith.select %612, %610, %613 : vector<16x128xi1>, vector<16x128xf32>
    %c1_224 = arith.constant 1 : index
    %c0_225 = arith.constant 0 : index
    %c0_226 = arith.constant 0 : index
    %615 = vector.load %arg15[%c1_224, %c0_225, %c0_226] : memref<2x128x128xf32, #tpu.memory_space<vmem>>, vector<1x128x128xf32>
    %616 = vector.shape_cast %615 : vector<1x128x128xf32> to vector<128x128xf32>
    %cst_227 = arith.constant dense<0.000000e+00> : vector<16x128xf32>
    %617 = tpu.matmul %465, %616, %cst_227 {dimension_numbers = #tpu.dot_dimension_numbers<[1], [0], [0], [1], [0, 0, 1, 1], [], []>} : vector<16x128xf32>, vector<128x128xf32>, vector<16x128xf32> -> vector<16x128xf32>
    %c1_228 = arith.constant 1 : index
    %c0_229 = arith.constant 0 : index
    %c0_230 = arith.constant 0 : index
    %618 = vector.load %arg16[%c1_228, %c0_229, %c0_230] : memref<2x128x128xf32, #tpu.memory_space<vmem>>, vector<1x128x128xf32>
    %619 = vector.shape_cast %618 : vector<1x128x128xf32> to vector<128x128xf32>
    %cst_231 = arith.constant dense<0.000000e+00> : vector<16x128xf32>
    %620 = tpu.matmul %582, %619, %cst_231 {dimension_numbers = #tpu.dot_dimension_numbers<[1], [0], [0], [1], [0, 0, 1, 1], [], []>} : vector<16x128xf32>, vector<128x128xf32>, vector<16x128xf32> -> vector<16x128xf32>
    %621 = arith.addf %617, %620 : vector<16x128xf32>
    %c1_232 = arith.constant 1 : index
    %c0_233 = arith.constant 0 : index
    %c0_234 = arith.constant 0 : index
    %622 = vector.load %arg17[%c1_232, %c0_233, %c0_234] : memref<2x128x128xf32, #tpu.memory_space<vmem>>, vector<1x128x128xf32>
    %623 = vector.shape_cast %622 : vector<1x128x128xf32> to vector<128x128xf32>
    %cst_235 = arith.constant dense<0.000000e+00> : vector<16x128xf32>
    %624 = tpu.matmul %614, %623, %cst_235 {dimension_numbers = #tpu.dot_dimension_numbers<[1], [0], [0], [1], [0, 0, 1, 1], [], []>} : vector<16x128xf32>, vector<128x128xf32>, vector<16x128xf32> -> vector<16x128xf32>
    %625 = arith.addf %621, %624 : vector<16x128xf32>
    %c1_236 = arith.constant 1 : index
    %c0_237 = arith.constant 0 : index
    %c0_238 = arith.constant 0 : index
    %626 = vector.load %arg18[%c1_236, %c0_237, %c0_238] : memref<2x1x128xf32, #tpu.memory_space<vmem>>, vector<1x1x128xf32>
    %627 = vector.shape_cast %626 : vector<1x1x128xf32> to vector<1x128xf32>
    %628 = vector.broadcast %627 : vector<1x128xf32> to vector<16x128xf32>
    %629 = arith.addf %625, %628 : vector<16x128xf32>
    %630 = math.tanh %629 : vector<16x128xf32>
    %c0_239 = arith.constant 0 : index
    %c0_240 = arith.constant 0 : index
    %631 = vector.load %arg19[%c0_239, %c0_240] : memref<16x128xf32, #tpu.memory_space<vmem>>, vector<16x128xf32>
    tpu.vector_store %arg19[%c0_239, %c0_240], %630 {strides = array<i32>} : memref<16x128xf32, #tpu.memory_space<vmem>>, vector<16x128xf32>,
    return
  }
  func.func @transform_0(%arg0: i32) -> (i32, i32) {
    %c0_i32 = arith.constant 0 : i32
    %c0_i32_0 = arith.constant 0 : i32
    %c0_i32_1 = arith.constant 0 : i32
    return %c0_i32, %c0_i32_0 : i32, i32
  }
  func.func @transform_1(%arg0: i32) -> (i32, i32) {
    %c0_i32 = arith.constant 0 : i32
    %c0_i32_0 = arith.constant 0 : i32
    %c0_i32_1 = arith.constant 0 : i32
    return %c0_i32, %c0_i32_0 : i32, i32
  }
  func.func @transform_2(%arg0: i32) -> (i32, i32) {
    %c0_i32 = arith.constant 0 : i32
    %c0_i32_0 = arith.constant 0 : i32
    %c0_i32_1 = arith.constant 0 : i32
    return %c0_i32, %c0_i32_0 : i32, i32
  }
  func.func @transform_3(%arg0: i32) -> (i32, i32) {
    %c0_i32 = arith.constant 0 : i32
    %c0_i32_0 = arith.constant 0 : i32
    %c0_i32_1 = arith.constant 0 : i32
    return %c0_i32, %c0_i32_0 : i32, i32
  }
  func.func @transform_4(%arg0: i32) -> (i32, i32) {
    %c0_i32 = arith.constant 0 : i32
    %c0_i32_0 = arith.constant 0 : i32
    %c0_i32_1 = arith.constant 0 : i32
    return %c0_i32, %c0_i32_0 : i32, i32
  }
  func.func @transform_5(%arg0: i32) -> (i32, i32) {
    %c0_i32 = arith.constant 0 : i32
    %c0_i32_0 = arith.constant 0 : i32
    %c0_i32_1 = arith.constant 0 : i32
    return %c0_i32, %c0_i32_0 : i32, i32
  }
  func.func @transform_6(%arg0: i32) -> (i32, i32) {
    %c0_i32 = arith.constant 0 : i32
    %c0_i32_0 = arith.constant 0 : i32
    %c0_i32_1 = arith.constant 0 : i32
    return %c0_i32, %c0_i32_0 : i32, i32
  }
  func.func @transform_7(%arg0: i32) -> (i32, i32, i32) {
    %c0_i32 = arith.constant 0 : i32
    %c0_i32_0 = arith.constant 0 : i32
    %c0_i32_1 = arith.constant 0 : i32
    %c0_i32_2 = arith.constant 0 : i32
    return %c0_i32, %c0_i32_0, %c0_i32_1 : i32, i32, i32
  }
  func.func @transform_8(%arg0: i32) -> (i32, i32, i32) {
    %c0_i32 = arith.constant 0 : i32
    %c0_i32_0 = arith.constant 0 : i32
    %c0_i32_1 = arith.constant 0 : i32
    %c0_i32_2 = arith.constant 0 : i32
    return %c0_i32, %c0_i32_0, %c0_i32_1 : i32, i32, i32
  }
  func.func @transform_9(%arg0: i32) -> (i32, i32, i32) {
    %c0_i32 = arith.constant 0 : i32
    %c0_i32_0 = arith.constant 0 : i32
    %c0_i32_1 = arith.constant 0 : i32
    %c0_i32_2 = arith.constant 0 : i32
    return %c0_i32, %c0_i32_0, %c0_i32_1 : i32, i32, i32
  }
  func.func @transform_10(%arg0: i32) -> (i32, i32, i32) {
    %c0_i32 = arith.constant 0 : i32
    %c0_i32_0 = arith.constant 0 : i32
    %c0_i32_1 = arith.constant 0 : i32
    %c0_i32_2 = arith.constant 0 : i32
    return %c0_i32, %c0_i32_0, %c0_i32_1 : i32, i32, i32
  }
  func.func @transform_11(%arg0: i32) -> (i32, i32, i32) {
    %c0_i32 = arith.constant 0 : i32
    %c0_i32_0 = arith.constant 0 : i32
    %c0_i32_1 = arith.constant 0 : i32
    %c0_i32_2 = arith.constant 0 : i32
    return %c0_i32, %c0_i32_0, %c0_i32_1 : i32, i32, i32
  }
  func.func @transform_12(%arg0: i32) -> (i32, i32, i32) {
    %c0_i32 = arith.constant 0 : i32
    %c0_i32_0 = arith.constant 0 : i32
    %c0_i32_1 = arith.constant 0 : i32
    %c0_i32_2 = arith.constant 0 : i32
    return %c0_i32, %c0_i32_0, %c0_i32_1 : i32, i32, i32
  }
  func.func @transform_13(%arg0: i32) -> (i32, i32, i32) {
    %c0_i32 = arith.constant 0 : i32
    %c0_i32_0 = arith.constant 0 : i32
    %c0_i32_1 = arith.constant 0 : i32
    %c0_i32_2 = arith.constant 0 : i32
    return %c0_i32, %c0_i32_0, %c0_i32_1 : i32, i32, i32
  }
  func.func @transform_14(%arg0: i32) -> (i32, i32, i32) {
    %c0_i32 = arith.constant 0 : i32
    %c0_i32_0 = arith.constant 0 : i32
    %c0_i32_1 = arith.constant 0 : i32
    %c0_i32_2 = arith.constant 0 : i32
    return %c0_i32, %c0_i32_0, %c0_i32_1 : i32, i32, i32
  }
  func.func @transform_15(%arg0: i32) -> (i32, i32, i32) {
    %c0_i32 = arith.constant 0 : i32
    %c0_i32_0 = arith.constant 0 : i32
    %c0_i32_1 = arith.constant 0 : i32
    %c0_i32_2 = arith.constant 0 : i32
    return %c0_i32, %c0_i32_0, %c0_i32_1 : i32, i32, i32
  }
  func.func @transform_16(%arg0: i32) -> (i32, i32, i32) {
    %c0_i32 = arith.constant 0 : i32
    %c0_i32_0 = arith.constant 0 : i32
    %c0_i32_1 = arith.constant 0 : i32
    %c0_i32_2 = arith.constant 0 : i32
    return %c0_i32, %c0_i32_0, %c0_i32_1 : i32, i32, i32
  }
  func.func @transform_17(%arg0: i32) -> (i32, i32, i32) {
    %c0_i32 = arith.constant 0 : i32
    %c0_i32_0 = arith.constant 0 : i32
    %c0_i32_1 = arith.constant 0 : i32
    %c0_i32_2 = arith.constant 0 : i32
    return %c0_i32, %c0_i32_0, %c0_i32_1 : i32, i32, i32
  }
  func.func @transform_18(%arg0: i32) -> (i32, i32) {
    %c0_i32 = arith.constant 0 : i32
    %c0_i32_0 = arith.constant 0 : i32
    %c0_i32_1 = arith.constant 0 : i32
    return %c0_i32, %c0_i32_0 : i32, i32
  }
}

</mosaic_0001>

<llo_original>
// kernel: gnn_forward.1
$region0: #{gnn_forward.1}
  #allocation0 [shape = 'u32[]', space=smem, size = 0x4, offset = 0x4, fixed_abs, tag = 'smem constant byte address 0x4 - core index']
  #allocation1 [shape = 'u32[144,128]{1,0:T(1,128)}', space=vmem, size = 0x12000, scoped, tag = 'internal scratch']
  %s0 = inlined_call_operand.vmem [shape: f32[128,8], index: 0, kind: input, shape index: {}]
  %s1 = inlined_call_operand.vmem [shape: f32[8,384], index: 1, kind: input, shape index: {}]
  %s2 = inlined_call_operand.hbm [shape: f32[128,384], index: 2, kind: input, shape index: {}]
  %s3 = inlined_call_operand.vmem [shape: f32[1,384], index: 3, kind: input, shape index: {}]
  %s4 = inlined_call_operand.hbm [shape: f32[1,384], index: 4, kind: input, shape index: {}]
  %s5 = inlined_call_operand.hbm [shape: f32[128,128], index: 5, kind: input, shape index: {}]
  %s6 = inlined_call_operand.vmem [shape: f32[16,128], index: 6, kind: input, shape index: {}]
  %s7 = inlined_call_operand.vmem [shape: f32[2,16,16], index: 7, kind: input, shape index: {}]
  %s8 = inlined_call_operand.vmem [shape: f32[6,128,256], index: 8, kind: input, shape index: {}]
  %s9 = inlined_call_operand.hbm [shape: f32[6,128,128], index: 9, kind: input, shape index: {}]
  %s10 = inlined_call_operand.hbm [shape: f32[6,128,128], index: 10, kind: input, shape index: {}]
  %s11 = inlined_call_operand.hbm [shape: f32[6,1,128], index: 11, kind: input, shape index: {}]
  %s12 = inlined_call_operand.hbm [shape: f32[2,128,256], index: 12, kind: input, shape index: {}]
  %s13 = inlined_call_operand.hbm [shape: f32[2,128,256], index: 13, kind: input, shape index: {}]
  %s14 = inlined_call_operand.hbm [shape: f32[2,128,128], index: 14, kind: input, shape index: {}]
  %s15 = inlined_call_operand.hbm [shape: f32[2,128,128], index: 15, kind: input, shape index: {}]
  %s16 = inlined_call_operand.hbm [shape: f32[2,128,128], index: 16, kind: input, shape index: {}]
  %s17 = inlined_call_operand.vmem [shape: f32[2,1,128], index: 17, kind: input, shape index: {}]
  %s18 = inlined_call_operand.vmem [shape: f32[16,128], index: 18, kind: output, shape index: {}]
  %s19 = sld [smem:[#allocation0]]
  $region126: #{gnn_forward.1} parent=0
    _
  %s21 = ssub.s32 1, %s19
  %s22 = scalar_select 0, %s21, %s19
  $region1: #{gnn_forward.1} parent=0
    #allocation2 [shape = 'u8[196608]{0}', space=vmem, size = 0x30000, scoped, tag = 'input window, operand 2, single buffered']
    #allocation3 [shape = 's32[1]{0}', space=sflag, size = 0x4, scoped, tag = 'scoped memory for gnn_forward.1']
    #allocation4 [shape = 'u8[1536]{0}', space=vmem, size = 0x800, scoped, tag = 'input window, operand 4, single buffered']
    #allocation5 [shape = 's32[1]{0}', space=sflag, size = 0x4, scoped, tag = 'scoped memory for gnn_forward.1']
    #allocation6 [shape = 'u8[65536]{0}', space=vmem, size = 0x10000, scoped, tag = 'input window, operand 5, single buffered']
    #allocation7 [shape = 'u8[393216]{0}', space=vmem, size = 0x60000, scoped, tag = 'input window, operand 9, single buffered']
    #allocation8 [shape = 's32[1]{0}', space=sflag, size = 0x4, scoped, tag = 'scoped memory for gnn_forward.1']
    #allocation9 [shape = 'u8[393216]{0}', space=vmem, size = 0x60000, scoped, tag = 'input window, operand 10, single buffered']
    #allocation10 [shape = 'u8[3072]{0}', space=vmem, size = 0xc00, scoped, tag = 'input window, operand 11, single buffered']
    #allocation11 [shape = 's32[1]{0}', space=sflag, size = 0x4, scoped, tag = 'scoped memory for gnn_forward.1']
    #allocation12 [shape = 'u8[262144]{0}', space=vmem, size = 0x40000, scoped, tag = 'input window, operand 12, single buffered']
    #allocation13 [shape = 'u8[262144]{0}', space=vmem, size = 0x40000, scoped, tag = 'input window, operand 13, single buffered']
    #allocation14 [shape = 's32[1]{0}', space=sflag, size = 0x4, scoped, tag = 'scoped memory for gnn_forward.1']
    #allocation15 [shape = 'u8[131072]{0}', space=vmem, size = 0x20000, scoped, tag = 'input window, operand 14, single buffered']
    #allocation16 [shape = 'u8[131072]{0}', space=vmem, size = 0x20000, scoped, tag = 'input window, operand 15, single buffered']
    #allocation17 [shape = 's32[1]{0}', space=sflag, size = 0x4, scoped, tag = 'scoped memory for gnn_forward.1']
    #allocation18 [shape = 'u8[131072]{0}', space=vmem, size = 0x20000, scoped, tag = 'input window, operand 16, single buffered']
    %23 = vsyncpa [#allocation3], 0
    %24 = vsyncpa [#allocation5], 0
    %25 = vsyncpa [#allocation8], 0
    %26 = vsyncpa [#allocation11], 0
    %27 = vsyncpa [#allocation14], 0
    %28 = vsyncpa [#allocation17], 0
    // Predicated region
    $region2: #{gnn_forward.1} parent=1 // pred_check
      _
    $region3: #{gnn_forward.1} parent=1 // pred_check_branch
      %30 = sbr.rel (0) target = $region5
    $region4: #{gnn_forward.1} parent=1 // pred_region
      _
    $region5: #{gnn_forward.1} parent=1 // pred_fallthru
      _
    // Predicated region
    $region6: #{gnn_forward.1} parent=1 // pred_check
      _
    $region7: #{gnn_forward.1} parent=1 // pred_check_branch
      %32 = sbr.rel (0) target = $region9
    $region8: #{gnn_forward.1} parent=1 // pred_region
      _
    $region9: #{gnn_forward.1} parent=1 // pred_fallthru
      _
    // Predicated region
    $region10: #{gnn_forward.1} parent=1 // pred_check
      _
    $region11: #{gnn_forward.1} parent=1 // pred_check_branch
      %34 = sbr.rel (0) target = $region13
    $region12: #{gnn_forward.1} parent=1 // pred_region
      %s36 = ssub.s32 6144, 6144
      %37 = vsyncadd [#allocation3], %s36
      %s38 = sshll.u32 [#allocation2], 4
      %s39 = int_to_ptr.vmem [resolvable:$true] %s38
      %44 = dma.hbm_to_vmem [thread:$0]  %s2, 6144, %s39, [#allocation3], 384, 384, 24
    $region13: #{gnn_forward.1} parent=1 // pred_fallthru
      _
    // Predicated region
    $region14: #{gnn_forward.1} parent=1 // pred_check
      _
    $region15: #{gnn_forward.1} parent=1 // pred_check_branch
      %46 = sbr.rel (0) target = $region17
    $region16: #{gnn_forward.1} parent=1 // pred_region
      _
    $region17: #{gnn_forward.1} parent=1 // pred_fallthru
      _
    // Predicated region
    $region18: #{gnn_forward.1} parent=1 // pred_check
      _
    $region19: #{gnn_forward.1} parent=1 // pred_check_branch
      %48 = sbr.rel (0) target = $region21
    $region20: #{gnn_forward.1} parent=1 // pred_region
      %s50 = ssub.s32 48, 48
      %51 = vsyncadd [#allocation5], %s50
      %s53 = sshll.u32 [#allocation4], 4
      %s54 = int_to_ptr.vmem [resolvable:$true] %s53
      %56 = dma.hbm_to_vmem [thread:$0]  %s4, 48, %s54, [#allocation5]
    $region21: #{gnn_forward.1} parent=1 // pred_fallthru
      _
    // Predicated region
    $region22: #{gnn_forward.1} parent=1 // pred_check
      _
    $region23: #{gnn_forward.1} parent=1 // pred_check_branch
      %58 = sbr.rel (0) target = $region25
    $region24: #{gnn_forward.1} parent=1 // pred_region
      %s60 = ssub.s32 2048, 2048
      %61 = vsyncadd [#allocation5], %s60
      %s62 = sshll.u32 [#allocation6], 4
      %s63 = int_to_ptr.vmem [resolvable:$true] %s62
      %68 = dma.hbm_to_vmem [thread:$0]  %s5, 2048, %s63, [#allocation5], 128, 128, 8
    $region25: #{gnn_forward.1} parent=1 // pred_fallthru
      _
    // Predicated region
    $region26: #{gnn_forward.1} parent=1 // pred_check
      _
    $region27: #{gnn_forward.1} parent=1 // pred_check_branch
      %70 = sbr.rel (0) target = $region29
    $region28: #{gnn_forward.1} parent=1 // pred_region
      _
    $region29: #{gnn_forward.1} parent=1 // pred_fallthru
      _
    // Predicated region
    $region30: #{gnn_forward.1} parent=1 // pred_check
      _
    $region31: #{gnn_forward.1} parent=1 // pred_check_branch
      %72 = sbr.rel (0) target = $region33
    $region32: #{gnn_forward.1} parent=1 // pred_region
      _
    $region33: #{gnn_forward.1} parent=1 // pred_fallthru
      _
    // Predicated region
    $region34: #{gnn_forward.1} parent=1 // pred_check
      _
    $region35: #{gnn_forward.1} parent=1 // pred_check_branch
      %74 = sbr.rel (0) target = $region37
    $region36: #{gnn_forward.1} parent=1 // pred_region
      _
    $region37: #{gnn_forward.1} parent=1 // pred_fallthru
      _
    // Predicated region
    $region38: #{gnn_forward.1} parent=1 // pred_check
      _
    $region39: #{gnn_forward.1} parent=1 // pred_check_branch
      %76 = sbr.rel (0) target = $region41
    $region40: #{gnn_forward.1} parent=1 // pred_region
      %s78 = ssub.s32 12288, 12288
      %79 = vsyncadd [#allocation8], %s78
      %s80 = sshll.u32 [#allocation7], 4
      %s81 = int_to_ptr.vmem [resolvable:$true] %s80
      %86 = dma.hbm_to_vmem [thread:$0]  %s9, 12288, %s81, [#allocation8], 128, 128, 8
    $region41: #{gnn_forward.1} parent=1 // pred_fallthru
      _
    // Predicated region
    $region42: #{gnn_forward.1} parent=1 // pred_check
      _
    $region43: #{gnn_forward.1} parent=1 // pred_check_branch
      %88 = sbr.rel (0) target = $region45
    $region44: #{gnn_forward.1} parent=1 // pred_region
      %s90 = ssub.s32 12288, 12288
      %91 = vsyncadd [#allocation8], %s90
      %s92 = sshll.u32 [#allocation9], 4
      %s93 = int_to_ptr.vmem [resolvable:$true] %s92
      %98 = dma.hbm_to_vmem [thread:$0]  %s10, 12288, %s93, [#allocation8], 128, 128, 8
    $region45: #{gnn_forward.1} parent=1 // pred_fallthru
      _
    // Predicated region
    $region46: #{gnn_forward.1} parent=1 // pred_check
      _
    $region47: #{gnn_forward.1} parent=1 // pred_check_branch
      %100 = sbr.rel (0) target = $region49
    $region48: #{gnn_forward.1} parent=1 // pred_region
      %s102 = ssub.s32 96, 96
      %103 = vsyncadd [#allocation11], %s102
      %s104 = sshll.u32 [#allocation10], 4
      %s105 = int_to_ptr.vmem [resolvable:$true] %s104
      %110 = dma.hbm_to_vmem [thread:$0]  %s11, 96, %s105, [#allocation11], 16, 16, 1
    $region49: #{gnn_forward.1} parent=1 // pred_fallthru
      _
    // Predicated region
    $region50: #{gnn_forward.1} parent=1 // pred_check
      _
    $region51: #{gnn_forward.1} parent=1 // pred_check_branch
      %112 = sbr.rel (0) target = $region53
    $region52: #{gnn_forward.1} parent=1 // pred_region
      %s114 = ssub.s32 8192, 8192
      %115 = vsyncadd [#allocation11], %s114
      %s116 = sshll.u32 [#allocation12], 4
      %s117 = int_to_ptr.vmem [resolvable:$true] %s116
      %122 = dma.hbm_to_vmem [thread:$0]  %s12, 8192, %s117, [#allocation11], 256, 256, 16
    $region53: #{gnn_forward.1} parent=1 // pred_fallthru
      _
    // Predicated region
    $region54: #{gnn_forward.1} parent=1 // pred_check
      _
    $region55: #{gnn_forward.1} parent=1 // pred_check_branch
      %124 = sbr.rel (0) target = $region57
    $region56: #{gnn_forward.1} parent=1 // pred_region
      %s126 = ssub.s32 8192, 8192
      %127 = vsyncadd [#allocation14], %s126
      %s128 = sshll.u32 [#allocation13], 4
      %s129 = int_to_ptr.vmem [resolvable:$true] %s128
      %134 = dma.hbm_to_vmem [thread:$0]  %s13, 8192, %s129, [#allocation14], 256, 256, 16
    $region57: #{gnn_forward.1} parent=1 // pred_fallthru
      _
    // Predicated region
    $region58: #{gnn_forward.1} parent=1 // pred_check
      _
    $region59: #{gnn_forward.1} parent=1 // pred_check_branch
      %136 = sbr.rel (0) target = $region61
    $region60: #{gnn_forward.1} parent=1 // pred_region
      %s138 = ssub.s32 4096, 4096
      %139 = vsyncadd [#allocation14], %s138
      %s140 = sshll.u32 [#allocation15], 4
      %s141 = int_to_ptr.vmem [resolvable:$true] %s140
      %146 = dma.hbm_to_vmem [thread:$0]  %s14, 4096, %s141, [#allocation14], 128, 128, 8
    $region61: #{gnn_forward.1} parent=1 // pred_fallthru
      _
    // Predicated region
    $region62: #{gnn_forward.1} parent=1 // pred_check
      _
    $region63: #{gnn_forward.1} parent=1 // pred_check_branch
      %148 = sbr.rel (0) target = $region65
    $region64: #{gnn_forward.1} parent=1 // pred_region
      %s150 = ssub.s32 4096, 4096
      %151 = vsyncadd [#allocation17], %s150
      %s152 = sshll.u32 [#allocation16], 4
      %s153 = int_to_ptr.vmem [resolvable:$true] %s152
      %158 = dma.hbm_to_vmem [thread:$0]  %s15, 4096, %s153, [#allocation17], 128, 128, 8
    $region65: #{gnn_forward.1} parent=1 // pred_fallthru
      _
    // Predicated region
    $region66: #{gnn_forward.1} parent=1 // pred_check
      _
    $region67: #{gnn_forward.1} parent=1 // pred_check_branch
      %160 = sbr.rel (0) target = $region69
    $region68: #{gnn_forward.1} parent=1 // pred_region
      %s162 = ssub.s32 4096, 4096
      %163 = vsyncadd [#allocation17], %s162
      %s164 = sshll.u32 [#allocation18], 4
      %s165 = int_to_ptr.vmem [resolvable:$true] %s164
      %170 = dma.hbm_to_vmem [thread:$0]  %s16, 4096, %s165, [#allocation17], 128, 128, 8
    $region69: #{gnn_forward.1} parent=1 // pred_fallthru
      _
    // Predicated region
    $region70: #{gnn_forward.1} parent=1 // pred_check
      _
    $region71: #{gnn_forward.1} parent=1 // pred_check_branch
      %172 = sbr.rel (0) target = $region73
    $region72: #{gnn_forward.1} parent=1 // pred_region
      _
    $region73: #{gnn_forward.1} parent=1 // pred_fallthru
      _
    // Predicated region
    $region74: #{gnn_forward.1} parent=1 // pred_check
      _
    $region75: #{gnn_forward.1} parent=1 // pred_check_branch
      %174 = sbr.rel (0) target = $region77
    $region76: #{gnn_forward.1} parent=1 // pred_region
      %175 = dma.done [#allocation3], 6144
    $region77: #{gnn_forward.1} parent=1 // pred_fallthru
      _
    // Predicated region
    $region78: #{gnn_forward.1} parent=1 // pred_check
      _
    $region79: #{gnn_forward.1} parent=1 // pred_check_branch
      %177 = sbr.rel (0) target = $region81
    $region80: #{gnn_forward.1} parent=1 // pred_region
      %178 = dma.done [#allocation5], 48
    $region81: #{gnn_forward.1} parent=1 // pred_fallthru
      _
    // Predicated region
    $region82: #{gnn_forward.1} parent=1 // pred_check
      _
    $region83: #{gnn_forward.1} parent=1 // pred_check_branch
      %180 = sbr.rel (0) target = $region85
    $region84: #{gnn_forward.1} parent=1 // pred_region
      %181 = dma.done [#allocation5], 2048
    $region85: #{gnn_forward.1} parent=1 // pred_fallthru
      _
    // Predicated region
    $region86: #{gnn_forward.1} parent=1 // pred_check
      _
    $region87: #{gnn_forward.1} parent=1 // pred_check_branch
      %183 = sbr.rel (0) target = $region89
    $region88: #{gnn_forward.1} parent=1 // pred_region
      %184 = dma.done [#allocation8], 12288
    $region89: #{gnn_forward.1} parent=1 // pred_fallthru
      _
    // Predicated region
    $region90: #{gnn_forward.1} parent=1 // pred_check
      _
    $region91: #{gnn_forward.1} parent=1 // pred_check_branch
      %186 = sbr.rel (0) target = $region93
    $region92: #{gnn_forward.1} parent=1 // pred_region
      %187 = dma.done [#allocation8], 12288
    $region93: #{gnn_forward.1} parent=1 // pred_fallthru
      _
    // Predicated region
    $region94: #{gnn_forward.1} parent=1 // pred_check
      _
    $region95: #{gnn_forward.1} parent=1 // pred_check_branch
      %189 = sbr.rel (0) target = $region97
    $region96: #{gnn_forward.1} parent=1 // pred_region
      %190 = dma.done [#allocation11], 96
    $region97: #{gnn_forward.1} parent=1 // pred_fallthru
      _
    // Predicated region
    $region98: #{gnn_forward.1} parent=1 // pred_check
      _
    $region99: #{gnn_forward.1} parent=1 // pred_check_branch
      %192 = sbr.rel (0) target = $region101
    $region100: #{gnn_forward.1} parent=1 // pred_region
      %193 = dma.done [#allocation11], 8192
    $region101: #{gnn_forward.1} parent=1 // pred_fallthru
      _
    // Predicated region
    $region102: #{gnn_forward.1} parent=1 // pred_check
      _
    $region103: #{gnn_forward.1} parent=1 // pred_check_branch
      %195 = sbr.rel (0) target = $region105
    $region104: #{gnn_forward.1} parent=1 // pred_region
      %196 = dma.done [#allocation14], 8192
    $region105: #{gnn_forward.1} parent=1 // pred_fallthru
      _
    // Predicated region
    $region106: #{gnn_forward.1} parent=1 // pred_check
      _
    $region107: #{gnn_forward.1} parent=1 // pred_check_branch
      %198 = sbr.rel (0) target = $region109
    $region108: #{gnn_forward.1} parent=1 // pred_region
      %199 = dma.done [#allocation14], 4096
    $region109: #{gnn_forward.1} parent=1 // pred_fallthru
      _
    // Predicated region
    $region110: #{gnn_forward.1} parent=1 // pred_check
      _
    $region111: #{gnn_forward.1} parent=1 // pred_check_branch
      %201 = sbr.rel (0) target = $region113
    $region112: #{gnn_forward.1} parent=1 // pred_region
      %202 = dma.done [#allocation17], 4096
    $region113: #{gnn_forward.1} parent=1 // pred_fallthru
      _
    // Predicated region
    $region114: #{gnn_forward.1} parent=1 // pred_check
      _
    $region115: #{gnn_forward.1} parent=1 // pred_check_branch
      %204 = sbr.rel (0) target = $region117
    $region116: #{gnn_forward.1} parent=1 // pred_region
      %205 = dma.done [#allocation17], 4096
    $region117: #{gnn_forward.1} parent=1 // pred_fallthru
      _
    %v206 = vld [vmem:[%s0] sm:$0xff]
    %v207 = vld [vmem:[%s0 + $0x8] sm:$0xff]
    %v208 = vld [vmem:[%s0 + $0x10] sm:$0xff]
    %v209 = vld [vmem:[%s0 + $0x18] sm:$0xff]
    %v210 = vld [vmem:[%s0 + $0x20] sm:$0xff]
    %v211 = vld [vmem:[%s0 + $0x28] sm:$0xff]
    %v212 = vld [vmem:[%s0 + $0x30] sm:$0xff]
    %v213 = vld [vmem:[%s0 + $0x38] sm:$0xff]
    %v214 = vld [vmem:[%s0 + $0x40] sm:$0xff]
    %v215 = vld [vmem:[%s0 + $0x48] sm:$0xff]
    %v216 = vld [vmem:[%s0 + $0x50] sm:$0xff]
    %v217 = vld [vmem:[%s0 + $0x58] sm:$0xff]
    %v218 = vld [vmem:[%s0 + $0x60] sm:$0xff]
    %v219 = vld [vmem:[%s0 + $0x68] sm:$0xff]
    %v220 = vld [vmem:[%s0 + $0x70] sm:$0xff]
    %v221 = vld [vmem:[%s0 + $0x78] sm:$0xff]
    %v222 = vld [vmem:[%s1] sm:$0xff]
    %v223 = vld [vmem:[%s1 + $0x8] sm:$0xff]
    %v224 = vld [vmem:[%s1 + $0x10] sm:$0xff]
    %v225 = vld [vmem:[%s3] sm:$0x7]
    %v227 = vlaneseq
    %v228 = vshrl.u32 %v227, 7
    %v229 = vsub.s32 0, %v228
    %v230 = vrot.slane %v225, %v229
    %v231 = vlaneseq
    %v232 = vshrl.u32 %v231, 7
    %v233 = vsub.s32 1, %v232
    %v234 = vrot.slane %v225, %v233
    %v235 = vlaneseq
    %v236 = vshrl.u32 %v235, 7
    %v237 = vsub.s32 2, %v236
    %v238 = vrot.slane %v225, %v237
    %vm242 = vcmask 64512
    %v244 = vsel %vm242, %v206, 0
    %v247 = vsel %vm242, %v207, 0
    %v250 = vsel %vm242, %v208, 0
    %v253 = vsel %vm242, %v209, 0
    %v256 = vsel %vm242, %v210, 0
    %v259 = vsel %vm242, %v211, 0
    %v262 = vsel %vm242, %v212, 0
    %v265 = vsel %vm242, %v213, 0
    %v268 = vsel %vm242, %v214, 0
    %v271 = vsel %vm242, %v215, 0
    %v274 = vsel %vm242, %v216, 0
    %v277 = vsel %vm242, %v217, 0
    %v280 = vsel %vm242, %v218, 0
    %v283 = vsel %vm242, %v219, 0
    %v286 = vsel %vm242, %v220, 0
    %v289 = vsel %vm242, %v221, 0
    %291 = vmatprep.subr.mxu0 0.0
    %292 = vmatpush1.msra.mxu0 0.0
    %293 = vmatprep.subr.mxu0 0.0
    %294 = vmatpush1.msra.mxu0 0.0
    %295 = vmatprep.subr.mxu0 0.0
    %296 = vmatpush1.msra.mxu0 0.0
    %297 = vmatprep.subr.mxu0 0.0
    %298 = vmatpush1.msra.mxu0 0.0
    %299 = vmatprep.subr.mxu0 0.0
    %300 = vmatpush1.msra.mxu0 0.0
    %301 = vmatprep.subr.mxu0 0.0
    %302 = vmatpush1.msra.mxu0 0.0
    %303 = vmatprep.subr.mxu0 0.0
    %304 = vmatpush1.msra.mxu0 0.0
    %305 = vmatprep.subr.mxu0 0.0
    %306 = vmatpush1.msra.mxu0 0.0
    %307 = vmatprep.subr.mxu0 0.0
    %308 = vmatpush1.msra.mxu0 0.0
    %309 = vmatprep.subr.mxu0 0.0
    %310 = vmatpush1.msra.mxu0 0.0
    %311 = vmatprep.subr.mxu0 0.0
    %312 = vmatpush1.msra.mxu0 0.0
    %313 = vmatprep.subr.mxu0 0.0
    %314 = vmatpush1.msra.mxu0 0.0
    %315 = vmatprep.subr.mxu0 0.0
    %316 = vmatpush1.msra.mxu0 0.0
    %317 = vmatprep.subr.mxu0 0.0
    %318 = vmatpush1.msra.mxu0 0.0
    %319 = vmatprep.subr.mxu0 0.0
    %320 = vmatpush1.msra.mxu0 0.0
    %321 = vmatprep.subr.mxu0 %v223
    %322 = vmatpush1.msra.mxu0 %v222
    %323 = vmatprep.subr.mxu0 0.0
    %324 = vmatpush2.msra.mxu0 0.0
    %325 = vmatprep.subr.mxu0 0.0
    %326 = vmatpush2.msra.mxu0 0.0
    %327 = vmatprep.subr.mxu0 0.0
    %328 = vmatpush2.msra.mxu0 0.0
    %329 = vmatprep.subr.mxu0 0.0
    %330 = vmatpush2.msra.mxu0 0.0
    %331 = vmatprep.subr.mxu0 0.0
    %332 = vmatpush2.msra.mxu0 0.0
    %333 = vmatprep.subr.mxu0 0.0
    %334 = vmatpush2.msra.mxu0 0.0
    %335 = vmatprep.subr.mxu0 0.0
    %336 = vmatpush2.msra.mxu0 0.0
    %337 = vmatprep.subr.mxu0 0.0
    %338 = vmatpush2.msra.mxu0 0.0
    %339 = vmatprep.subr.mxu0 0.0
    %340 = vmatpush2.msra.mxu0 0.0
    %341 = vmatprep.subr.mxu0 0.0
    %342 = vmatpush2.msra.mxu0 0.0
    %343 = vmatprep.subr.mxu0 0.0
    %344 = vmatpush2.msra.mxu0 0.0
    %345 = vmatprep.subr.mxu0 0.0
    %346 = vmatpush2.msra.mxu0 0.0
    %347 = vmatprep.subr.mxu0 0.0
    %348 = vmatpush2.msra.mxu0 0.0
    %349 = vmatprep.subr.mxu0 0.0
    %350 = vmatpush2.msra.mxu0 0.0
    %351 = vmatprep.subr.mxu0 0.0
    %352 = vmatpush2.msra.mxu0 0.0
    %353 = vmatprep.subr.mxu0 0.0
    %354 = vmatpush2.msra.mxu0 0.0
    %355 = vmatprep.mubr.f32.mxu0 0.0
    %356 = vmatmul.mubr.f32.gmra.mxu0 %v244
    %v357 = vpop.f32.mrf.mxu0
    %v358 = vadd.f32 %v230, %v357
    %v359 = vpop.f32.mrf.mxu0
    %v360 = vadd.f32 %v234, %v359
    %361 = vmatprep.mubr.f32.mxu0 0.0
    %362 = vmatmul.mubr.f32.gmra.mxu0 %v247
    %v363 = vpop.f32.mrf.mxu0
    %v364 = vadd.f32 %v230, %v363
    %v365 = vpop.f32.mrf.mxu0
    %v366 = vadd.f32 %v234, %v365
    %367 = vmatprep.mubr.f32.mxu0 0.0
    %368 = vmatmul.mubr.f32.gmra.mxu0 %v250
    %v369 = vpop.f32.mrf.mxu0
    %v370 = vadd.f32 %v230, %v369
    %v371 = vpop.f32.mrf.mxu0
    %v372 = vadd.f32 %v234, %v371
    %373 = vmatprep.mubr.f32.mxu0 0.0
    %374 = vmatmul.mubr.f32.gmra.mxu0 %v253
    %v375 = vpop.f32.mrf.mxu0
    %v376 = vadd.f32 %v230, %v375
    %v377 = vpop.f32.mrf.mxu0
    %v378 = vadd.f32 %v234, %v377
    %379 = vmatprep.mubr.f32.mxu0 0.0
    %380 = vmatmul.mubr.f32.gmra.mxu0 %v256
    %v381 = vpop.f32.mrf.mxu0
    %v382 = vadd.f32 %v230, %v381
    %v383 = vpop.f32.mrf.mxu0
    %v384 = vadd.f32 %v234, %v383
    %385 = vmatprep.mubr.f32.mxu0 0.0
    %386 = vmatmul.mubr.f32.gmra.mxu0 %v259
    %v387 = vpop.f32.mrf.mxu0
    %v388 = vadd.f32 %v230, %v387
    %v389 = vpop.f32.mrf.mxu0
    %v390 = vadd.f32 %v234, %v389
    %391 = vmatprep.mubr.f32.mxu0 0.0
    %392 = vmatmul.mubr.f32.gmra.mxu0 %v262
    %v393 = vpop.f32.mrf.mxu0
    %v394 = vadd.f32 %v230, %v393
    %v395 = vpop.f32.mrf.mxu0
    %v396 = vadd.f32 %v234, %v395
    %397 = vmatprep.mubr.f32.mxu0 0.0
    %398 = vmatmul.mubr.f32.gmra.mxu0 %v265
    %v399 = vpop.f32.mrf.mxu0
    %v400 = vadd.f32 %v230, %v399
    %v401 = vpop.f32.mrf.mxu0
    %v402 = vadd.f32 %v234, %v401
    %403 = vmatprep.mubr.f32.mxu0 0.0
    %404 = vmatmul.mubr.f32.gmra.mxu0 %v268
    %v405 = vpop.f32.mrf.mxu0
    %v406 = vadd.f32 %v230, %v405
    %v407 = vpop.f32.mrf.mxu0
    %v408 = vadd.f32 %v234, %v407
    %409 = vmatprep.mubr.f32.mxu0 0.0
    %410 = vmatmul.mubr.f32.gmra.mxu0 %v271
    %v411 = vpop.f32.mrf.mxu0
    %v412 = vadd.f32 %v230, %v411
    %v413 = vpop.f32.mrf.mxu0
    %v414 = vadd.f32 %v234, %v413
    %415 = vmatprep.mubr.f32.mxu0 0.0
    %416 = vmatmul.mubr.f32.gmra.mxu0 %v274
    %v417 = vpop.f32.mrf.mxu0
    %v418 = vadd.f32 %v230, %v417
    %v419 = vpop.f32.mrf.mxu0
    %v420 = vadd.f32 %v234, %v419
    %421 = vmatprep.mubr.f32.mxu0 0.0
    %422 = vmatmul.mubr.f32.gmra.mxu0 %v277
    %v423 = vpop.f32.mrf.mxu0
    %v424 = vadd.f32 %v230, %v423
    %v425 = vpop.f32.mrf.mxu0
    %v426 = vadd.f32 %v234, %v425
    %427 = vmatprep.mubr.f32.mxu0 0.0
    %428 = vmatmul.mubr.f32.gmra.mxu0 %v280
    %v429 = vpop.f32.mrf.mxu0
    %v430 = vadd.f32 %v230, %v429
    %v431 = vpop.f32.mrf.mxu0
    %v432 = vadd.f32 %v234, %v431
    %433 = vmatprep.mubr.f32.mxu0 0.0
    %434 = vmatmul.mubr.f32.gmra.mxu0 %v283
    %v435 = vpop.f32.mrf.mxu0
    %v436 = vadd.f32 %v230, %v435
    %v437 = vpop.f32.mrf.mxu0
    %v438 = vadd.f32 %v234, %v437
    %439 = vmatprep.mubr.f32.mxu0 0.0
    %440 = vmatmul.mubr.f32.gmra.mxu0 %v286
    %v441 = vpop.f32.mrf.mxu0
    %v442 = vadd.f32 %v230, %v441
    %v443 = vpop.f32.mrf.mxu0
    %v444 = vadd.f32 %v234, %v443
    %445 = vmatprep.mubr.f32.mxu0 0.0
    %446 = vmatmul.mubr.f32.gmra.mxu0 %v289
    %v447 = vpop.f32.mrf.mxu0
    %v448 = vadd.f32 %v230, %v447
    %v449 = vpop.f32.mrf.mxu0
    %v450 = vadd.f32 %v234, %v449
    %451 = vdwg.mxu0
    %452 = vmatprep.subr.mxu0 0.0
    %453 = vmatpush1.msra.mxu0 0.0
    %454 = vmatprep.subr.mxu0 0.0
    %455 = vmatpush1.msra.mxu0 0.0
    %456 = vmatprep.subr.mxu0 0.0
    %457 = vmatpush1.msra.mxu0 0.0
    %458 = vmatprep.subr.mxu0 0.0
    %459 = vmatpush1.msra.mxu0 0.0
    %460 = vmatprep.subr.mxu0 0.0
    %461 = vmatpush1.msra.mxu0 0.0
    %462 = vmatprep.subr.mxu0 0.0
    %463 = vmatpush1.msra.mxu0 0.0
    %464 = vmatprep.subr.mxu0 0.0
    %465 = vmatpush1.msra.mxu0 0.0
    %466 = vmatprep.subr.mxu0 0.0
    %467 = vmatpush1.msra.mxu0 0.0
    %468 = vmatprep.subr.mxu0 0.0
    %469 = vmatpush1.msra.mxu0 0.0
    %470 = vmatprep.subr.mxu0 0.0
    %471 = vmatpush1.msra.mxu0 0.0
    %472 = vmatprep.subr.mxu0 0.0
    %473 = vmatpush1.msra.mxu0 0.0
    %474 = vmatprep.subr.mxu0 0.0
    %475 = vmatpush1.msra.mxu0 0.0
    %476 = vmatprep.subr.mxu0 0.0
    %477 = vmatpush1.msra.mxu0 0.0
    %478 = vmatprep.subr.mxu0 0.0
    %479 = vmatpush1.msra.mxu0 0.0
    %480 = vmatprep.subr.mxu0 0.0
    %481 = vmatpush1.msra.mxu0 0.0
    %482 = vmatprep.subr.mxu0 0.0
    %483 = vmatpush1.msra.mxu0 %v224
    %484 = vmatprep.subr.mxu0 0.0
    %485 = vmatpush2.msra.mxu0 0.0
    %486 = vmatprep.subr.mxu0 0.0
    %487 = vmatpush2.msra.mxu0 0.0
    %488 = vmatprep.subr.mxu0 0.0
    %489 = vmatpush2.msra.mxu0 0.0
    %490 = vmatprep.subr.mxu0 0.0
    %491 = vmatpush2.msra.mxu0 0.0
    %492 = vmatprep.subr.mxu0 0.0
    %493 = vmatpush2.msra.mxu0 0.0
    %494 = vmatprep.subr.mxu0 0.0
    %495 = vmatpush2.msra.mxu0 0.0
    %496 = vmatprep.subr.mxu0 0.0
    %497 = vmatpush2.msra.mxu0 0.0
    %498 = vmatprep.subr.mxu0 0.0
    %499 = vmatpush2.msra.mxu0 0.0
    %500 = vmatprep.subr.mxu0 0.0
    %501 = vmatpush2.msra.mxu0 0.0
    %502 = vmatprep.subr.mxu0 0.0
    %503 = vmatpush2.msra.mxu0 0.0
    %504 = vmatprep.subr.mxu0 0.0
    %505 = vmatpush2.msra.mxu0 0.0
    %506 = vmatprep.subr.mxu0 0.0
    %507 = vmatpush2.msra.mxu0 0.0
    %508 = vmatprep.subr.mxu0 0.0
    %509 = vmatpush2.msra.mxu0 0.0
    %510 = vmatprep.subr.mxu0 0.0
    %511 = vmatpush2.msra.mxu0 0.0
    %512 = vmatprep.subr.mxu0 0.0
    %513 = vmatpush2.msra.mxu0 0.0
    %514 = vmatprep.subr.mxu0 0.0
    %515 = vmatpush2.msra.mxu0 0.0
    %516 = vmatprep.mubr.f32.mxu0 0.0
    %517 = vmatmul.mubr.f32.gmra.mxu0 %v244
    %v518 = vpop.f32.mrf.mxu0
    %v519 = vadd.f32 %v238, %v518
    %v520 = vpop.f32.mrf.mxu0
    %521 = vmatprep.mubr.f32.mxu0 0.0
    %522 = vmatmul.mubr.f32.gmra.mxu0 %v247
    %v523 = vpop.f32.mrf.mxu0
    %v524 = vadd.f32 %v238, %v523
    %v525 = vpop.f32.mrf.mxu0
    %526 = vmatprep.mubr.f32.mxu0 0.0
    %527 = vmatmul.mubr.f32.gmra.mxu0 %v250
    %v528 = vpop.f32.mrf.mxu0
    %v529 = vadd.f32 %v238, %v528
    %v530 = vpop.f32.mrf.mxu0
    %531 = vmatprep.mubr.f32.mxu0 0.0
    %532 = vmatmul.mubr.f32.gmra.mxu0 %v253
    %v533 = vpop.f32.mrf.mxu0
    %v534 = vadd.f32 %v238, %v533
    %v535 = vpop.f32.mrf.mxu0
    %536 = vmatprep.mubr.f32.mxu0 0.0
    %537 = vmatmul.mubr.f32.gmra.mxu0 %v256
    %v538 = vpop.f32.mrf.mxu0
    %v539 = vadd.f32 %v238, %v538
    %v540 = vpop.f32.mrf.mxu0
    %541 = vmatprep.mubr.f32.mxu0 0.0
    %542 = vmatmul.mubr.f32.gmra.mxu0 %v259
    %v543 = vpop.f32.mrf.mxu0
    %v544 = vadd.f32 %v238, %v543
    %v545 = vpop.f32.mrf.mxu0
    %546 = vmatprep.mubr.f32.mxu0 0.0
    %547 = vmatmul.mubr.f32.gmra.mxu0 %v262
    %v548 = vpop.f32.mrf.mxu0
    %v549 = vadd.f32 %v238, %v548
    %v550 = vpop.f32.mrf.mxu0
    %551 = vmatprep.mubr.f32.mxu0 0.0
    %552 = vmatmul.mubr.f32.gmra.mxu0 %v265
    %v553 = vpop.f32.mrf.mxu0
    %v554 = vadd.f32 %v238, %v553
    %v555 = vpop.f32.mrf.mxu0
    %556 = vmatprep.mubr.f32.mxu0 0.0
    %557 = vmatmul.mubr.f32.gmra.mxu0 %v268
    %v558 = vpop.f32.mrf.mxu0
    %v559 = vadd.f32 %v238, %v558
    %v560 = vpop.f32.mrf.mxu0
    %561 = vmatprep.mubr.f32.mxu0 0.0
    %562 = vmatmul.mubr.f32.gmra.mxu0 %v271
    %v563 = vpop.f32.mrf.mxu0
    %v564 = vadd.f32 %v238, %v563
    %v565 = vpop.f32.mrf.mxu0
    %566 = vmatprep.mubr.f32.mxu0 0.0
    %567 = vmatmul.mubr.f32.gmra.mxu0 %v274
    %v568 = vpop.f32.mrf.mxu0
    %v569 = vadd.f32 %v238, %v568
    %v570 = vpop.f32.mrf.mxu0
    %571 = vmatprep.mubr.f32.mxu0 0.0
    %572 = vmatmul.mubr.f32.gmra.mxu0 %v277
    %v573 = vpop.f32.mrf.mxu0
    %v574 = vadd.f32 %v238, %v573
    %v575 = vpop.f32.mrf.mxu0
    %576 = vmatprep.mubr.f32.mxu0 0.0
    %577 = vmatmul.mubr.f32.gmra.mxu0 %v280
    %v578 = vpop.f32.mrf.mxu0
    %v579 = vadd.f32 %v238, %v578
    %v580 = vpop.f32.mrf.mxu0
    %581 = vmatprep.mubr.f32.mxu0 0.0
    %582 = vmatmul.mubr.f32.gmra.mxu0 %v283
    %v583 = vpop.f32.mrf.mxu0
    %v584 = vadd.f32 %v238, %v583
    %v585 = vpop.f32.mrf.mxu0
    %586 = vmatprep.mubr.f32.mxu0 0.0
    %587 = vmatmul.mubr.f32.gmra.mxu0 %v286
    %v588 = vpop.f32.mrf.mxu0
    %v589 = vadd.f32 %v238, %v588
    %v590 = vpop.f32.mrf.mxu0
    %591 = vmatprep.mubr.f32.mxu0 0.0
    %592 = vmatmul.mubr.f32.gmra.mxu0 %v289
    %v593 = vpop.f32.mrf.mxu0
    %v594 = vadd.f32 %v238, %v593
    %v595 = vpop.f32.mrf.mxu0
    %596 = vdwg.mxu0
    %v597 = vld [vmem:[#allocation2] sm:$0xff]
    %v598 = vld [vmem:[#allocation2 + $0x8] sm:$0xff]
    %v599 = vld [vmem:[#allocation2 + $0x10] sm:$0xff]
    %v600 = vld [vmem:[#allocation2 + $0x18] sm:$0xff]
    %v601 = vld [vmem:[#allocation2 + $0x20] sm:$0xff]
    %v602 = vld [vmem:[#allocation2 + $0x28] sm:$0xff]
    %v603 = vld [vmem:[#allocation2 + $0x30] sm:$0xff]
    %v604 = vld [vmem:[#allocation2 + $0x38] sm:$0xff]
    %v605 = vld [vmem:[#allocation2 + $0x40] sm:$0xff]
    %v606 = vld [vmem:[#allocation2 + $0x48] sm:$0xff]
    %v607 = vld [vmem:[#allocation2 + $0x50] sm:$0xff]
    %v608 = vld [vmem:[#allocation2 + $0x58] sm:$0xff]
    %v609 = vld [vmem:[#allocation2 + $0x60] sm:$0xff]
    %v610 = vld [vmem:[#allocation2 + $0x68] sm:$0xff]
    %v611 = vld [vmem:[#allocation2 + $0x70] sm:$0xff]
    %v612 = vld [vmem:[#allocation2 + $0x78] sm:$0xff]
    %v613 = vld [vmem:[#allocation2 + $0x80] sm:$0xff]
    %v614 = vld [vmem:[#allocation2 + $0x88] sm:$0xff]
    %v615 = vld [vmem:[#allocation2 + $0x90] sm:$0xff]
    %v616 = vld [vmem:[#allocation2 + $0x98] sm:$0xff]
    %v617 = vld [vmem:[#allocation2 + $0xa0] sm:$0xff]
    %v618 = vld [vmem:[#allocation2 + $0xa8] sm:$0xff]
    %v619 = vld [vmem:[#allocation2 + $0xb0] sm:$0xff]
    %v620 = vld [vmem:[#allocation2 + $0xb8] sm:$0xff]
    %v621 = vld [vmem:[#allocation2 + $0xc0] sm:$0xff]
    %v622 = vld [vmem:[#allocation2 + $0xc8] sm:$0xff]
    %v623 = vld [vmem:[#allocation2 + $0xd0] sm:$0xff]
    %v624 = vld [vmem:[#allocation2 + $0xd8] sm:$0xff]
    %v625 = vld [vmem:[#allocation2 + $0xe0] sm:$0xff]
    %v626 = vld [vmem:[#allocation2 + $0xe8] sm:$0xff]
    %v627 = vld [vmem:[#allocation2 + $0xf0] sm:$0xff]
    %v628 = vld [vmem:[#allocation2 + $0xf8] sm:$0xff]
    %v629 = vld [vmem:[#allocation2 + $0x100] sm:$0xff]
    %v630 = vld [vmem:[#allocation2 + $0x108] sm:$0xff]
    %v631 = vld [vmem:[#allocation2 + $0x110] sm:$0xff]
    %v632 = vld [vmem:[#allocation2 + $0x118] sm:$0xff]
    %v633 = vld [vmem:[#allocation2 + $0x120] sm:$0xff]
    %v634 = vld [vmem:[#allocation2 + $0x128] sm:$0xff]
    %v635 = vld [vmem:[#allocation2 + $0x130] sm:$0xff]
    %v636 = vld [vmem:[#allocation2 + $0x138] sm:$0xff]
    %v637 = vld [vmem:[#allocation2 + $0x140] sm:$0xff]
    %v638 = vld [vmem:[#allocation2 + $0x148] sm:$0xff]
    %v639 = vld [vmem:[#allocation2 + $0x150] sm:$0xff]
    %v640 = vld [vmem:[#allocation2 + $0x158] sm:$0xff]
    %v641 = vld [vmem:[#allocation2 + $0x160] sm:$0xff]
    %v642 = vld [vmem:[#allocation2 + $0x168] sm:$0xff]
    %v643 = vld [vmem:[#allocation2 + $0x170] sm:$0xff]
    %v644 = vld [vmem:[#allocation2 + $0x178] sm:$0xff]
    %v645 = vld [vmem:[#allocation4] sm:$0x7]
    %v647 = vlaneseq
    %v648 = vshrl.u32 %v647, 7
    %v649 = vsub.s32 0, %v648
    %v650 = vrot.slane %v645, %v649
    %v651 = vlaneseq
    %v652 = vshrl.u32 %v651, 7
    %v653 = vsub.s32 1, %v652
    %v654 = vrot.slane %v645, %v653
    %v655 = vlaneseq
    %v656 = vshrl.u32 %v655, 7
    %v657 = vsub.s32 2, %v656
    %v658 = vrot.slane %v645, %v657
    %662 = vmatprep.subr.mxu0 %v643
    %663 = vmatpush1.msra.mxu0 %v642
    %664 = vmatprep.subr.mxu0 %v640
    %665 = vmatpush1.msra.mxu0 %v639
    %666 = vmatprep.subr.mxu0 %v637
    %667 = vmatpush1.msra.mxu0 %v636
    %668 = vmatprep.subr.mxu0 %v634
    %669 = vmatpush1.msra.mxu0 %v633
    %670 = vmatprep.subr.mxu0 %v631
    %671 = vmatpush1.msra.mxu0 %v630
    %672 = vmatprep.subr.mxu0 %v628
    %673 = vmatpush1.msra.mxu0 %v627
    %674 = vmatprep.subr.mxu0 %v625
    %675 = vmatpush1.msra.mxu0 %v624
    %676 = vmatprep.subr.mxu0 %v622
    %677 = vmatpush1.msra.mxu0 %v621
    %678 = vmatprep.subr.mxu0 %v619
    %679 = vmatpush1.msra.mxu0 %v618
    %680 = vmatprep.subr.mxu0 %v616
    %681 = vmatpush1.msra.mxu0 %v615
    %682 = vmatprep.subr.mxu0 %v613
    %683 = vmatpush1.msra.mxu0 %v612
    %684 = vmatprep.subr.mxu0 %v610
    %685 = vmatpush1.msra.mxu0 %v609
    %686 = vmatprep.subr.mxu0 %v607
    %687 = vmatpush1.msra.mxu0 %v606
    %688 = vmatprep.subr.mxu0 %v604
    %689 = vmatpush1.msra.mxu0 %v603
    %690 = vmatprep.subr.mxu0 %v601
    %691 = vmatpush1.msra.mxu0 %v600
    %692 = vmatprep.subr.mxu0 %v598
    %693 = vmatpush1.msra.mxu0 %v597
    %694 = vmatprep.subr.mxu0 0.0
    %695 = vmatpush2.msra.mxu0 0.0
    %696 = vmatprep.subr.mxu0 0.0
    %697 = vmatpush2.msra.mxu0 0.0
    %698 = vmatprep.subr.mxu0 0.0
    %699 = vmatpush2.msra.mxu0 0.0
    %700 = vmatprep.subr.mxu0 0.0
    %701 = vmatpush2.msra.mxu0 0.0
    %702 = vmatprep.subr.mxu0 0.0
    %703 = vmatpush2.msra.mxu0 0.0
    %704 = vmatprep.subr.mxu0 0.0
    %705 = vmatpush2.msra.mxu0 0.0
    %706 = vmatprep.subr.mxu0 0.0
    %707 = vmatpush2.msra.mxu0 0.0
    %708 = vmatprep.subr.mxu0 0.0
    %709 = vmatpush2.msra.mxu0 0.0
    %710 = vmatprep.subr.mxu0 0.0
    %711 = vmatpush2.msra.mxu0 0.0
    %712 = vmatprep.subr.mxu0 0.0
    %713 = vmatpush2.msra.mxu0 0.0
    %714 = vmatprep.subr.mxu0 0.0
    %715 = vmatpush2.msra.mxu0 0.0
    %716 = vmatprep.subr.mxu0 0.0
    %717 = vmatpush2.msra.mxu0 0.0
    %718 = vmatprep.subr.mxu0 0.0
    %719 = vmatpush2.msra.mxu0 0.0
    %720 = vmatprep.subr.mxu0 0.0
    %721 = vmatpush2.msra.mxu0 0.0
    %722 = vmatprep.subr.mxu0 0.0
    %723 = vmatpush2.msra.mxu0 0.0
    %724 = vmatprep.subr.mxu0 0.0
    %725 = vmatpush2.msra.mxu0 0.0
    %726 = vmatprep.mubr.f32.mxu0 0.0
    %727 = vmatmul.mubr.f32.gmra.mxu0 0.0
    %v728 = vpop.f32.mrf.mxu0
    %v729 = vadd.f32 %v650, %v728
    %v730 = vpop.f32.mrf.mxu0
    %v731 = vadd.f32 %v654, %v730
    %732 = vmatprep.mubr.f32.mxu0 0.0
    %733 = vmatmul.mubr.f32.gmra.mxu0 0.0
    %v734 = vpop.f32.mrf.mxu0
    %v735 = vadd.f32 %v650, %v734
    %v736 = vpop.f32.mrf.mxu0
    %v737 = vadd.f32 %v654, %v736
    %738 = vdwg.mxu0
    %739 = vmatprep.subr.mxu0 0.0
    %740 = vmatpush1.msra.mxu0 %v644
    %741 = vmatprep.subr.mxu0 0.0
    %742 = vmatpush1.msra.mxu0 %v641
    %743 = vmatprep.subr.mxu0 0.0
    %744 = vmatpush1.msra.mxu0 %v638
    %745 = vmatprep.subr.mxu0 0.0
    %746 = vmatpush1.msra.mxu0 %v635
    %747 = vmatprep.subr.mxu0 0.0
    %748 = vmatpush1.msra.mxu0 %v632
    %749 = vmatprep.subr.mxu0 0.0
    %750 = vmatpush1.msra.mxu0 %v629
    %751 = vmatprep.subr.mxu0 0.0
    %752 = vmatpush1.msra.mxu0 %v626
    %753 = vmatprep.subr.mxu0 0.0
    %754 = vmatpush1.msra.mxu0 %v623
    %755 = vmatprep.subr.mxu0 0.0
    %756 = vmatpush1.msra.mxu0 %v620
    %757 = vmatprep.subr.mxu0 0.0
    %758 = vmatpush1.msra.mxu0 %v617
    %759 = vmatprep.subr.mxu0 0.0
    %760 = vmatpush1.msra.mxu0 %v614
    %761 = vmatprep.subr.mxu0 0.0
    %762 = vmatpush1.msra.mxu0 %v611
    %763 = vmatprep.subr.mxu0 0.0
    %764 = vmatpush1.msra.mxu0 %v608
    %765 = vmatprep.subr.mxu0 0.0
    %766 = vmatpush1.msra.mxu0 %v605
    %767 = vmatprep.subr.mxu0 0.0
    %768 = vmatpush1.msra.mxu0 %v602
    %769 = vmatprep.subr.mxu0 0.0
    %770 = vmatpush1.msra.mxu0 %v599
    %771 = vmatprep.subr.mxu0 0.0
    %772 = vmatpush2.msra.mxu0 0.0
    %773 = vmatprep.subr.mxu0 0.0
    %774 = vmatpush2.msra.mxu0 0.0
    %775 = vmatprep.subr.mxu0 0.0
    %776 = vmatpush2.msra.mxu0 0.0
    %777 = vmatprep.subr.mxu0 0.0
    %778 = vmatpush2.msra.mxu0 0.0
    %779 = vmatprep.subr.mxu0 0.0
    %780 = vmatpush2.msra.mxu0 0.0
    %781 = vmatprep.subr.mxu0 0.0
    %782 = vmatpush2.msra.mxu0 0.0
    %783 = vmatprep.subr.mxu0 0.0
    %784 = vmatpush2.msra.mxu0 0.0
    %785 = vmatprep.subr.mxu0 0.0
    %786 = vmatpush2.msra.mxu0 0.0
    %787 = vmatprep.subr.mxu0 0.0
    %788 = vmatpush2.msra.mxu0 0.0
    %789 = vmatprep.subr.mxu0 0.0
    %790 = vmatpush2.msra.mxu0 0.0
    %791 = vmatprep.subr.mxu0 0.0
    %792 = vmatpush2.msra.mxu0 0.0
    %793 = vmatprep.subr.mxu0 0.0
    %794 = vmatpush2.msra.mxu0 0.0
    %795 = vmatprep.subr.mxu0 0.0
    %796 = vmatpush2.msra.mxu0 0.0
    %797 = vmatprep.subr.mxu0 0.0
    %798 = vmatpush2.msra.mxu0 0.0
    %799 = vmatprep.subr.mxu0 0.0
    %800 = vmatpush2.msra.mxu0 0.0
    %801 = vmatprep.subr.mxu0 0.0
    %802 = vmatpush2.msra.mxu0 0.0
    %803 = vmatprep.mubr.f32.mxu0 0.0
    %804 = vmatmul.mubr.f32.gmra.mxu0 0.0
    %v805 = vpop.f32.mrf.mxu0
    %v806 = vadd.f32 %v658, %v805
    %v807 = vpop.f32.mrf.mxu0
    %808 = vmatprep.mubr.f32.mxu0 0.0
    %809 = vmatmul.mubr.f32.gmra.mxu0 0.0
    %v810 = vpop.f32.mrf.mxu0
    %v811 = vadd.f32 %v658, %v810
    %v812 = vpop.f32.mrf.mxu0
    %813 = vdwg.mxu0
    %v814 = vadd.f32 %v358, %v729
    %v815 = vadd.f32 %v364, %v735
    %v816 = vxor.u32 %v814, 2147483648
    %v817 = vxor.u32 %v815, 2147483648
    %v818 = vmul.f32 %v816, 1.442695
    %v819 = vpow.pop %v818
    %v820 = vmul.f32 %v817, 1.442695
    %v821 = vpow.pop %v820
    %v822 = vadd.f32 %v819, 1.0
    %v823 = vadd.f32 %v821, 1.0
    %v824 = vrcp.pop %v822
    %v825 = vmul.f32 1.0, %v824
    %v826 = vrcp.pop %v823
    %v827 = vmul.f32 1.0, %v826
    %v828 = vadd.f32 %v360, %v731
    %v829 = vadd.f32 %v366, %v737
    %v830 = vxor.u32 %v828, 2147483648
    %v831 = vxor.u32 %v829, 2147483648
    %v832 = vmul.f32 %v830, 1.442695
    %v833 = vpow.pop %v832
    %v834 = vmul.f32 %v831, 1.442695
    %v835 = vpow.pop %v834
    %v836 = vadd.f32 %v833, 1.0
    %v837 = vadd.f32 %v835, 1.0
    %v838 = vrcp.pop %v836
    %v839 = vmul.f32 1.0, %v838
    %v840 = vrcp.pop %v837
    %v841 = vmul.f32 1.0, %v840
    %v842 = vmul.f32 %v825, %v806
    %v843 = vmul.f32 %v827, %v811
    %v844 = vadd.f32 %v519, %v842
    %v845 = vadd.f32 %v524, %v843
    %v846 = vtanh.pop %v844
    %v847 = vtanh.pop %v845
    %v848 = vsub.f32 1.0, %v839
    %v849 = vsub.f32 1.0, %v841
    %v850 = vmul.f32 %v848, %v846
    %v851 = vmul.f32 %v849, %v847
    %v852 = vmul.f32 %v839, 0.0
    %v853 = vmul.f32 %v841, 0.0
    %v854 = vadd.f32 %v850, %v852
    %v855 = vadd.f32 %v851, %v853
    %856 = vmatprep.subr.mxu0 %v643
    %857 = vmatpush1.msra.mxu0 %v642
    %858 = vmatprep.subr.mxu0 %v640
    %859 = vmatpush1.msra.mxu0 %v639
    %860 = vmatprep.subr.mxu0 %v637
    %861 = vmatpush1.msra.mxu0 %v636
    %862 = vmatprep.subr.mxu0 %v634
    %863 = vmatpush1.msra.mxu0 %v633
    %864 = vmatprep.subr.mxu0 %v631
    %865 = vmatpush1.msra.mxu0 %v630
    %866 = vmatprep.subr.mxu0 %v628
    %867 = vmatpush1.msra.mxu0 %v627
    %868 = vmatprep.subr.mxu0 %v625
    %869 = vmatpush1.msra.mxu0 %v624
    %870 = vmatprep.subr.mxu0 %v622
    %871 = vmatpush1.msra.mxu0 %v621
    %872 = vmatprep.subr.mxu0 %v619
    %873 = vmatpush1.msra.mxu0 %v618
    %874 = vmatprep.subr.mxu0 %v616
    %875 = vmatpush1.msra.mxu0 %v615
    %876 = vmatprep.subr.mxu0 %v613
    %877 = vmatpush1.msra.mxu0 %v612
    %878 = vmatprep.subr.mxu0 %v610
    %879 = vmatpush1.msra.mxu0 %v609
    %880 = vmatprep.subr.mxu0 %v607
    %881 = vmatpush1.msra.mxu0 %v606
    %882 = vmatprep.subr.mxu0 %v604
    %883 = vmatpush1.msra.mxu0 %v603
    %884 = vmatprep.subr.mxu0 %v601
    %885 = vmatpush1.msra.mxu0 %v600
    %886 = vmatprep.subr.mxu0 %v598
    %887 = vmatpush1.msra.mxu0 %v597
    %888 = vmatprep.subr.mxu0 0.0
    %889 = vmatpush2.msra.mxu0 0.0
    %890 = vmatprep.subr.mxu0 0.0
    %891 = vmatpush2.msra.mxu0 0.0
    %892 = vmatprep.subr.mxu0 0.0
    %893 = vmatpush2.msra.mxu0 0.0
    %894 = vmatprep.subr.mxu0 0.0
    %895 = vmatpush2.msra.mxu0 0.0
    %896 = vmatprep.subr.mxu0 0.0
    %897 = vmatpush2.msra.mxu0 0.0
    %898 = vmatprep.subr.mxu0 0.0
    %899 = vmatpush2.msra.mxu0 0.0
    %900 = vmatprep.subr.mxu0 0.0
    %901 = vmatpush2.msra.mxu0 0.0
    %902 = vmatprep.subr.mxu0 0.0
    %903 = vmatpush2.msra.mxu0 0.0
    %904 = vmatprep.subr.mxu0 0.0
    %905 = vmatpush2.msra.mxu0 0.0
    %906 = vmatprep.subr.mxu0 0.0
    %907 = vmatpush2.msra.mxu0 0.0
    %908 = vmatprep.subr.mxu0 0.0
    %909 = vmatpush2.msra.mxu0 0.0
    %910 = vmatprep.subr.mxu0 0.0
    %911 = vmatpush2.msra.mxu0 0.0
    %912 = vmatprep.subr.mxu0 0.0
    %913 = vmatpush2.msra.mxu0 0.0
    %914 = vmatprep.subr.mxu0 0.0
    %915 = vmatpush2.msra.mxu0 0.0
    %916 = vmatprep.subr.mxu0 0.0
    %917 = vmatpush2.msra.mxu0 0.0
    %918 = vmatprep.subr.mxu0 0.0
    %919 = vmatpush2.msra.mxu0 0.0
    %920 = vmatprep.mubr.f32.mxu0 0.0
    %921 = vmatmul.mubr.f32.gmra.mxu0 %v854
    %v922 = vpop.f32.mrf.mxu0
    %v923 = vadd.f32 %v650, %v922
    %v924 = vpop.f32.mrf.mxu0
    %v925 = vadd.f32 %v654, %v924
    %926 = vmatprep.mubr.f32.mxu0 0.0
    %927 = vmatmul.mubr.f32.gmra.mxu0 %v855
    %v928 = vpop.f32.mrf.mxu0
    %v929 = vadd.f32 %v650, %v928
    %v930 = vpop.f32.mrf.mxu0
    %v931 = vadd.f32 %v654, %v930
    %932 = vdwg.mxu0
    %933 = vmatprep.subr.mxu0 0.0
    %934 = vmatpush1.msra.mxu0 %v644
    %935 = vmatprep.subr.mxu0 0.0
    %936 = vmatpush1.msra.mxu0 %v641
    %937 = vmatprep.subr.mxu0 0.0
    %938 = vmatpush1.msra.mxu0 %v638
    %939 = vmatprep.subr.mxu0 0.0
    %940 = vmatpush1.msra.mxu0 %v635
    %941 = vmatprep.subr.mxu0 0.0
    %942 = vmatpush1.msra.mxu0 %v632
    %943 = vmatprep.subr.mxu0 0.0
    %944 = vmatpush1.msra.mxu0 %v629
    %945 = vmatprep.subr.mxu0 0.0
    %946 = vmatpush1.msra.mxu0 %v626
    %947 = vmatprep.subr.mxu0 0.0
    %948 = vmatpush1.msra.mxu0 %v623
    %949 = vmatprep.subr.mxu0 0.0
    %950 = vmatpush1.msra.mxu0 %v620
    %951 = vmatprep.subr.mxu0 0.0
    %952 = vmatpush1.msra.mxu0 %v617
    %953 = vmatprep.subr.mxu0 0.0
    %954 = vmatpush1.msra.mxu0 %v614
    %955 = vmatprep.subr.mxu0 0.0
    %956 = vmatpush1.msra.mxu0 %v611
    %957 = vmatprep.subr.mxu0 0.0
    %958 = vmatpush1.msra.mxu0 %v608
    %959 = vmatprep.subr.mxu0 0.0
    %960 = vmatpush1.msra.mxu0 %v605
    %961 = vmatprep.subr.mxu0 0.0
    %962 = vmatpush1.msra.mxu0 %v602
    %963 = vmatprep.subr.mxu0 0.0
    %964 = vmatpush1.msra.mxu0 %v599
    %965 = vmatprep.subr.mxu0 0.0
    %966 = vmatpush2.msra.mxu0 0.0
    %967 = vmatprep.subr.mxu0 0.0
    %968 = vmatpush2.msra.mxu0 0.0
    %969 = vmatprep.subr.mxu0 0.0
    %970 = vmatpush2.msra.mxu0 0.0
    %971 = vmatprep.subr.mxu0 0.0
    %972 = vmatpush2.msra.mxu0 0.0
    %973 = vmatprep.subr.mxu0 0.0
    %974 = vmatpush2.msra.mxu0 0.0
    %975 = vmatprep.subr.mxu0 0.0
    %976 = vmatpush2.msra.mxu0 0.0
    %977 = vmatprep.subr.mxu0 0.0
    %978 = vmatpush2.msra.mxu0 0.0
    %979 = vmatprep.subr.mxu0 0.0
    %980 = vmatpush2.msra.mxu0 0.0
    %981 = vmatprep.subr.mxu0 0.0
    %982 = vmatpush2.msra.mxu0 0.0
    %983 = vmatprep.subr.mxu0 0.0
    %984 = vmatpush2.msra.mxu0 0.0
    %985 = vmatprep.subr.mxu0 0.0
    %986 = vmatpush2.msra.mxu0 0.0
    %987 = vmatprep.subr.mxu0 0.0
    %988 = vmatpush2.msra.mxu0 0.0
    %989 = vmatprep.subr.mxu0 0.0
    %990 = vmatpush2.msra.mxu0 0.0
    %991 = vmatprep.subr.mxu0 0.0
    %992 = vmatpush2.msra.mxu0 0.0
    %993 = vmatprep.subr.mxu0 0.0
    %994 = vmatpush2.msra.mxu0 0.0
    %995 = vmatprep.subr.mxu0 0.0
    %996 = vmatpush2.msra.mxu0 0.0
    %997 = vmatprep.mubr.f32.mxu0 0.0
    %998 = vmatmul.mubr.f32.gmra.mxu0 %v854
    %v999 = vpop.f32.mrf.mxu0
    %v1000 = vadd.f32 %v658, %v999
    %v1001 = vpop.f32.mrf.mxu0
    %1002 = vmatprep.mubr.f32.mxu0 0.0
    %1003 = vmatmul.mubr.f32.gmra.mxu0 %v855
    %v1004 = vpop.f32.mrf.mxu0
    %v1005 = vadd.f32 %v658, %v1004
    %v1006 = vpop.f32.mrf.mxu0
    %1007 = vdwg.mxu0
    %v1008 = vadd.f32 %v370, %v923
    %v1009 = vadd.f32 %v376, %v929
    %v1010 = vxor.u32 %v1008, 2147483648
    %v1011 = vxor.u32 %v1009, 2147483648
    %v1012 = vmul.f32 %v1010, 1.442695
    %v1013 = vpow.pop %v1012
    %v1014 = vmul.f32 %v1011, 1.442695
    %v1015 = vpow.pop %v1014
    %v1016 = vadd.f32 %v1013, 1.0
    %v1017 = vadd.f32 %v1015, 1.0
    %v1018 = vrcp.pop %v1016
    %v1019 = vmul.f32 1.0, %v1018
    %v1020 = vrcp.pop %v1017
    %v1021 = vmul.f32 1.0, %v1020
    %v1022 = vadd.f32 %v372, %v925
    %v1023 = vadd.f32 %v378, %v931
    %v1024 = vxor.u32 %v1022, 2147483648
    %v1025 = vxor.u32 %v1023, 2147483648
    %v1026 = vmul.f32 %v1024, 1.442695
    %v1027 = vpow.pop %v1026
    %v1028 = vmul.f32 %v1025, 1.442695
    %v1029 = vpow.pop %v1028
    %v1030 = vadd.f32 %v1027, 1.0
    %v1031 = vadd.f32 %v1029, 1.0
    %v1032 = vrcp.pop %v1030
    %v1033 = vmul.f32 1.0, %v1032
    %v1034 = vrcp.pop %v1031
    %v1035 = vmul.f32 1.0, %v1034
    %v1036 = vmul.f32 %v1019, %v1000
    %v1037 = vmul.f32 %v1021, %v1005
    %v1038 = vadd.f32 %v529, %v1036
    %v1039 = vadd.f32 %v534, %v1037
    %v1040 = vtanh.pop %v1038
    %v1041 = vtanh.pop %v1039
    %v1042 = vsub.f32 1.0, %v1033
    %v1043 = vsub.f32 1.0, %v1035
    %v1044 = vmul.f32 %v1042, %v1040
    %v1045 = vmul.f32 %v1043, %v1041
    %v1046 = vmul.f32 %v1033, %v854
    %v1047 = vmul.f32 %v1035, %v855
    %v1048 = vadd.f32 %v1044, %v1046
    %v1049 = vadd.f32 %v1045, %v1047
    %1050 = vmatprep.subr.mxu0 %v643
    %1051 = vmatpush1.msra.mxu0 %v642
    %1052 = vmatprep.subr.mxu0 %v640
    %1053 = vmatpush1.msra.mxu0 %v639
    %1054 = vmatprep.subr.mxu0 %v637
    %1055 = vmatpush1.msra.mxu0 %v636
    %1056 = vmatprep.subr.mxu0 %v634
    %1057 = vmatpush1.msra.mxu0 %v633
    %1058 = vmatprep.subr.mxu0 %v631
    %1059 = vmatpush1.msra.mxu0 %v630
    %1060 = vmatprep.subr.mxu0 %v628
    %1061 = vmatpush1.msra.mxu0 %v627
    %1062 = vmatprep.subr.mxu0 %v625
    %1063 = vmatpush1.msra.mxu0 %v624
    %1064 = vmatprep.subr.mxu0 %v622
    %1065 = vmatpush1.msra.mxu0 %v621
    %1066 = vmatprep.subr.mxu0 %v619
    %1067 = vmatpush1.msra.mxu0 %v618
    %1068 = vmatprep.subr.mxu0 %v616
    %1069 = vmatpush1.msra.mxu0 %v615
    %1070 = vmatprep.subr.mxu0 %v613
    %1071 = vmatpush1.msra.mxu0 %v612
    %1072 = vmatprep.subr.mxu0 %v610
    %1073 = vmatpush1.msra.mxu0 %v609
    %1074 = vmatprep.subr.mxu0 %v607
    %1075 = vmatpush1.msra.mxu0 %v606
    %1076 = vmatprep.subr.mxu0 %v604
    %1077 = vmatpush1.msra.mxu0 %v603
    %1078 = vmatprep.subr.mxu0 %v601
    %1079 = vmatpush1.msra.mxu0 %v600
    %1080 = vmatprep.subr.mxu0 %v598
    %1081 = vmatpush1.msra.mxu0 %v597
    %1082 = vmatprep.subr.mxu0 0.0
    %1083 = vmatpush2.msra.mxu0 0.0
    %1084 = vmatprep.subr.mxu0 0.0
    %1085 = vmatpush2.msra.mxu0 0.0
    %1086 = vmatprep.subr.mxu0 0.0
    %1087 = vmatpush2.msra.mxu0 0.0
    %1088 = vmatprep.subr.mxu0 0.0
    %1089 = vmatpush2.msra.mxu0 0.0
    %1090 = vmatprep.subr.mxu0 0.0
    %1091 = vmatpush2.msra.mxu0 0.0
    %1092 = vmatprep.subr.mxu0 0.0
    %1093 = vmatpush2.msra.mxu0 0.0
    %1094 = vmatprep.subr.mxu0 0.0
    %1095 = vmatpush2.msra.mxu0 0.0
    %1096 = vmatprep.subr.mxu0 0.0
    %1097 = vmatpush2.msra.mxu0 0.0
    %1098 = vmatprep.subr.mxu0 0.0
    %1099 = vmatpush2.msra.mxu0 0.0
    %1100 = vmatprep.subr.mxu0 0.0
    %1101 = vmatpush2.msra.mxu0 0.0
    %1102 = vmatprep.subr.mxu0 0.0
    %1103 = vmatpush2.msra.mxu0 0.0
    %1104 = vmatprep.subr.mxu0 0.0
    %1105 = vmatpush2.msra.mxu0 0.0
    %1106 = vmatprep.subr.mxu0 0.0
    %1107 = vmatpush2.msra.mxu0 0.0
    %1108 = vmatprep.subr.mxu0 0.0
    %1109 = vmatpush2.msra.mxu0 0.0
    %1110 = vmatprep.subr.mxu0 0.0
    %1111 = vmatpush2.msra.mxu0 0.0
    %1112 = vmatprep.subr.mxu0 0.0
    %1113 = vmatpush2.msra.mxu0 0.0
    %1114 = vmatprep.mubr.f32.mxu0 0.0
    %1115 = vmatmul.mubr.f32.gmra.mxu0 %v1048
    %v1116 = vpop.f32.mrf.mxu0
    %v1117 = vadd.f32 %v650, %v1116
    %v1118 = vpop.f32.mrf.mxu0
    %v1119 = vadd.f32 %v654, %v1118
    %1120 = vmatprep.mubr.f32.mxu0 0.0
    %1121 = vmatmul.mubr.f32.gmra.mxu0 %v1049
    %v1122 = vpop.f32.mrf.mxu0
    %v1123 = vadd.f32 %v650, %v1122
    %v1124 = vpop.f32.mrf.mxu0
    %v1125 = vadd.f32 %v654, %v1124
    %1126 = vdwg.mxu0
    %1127 = vmatprep.subr.mxu0 0.0
    %1128 = vmatpush1.msra.mxu0 %v644
    %1129 = vmatprep.subr.mxu0 0.0
    %1130 = vmatpush1.msra.mxu0 %v641
    %1131 = vmatprep.subr.mxu0 0.0
    %1132 = vmatpush1.msra.mxu0 %v638
    %1133 = vmatprep.subr.mxu0 0.0
    %1134 = vmatpush1.msra.mxu0 %v635
    %1135 = vmatprep.subr.mxu0 0.0
    %1136 = vmatpush1.msra.mxu0 %v632
    %1137 = vmatprep.subr.mxu0 0.0
    %1138 = vmatpush1.msra.mxu0 %v629
    %1139 = vmatprep.subr.mxu0 0.0
    %1140 = vmatpush1.msra.mxu0 %v626
    %1141 = vmatprep.subr.mxu0 0.0
    %1142 = vmatpush1.msra.mxu0 %v623
    %1143 = vmatprep.subr.mxu0 0.0
    %1144 = vmatpush1.msra.mxu0 %v620
    %1145 = vmatprep.subr.mxu0 0.0
    %1146 = vmatpush1.msra.mxu0 %v617
    %1147 = vmatprep.subr.mxu0 0.0
    %1148 = vmatpush1.msra.mxu0 %v614
    %1149 = vmatprep.subr.mxu0 0.0
    %1150 = vmatpush1.msra.mxu0 %v611
    %1151 = vmatprep.subr.mxu0 0.0
    %1152 = vmatpush1.msra.mxu0 %v608
    %1153 = vmatprep.subr.mxu0 0.0
    %1154 = vmatpush1.msra.mxu0 %v605
    %1155 = vmatprep.subr.mxu0 0.0
    %1156 = vmatpush1.msra.mxu0 %v602
    %1157 = vmatprep.subr.mxu0 0.0
    %1158 = vmatpush1.msra.mxu0 %v599
    %1159 = vmatprep.subr.mxu0 0.0
    %1160 = vmatpush2.msra.mxu0 0.0
    %1161 = vmatprep.subr.mxu0 0.0
    %1162 = vmatpush2.msra.mxu0 0.0
    %1163 = vmatprep.subr.mxu0 0.0
    %1164 = vmatpush2.msra.mxu0 0.0
    %1165 = vmatprep.subr.mxu0 0.0
    %1166 = vmatpush2.msra.mxu0 0.0
    %1167 = vmatprep.subr.mxu0 0.0
    %1168 = vmatpush2.msra.mxu0 0.0
    %1169 = vmatprep.subr.mxu0 0.0
    %1170 = vmatpush2.msra.mxu0 0.0
    %1171 = vmatprep.subr.mxu0 0.0
    %1172 = vmatpush2.msra.mxu0 0.0
    %1173 = vmatprep.subr.mxu0 0.0
    %1174 = vmatpush2.msra.mxu0 0.0
    %1175 = vmatprep.subr.mxu0 0.0
    %1176 = vmatpush2.msra.mxu0 0.0
    %1177 = vmatprep.subr.mxu0 0.0
    %1178 = vmatpush2.msra.mxu0 0.0
    %1179 = vmatprep.subr.mxu0 0.0
    %1180 = vmatpush2.msra.mxu0 0.0
    %1181 = vmatprep.subr.mxu0 0.0
    %1182 = vmatpush2.msra.mxu0 0.0
    %1183 = vmatprep.subr.mxu0 0.0
    %1184 = vmatpush2.msra.mxu0 0.0
    %1185 = vmatprep.subr.mxu0 0.0
    %1186 = vmatpush2.msra.mxu0 0.0
    %1187 = vmatprep.subr.mxu0 0.0
    %1188 = vmatpush2.msra.mxu0 0.0
    %1189 = vmatprep.subr.mxu0 0.0
    %1190 = vmatpush2.msra.mxu0 0.0
    %1191 = vmatprep.mubr.f32.mxu0 0.0
    %1192 = vmatmul.mubr.f32.gmra.mxu0 %v1048
    %v1193 = vpop.f32.mrf.mxu0
    %v1194 = vadd.f32 %v658, %v1193
    %v1195 = vpop.f32.mrf.mxu0
    %1196 = vmatprep.mubr.f32.mxu0 0.0
    %1197 = vmatmul.mubr.f32.gmra.mxu0 %v1049
    %v1198 = vpop.f32.mrf.mxu0
    %v1199 = vadd.f32 %v658, %v1198
    %v1200 = vpop.f32.mrf.mxu0
    %1201 = vdwg.mxu0
    %v1202 = vadd.f32 %v382, %v1117
    %v1203 = vadd.f32 %v388, %v1123
    %v1204 = vxor.u32 %v1202, 2147483648
    %v1205 = vxor.u32 %v1203, 2147483648
    %v1206 = vmul.f32 %v1204, 1.442695
    %v1207 = vpow.pop %v1206
    %v1208 = vmul.f32 %v1205, 1.442695
    %v1209 = vpow.pop %v1208
    %v1210 = vadd.f32 %v1207, 1.0
    %v1211 = vadd.f32 %v1209, 1.0
    %v1212 = vrcp.pop %v1210
    %v1213 = vmul.f32 1.0, %v1212
    %v1214 = vrcp.pop %v1211
    %v1215 = vmul.f32 1.0, %v1214
    %v1216 = vadd.f32 %v384, %v1119
    %v1217 = vadd.f32 %v390, %v1125
    %v1218 = vxor.u32 %v1216, 2147483648
    %v1219 = vxor.u32 %v1217, 2147483648
    %v1220 = vmul.f32 %v1218, 1.442695
    %v1221 = vpow.pop %v1220
    %v1222 = vmul.f32 %v1219, 1.442695
    %v1223 = vpow.pop %v1222
    %v1224 = vadd.f32 %v1221, 1.0
    %v1225 = vadd.f32 %v1223, 1.0
    %v1226 = vrcp.pop %v1224
    %v1227 = vmul.f32 1.0, %v1226
    %v1228 = vrcp.pop %v1225
    %v1229 = vmul.f32 1.0, %v1228
    %v1230 = vmul.f32 %v1213, %v1194
    %v1231 = vmul.f32 %v1215, %v1199
    %v1232 = vadd.f32 %v539, %v1230
    %v1233 = vadd.f32 %v544, %v1231
    %v1234 = vtanh.pop %v1232
    %v1235 = vtanh.pop %v1233
    %v1236 = vsub.f32 1.0, %v1227
    %v1237 = vsub.f32 1.0, %v1229
    %v1238 = vmul.f32 %v1236, %v1234
    %v1239 = vmul.f32 %v1237, %v1235
    %v1240 = vmul.f32 %v1227, %v1048
    %v1241 = vmul.f32 %v1229, %v1049
    %v1242 = vadd.f32 %v1238, %v1240
    %v1243 = vadd.f32 %v1239, %v1241
    %1244 = vmatprep.subr.mxu0 %v643
    %1245 = vmatpush1.msra.mxu0 %v642
    %1246 = vmatprep.subr.mxu0 %v640
    %1247 = vmatpush1.msra.mxu0 %v639
    %1248 = vmatprep.subr.mxu0 %v637
    %1249 = vmatpush1.msra.mxu0 %v636
    %1250 = vmatprep.subr.mxu0 %v634
    %1251 = vmatpush1.msra.mxu0 %v633
    %1252 = vmatprep.subr.mxu0 %v631
    %1253 = vmatpush1.msra.mxu0 %v630
    %1254 = vmatprep.subr.mxu0 %v628
    %1255 = vmatpush1.msra.mxu0 %v627
    %1256 = vmatprep.subr.mxu0 %v625
    %1257 = vmatpush1.msra.mxu0 %v624
    %1258 = vmatprep.subr.mxu0 %v622
    %1259 = vmatpush1.msra.mxu0 %v621
    %1260 = vmatprep.subr.mxu0 %v619
    %1261 = vmatpush1.msra.mxu0 %v618
    %1262 = vmatprep.subr.mxu0 %v616
    %1263 = vmatpush1.msra.mxu0 %v615
    %1264 = vmatprep.subr.mxu0 %v613
    %1265 = vmatpush1.msra.mxu0 %v612
    %1266 = vmatprep.subr.mxu0 %v610
    %1267 = vmatpush1.msra.mxu0 %v609
    %1268 = vmatprep.subr.mxu0 %v607
    %1269 = vmatpush1.msra.mxu0 %v606
    %1270 = vmatprep.subr.mxu0 %v604
    %1271 = vmatpush1.msra.mxu0 %v603
    %1272 = vmatprep.subr.mxu0 %v601
    %1273 = vmatpush1.msra.mxu0 %v600
    %1274 = vmatprep.subr.mxu0 %v598
    %1275 = vmatpush1.msra.mxu0 %v597
    %1276 = vmatprep.subr.mxu0 0.0
    %1277 = vmatpush2.msra.mxu0 0.0
    %1278 = vmatprep.subr.mxu0 0.0
    %1279 = vmatpush2.msra.mxu0 0.0
    %1280 = vmatprep.subr.mxu0 0.0
    %1281 = vmatpush2.msra.mxu0 0.0
    %1282 = vmatprep.subr.mxu0 0.0
    %1283 = vmatpush2.msra.mxu0 0.0
    %1284 = vmatprep.subr.mxu0 0.0
    %1285 = vmatpush2.msra.mxu0 0.0
    %1286 = vmatprep.subr.mxu0 0.0
    %1287 = vmatpush2.msra.mxu0 0.0
    %1288 = vmatprep.subr.mxu0 0.0
    %1289 = vmatpush2.msra.mxu0 0.0
    %1290 = vmatprep.subr.mxu0 0.0
    %1291 = vmatpush2.msra.mxu0 0.0
    %1292 = vmatprep.subr.mxu0 0.0
    %1293 = vmatpush2.msra.mxu0 0.0
    %1294 = vmatprep.subr.mxu0 0.0
    %1295 = vmatpush2.msra.mxu0 0.0
    %1296 = vmatprep.subr.mxu0 0.0
    %1297 = vmatpush2.msra.mxu0 0.0
    %1298 = vmatprep.subr.mxu0 0.0
    %1299 = vmatpush2.msra.mxu0 0.0
    %1300 = vmatprep.subr.mxu0 0.0
    %1301 = vmatpush2.msra.mxu0 0.0
    %1302 = vmatprep.subr.mxu0 0.0
    %1303 = vmatpush2.msra.mxu0 0.0
    %1304 = vmatprep.subr.mxu0 0.0
    %1305 = vmatpush2.msra.mxu0 0.0
    %1306 = vmatprep.subr.mxu0 0.0
    %1307 = vmatpush2.msra.mxu0 0.0
    %1308 = vmatprep.mubr.f32.mxu0 0.0
    %1309 = vmatmul.mubr.f32.gmra.mxu0 %v1242
    %v1310 = vpop.f32.mrf.mxu0
    %v1311 = vadd.f32 %v650, %v1310
    %v1312 = vpop.f32.mrf.mxu0
    %v1313 = vadd.f32 %v654, %v1312
    %1314 = vmatprep.mubr.f32.mxu0 0.0
    %1315 = vmatmul.mubr.f32.gmra.mxu0 %v1243
    %v1316 = vpop.f32.mrf.mxu0
    %v1317 = vadd.f32 %v650, %v1316
    %v1318 = vpop.f32.mrf.mxu0
    %v1319 = vadd.f32 %v654, %v1318
    %1320 = vdwg.mxu0
    %1321 = vmatprep.subr.mxu0 0.0
    %1322 = vmatpush1.msra.mxu0 %v644
    %1323 = vmatprep.subr.mxu0 0.0
    %1324 = vmatpush1.msra.mxu0 %v641
    %1325 = vmatprep.subr.mxu0 0.0
    %1326 = vmatpush1.msra.mxu0 %v638
    %1327 = vmatprep.subr.mxu0 0.0
    %1328 = vmatpush1.msra.mxu0 %v635
    %1329 = vmatprep.subr.mxu0 0.0
    %1330 = vmatpush1.msra.mxu0 %v632
    %1331 = vmatprep.subr.mxu0 0.0
    %1332 = vmatpush1.msra.mxu0 %v629
    %1333 = vmatprep.subr.mxu0 0.0
    %1334 = vmatpush1.msra.mxu0 %v626
    %1335 = vmatprep.subr.mxu0 0.0
    %1336 = vmatpush1.msra.mxu0 %v623
    %1337 = vmatprep.subr.mxu0 0.0
    %1338 = vmatpush1.msra.mxu0 %v620
    %1339 = vmatprep.subr.mxu0 0.0
    %1340 = vmatpush1.msra.mxu0 %v617
    %1341 = vmatprep.subr.mxu0 0.0
    %1342 = vmatpush1.msra.mxu0 %v614
    %1343 = vmatprep.subr.mxu0 0.0
    %1344 = vmatpush1.msra.mxu0 %v611
    %1345 = vmatprep.subr.mxu0 0.0
    %1346 = vmatpush1.msra.mxu0 %v608
    %1347 = vmatprep.subr.mxu0 0.0
    %1348 = vmatpush1.msra.mxu0 %v605
    %1349 = vmatprep.subr.mxu0 0.0
    %1350 = vmatpush1.msra.mxu0 %v602
    %1351 = vmatprep.subr.mxu0 0.0
    %1352 = vmatpush1.msra.mxu0 %v599
    %1353 = vmatprep.subr.mxu0 0.0
    %1354 = vmatpush2.msra.mxu0 0.0
    %1355 = vmatprep.subr.mxu0 0.0
    %1356 = vmatpush2.msra.mxu0 0.0
    %1357 = vmatprep.subr.mxu0 0.0
    %1358 = vmatpush2.msra.mxu0 0.0
    %1359 = vmatprep.subr.mxu0 0.0
    %1360 = vmatpush2.msra.mxu0 0.0
    %1361 = vmatprep.subr.mxu0 0.0
    %1362 = vmatpush2.msra.mxu0 0.0
    %1363 = vmatprep.subr.mxu0 0.0
    %1364 = vmatpush2.msra.mxu0 0.0
    %1365 = vmatprep.subr.mxu0 0.0
    %1366 = vmatpush2.msra.mxu0 0.0
    %1367 = vmatprep.subr.mxu0 0.0
    %1368 = vmatpush2.msra.mxu0 0.0
    %1369 = vmatprep.subr.mxu0 0.0
    %1370 = vmatpush2.msra.mxu0 0.0
    %1371 = vmatprep.subr.mxu0 0.0
    %1372 = vmatpush2.msra.mxu0 0.0
    %1373 = vmatprep.subr.mxu0 0.0
    %1374 = vmatpush2.msra.mxu0 0.0
    %1375 = vmatprep.subr.mxu0 0.0
    %1376 = vmatpush2.msra.mxu0 0.0
    %1377 = vmatprep.subr.mxu0 0.0
    %1378 = vmatpush2.msra.mxu0 0.0
    %1379 = vmatprep.subr.mxu0 0.0
    %1380 = vmatpush2.msra.mxu0 0.0
    %1381 = vmatprep.subr.mxu0 0.0
    %1382 = vmatpush2.msra.mxu0 0.0
    %1383 = vmatprep.subr.mxu0 0.0
    %1384 = vmatpush2.msra.mxu0 0.0
    %1385 = vmatprep.mubr.f32.mxu0 0.0
    %1386 = vmatmul.mubr.f32.gmra.mxu0 %v1242
    %v1387 = vpop.f32.mrf.mxu0
    %v1388 = vadd.f32 %v658, %v1387
    %v1389 = vpop.f32.mrf.mxu0
    %1390 = vmatprep.mubr.f32.mxu0 0.0
    %1391 = vmatmul.mubr.f32.gmra.mxu0 %v1243
    %v1392 = vpop.f32.mrf.mxu0
    %v1393 = vadd.f32 %v658, %v1392
    %v1394 = vpop.f32.mrf.mxu0
    %1395 = vdwg.mxu0
    %v1396 = vadd.f32 %v394, %v1311
    %v1397 = vadd.f32 %v400, %v1317
    %v1398 = vxor.u32 %v1396, 2147483648
    %v1399 = vxor.u32 %v1397, 2147483648
    %v1400 = vmul.f32 %v1398, 1.442695
    %v1401 = vpow.pop %v1400
    %v1402 = vmul.f32 %v1399, 1.442695
    %v1403 = vpow.pop %v1402
    %v1404 = vadd.f32 %v1401, 1.0
    %v1405 = vadd.f32 %v1403, 1.0
    %v1406 = vrcp.pop %v1404
    %v1407 = vmul.f32 1.0, %v1406
    %v1408 = vrcp.pop %v1405
    %v1409 = vmul.f32 1.0, %v1408
    %v1410 = vadd.f32 %v396, %v1313
    %v1411 = vadd.f32 %v402, %v1319
    %v1412 = vxor.u32 %v1410, 2147483648
    %v1413 = vxor.u32 %v1411, 2147483648
    %v1414 = vmul.f32 %v1412, 1.442695
    %v1415 = vpow.pop %v1414
    %v1416 = vmul.f32 %v1413, 1.442695
    %v1417 = vpow.pop %v1416
    %v1418 = vadd.f32 %v1415, 1.0
    %v1419 = vadd.f32 %v1417, 1.0
    %v1420 = vrcp.pop %v1418
    %v1421 = vmul.f32 1.0, %v1420
    %v1422 = vrcp.pop %v1419
    %v1423 = vmul.f32 1.0, %v1422
    %v1424 = vmul.f32 %v1407, %v1388
    %v1425 = vmul.f32 %v1409, %v1393
    %v1426 = vadd.f32 %v549, %v1424
    %v1427 = vadd.f32 %v554, %v1425
    %v1428 = vtanh.pop %v1426
    %v1429 = vtanh.pop %v1427
    %v1430 = vsub.f32 1.0, %v1421
    %v1431 = vsub.f32 1.0, %v1423
    %v1432 = vmul.f32 %v1430, %v1428
    %v1433 = vmul.f32 %v1431, %v1429
    %v1434 = vmul.f32 %v1421, %v1242
    %v1435 = vmul.f32 %v1423, %v1243
    %v1436 = vadd.f32 %v1432, %v1434
    %v1437 = vadd.f32 %v1433, %v1435
    %1438 = vmatprep.subr.mxu0 %v643
    %1439 = vmatpush1.msra.mxu0 %v642
    %1440 = vmatprep.subr.mxu0 %v640
    %1441 = vmatpush1.msra.mxu0 %v639
    %1442 = vmatprep.subr.mxu0 %v637
    %1443 = vmatpush1.msra.mxu0 %v636
    %1444 = vmatprep.subr.mxu0 %v634
    %1445 = vmatpush1.msra.mxu0 %v633
    %1446 = vmatprep.subr.mxu0 %v631
    %1447 = vmatpush1.msra.mxu0 %v630
    %1448 = vmatprep.subr.mxu0 %v628
    %1449 = vmatpush1.msra.mxu0 %v627
    %1450 = vmatprep.subr.mxu0 %v625
    %1451 = vmatpush1.msra.mxu0 %v624
    %1452 = vmatprep.subr.mxu0 %v622
    %1453 = vmatpush1.msra.mxu0 %v621
    %1454 = vmatprep.subr.mxu0 %v619
    %1455 = vmatpush1.msra.mxu0 %v618
    %1456 = vmatprep.subr.mxu0 %v616
    %1457 = vmatpush1.msra.mxu0 %v615
    %1458 = vmatprep.subr.mxu0 %v613
    %1459 = vmatpush1.msra.mxu0 %v612
    %1460 = vmatprep.subr.mxu0 %v610
    %1461 = vmatpush1.msra.mxu0 %v609
    %1462 = vmatprep.subr.mxu0 %v607
    %1463 = vmatpush1.msra.mxu0 %v606
    %1464 = vmatprep.subr.mxu0 %v604
    %1465 = vmatpush1.msra.mxu0 %v603
    %1466 = vmatprep.subr.mxu0 %v601
    %1467 = vmatpush1.msra.mxu0 %v600
    %1468 = vmatprep.subr.mxu0 %v598
    %1469 = vmatpush1.msra.mxu0 %v597
    %1470 = vmatprep.subr.mxu0 0.0
    %1471 = vmatpush2.msra.mxu0 0.0
    %1472 = vmatprep.subr.mxu0 0.0
    %1473 = vmatpush2.msra.mxu0 0.0
    %1474 = vmatprep.subr.mxu0 0.0
    %1475 = vmatpush2.msra.mxu0 0.0
    %1476 = vmatprep.subr.mxu0 0.0
    %1477 = vmatpush2.msra.mxu0 0.0
    %1478 = vmatprep.subr.mxu0 0.0
    %1479 = vmatpush2.msra.mxu0 0.0
    %1480 = vmatprep.subr.mxu0 0.0
    %1481 = vmatpush2.msra.mxu0 0.0
    %1482 = vmatprep.subr.mxu0 0.0
    %1483 = vmatpush2.msra.mxu0 0.0
    %1484 = vmatprep.subr.mxu0 0.0
    %1485 = vmatpush2.msra.mxu0 0.0
    %1486 = vmatprep.subr.mxu0 0.0
    %1487 = vmatpush2.msra.mxu0 0.0
    %1488 = vmatprep.subr.mxu0 0.0
    %1489 = vmatpush2.msra.mxu0 0.0
    %1490 = vmatprep.subr.mxu0 0.0
    %1491 = vmatpush2.msra.mxu0 0.0
    %1492 = vmatprep.subr.mxu0 0.0
    %1493 = vmatpush2.msra.mxu0 0.0
    %1494 = vmatprep.subr.mxu0 0.0
    %1495 = vmatpush2.msra.mxu0 0.0
    %1496 = vmatprep.subr.mxu0 0.0
    %1497 = vmatpush2.msra.mxu0 0.0
    %1498 = vmatprep.subr.mxu0 0.0
    %1499 = vmatpush2.msra.mxu0 0.0
    %1500 = vmatprep.subr.mxu0 0.0
    %1501 = vmatpush2.msra.mxu0 0.0
    %1502 = vmatprep.mubr.f32.mxu0 0.0
    %1503 = vmatmul.mubr.f32.gmra.mxu0 %v1436
    %v1504 = vpop.f32.mrf.mxu0
    %v1505 = vadd.f32 %v650, %v1504
    %v1506 = vpop.f32.mrf.mxu0
    %v1507 = vadd.f32 %v654, %v1506
    %1508 = vmatprep.mubr.f32.mxu0 0.0
    %1509 = vmatmul.mubr.f32.gmra.mxu0 %v1437
    %v1510 = vpop.f32.mrf.mxu0
    %v1511 = vadd.f32 %v650, %v1510
    %v1512 = vpop.f32.mrf.mxu0
    %v1513 = vadd.f32 %v654, %v1512
    %1514 = vdwg.mxu0
    %1515 = vmatprep.subr.mxu0 0.0
    %1516 = vmatpush1.msra.mxu0 %v644
    %1517 = vmatprep.subr.mxu0 0.0
    %1518 = vmatpush1.msra.mxu0 %v641
    %1519 = vmatprep.subr.mxu0 0.0
    %1520 = vmatpush1.msra.mxu0 %v638
    %1521 = vmatprep.subr.mxu0 0.0
    %1522 = vmatpush1.msra.mxu0 %v635
    %1523 = vmatprep.subr.mxu0 0.0
    %1524 = vmatpush1.msra.mxu0 %v632
    %1525 = vmatprep.subr.mxu0 0.0
    %1526 = vmatpush1.msra.mxu0 %v629
    %1527 = vmatprep.subr.mxu0 0.0
    %1528 = vmatpush1.msra.mxu0 %v626
    %1529 = vmatprep.subr.mxu0 0.0
    %1530 = vmatpush1.msra.mxu0 %v623
    %1531 = vmatprep.subr.mxu0 0.0
    %1532 = vmatpush1.msra.mxu0 %v620
    %1533 = vmatprep.subr.mxu0 0.0
    %1534 = vmatpush1.msra.mxu0 %v617
    %1535 = vmatprep.subr.mxu0 0.0
    %1536 = vmatpush1.msra.mxu0 %v614
    %1537 = vmatprep.subr.mxu0 0.0
    %1538 = vmatpush1.msra.mxu0 %v611
    %1539 = vmatprep.subr.mxu0 0.0
    %1540 = vmatpush1.msra.mxu0 %v608
    %1541 = vmatprep.subr.mxu0 0.0
    %1542 = vmatpush1.msra.mxu0 %v605
    %1543 = vmatprep.subr.mxu0 0.0
    %1544 = vmatpush1.msra.mxu0 %v602
    %1545 = vmatprep.subr.mxu0 0.0
    %1546 = vmatpush1.msra.mxu0 %v599
    %1547 = vmatprep.subr.mxu0 0.0
    %1548 = vmatpush2.msra.mxu0 0.0
    %1549 = vmatprep.subr.mxu0 0.0
    %1550 = vmatpush2.msra.mxu0 0.0
    %1551 = vmatprep.subr.mxu0 0.0
    %1552 = vmatpush2.msra.mxu0 0.0
    %1553 = vmatprep.subr.mxu0 0.0
    %1554 = vmatpush2.msra.mxu0 0.0
    %1555 = vmatprep.subr.mxu0 0.0
    %1556 = vmatpush2.msra.mxu0 0.0
    %1557 = vmatprep.subr.mxu0 0.0
    %1558 = vmatpush2.msra.mxu0 0.0
    %1559 = vmatprep.subr.mxu0 0.0
    %1560 = vmatpush2.msra.mxu0 0.0
    %1561 = vmatprep.subr.mxu0 0.0
    %1562 = vmatpush2.msra.mxu0 0.0
    %1563 = vmatprep.subr.mxu0 0.0
    %1564 = vmatpush2.msra.mxu0 0.0
    %1565 = vmatprep.subr.mxu0 0.0
    %1566 = vmatpush2.msra.mxu0 0.0
    %1567 = vmatprep.subr.mxu0 0.0
    %1568 = vmatpush2.msra.mxu0 0.0
    %1569 = vmatprep.subr.mxu0 0.0
    %1570 = vmatpush2.msra.mxu0 0.0
    %1571 = vmatprep.subr.mxu0 0.0
    %1572 = vmatpush2.msra.mxu0 0.0
    %1573 = vmatprep.subr.mxu0 0.0
    %1574 = vmatpush2.msra.mxu0 0.0
    %1575 = vmatprep.subr.mxu0 0.0
    %1576 = vmatpush2.msra.mxu0 0.0
    %1577 = vmatprep.subr.mxu0 0.0
    %1578 = vmatpush2.msra.mxu0 0.0
    %1579 = vmatprep.mubr.f32.mxu0 0.0
    %1580 = vmatmul.mubr.f32.gmra.mxu0 %v1436
    %v1581 = vpop.f32.mrf.mxu0
    %v1582 = vadd.f32 %v658, %v1581
    %v1583 = vpop.f32.mrf.mxu0
    %1584 = vmatprep.mubr.f32.mxu0 0.0
    %1585 = vmatmul.mubr.f32.gmra.mxu0 %v1437
    %v1586 = vpop.f32.mrf.mxu0
    %v1587 = vadd.f32 %v658, %v1586
    %v1588 = vpop.f32.mrf.mxu0
    %1589 = vdwg.mxu0
    %v1590 = vadd.f32 %v406, %v1505
    %v1591 = vadd.f32 %v412, %v1511
    %v1592 = vxor.u32 %v1590, 2147483648
    %v1593 = vxor.u32 %v1591, 2147483648
    %v1594 = vmul.f32 %v1592, 1.442695
    %v1595 = vpow.pop %v1594
    %v1596 = vmul.f32 %v1593, 1.442695
    %v1597 = vpow.pop %v1596
    %v1598 = vadd.f32 %v1595, 1.0
    %v1599 = vadd.f32 %v1597, 1.0
    %v1600 = vrcp.pop %v1598
    %v1601 = vmul.f32 1.0, %v1600
    %v1602 = vrcp.pop %v1599
    %v1603 = vmul.f32 1.0, %v1602
    %v1604 = vadd.f32 %v408, %v1507
    %v1605 = vadd.f32 %v414, %v1513
    %v1606 = vxor.u32 %v1604, 2147483648
    %v1607 = vxor.u32 %v1605, 2147483648
    %v1608 = vmul.f32 %v1606, 1.442695
    %v1609 = vpow.pop %v1608
    %v1610 = vmul.f32 %v1607, 1.442695
    %v1611 = vpow.pop %v1610
    %v1612 = vadd.f32 %v1609, 1.0
    %v1613 = vadd.f32 %v1611, 1.0
    %v1614 = vrcp.pop %v1612
    %v1615 = vmul.f32 1.0, %v1614
    %v1616 = vrcp.pop %v1613
    %v1617 = vmul.f32 1.0, %v1616
    %v1618 = vmul.f32 %v1601, %v1582
    %v1619 = vmul.f32 %v1603, %v1587
    %v1620 = vadd.f32 %v559, %v1618
    %v1621 = vadd.f32 %v564, %v1619
    %v1622 = vtanh.pop %v1620
    %v1623 = vtanh.pop %v1621
    %v1624 = vsub.f32 1.0, %v1615
    %v1625 = vsub.f32 1.0, %v1617
    %v1626 = vmul.f32 %v1624, %v1622
    %v1627 = vmul.f32 %v1625, %v1623
    %v1628 = vmul.f32 %v1615, %v1436
    %v1629 = vmul.f32 %v1617, %v1437
    %v1630 = vadd.f32 %v1626, %v1628
    %v1631 = vadd.f32 %v1627, %v1629
    %1632 = vmatprep.subr.mxu0 %v643
    %1633 = vmatpush1.msra.mxu0 %v642
    %1634 = vmatprep.subr.mxu0 %v640
    %1635 = vmatpush1.msra.mxu0 %v639
    %1636 = vmatprep.subr.mxu0 %v637
    %1637 = vmatpush1.msra.mxu0 %v636
    %1638 = vmatprep.subr.mxu0 %v634
    %1639 = vmatpush1.msra.mxu0 %v633
    %1640 = vmatprep.subr.mxu0 %v631
    %1641 = vmatpush1.msra.mxu0 %v630
    %1642 = vmatprep.subr.mxu0 %v628
    %1643 = vmatpush1.msra.mxu0 %v627
    %1644 = vmatprep.subr.mxu0 %v625
    %1645 = vmatpush1.msra.mxu0 %v624
    %1646 = vmatprep.subr.mxu0 %v622
    %1647 = vmatpush1.msra.mxu0 %v621
    %1648 = vmatprep.subr.mxu0 %v619
    %1649 = vmatpush1.msra.mxu0 %v618
    %1650 = vmatprep.subr.mxu0 %v616
    %1651 = vmatpush1.msra.mxu0 %v615
    %1652 = vmatprep.subr.mxu0 %v613
    %1653 = vmatpush1.msra.mxu0 %v612
    %1654 = vmatprep.subr.mxu0 %v610
    %1655 = vmatpush1.msra.mxu0 %v609
    %1656 = vmatprep.subr.mxu0 %v607
    %1657 = vmatpush1.msra.mxu0 %v606
    %1658 = vmatprep.subr.mxu0 %v604
    %1659 = vmatpush1.msra.mxu0 %v603
    %1660 = vmatprep.subr.mxu0 %v601
    %1661 = vmatpush1.msra.mxu0 %v600
    %1662 = vmatprep.subr.mxu0 %v598
    %1663 = vmatpush1.msra.mxu0 %v597
    %1664 = vmatprep.subr.mxu0 0.0
    %1665 = vmatpush2.msra.mxu0 0.0
    %1666 = vmatprep.subr.mxu0 0.0
    %1667 = vmatpush2.msra.mxu0 0.0
    %1668 = vmatprep.subr.mxu0 0.0
    %1669 = vmatpush2.msra.mxu0 0.0
    %1670 = vmatprep.subr.mxu0 0.0
    %1671 = vmatpush2.msra.mxu0 0.0
    %1672 = vmatprep.subr.mxu0 0.0
    %1673 = vmatpush2.msra.mxu0 0.0
    %1674 = vmatprep.subr.mxu0 0.0
    %1675 = vmatpush2.msra.mxu0 0.0
    %1676 = vmatprep.subr.mxu0 0.0
    %1677 = vmatpush2.msra.mxu0 0.0
    %1678 = vmatprep.subr.mxu0 0.0
    %1679 = vmatpush2.msra.mxu0 0.0
    %1680 = vmatprep.subr.mxu0 0.0
    %1681 = vmatpush2.msra.mxu0 0.0
    %1682 = vmatprep.subr.mxu0 0.0
    %1683 = vmatpush2.msra.mxu0 0.0
    %1684 = vmatprep.subr.mxu0 0.0
    %1685 = vmatpush2.msra.mxu0 0.0
    %1686 = vmatprep.subr.mxu0 0.0
    %1687 = vmatpush2.msra.mxu0 0.0
    %1688 = vmatprep.subr.mxu0 0.0
    %1689 = vmatpush2.msra.mxu0 0.0
    %1690 = vmatprep.subr.mxu0 0.0
    %1691 = vmatpush2.msra.mxu0 0.0
    %1692 = vmatprep.subr.mxu0 0.0
    %1693 = vmatpush2.msra.mxu0 0.0
    %1694 = vmatprep.subr.mxu0 0.0
    %1695 = vmatpush2.msra.mxu0 0.0
    %1696 = vmatprep.mubr.f32.mxu0 0.0
    %1697 = vmatmul.mubr.f32.gmra.mxu0 %v1630
    %v1698 = vpop.f32.mrf.mxu0
    %v1699 = vadd.f32 %v650, %v1698
    %v1700 = vpop.f32.mrf.mxu0
    %v1701 = vadd.f32 %v654, %v1700
    %1702 = vmatprep.mubr.f32.mxu0 0.0
    %1703 = vmatmul.mubr.f32.gmra.mxu0 %v1631
    %v1704 = vpop.f32.mrf.mxu0
    %v1705 = vadd.f32 %v650, %v1704
    %v1706 = vpop.f32.mrf.mxu0
    %v1707 = vadd.f32 %v654, %v1706
    %1708 = vdwg.mxu0
    %1709 = vmatprep.subr.mxu0 0.0
    %1710 = vmatpush1.msra.mxu0 %v644
    %1711 = vmatprep.subr.mxu0 0.0
    %1712 = vmatpush1.msra.mxu0 %v641
    %1713 = vmatprep.subr.mxu0 0.0
    %1714 = vmatpush1.msra.mxu0 %v638
    %1715 = vmatprep.subr.mxu0 0.0
    %1716 = vmatpush1.msra.mxu0 %v635
    %1717 = vmatprep.subr.mxu0 0.0
    %1718 = vmatpush1.msra.mxu0 %v632
    %1719 = vmatprep.subr.mxu0 0.0
    %1720 = vmatpush1.msra.mxu0 %v629
    %1721 = vmatprep.subr.mxu0 0.0
    %1722 = vmatpush1.msra.mxu0 %v626
    %1723 = vmatprep.subr.mxu0 0.0
    %1724 = vmatpush1.msra.mxu0 %v623
    %1725 = vmatprep.subr.mxu0 0.0
    %1726 = vmatpush1.msra.mxu0 %v620
    %1727 = vmatprep.subr.mxu0 0.0
    %1728 = vmatpush1.msra.mxu0 %v617
    %1729 = vmatprep.subr.mxu0 0.0
    %1730 = vmatpush1.msra.mxu0 %v614
    %1731 = vmatprep.subr.mxu0 0.0
    %1732 = vmatpush1.msra.mxu0 %v611
    %1733 = vmatprep.subr.mxu0 0.0
    %1734 = vmatpush1.msra.mxu0 %v608
    %1735 = vmatprep.subr.mxu0 0.0
    %1736 = vmatpush1.msra.mxu0 %v605
    %1737 = vmatprep.subr.mxu0 0.0
    %1738 = vmatpush1.msra.mxu0 %v602
    %1739 = vmatprep.subr.mxu0 0.0
    %1740 = vmatpush1.msra.mxu0 %v599
    %1741 = vmatprep.subr.mxu0 0.0
    %1742 = vmatpush2.msra.mxu0 0.0
    %1743 = vmatprep.subr.mxu0 0.0
    %1744 = vmatpush2.msra.mxu0 0.0
    %1745 = vmatprep.subr.mxu0 0.0
    %1746 = vmatpush2.msra.mxu0 0.0
    %1747 = vmatprep.subr.mxu0 0.0
    %1748 = vmatpush2.msra.mxu0 0.0
    %1749 = vmatprep.subr.mxu0 0.0
    %1750 = vmatpush2.msra.mxu0 0.0
    %1751 = vmatprep.subr.mxu0 0.0
    %1752 = vmatpush2.msra.mxu0 0.0
    %1753 = vmatprep.subr.mxu0 0.0
    %1754 = vmatpush2.msra.mxu0 0.0
    %1755 = vmatprep.subr.mxu0 0.0
    %1756 = vmatpush2.msra.mxu0 0.0
    %1757 = vmatprep.subr.mxu0 0.0
    %1758 = vmatpush2.msra.mxu0 0.0
    %1759 = vmatprep.subr.mxu0 0.0
    %1760 = vmatpush2.msra.mxu0 0.0
    %1761 = vmatprep.subr.mxu0 0.0
    %1762 = vmatpush2.msra.mxu0 0.0
    %1763 = vmatprep.subr.mxu0 0.0
    %1764 = vmatpush2.msra.mxu0 0.0
    %1765 = vmatprep.subr.mxu0 0.0
    %1766 = vmatpush2.msra.mxu0 0.0
    %1767 = vmatprep.subr.mxu0 0.0
    %1768 = vmatpush2.msra.mxu0 0.0
    %1769 = vmatprep.subr.mxu0 0.0
    %1770 = vmatpush2.msra.mxu0 0.0
    %1771 = vmatprep.subr.mxu0 0.0
    %1772 = vmatpush2.msra.mxu0 0.0
    %1773 = vmatprep.mubr.f32.mxu0 0.0
    %1774 = vmatmul.mubr.f32.gmra.mxu0 %v1630
    %v1775 = vpop.f32.mrf.mxu0
    %v1776 = vadd.f32 %v658, %v1775
    %v1777 = vpop.f32.mrf.mxu0
    %1778 = vmatprep.mubr.f32.mxu0 0.0
    %1779 = vmatmul.mubr.f32.gmra.mxu0 %v1631
    %v1780 = vpop.f32.mrf.mxu0
    %v1781 = vadd.f32 %v658, %v1780
    %v1782 = vpop.f32.mrf.mxu0
    %1783 = vdwg.mxu0
    %v1784 = vadd.f32 %v418, %v1699
    %v1785 = vadd.f32 %v424, %v1705
    %v1786 = vxor.u32 %v1784, 2147483648
    %v1787 = vxor.u32 %v1785, 2147483648
    %v1788 = vmul.f32 %v1786, 1.442695
    %v1789 = vpow.pop %v1788
    %v1790 = vmul.f32 %v1787, 1.442695
    %v1791 = vpow.pop %v1790
    %v1792 = vadd.f32 %v1789, 1.0
    %v1793 = vadd.f32 %v1791, 1.0
    %v1794 = vrcp.pop %v1792
    %v1795 = vmul.f32 1.0, %v1794
    %v1796 = vrcp.pop %v1793
    %v1797 = vmul.f32 1.0, %v1796
    %v1798 = vadd.f32 %v420, %v1701
    %v1799 = vadd.f32 %v426, %v1707
    %v1800 = vxor.u32 %v1798, 2147483648
    %v1801 = vxor.u32 %v1799, 2147483648
    %v1802 = vmul.f32 %v1800, 1.442695
    %v1803 = vpow.pop %v1802
    %v1804 = vmul.f32 %v1801, 1.442695
    %v1805 = vpow.pop %v1804
    %v1806 = vadd.f32 %v1803, 1.0
    %v1807 = vadd.f32 %v1805, 1.0
    %v1808 = vrcp.pop %v1806
    %v1809 = vmul.f32 1.0, %v1808
    %v1810 = vrcp.pop %v1807
    %v1811 = vmul.f32 1.0, %v1810
    %v1812 = vmul.f32 %v1795, %v1776
    %v1813 = vmul.f32 %v1797, %v1781
    %v1814 = vadd.f32 %v569, %v1812
    %v1815 = vadd.f32 %v574, %v1813
    %v1816 = vtanh.pop %v1814
    %v1817 = vtanh.pop %v1815
    %v1818 = vsub.f32 1.0, %v1809
    %v1819 = vsub.f32 1.0, %v1811
    %v1820 = vmul.f32 %v1818, %v1816
    %v1821 = vmul.f32 %v1819, %v1817
    %v1822 = vmul.f32 %v1809, %v1630
    %v1823 = vmul.f32 %v1811, %v1631
    %v1824 = vadd.f32 %v1820, %v1822
    %v1825 = vadd.f32 %v1821, %v1823
    %1826 = vmatprep.subr.mxu0 %v643
    %1827 = vmatpush1.msra.mxu0 %v642
    %1828 = vmatprep.subr.mxu0 %v640
    %1829 = vmatpush1.msra.mxu0 %v639
    %1830 = vmatprep.subr.mxu0 %v637
    %1831 = vmatpush1.msra.mxu0 %v636
    %1832 = vmatprep.subr.mxu0 %v634
    %1833 = vmatpush1.msra.mxu0 %v633
    %1834 = vmatprep.subr.mxu0 %v631
    %1835 = vmatpush1.msra.mxu0 %v630
    %1836 = vmatprep.subr.mxu0 %v628
    %1837 = vmatpush1.msra.mxu0 %v627
    %1838 = vmatprep.subr.mxu0 %v625
    %1839 = vmatpush1.msra.mxu0 %v624
    %1840 = vmatprep.subr.mxu0 %v622
    %1841 = vmatpush1.msra.mxu0 %v621
    %1842 = vmatprep.subr.mxu0 %v619
    %1843 = vmatpush1.msra.mxu0 %v618
    %1844 = vmatprep.subr.mxu0 %v616
    %1845 = vmatpush1.msra.mxu0 %v615
    %1846 = vmatprep.subr.mxu0 %v613
    %1847 = vmatpush1.msra.mxu0 %v612
    %1848 = vmatprep.subr.mxu0 %v610
    %1849 = vmatpush1.msra.mxu0 %v609
    %1850 = vmatprep.subr.mxu0 %v607
    %1851 = vmatpush1.msra.mxu0 %v606
    %1852 = vmatprep.subr.mxu0 %v604
    %1853 = vmatpush1.msra.mxu0 %v603
    %1854 = vmatprep.subr.mxu0 %v601
    %1855 = vmatpush1.msra.mxu0 %v600
    %1856 = vmatprep.subr.mxu0 %v598
    %1857 = vmatpush1.msra.mxu0 %v597
    %1858 = vmatprep.subr.mxu0 0.0
    %1859 = vmatpush2.msra.mxu0 0.0
    %1860 = vmatprep.subr.mxu0 0.0
    %1861 = vmatpush2.msra.mxu0 0.0
    %1862 = vmatprep.subr.mxu0 0.0
    %1863 = vmatpush2.msra.mxu0 0.0
    %1864 = vmatprep.subr.mxu0 0.0
    %1865 = vmatpush2.msra.mxu0 0.0
    %1866 = vmatprep.subr.mxu0 0.0
    %1867 = vmatpush2.msra.mxu0 0.0
    %1868 = vmatprep.subr.mxu0 0.0
    %1869 = vmatpush2.msra.mxu0 0.0
    %1870 = vmatprep.subr.mxu0 0.0
    %1871 = vmatpush2.msra.mxu0 0.0
    %1872 = vmatprep.subr.mxu0 0.0
    %1873 = vmatpush2.msra.mxu0 0.0
    %1874 = vmatprep.subr.mxu0 0.0
    %1875 = vmatpush2.msra.mxu0 0.0
    %1876 = vmatprep.subr.mxu0 0.0
    %1877 = vmatpush2.msra.mxu0 0.0
    %1878 = vmatprep.subr.mxu0 0.0
    %1879 = vmatpush2.msra.mxu0 0.0
    %1880 = vmatprep.subr.mxu0 0.0
    %1881 = vmatpush2.msra.mxu0 0.0
    %1882 = vmatprep.subr.mxu0 0.0
    %1883 = vmatpush2.msra.mxu0 0.0
    %1884 = vmatprep.subr.mxu0 0.0
    %1885 = vmatpush2.msra.mxu0 0.0
    %1886 = vmatprep.subr.mxu0 0.0
    %1887 = vmatpush2.msra.mxu0 0.0
    %1888 = vmatprep.subr.mxu0 0.0
    %1889 = vmatpush2.msra.mxu0 0.0
    %1890 = vmatprep.mubr.f32.mxu0 0.0
    %1891 = vmatmul.mubr.f32.gmra.mxu0 %v1824
    %v1892 = vpop.f32.mrf.mxu0
    %v1893 = vadd.f32 %v650, %v1892
    %v1894 = vpop.f32.mrf.mxu0
    %v1895 = vadd.f32 %v654, %v1894
    %1896 = vmatprep.mubr.f32.mxu0 0.0
    %1897 = vmatmul.mubr.f32.gmra.mxu0 %v1825
    %v1898 = vpop.f32.mrf.mxu0
    %v1899 = vadd.f32 %v650, %v1898
    %v1900 = vpop.f32.mrf.mxu0
    %v1901 = vadd.f32 %v654, %v1900
    %1902 = vdwg.mxu0
    %1903 = vmatprep.subr.mxu0 0.0
    %1904 = vmatpush1.msra.mxu0 %v644
    %1905 = vmatprep.subr.mxu0 0.0
    %1906 = vmatpush1.msra.mxu0 %v641
    %1907 = vmatprep.subr.mxu0 0.0
    %1908 = vmatpush1.msra.mxu0 %v638
    %1909 = vmatprep.subr.mxu0 0.0
    %1910 = vmatpush1.msra.mxu0 %v635
    %1911 = vmatprep.subr.mxu0 0.0
    %1912 = vmatpush1.msra.mxu0 %v632
    %1913 = vmatprep.subr.mxu0 0.0
    %1914 = vmatpush1.msra.mxu0 %v629
    %1915 = vmatprep.subr.mxu0 0.0
    %1916 = vmatpush1.msra.mxu0 %v626
    %1917 = vmatprep.subr.mxu0 0.0
    %1918 = vmatpush1.msra.mxu0 %v623
    %1919 = vmatprep.subr.mxu0 0.0
    %1920 = vmatpush1.msra.mxu0 %v620
    %1921 = vmatprep.subr.mxu0 0.0
    %1922 = vmatpush1.msra.mxu0 %v617
    %1923 = vmatprep.subr.mxu0 0.0
    %1924 = vmatpush1.msra.mxu0 %v614
    %1925 = vmatprep.subr.mxu0 0.0
    %1926 = vmatpush1.msra.mxu0 %v611
    %1927 = vmatprep.subr.mxu0 0.0
    %1928 = vmatpush1.msra.mxu0 %v608
    %1929 = vmatprep.subr.mxu0 0.0
    %1930 = vmatpush1.msra.mxu0 %v605
    %1931 = vmatprep.subr.mxu0 0.0
    %1932 = vmatpush1.msra.mxu0 %v602
    %1933 = vmatprep.subr.mxu0 0.0
    %1934 = vmatpush1.msra.mxu0 %v599
    %1935 = vmatprep.subr.mxu0 0.0
    %1936 = vmatpush2.msra.mxu0 0.0
    %1937 = vmatprep.subr.mxu0 0.0
    %1938 = vmatpush2.msra.mxu0 0.0
    %1939 = vmatprep.subr.mxu0 0.0
    %1940 = vmatpush2.msra.mxu0 0.0
    %1941 = vmatprep.subr.mxu0 0.0
    %1942 = vmatpush2.msra.mxu0 0.0
    %1943 = vmatprep.subr.mxu0 0.0
    %1944 = vmatpush2.msra.mxu0 0.0
    %1945 = vmatprep.subr.mxu0 0.0
    %1946 = vmatpush2.msra.mxu0 0.0
    %1947 = vmatprep.subr.mxu0 0.0
    %1948 = vmatpush2.msra.mxu0 0.0
    %1949 = vmatprep.subr.mxu0 0.0
    %1950 = vmatpush2.msra.mxu0 0.0
    %1951 = vmatprep.subr.mxu0 0.0
    %1952 = vmatpush2.msra.mxu0 0.0
    %1953 = vmatprep.subr.mxu0 0.0
    %1954 = vmatpush2.msra.mxu0 0.0
    %1955 = vmatprep.subr.mxu0 0.0
    %1956 = vmatpush2.msra.mxu0 0.0
    %1957 = vmatprep.subr.mxu0 0.0
    %1958 = vmatpush2.msra.mxu0 0.0
    %1959 = vmatprep.subr.mxu0 0.0
    %1960 = vmatpush2.msra.mxu0 0.0
    %1961 = vmatprep.subr.mxu0 0.0
    %1962 = vmatpush2.msra.mxu0 0.0
    %1963 = vmatprep.subr.mxu0 0.0
    %1964 = vmatpush2.msra.mxu0 0.0
    %1965 = vmatprep.subr.mxu0 0.0
    %1966 = vmatpush2.msra.mxu0 0.0
    %1967 = vmatprep.mubr.f32.mxu0 0.0
    %1968 = vmatmul.mubr.f32.gmra.mxu0 %v1824
    %v1969 = vpop.f32.mrf.mxu0
    %v1970 = vadd.f32 %v658, %v1969
    %v1971 = vpop.f32.mrf.mxu0
    %1972 = vmatprep.mubr.f32.mxu0 0.0
    %1973 = vmatmul.mubr.f32.gmra.mxu0 %v1825
    %v1974 = vpop.f32.mrf.mxu0
    %v1975 = vadd.f32 %v658, %v1974
    %v1976 = vpop.f32.mrf.mxu0
    %1977 = vdwg.mxu0
    %v1978 = vadd.f32 %v430, %v1893
    %v1979 = vadd.f32 %v436, %v1899
    %v1980 = vxor.u32 %v1978, 2147483648
    %v1981 = vxor.u32 %v1979, 2147483648
    %v1982 = vmul.f32 %v1980, 1.442695
    %v1983 = vpow.pop %v1982
    %v1984 = vmul.f32 %v1981, 1.442695
    %v1985 = vpow.pop %v1984
    %v1986 = vadd.f32 %v1983, 1.0
    %v1987 = vadd.f32 %v1985, 1.0
    %v1988 = vrcp.pop %v1986
    %v1989 = vmul.f32 1.0, %v1988
    %v1990 = vrcp.pop %v1987
    %v1991 = vmul.f32 1.0, %v1990
    %v1992 = vadd.f32 %v432, %v1895
    %v1993 = vadd.f32 %v438, %v1901
    %v1994 = vxor.u32 %v1992, 2147483648
    %v1995 = vxor.u32 %v1993, 2147483648
    %v1996 = vmul.f32 %v1994, 1.442695
    %v1997 = vpow.pop %v1996
    %v1998 = vmul.f32 %v1995, 1.442695
    %v1999 = vpow.pop %v1998
    %v2000 = vadd.f32 %v1997, 1.0
    %v2001 = vadd.f32 %v1999, 1.0
    %v2002 = vrcp.pop %v2000
    %v2003 = vmul.f32 1.0, %v2002
    %v2004 = vrcp.pop %v2001
    %v2005 = vmul.f32 1.0, %v2004
    %v2006 = vmul.f32 %v1989, %v1970
    %v2007 = vmul.f32 %v1991, %v1975
    %v2008 = vadd.f32 %v579, %v2006
    %v2009 = vadd.f32 %v584, %v2007
    %v2010 = vtanh.pop %v2008
    %v2011 = vtanh.pop %v2009
    %v2012 = vsub.f32 1.0, %v2003
    %v2013 = vsub.f32 1.0, %v2005
    %v2014 = vmul.f32 %v2012, %v2010
    %v2015 = vmul.f32 %v2013, %v2011
    %v2016 = vmul.f32 %v2003, %v1824
    %v2017 = vmul.f32 %v2005, %v1825
    %v2018 = vadd.f32 %v2014, %v2016
    %v2019 = vadd.f32 %v2015, %v2017
    %2020 = vmatprep.subr.mxu0 %v643
    %2021 = vmatpush1.msra.mxu0 %v642
    %2022 = vmatprep.subr.mxu0 %v640
    %2023 = vmatpush1.msra.mxu0 %v639
    %2024 = vmatprep.subr.mxu0 %v637
    %2025 = vmatpush1.msra.mxu0 %v636
    %2026 = vmatprep.subr.mxu0 %v634
    %2027 = vmatpush1.msra.mxu0 %v633
    %2028 = vmatprep.subr.mxu0 %v631
    %2029 = vmatpush1.msra.mxu0 %v630
    %2030 = vmatprep.subr.mxu0 %v628
    %2031 = vmatpush1.msra.mxu0 %v627
    %2032 = vmatprep.subr.mxu0 %v625
    %2033 = vmatpush1.msra.mxu0 %v624
    %2034 = vmatprep.subr.mxu0 %v622
    %2035 = vmatpush1.msra.mxu0 %v621
    %2036 = vmatprep.subr.mxu0 %v619
    %2037 = vmatpush1.msra.mxu0 %v618
    %2038 = vmatprep.subr.mxu0 %v616
    %2039 = vmatpush1.msra.mxu0 %v615
    %2040 = vmatprep.subr.mxu0 %v613
    %2041 = vmatpush1.msra.mxu0 %v612
    %2042 = vmatprep.subr.mxu0 %v610
    %2043 = vmatpush1.msra.mxu0 %v609
    %2044 = vmatprep.subr.mxu0 %v607
    %2045 = vmatpush1.msra.mxu0 %v606
    %2046 = vmatprep.subr.mxu0 %v604
    %2047 = vmatpush1.msra.mxu0 %v603
    %2048 = vmatprep.subr.mxu0 %v601
    %2049 = vmatpush1.msra.mxu0 %v600
    %2050 = vmatprep.subr.mxu0 %v598
    %2051 = vmatpush1.msra.mxu0 %v597
    %2052 = vmatprep.subr.mxu0 0.0
    %2053 = vmatpush2.msra.mxu0 0.0
    %2054 = vmatprep.subr.mxu0 0.0
    %2055 = vmatpush2.msra.mxu0 0.0
    %2056 = vmatprep.subr.mxu0 0.0
    %2057 = vmatpush2.msra.mxu0 0.0
    %2058 = vmatprep.subr.mxu0 0.0
    %2059 = vmatpush2.msra.mxu0 0.0
    %2060 = vmatprep.subr.mxu0 0.0
    %2061 = vmatpush2.msra.mxu0 0.0
    %2062 = vmatprep.subr.mxu0 0.0
    %2063 = vmatpush2.msra.mxu0 0.0
    %2064 = vmatprep.subr.mxu0 0.0
    %2065 = vmatpush2.msra.mxu0 0.0
    %2066 = vmatprep.subr.mxu0 0.0
    %2067 = vmatpush2.msra.mxu0 0.0
    %2068 = vmatprep.subr.mxu0 0.0
    %2069 = vmatpush2.msra.mxu0 0.0
    %2070 = vmatprep.subr.mxu0 0.0
    %2071 = vmatpush2.msra.mxu0 0.0
    %2072 = vmatprep.subr.mxu0 0.0
    %2073 = vmatpush2.msra.mxu0 0.0
    %2074 = vmatprep.subr.mxu0 0.0
    %2075 = vmatpush2.msra.mxu0 0.0
    %2076 = vmatprep.subr.mxu0 0.0
    %2077 = vmatpush2.msra.mxu0 0.0
    %2078 = vmatprep.subr.mxu0 0.0
    %2079 = vmatpush2.msra.mxu0 0.0
    %2080 = vmatprep.subr.mxu0 0.0
    %2081 = vmatpush2.msra.mxu0 0.0
    %2082 = vmatprep.subr.mxu0 0.0
    %2083 = vmatpush2.msra.mxu0 0.0
    %2084 = vmatprep.mubr.f32.mxu0 0.0
    %2085 = vmatmul.mubr.f32.gmra.mxu0 %v2018
    %v2086 = vpop.f32.mrf.mxu0
    %v2087 = vadd.f32 %v650, %v2086
    %v2088 = vpop.f32.mrf.mxu0
    %v2089 = vadd.f32 %v654, %v2088
    %2090 = vmatprep.mubr.f32.mxu0 0.0
    %2091 = vmatmul.mubr.f32.gmra.mxu0 %v2019
    %v2092 = vpop.f32.mrf.mxu0
    %v2093 = vadd.f32 %v650, %v2092
    %v2094 = vpop.f32.mrf.mxu0
    %v2095 = vadd.f32 %v654, %v2094
    %2096 = vdwg.mxu0
    %2097 = vmatprep.subr.mxu0 0.0
    %2098 = vmatpush1.msra.mxu0 %v644
    %2099 = vmatprep.subr.mxu0 0.0
    %2100 = vmatpush1.msra.mxu0 %v641
    %2101 = vmatprep.subr.mxu0 0.0
    %2102 = vmatpush1.msra.mxu0 %v638
    %2103 = vmatprep.subr.mxu0 0.0
    %2104 = vmatpush1.msra.mxu0 %v635
    %2105 = vmatprep.subr.mxu0 0.0
    %2106 = vmatpush1.msra.mxu0 %v632
    %2107 = vmatprep.subr.mxu0 0.0
    %2108 = vmatpush1.msra.mxu0 %v629
    %2109 = vmatprep.subr.mxu0 0.0
    %2110 = vmatpush1.msra.mxu0 %v626
    %2111 = vmatprep.subr.mxu0 0.0
    %2112 = vmatpush1.msra.mxu0 %v623
    %2113 = vmatprep.subr.mxu0 0.0
    %2114 = vmatpush1.msra.mxu0 %v620
    %2115 = vmatprep.subr.mxu0 0.0
    %2116 = vmatpush1.msra.mxu0 %v617
    %2117 = vmatprep.subr.mxu0 0.0
    %2118 = vmatpush1.msra.mxu0 %v614
    %2119 = vmatprep.subr.mxu0 0.0
    %2120 = vmatpush1.msra.mxu0 %v611
    %2121 = vmatprep.subr.mxu0 0.0
    %2122 = vmatpush1.msra.mxu0 %v608
    %2123 = vmatprep.subr.mxu0 0.0
    %2124 = vmatpush1.msra.mxu0 %v605
    %2125 = vmatprep.subr.mxu0 0.0
    %2126 = vmatpush1.msra.mxu0 %v602
    %2127 = vmatprep.subr.mxu0 0.0
    %2128 = vmatpush1.msra.mxu0 %v599
    %2129 = vmatprep.subr.mxu0 0.0
    %2130 = vmatpush2.msra.mxu0 0.0
    %2131 = vmatprep.subr.mxu0 0.0
    %2132 = vmatpush2.msra.mxu0 0.0
    %2133 = vmatprep.subr.mxu0 0.0
    %2134 = vmatpush2.msra.mxu0 0.0
    %2135 = vmatprep.subr.mxu0 0.0
    %2136 = vmatpush2.msra.mxu0 0.0
    %2137 = vmatprep.subr.mxu0 0.0
    %2138 = vmatpush2.msra.mxu0 0.0
    %2139 = vmatprep.subr.mxu0 0.0
    %2140 = vmatpush2.msra.mxu0 0.0
    %2141 = vmatprep.subr.mxu0 0.0
    %2142 = vmatpush2.msra.mxu0 0.0
    %2143 = vmatprep.subr.mxu0 0.0
    %2144 = vmatpush2.msra.mxu0 0.0
    %2145 = vmatprep.subr.mxu0 0.0
    %2146 = vmatpush2.msra.mxu0 0.0
    %2147 = vmatprep.subr.mxu0 0.0
    %2148 = vmatpush2.msra.mxu0 0.0
    %2149 = vmatprep.subr.mxu0 0.0
    %2150 = vmatpush2.msra.mxu0 0.0
    %2151 = vmatprep.subr.mxu0 0.0
    %2152 = vmatpush2.msra.mxu0 0.0
    %2153 = vmatprep.subr.mxu0 0.0
    %2154 = vmatpush2.msra.mxu0 0.0
    %2155 = vmatprep.subr.mxu0 0.0
    %2156 = vmatpush2.msra.mxu0 0.0
    %2157 = vmatprep.subr.mxu0 0.0
    %2158 = vmatpush2.msra.mxu0 0.0
    %2159 = vmatprep.subr.mxu0 0.0
    %2160 = vmatpush2.msra.mxu0 0.0
    %2161 = vmatprep.mubr.f32.mxu0 0.0
    %2162 = vmatmul.mubr.f32.gmra.mxu0 %v2018
    %v2163 = vpop.f32.mrf.mxu0
    %v2164 = vadd.f32 %v658, %v2163
    %v2165 = vpop.f32.mrf.mxu0
    %2166 = vmatprep.mubr.f32.mxu0 0.0
    %2167 = vmatmul.mubr.f32.gmra.mxu0 %v2019
    %v2168 = vpop.f32.mrf.mxu0
    %v2169 = vadd.f32 %v658, %v2168
    %v2170 = vpop.f32.mrf.mxu0
    %2171 = vdwg.mxu0
    %v2172 = vadd.f32 %v442, %v2087
    %v2173 = vadd.f32 %v448, %v2093
    %v2174 = vxor.u32 %v2172, 2147483648
    %v2175 = vxor.u32 %v2173, 2147483648
    %v2176 = vmul.f32 %v2174, 1.442695
    %v2177 = vpow.pop %v2176
    %v2178 = vmul.f32 %v2175, 1.442695
    %v2179 = vpow.pop %v2178
    %v2180 = vadd.f32 %v2177, 1.0
    %v2181 = vadd.f32 %v2179, 1.0
    %v2182 = vrcp.pop %v2180
    %v2183 = vmul.f32 1.0, %v2182
    %v2184 = vrcp.pop %v2181
    %v2185 = vmul.f32 1.0, %v2184
    %v2186 = vadd.f32 %v444, %v2089
    %v2187 = vadd.f32 %v450, %v2095
    %v2188 = vxor.u32 %v2186, 2147483648
    %v2189 = vxor.u32 %v2187, 2147483648
    %v2190 = vmul.f32 %v2188, 1.442695
    %v2191 = vpow.pop %v2190
    %v2192 = vmul.f32 %v2189, 1.442695
    %v2193 = vpow.pop %v2192
    %v2194 = vadd.f32 %v2191, 1.0
    %v2195 = vadd.f32 %v2193, 1.0
    %v2196 = vrcp.pop %v2194
    %v2197 = vmul.f32 1.0, %v2196
    %v2198 = vrcp.pop %v2195
    %v2199 = vmul.f32 1.0, %v2198
    %v2200 = vmul.f32 %v2183, %v2164
    %v2201 = vmul.f32 %v2185, %v2169
    %v2202 = vadd.f32 %v589, %v2200
    %v2203 = vadd.f32 %v594, %v2201
    %v2204 = vtanh.pop %v2202
    %v2205 = vtanh.pop %v2203
    %v2206 = vsub.f32 1.0, %v2197
    %v2207 = vsub.f32 1.0, %v2199
    %v2208 = vmul.f32 %v2206, %v2204
    %v2209 = vmul.f32 %v2207, %v2205
    %v2210 = vmul.f32 %v2197, %v2018
    %v2211 = vmul.f32 %v2199, %v2019
    %v2212 = vadd.f32 %v2208, %v2210
    %v2213 = vadd.f32 %v2209, %v2211
    %v2214 = vld [vmem:[%s6] sm:$0xff]
    %v2215 = vld [vmem:[%s6 + $0x8] sm:$0xff]
    %vm2216 = vcmp.eq.f32.partialorder %v2214, 1.0
    %vm2217 = vcmp.eq.f32.partialorder %v2215, 1.0
    %vm2218 = vmxor %vm2216, 1
    %vm2219 = vmxor %vm2217, 1
    %v2220 = vsel %vm2216, 1, 0
    %v2221 = vsel %vm2217, 1, 0
    %2222 = vrot.lane.b32.xlu0 %v2220, 123
    %v2223 = vpop.permute.xlu0 %2222
    %2224 = vrot.lane.b32.xlu0 %v2221, 123
    %v2225 = vpop.permute.xlu0 %2224
    %vm2226 = vcmp.ne.s32.totalorder %v2223, 0
    %vm2227 = vcmp.ne.s32.totalorder %v2225, 0
    %vm2228 = vmand %vm2218, %vm2226
    %vm2229 = vmand %vm2219, %vm2227
    %v2230 = vlaneseq
    %v2231 = vand.u32 %v2230, 127
    %vm2232 = vcmp.lt.s32.totalorder %v2231, 26
    %v2233 = vsel %vm2232, 1, 0
    %v2234 = vcvt.s32.f32 %v2233
    %vm2235 = vcmp.ge.s32.totalorder %v2231, 26
    %vm2236 = vcmp.lt.s32.totalorder %v2231, 52
    %vm2237 = vmand %vm2235, %vm2236
    %v2238 = vsel %vm2237, 1, 0
    %v2239 = vcvt.s32.f32 %v2238
    %v2240 = vsel %vm2228, 1, 0
    %v2241 = vsel %vm2229, 1, 0
    %2242 = vset.pattern.permute.xlu0 0
    %2243 = vperm.xlu0 %2242, %v2240
    %v2244 = vpop.permute.xlu0 %2243
    %2245 = vset.pattern.permute.xlu0 0
    %2246 = vperm.xlu0 %2245, %v2241
    %v2247 = vpop.permute.xlu0 %2246
    %vm2248 = vcmp.eq.s32.totalorder %v2244, 1
    %vm2249 = vcmp.eq.s32.totalorder %v2247, 1
    %v2250 = vsel %vm2248, %v2239, 0.0
    %v2251 = vsel %vm2249, %v2239, 0.0
    %2252 = vset.pattern.permute.xlu0 0
    %2253 = vperm.xlu0 %2252, %v2220
    %v2254 = vpop.permute.xlu0 %2253
    %2255 = vset.pattern.permute.xlu0 0
    %2256 = vperm.xlu0 %2255, %v2221
    %v2257 = vpop.permute.xlu0 %2256
    %vm2258 = vcmp.eq.s32.totalorder %v2254, 1
    %vm2259 = vcmp.eq.s32.totalorder %v2257, 1
    %v2260 = vsel %vm2258, %v2234, %v2250
    %v2261 = vsel %vm2259, %v2234, %v2251
    %v2262 = vmul.f32 %v2212, %v2260
    %v2263 = vmul.f32 %v2213, %v2261
    %v2264 = vld [vmem:[#allocation6] sm:$0xff]
    %v2265 = vld [vmem:[#allocation6 + $0x8] sm:$0xff]
    %v2266 = vld [vmem:[#allocation6 + $0x10] sm:$0xff]
    %v2267 = vld [vmem:[#allocation6 + $0x18] sm:$0xff]
    %v2268 = vld [vmem:[#allocation6 + $0x20] sm:$0xff]
    %v2269 = vld [vmem:[#allocation6 + $0x28] sm:$0xff]
    %v2270 = vld [vmem:[#allocation6 + $0x30] sm:$0xff]
    %v2271 = vld [vmem:[#allocation6 + $0x38] sm:$0xff]
    %v2272 = vld [vmem:[#allocation6 + $0x40] sm:$0xff]
    %v2273 = vld [vmem:[#allocation6 + $0x48] sm:$0xff]
    %v2274 = vld [vmem:[#allocation6 + $0x50] sm:$0xff]
    %v2275 = vld [vmem:[#allocation6 + $0x58] sm:$0xff]
    %v2276 = vld [vmem:[#allocation6 + $0x60] sm:$0xff]
    %v2277 = vld [vmem:[#allocation6 + $0x68] sm:$0xff]
    %v2278 = vld [vmem:[#allocation6 + $0x70] sm:$0xff]
    %v2279 = vld [vmem:[#allocation6 + $0x78] sm:$0xff]
    %2280 = vmatprep.subr.mxu0 0.0
    %2281 = vmatpush1.msra.mxu0 %v2279
    %2282 = vmatprep.subr.mxu0 0.0
    %2283 = vmatpush1.msra.mxu0 %v2278
    %2284 = vmatprep.subr.mxu0 0.0
    %2285 = vmatpush1.msra.mxu0 %v2277
    %2286 = vmatprep.subr.mxu0 0.0
    %2287 = vmatpush1.msra.mxu0 %v2276
    %2288 = vmatprep.subr.mxu0 0.0
    %2289 = vmatpush1.msra.mxu0 %v2275
    %2290 = vmatprep.subr.mxu0 0.0
    %2291 = vmatpush1.msra.mxu0 %v2274
    %2292 = vmatprep.subr.mxu0 0.0
    %2293 = vmatpush1.msra.mxu0 %v2273
    %2294 = vmatprep.subr.mxu0 0.0
    %2295 = vmatpush1.msra.mxu0 %v2272
    %2296 = vmatprep.subr.mxu0 0.0
    %2297 = vmatpush1.msra.mxu0 %v2271
    %2298 = vmatprep.subr.mxu0 0.0
    %2299 = vmatpush1.msra.mxu0 %v2270
    %2300 = vmatprep.subr.mxu0 0.0
    %2301 = vmatpush1.msra.mxu0 %v2269
    %2302 = vmatprep.subr.mxu0 0.0
    %2303 = vmatpush1.msra.mxu0 %v2268
    %2304 = vmatprep.subr.mxu0 0.0
    %2305 = vmatpush1.msra.mxu0 %v2267
    %2306 = vmatprep.subr.mxu0 0.0
    %2307 = vmatpush1.msra.mxu0 %v2266
    %2308 = vmatprep.subr.mxu0 0.0
    %2309 = vmatpush1.msra.mxu0 %v2265
    %2310 = vmatprep.subr.mxu0 0.0
    %2311 = vmatpush1.msra.mxu0 %v2264
    %2312 = vmatprep.subr.mxu0 0.0
    %2313 = vmatpush2.msra.mxu0 0.0
    %2314 = vmatprep.subr.mxu0 0.0
    %2315 = vmatpush2.msra.mxu0 0.0
    %2316 = vmatprep.subr.mxu0 0.0
    %2317 = vmatpush2.msra.mxu0 0.0
    %2318 = vmatprep.subr.mxu0 0.0
    %2319 = vmatpush2.msra.mxu0 0.0
    %2320 = vmatprep.subr.mxu0 0.0
    %2321 = vmatpush2.msra.mxu0 0.0
    %2322 = vmatprep.subr.mxu0 0.0
    %2323 = vmatpush2.msra.mxu0 0.0
    %2324 = vmatprep.subr.mxu0 0.0
    %2325 = vmatpush2.msra.mxu0 0.0
    %2326 = vmatprep.subr.mxu0 0.0
    %2327 = vmatpush2.msra.mxu0 0.0
    %2328 = vmatprep.subr.mxu0 0.0
    %2329 = vmatpush2.msra.mxu0 0.0
    %2330 = vmatprep.subr.mxu0 0.0
    %2331 = vmatpush2.msra.mxu0 0.0
    %2332 = vmatprep.subr.mxu0 0.0
    %2333 = vmatpush2.msra.mxu0 0.0
    %2334 = vmatprep.subr.mxu0 0.0
    %2335 = vmatpush2.msra.mxu0 0.0
    %2336 = vmatprep.subr.mxu0 0.0
    %2337 = vmatpush2.msra.mxu0 0.0
    %2338 = vmatprep.subr.mxu0 0.0
    %2339 = vmatpush2.msra.mxu0 0.0
    %2340 = vmatprep.subr.mxu0 0.0
    %2341 = vmatpush2.msra.mxu0 0.0
    %2342 = vmatprep.subr.mxu0 0.0
    %2343 = vmatpush2.msra.mxu0 0.0
    %2344 = vmatprep.mubr.f32.mxu0 0.0
    %2345 = vmatmul.mubr.f32.gmra.mxu0 %v2262
    %v2346 = vpop.f32.mrf.mxu0
    %v2347 = vadd.f32 0.0, %v2346
    %v2348 = vpop.f32.mrf.mxu0
    %2349 = vmatprep.mubr.f32.mxu0 0.0
    %2350 = vmatmul.mubr.f32.gmra.mxu0 %v2263
    %v2351 = vpop.f32.mrf.mxu0
    %v2352 = vadd.f32 0.0, %v2351
    %v2353 = vpop.f32.mrf.mxu0
    %2354 = vdwg.mxu0
    %v2355 = vadd.f32 %v2214, %v2347
    %v2356 = vadd.f32 %v2215, %v2352
    %v2357 = vld [vmem:[%s7] sm:$0xff]
    %v2358 = vld [vmem:[%s7 + $0x8] sm:$0xff]
    %v2359 = vld [vmem:[%s7 + $0x10] sm:$0xff]
    %v2360 = vld [vmem:[%s7 + $0x18] sm:$0xff]
    %v2361 = vlaneseq
    %v2362 = vshrl.u32 %v2361, 7
    %v2363 = vsub.s32 0, %v2362
    %v2364 = vrot.slane %v2357, %v2363
    %2366 = vbcast.lane.b32.xlu0 %v2364, 256
    %v2367 = vpop.permute.xlu0 %2366
    %s2369 = sor.u32 256, 8
    %2370 = vbcast.lane.b32.xlu0 %v2364, %s2369
    %v2371 = vpop.permute.xlu0 %2370
    %v2372 = vlaneseq
    %v2373 = vshrl.u32 %v2372, 7
    %v2374 = vsub.s32 1, %v2373
    %v2375 = vrot.slane %v2357, %v2374
    %2377 = vbcast.lane.b32.xlu0 %v2375, 256
    %v2378 = vpop.permute.xlu0 %2377
    %s2380 = sor.u32 256, 8
    %2381 = vbcast.lane.b32.xlu0 %v2375, %s2380
    %v2382 = vpop.permute.xlu0 %2381
    %v2383 = vlaneseq
    %v2384 = vshrl.u32 %v2383, 7
    %v2385 = vsub.s32 2, %v2384
    %v2386 = vrot.slane %v2357, %v2385
    %2388 = vbcast.lane.b32.xlu0 %v2386, 256
    %v2389 = vpop.permute.xlu0 %2388
    %s2391 = sor.u32 256, 8
    %2392 = vbcast.lane.b32.xlu0 %v2386, %s2391
    %v2393 = vpop.permute.xlu0 %2392
    %v2394 = vlaneseq
    %v2395 = vshrl.u32 %v2394, 7
    %v2396 = vsub.s32 3, %v2395
    %v2397 = vrot.slane %v2357, %v2396
    %2399 = vbcast.lane.b32.xlu0 %v2397, 256
    %v2400 = vpop.permute.xlu0 %2399
    %s2402 = sor.u32 256, 8
    %2403 = vbcast.lane.b32.xlu0 %v2397, %s2402
    %v2404 = vpop.permute.xlu0 %2403
    %v2405 = vlaneseq
    %v2406 = vshrl.u32 %v2405, 7
    %v2407 = vsub.s32 4, %v2406
    %v2408 = vrot.slane %v2357, %v2407
    %2410 = vbcast.lane.b32.xlu0 %v2408, 256
    %v2411 = vpop.permute.xlu0 %2410
    %s2413 = sor.u32 256, 8
    %2414 = vbcast.lane.b32.xlu0 %v2408, %s2413
    %v2415 = vpop.permute.xlu0 %2414
    %v2416 = vlaneseq
    %v2417 = vshrl.u32 %v2416, 7
    %v2418 = vsub.s32 5, %v2417
    %v2419 = vrot.slane %v2357, %v2418
    %2421 = vbcast.lane.b32.xlu0 %v2419, 256
    %v2422 = vpop.permute.xlu0 %2421
    %s2424 = sor.u32 256, 8
    %2425 = vbcast.lane.b32.xlu0 %v2419, %s2424
    %v2426 = vpop.permute.xlu0 %2425
    %v2427 = vlaneseq
    %v2428 = vshrl.u32 %v2427, 7
    %v2429 = vsub.s32 6, %v2428
    %v2430 = vrot.slane %v2357, %v2429
    %2432 = vbcast.lane.b32.xlu0 %v2430, 256
    %v2433 = vpop.permute.xlu0 %2432
    %s2435 = sor.u32 256, 8
    %2436 = vbcast.lane.b32.xlu0 %v2430, %s2435
    %v2437 = vpop.permute.xlu0 %2436
    %v2438 = vlaneseq
    %v2439 = vshrl.u32 %v2438, 7
    %v2440 = vsub.s32 7, %v2439
    %v2441 = vrot.slane %v2357, %v2440
    %2443 = vbcast.lane.b32.xlu0 %v2441, 256
    %v2444 = vpop.permute.xlu0 %2443
    %s2446 = sor.u32 256, 8
    %2447 = vbcast.lane.b32.xlu0 %v2441, %s2446
    %v2448 = vpop.permute.xlu0 %2447
    %v2449 = vlaneseq
    %v2450 = vshrl.u32 %v2449, 7
    %v2451 = vsub.s32 0, %v2450
    %v2452 = vrot.slane %v2358, %v2451
    %2454 = vbcast.lane.b32.xlu0 %v2452, 256
    %v2455 = vpop.permute.xlu0 %2454
    %s2457 = sor.u32 256, 8
    %2458 = vbcast.lane.b32.xlu0 %v2452, %s2457
    %v2459 = vpop.permute.xlu0 %2458
    %v2460 = vlaneseq
    %v2461 = vshrl.u32 %v2460, 7
    %v2462 = vsub.s32 1, %v2461
    %v2463 = vrot.slane %v2358, %v2462
    %2465 = vbcast.lane.b32.xlu0 %v2463, 256
    %v2466 = vpop.permute.xlu0 %2465
    %s2468 = sor.u32 256, 8
    %2469 = vbcast.lane.b32.xlu0 %v2463, %s2468
    %v2470 = vpop.permute.xlu0 %2469
    %v2471 = vlaneseq
    %v2472 = vshrl.u32 %v2471, 7
    %v2473 = vsub.s32 2, %v2472
    %v2474 = vrot.slane %v2358, %v2473
    %2476 = vbcast.lane.b32.xlu0 %v2474, 256
    %v2477 = vpop.permute.xlu0 %2476
    %s2479 = sor.u32 256, 8
    %2480 = vbcast.lane.b32.xlu0 %v2474, %s2479
    %v2481 = vpop.permute.xlu0 %2480
    %v2482 = vlaneseq
    %v2483 = vshrl.u32 %v2482, 7
    %v2484 = vsub.s32 3, %v2483
    %v2485 = vrot.slane %v2358, %v2484
    %2487 = vbcast.lane.b32.xlu0 %v2485, 256
    %v2488 = vpop.permute.xlu0 %2487
    %s2490 = sor.u32 256, 8
    %2491 = vbcast.lane.b32.xlu0 %v2485, %s2490
    %v2492 = vpop.permute.xlu0 %2491
    %v2493 = vlaneseq
    %v2494 = vshrl.u32 %v2493, 7
    %v2495 = vsub.s32 4, %v2494
    %v2496 = vrot.slane %v2358, %v2495
    %2498 = vbcast.lane.b32.xlu0 %v2496, 256
    %v2499 = vpop.permute.xlu0 %2498
    %s2501 = sor.u32 256, 8
    %2502 = vbcast.lane.b32.xlu0 %v2496, %s2501
    %v2503 = vpop.permute.xlu0 %2502
    %v2504 = vlaneseq
    %v2505 = vshrl.u32 %v2504, 7
    %v2506 = vsub.s32 5, %v2505
    %v2507 = vrot.slane %v2358, %v2506
    %2509 = vbcast.lane.b32.xlu0 %v2507, 256
    %v2510 = vpop.permute.xlu0 %2509
    %s2512 = sor.u32 256, 8
    %2513 = vbcast.lane.b32.xlu0 %v2507, %s2512
    %v2514 = vpop.permute.xlu0 %2513
    %v2515 = vlaneseq
    %v2516 = vshrl.u32 %v2515, 7
    %v2517 = vsub.s32 6, %v2516
    %v2518 = vrot.slane %v2358, %v2517
    %2520 = vbcast.lane.b32.xlu0 %v2518, 256
    %v2521 = vpop.permute.xlu0 %2520
    %s2523 = sor.u32 256, 8
    %2524 = vbcast.lane.b32.xlu0 %v2518, %s2523
    %v2525 = vpop.permute.xlu0 %2524
    %v2526 = vlaneseq
    %v2527 = vshrl.u32 %v2526, 7
    %v2528 = vsub.s32 7, %v2527
    %v2529 = vrot.slane %v2358, %v2528
    %2531 = vbcast.lane.b32.xlu0 %v2529, 256
    %v2532 = vpop.permute.xlu0 %2531
    %s2534 = sor.u32 256, 8
    %2535 = vbcast.lane.b32.xlu0 %v2529, %s2534
    %v2536 = vpop.permute.xlu0 %2535
    %vm2537 = vcmp.gt.f32.partialorder %v2367, 0.5
    %vm2538 = vcmp.gt.f32.partialorder %v2371, 0.5
    %vm2539 = vcmp.gt.f32.partialorder %v2378, 0.5
    %vm2540 = vcmp.gt.f32.partialorder %v2382, 0.5
    %vm2541 = vcmp.gt.f32.partialorder %v2389, 0.5
    %vm2542 = vcmp.gt.f32.partialorder %v2393, 0.5
    %vm2543 = vcmp.gt.f32.partialorder %v2400, 0.5
    %vm2544 = vcmp.gt.f32.partialorder %v2404, 0.5
    %vm2545 = vcmp.gt.f32.partialorder %v2411, 0.5
    %vm2546 = vcmp.gt.f32.partialorder %v2415, 0.5
    %vm2547 = vcmp.gt.f32.partialorder %v2422, 0.5
    %vm2548 = vcmp.gt.f32.partialorder %v2426, 0.5
    %vm2549 = vcmp.gt.f32.partialorder %v2433, 0.5
    %vm2550 = vcmp.gt.f32.partialorder %v2437, 0.5
    %vm2551 = vcmp.gt.f32.partialorder %v2444, 0.5
    %vm2552 = vcmp.gt.f32.partialorder %v2448, 0.5
    %vm2553 = vcmp.gt.f32.partialorder %v2455, 0.5
    %vm2554 = vcmp.gt.f32.partialorder %v2459, 0.5
    %vm2555 = vcmp.gt.f32.partialorder %v2466, 0.5
    %vm2556 = vcmp.gt.f32.partialorder %v2470, 0.5
    %vm2557 = vcmp.gt.f32.partialorder %v2477, 0.5
    %vm2558 = vcmp.gt.f32.partialorder %v2481, 0.5
    %vm2559 = vcmp.gt.f32.partialorder %v2488, 0.5
    %vm2560 = vcmp.gt.f32.partialorder %v2492, 0.5
    %vm2561 = vcmp.gt.f32.partialorder %v2499, 0.5
    %vm2562 = vcmp.gt.f32.partialorder %v2503, 0.5
    %vm2563 = vcmp.gt.f32.partialorder %v2510, 0.5
    %vm2564 = vcmp.gt.f32.partialorder %v2514, 0.5
    %vm2565 = vcmp.gt.f32.partialorder %v2521, 0.5
    %vm2566 = vcmp.gt.f32.partialorder %v2525, 0.5
    %vm2567 = vcmp.gt.f32.partialorder %v2532, 0.5
    %vm2568 = vcmp.gt.f32.partialorder %v2536, 0.5
    %v2569 = vlaneseq
    %v2570 = vshrl.u32 %v2569, 7
    %v2571 = vsub.s32 0, %v2570
    %v2572 = vrot.slane %v2359, %v2571
    %2574 = vbcast.lane.b32.xlu0 %v2572, 256
    %v2575 = vpop.permute.xlu0 %2574
    %s2577 = sor.u32 256, 8
    %2578 = vbcast.lane.b32.xlu0 %v2572, %s2577
    %v2579 = vpop.permute.xlu0 %2578
    %v2580 = vlaneseq
    %v2581 = vshrl.u32 %v2580, 7
    %v2582 = vsub.s32 1, %v2581
    %v2583 = vrot.slane %v2359, %v2582
    %2585 = vbcast.lane.b32.xlu0 %v2583, 256
    %v2586 = vpop.permute.xlu0 %2585
    %s2588 = sor.u32 256, 8
    %2589 = vbcast.lane.b32.xlu0 %v2583, %s2588
    %v2590 = vpop.permute.xlu0 %2589
    %v2591 = vlaneseq
    %v2592 = vshrl.u32 %v2591, 7
    %v2593 = vsub.s32 2, %v2592
    %v2594 = vrot.slane %v2359, %v2593
    %2596 = vbcast.lane.b32.xlu0 %v2594, 256
    %v2597 = vpop.permute.xlu0 %2596
    %s2599 = sor.u32 256, 8
    %2600 = vbcast.lane.b32.xlu0 %v2594, %s2599
    %v2601 = vpop.permute.xlu0 %2600
    %v2602 = vlaneseq
    %v2603 = vshrl.u32 %v2602, 7
    %v2604 = vsub.s32 3, %v2603
    %v2605 = vrot.slane %v2359, %v2604
    %2607 = vbcast.lane.b32.xlu0 %v2605, 256
    %v2608 = vpop.permute.xlu0 %2607
    %s2610 = sor.u32 256, 8
    %2611 = vbcast.lane.b32.xlu0 %v2605, %s2610
    %v2612 = vpop.permute.xlu0 %2611
    %v2613 = vlaneseq
    %v2614 = vshrl.u32 %v2613, 7
    %v2615 = vsub.s32 4, %v2614
    %v2616 = vrot.slane %v2359, %v2615
    %2618 = vbcast.lane.b32.xlu0 %v2616, 256
    %v2619 = vpop.permute.xlu0 %2618
    %s2621 = sor.u32 256, 8
    %2622 = vbcast.lane.b32.xlu0 %v2616, %s2621
    %v2623 = vpop.permute.xlu0 %2622
    %v2624 = vlaneseq
    %v2625 = vshrl.u32 %v2624, 7
    %v2626 = vsub.s32 5, %v2625
    %v2627 = vrot.slane %v2359, %v2626
    %2629 = vbcast.lane.b32.xlu0 %v2627, 256
    %v2630 = vpop.permute.xlu0 %2629
    %s2632 = sor.u32 256, 8
    %2633 = vbcast.lane.b32.xlu0 %v2627, %s2632
    %v2634 = vpop.permute.xlu0 %2633
    %v2635 = vlaneseq
    %v2636 = vshrl.u32 %v2635, 7
    %v2637 = vsub.s32 6, %v2636
    %v2638 = vrot.slane %v2359, %v2637
    %2640 = vbcast.lane.b32.xlu0 %v2638, 256
    %v2641 = vpop.permute.xlu0 %2640
    %s2643 = sor.u32 256, 8
    %2644 = vbcast.lane.b32.xlu0 %v2638, %s2643
    %v2645 = vpop.permute.xlu0 %2644
    %v2646 = vlaneseq
    %v2647 = vshrl.u32 %v2646, 7
    %v2648 = vsub.s32 7, %v2647
    %v2649 = vrot.slane %v2359, %v2648
    %2651 = vbcast.lane.b32.xlu0 %v2649, 256
    %v2652 = vpop.permute.xlu0 %2651
    %s2654 = sor.u32 256, 8
    %2655 = vbcast.lane.b32.xlu0 %v2649, %s2654
    %v2656 = vpop.permute.xlu0 %2655
    %v2657 = vlaneseq
    %v2658 = vshrl.u32 %v2657, 7
    %v2659 = vsub.s32 0, %v2658
    %v2660 = vrot.slane %v2360, %v2659
    %2662 = vbcast.lane.b32.xlu0 %v2660, 256
    %v2663 = vpop.permute.xlu0 %2662
    %s2665 = sor.u32 256, 8
    %2666 = vbcast.lane.b32.xlu0 %v2660, %s2665
    %v2667 = vpop.permute.xlu0 %2666
    %v2668 = vlaneseq
    %v2669 = vshrl.u32 %v2668, 7
    %v2670 = vsub.s32 1, %v2669
    %v2671 = vrot.slane %v2360, %v2670
    %2673 = vbcast.lane.b32.xlu0 %v2671, 256
    %v2674 = vpop.permute.xlu0 %2673
    %s2676 = sor.u32 256, 8
    %2677 = vbcast.lane.b32.xlu0 %v2671, %s2676
    %v2678 = vpop.permute.xlu0 %2677
    %v2679 = vlaneseq
    %v2680 = vshrl.u32 %v2679, 7
    %v2681 = vsub.s32 2, %v2680
    %v2682 = vrot.slane %v2360, %v2681
    %2684 = vbcast.lane.b32.xlu0 %v2682, 256
    %v2685 = vpop.permute.xlu0 %2684
    %s2687 = sor.u32 256, 8
    %2688 = vbcast.lane.b32.xlu0 %v2682, %s2687
    %v2689 = vpop.permute.xlu0 %2688
    %v2690 = vlaneseq
    %v2691 = vshrl.u32 %v2690, 7
    %v2692 = vsub.s32 3, %v2691
    %v2693 = vrot.slane %v2360, %v2692
    %2695 = vbcast.lane.b32.xlu0 %v2693, 256
    %v2696 = vpop.permute.xlu0 %2695
    %s2698 = sor.u32 256, 8
    %2699 = vbcast.lane.b32.xlu0 %v2693, %s2698
    %v2700 = vpop.permute.xlu0 %2699
    %v2701 = vlaneseq
    %v2702 = vshrl.u32 %v2701, 7
    %v2703 = vsub.s32 4, %v2702
    %v2704 = vrot.slane %v2360, %v2703
    %2706 = vbcast.lane.b32.xlu0 %v2704, 256
    %v2707 = vpop.permute.xlu0 %2706
    %s2709 = sor.u32 256, 8
    %2710 = vbcast.lane.b32.xlu0 %v2704, %s2709
    %v2711 = vpop.permute.xlu0 %2710
    %v2712 = vlaneseq
    %v2713 = vshrl.u32 %v2712, 7
    %v2714 = vsub.s32 5, %v2713
    %v2715 = vrot.slane %v2360, %v2714
    %2717 = vbcast.lane.b32.xlu0 %v2715, 256
    %v2718 = vpop.permute.xlu0 %2717
    %s2720 = sor.u32 256, 8
    %2721 = vbcast.lane.b32.xlu0 %v2715, %s2720
    %v2722 = vpop.permute.xlu0 %2721
    %v2723 = vlaneseq
    %v2724 = vshrl.u32 %v2723, 7
    %v2725 = vsub.s32 6, %v2724
    %v2726 = vrot.slane %v2360, %v2725
    %2728 = vbcast.lane.b32.xlu0 %v2726, 256
    %v2729 = vpop.permute.xlu0 %2728
    %s2731 = sor.u32 256, 8
    %2732 = vbcast.lane.b32.xlu0 %v2726, %s2731
    %v2733 = vpop.permute.xlu0 %2732
    %v2734 = vlaneseq
    %v2735 = vshrl.u32 %v2734, 7
    %v2736 = vsub.s32 7, %v2735
    %v2737 = vrot.slane %v2360, %v2736
    %2739 = vbcast.lane.b32.xlu0 %v2737, 256
    %v2740 = vpop.permute.xlu0 %2739
    %s2742 = sor.u32 256, 8
    %2743 = vbcast.lane.b32.xlu0 %v2737, %s2742
    %v2744 = vpop.permute.xlu0 %2743
    %vm2745 = vcmp.gt.f32.partialorder %v2575, 0.5
    %vm2746 = vcmp.gt.f32.partialorder %v2579, 0.5
    %vm2747 = vcmp.gt.f32.partialorder %v2586, 0.5
    %vm2748 = vcmp.gt.f32.partialorder %v2590, 0.5
    %vm2749 = vcmp.gt.f32.partialorder %v2597, 0.5
    %vm2750 = vcmp.gt.f32.partialorder %v2601, 0.5
    %vm2751 = vcmp.gt.f32.partialorder %v2608, 0.5
    %vm2752 = vcmp.gt.f32.partialorder %v2612, 0.5
    %vm2753 = vcmp.gt.f32.partialorder %v2619, 0.5
    %vm2754 = vcmp.gt.f32.partialorder %v2623, 0.5
    %vm2755 = vcmp.gt.f32.partialorder %v2630, 0.5
    %vm2756 = vcmp.gt.f32.partialorder %v2634, 0.5
    %vm2757 = vcmp.gt.f32.partialorder %v2641, 0.5
    %vm2758 = vcmp.gt.f32.partialorder %v2645, 0.5
    %vm2759 = vcmp.gt.f32.partialorder %v2652, 0.5
    %vm2760 = vcmp.gt.f32.partialorder %v2656, 0.5
    %vm2761 = vcmp.gt.f32.partialorder %v2663, 0.5
    %vm2762 = vcmp.gt.f32.partialorder %v2667, 0.5
    %vm2763 = vcmp.gt.f32.partialorder %v2674, 0.5
    %vm2764 = vcmp.gt.f32.partialorder %v2678, 0.5
    %vm2765 = vcmp.gt.f32.partialorder %v2685, 0.5
    %vm2766 = vcmp.gt.f32.partialorder %v2689, 0.5
    %vm2767 = vcmp.gt.f32.partialorder %v2696, 0.5
    %vm2768 = vcmp.gt.f32.partialorder %v2700, 0.5
    %vm2769 = vcmp.gt.f32.partialorder %v2707, 0.5
    %vm2770 = vcmp.gt.f32.partialorder %v2711, 0.5
    %vm2771 = vcmp.gt.f32.partialorder %v2718, 0.5
    %vm2772 = vcmp.gt.f32.partialorder %v2722, 0.5
    %vm2773 = vcmp.gt.f32.partialorder %v2729, 0.5
    %vm2774 = vcmp.gt.f32.partialorder %v2733, 0.5
    %vm2775 = vcmp.gt.f32.partialorder %v2740, 0.5
    %vm2776 = vcmp.gt.f32.partialorder %v2744, 0.5
    %vm2777 = vcmask 130048
    %v2778 = vsel %vm2777, %v2357, -inf
    %v2779 = vsel %vm2777, %v2359, -inf
    %v2780 = vmax.f32 %v2778, %v2779
    %v2781 = vsel %vm2777, %v2358, -inf
    %v2782 = vsel %vm2777, %v2360, -inf
    %v2783 = vmax.f32 %v2781, %v2782
    %v2784 = vsel %vm2777, %v2780, -inf
    %2785 = vmax.xlane.f32.xlu0 %v2784
    %v2786 = vpop.xlane.xlu0 %2785
    %v2787 = vsel %vm2777, %v2783, -inf
    %2788 = vmax.xlane.f32.xlu0 %v2787
    %v2789 = vpop.xlane.xlu0 %2788
    %vm2790 = vcmp.gt.f32.partialorder %v2786, 0.5
    %vm2791 = vcmp.gt.f32.partialorder %v2789, 0.5
    %v2792 = vld [vmem:[%s8] sm:$0xff]
    %v2793 = vld [vmem:[%s8 + $0x8] sm:$0xff]
    %v2794 = vld [vmem:[%s8 + $0x10] sm:$0xff]
    %v2795 = vld [vmem:[%s8 + $0x18] sm:$0xff]
    %v2796 = vld [vmem:[%s8 + $0x20] sm:$0xff]
    %v2797 = vld [vmem:[%s8 + $0x28] sm:$0xff]
    %v2798 = vld [vmem:[%s8 + $0x30] sm:$0xff]
    %v2799 = vld [vmem:[%s8 + $0x38] sm:$0xff]
    %v2800 = vld [vmem:[%s8 + $0x40] sm:$0xff]
    %v2801 = vld [vmem:[%s8 + $0x48] sm:$0xff]
    %v2802 = vld [vmem:[%s8 + $0x50] sm:$0xff]
    %v2803 = vld [vmem:[%s8 + $0x58] sm:$0xff]
    %v2804 = vld [vmem:[%s8 + $0x60] sm:$0xff]
    %v2805 = vld [vmem:[%s8 + $0x68] sm:$0xff]
    %v2806 = vld [vmem:[%s8 + $0x70] sm:$0xff]
    %v2807 = vld [vmem:[%s8 + $0x78] sm:$0xff]
    %v2808 = vld [vmem:[%s8 + $0x80] sm:$0xff]
    %v2809 = vld [vmem:[%s8 + $0x88] sm:$0xff]
    %v2810 = vld [vmem:[%s8 + $0x90] sm:$0xff]
    %v2811 = vld [vmem:[%s8 + $0x98] sm:$0xff]
    %v2812 = vld [vmem:[%s8 + $0xa0] sm:$0xff]
    %v2813 = vld [vmem:[%s8 + $0xa8] sm:$0xff]
    %v2814 = vld [vmem:[%s8 + $0xb0] sm:$0xff]
    %v2815 = vld [vmem:[%s8 + $0xb8] sm:$0xff]
    %v2816 = vld [vmem:[%s8 + $0xc0] sm:$0xff]
    %v2817 = vld [vmem:[%s8 + $0xc8] sm:$0xff]
    %v2818 = vld [vmem:[%s8 + $0xd0] sm:$0xff]
    %v2819 = vld [vmem:[%s8 + $0xd8] sm:$0xff]
    %v2820 = vld [vmem:[%s8 + $0xe0] sm:$0xff]
    %v2821 = vld [vmem:[%s8 + $0xe8] sm:$0xff]
    %v2822 = vld [vmem:[%s8 + $0xf0] sm:$0xff]
    %v2823 = vld [vmem:[%s8 + $0xf8] sm:$0xff]
    %2824 = vmatprep.subr.mxu0 %v2823
    %2825 = vmatpush1.msra.mxu0 %v2822
    %2826 = vmatprep.subr.mxu0 %v2821
    %2827 = vmatpush1.msra.mxu0 %v2820
    %2828 = vmatprep.subr.mxu0 %v2819
    %2829 = vmatpush1.msra.mxu0 %v2818
    %2830 = vmatprep.subr.mxu0 %v2817
    %2831 = vmatpush1.msra.mxu0 %v2816
    %2832 = vmatprep.subr.mxu0 %v2815
    %2833 = vmatpush1.msra.mxu0 %v2814
    %2834 = vmatprep.subr.mxu0 %v2813
    %2835 = vmatpush1.msra.mxu0 %v2812
    %2836 = vmatprep.subr.mxu0 %v2811
    %2837 = vmatpush1.msra.mxu0 %v2810
    %2838 = vmatprep.subr.mxu0 %v2809
    %2839 = vmatpush1.msra.mxu0 %v2808
    %2840 = vmatprep.subr.mxu0 %v2807
    %2841 = vmatpush1.msra.mxu0 %v2806
    %2842 = vmatprep.subr.mxu0 %v2805
    %2843 = vmatpush1.msra.mxu0 %v2804
    %2844 = vmatprep.subr.mxu0 %v2803
    %2845 = vmatpush1.msra.mxu0 %v2802
    %2846 = vmatprep.subr.mxu0 %v2801
    %2847 = vmatpush1.msra.mxu0 %v2800
    %2848 = vmatprep.subr.mxu0 %v2799
    %2849 = vmatpush1.msra.mxu0 %v2798
    %2850 = vmatprep.subr.mxu0 %v2797
    %2851 = vmatpush1.msra.mxu0 %v2796
    %2852 = vmatprep.subr.mxu0 %v2795
    %2853 = vmatpush1.msra.mxu0 %v2794
    %2854 = vmatprep.subr.mxu0 %v2793
    %2855 = vmatpush1.msra.mxu0 %v2792
    %2856 = vmatprep.subr.mxu0 0.0
    %2857 = vmatpush2.msra.mxu0 0.0
    %2858 = vmatprep.subr.mxu0 0.0
    %2859 = vmatpush2.msra.mxu0 0.0
    %2860 = vmatprep.subr.mxu0 0.0
    %2861 = vmatpush2.msra.mxu0 0.0
    %2862 = vmatprep.subr.mxu0 0.0
    %2863 = vmatpush2.msra.mxu0 0.0
    %2864 = vmatprep.subr.mxu0 0.0
    %2865 = vmatpush2.msra.mxu0 0.0
    %2866 = vmatprep.subr.mxu0 0.0
    %2867 = vmatpush2.msra.mxu0 0.0
    %2868 = vmatprep.subr.mxu0 0.0
    %2869 = vmatpush2.msra.mxu0 0.0
    %2870 = vmatprep.subr.mxu0 0.0
    %2871 = vmatpush2.msra.mxu0 0.0
    %2872 = vmatprep.subr.mxu0 0.0
    %2873 = vmatpush2.msra.mxu0 0.0
    %2874 = vmatprep.subr.mxu0 0.0
    %2875 = vmatpush2.msra.mxu0 0.0
    %2876 = vmatprep.subr.mxu0 0.0
    %2877 = vmatpush2.msra.mxu0 0.0
    %2878 = vmatprep.subr.mxu0 0.0
    %2879 = vmatpush2.msra.mxu0 0.0
    %2880 = vmatprep.subr.mxu0 0.0
    %2881 = vmatpush2.msra.mxu0 0.0
    %2882 = vmatprep.subr.mxu0 0.0
    %2883 = vmatpush2.msra.mxu0 0.0
    %2884 = vmatprep.subr.mxu0 0.0
    %2885 = vmatpush2.msra.mxu0 0.0
    %2886 = vmatprep.subr.mxu0 0.0
    %2887 = vmatpush2.msra.mxu0 0.0
    %2888 = vmatprep.mubr.f32.mxu0 0.0
    %2889 = vmatmul.mubr.f32.gmra.mxu0 %v2355
    %v2890 = vpop.f32.mrf.mxu0
    %v2891 = vadd.f32 0.0, %v2890
    %v2892 = vpop.f32.mrf.mxu0
    %v2893 = vadd.f32 0.0, %v2892
    %2894 = vmatprep.mubr.f32.mxu0 0.0
    %2895 = vmatmul.mubr.f32.gmra.mxu0 %v2356
    %v2896 = vpop.f32.mrf.mxu0
    %v2897 = vadd.f32 0.0, %v2896
    %v2898 = vpop.f32.mrf.mxu0
    %v2899 = vadd.f32 0.0, %v2898
    %2900 = vdwg.mxu0
    %v2901 = vsel %vm2537, 1, 0
    %v2902 = vsel %vm2538, 1, 0
    %v2903 = vsel %vm2539, 1, 0
    %v2904 = vsel %vm2540, 1, 0
    %v2905 = vsel %vm2541, 1, 0
    %v2906 = vsel %vm2542, 1, 0
    %v2907 = vsel %vm2543, 1, 0
    %v2908 = vsel %vm2544, 1, 0
    %v2909 = vsel %vm2545, 1, 0
    %v2910 = vsel %vm2546, 1, 0
    %v2911 = vsel %vm2547, 1, 0
    %v2912 = vsel %vm2548, 1, 0
    %v2913 = vsel %vm2549, 1, 0
    %v2914 = vsel %vm2550, 1, 0
    %v2915 = vsel %vm2551, 1, 0
    %v2916 = vsel %vm2552, 1, 0
    %v2917 = vsel %vm2553, 1, 0
    %v2918 = vsel %vm2554, 1, 0
    %v2919 = vsel %vm2555, 1, 0
    %v2920 = vsel %vm2556, 1, 0
    %v2921 = vsel %vm2557, 1, 0
    %v2922 = vsel %vm2558, 1, 0
    %v2923 = vsel %vm2559, 1, 0
    %v2924 = vsel %vm2560, 1, 0
    %v2925 = vsel %vm2561, 1, 0
    %v2926 = vsel %vm2562, 1, 0
    %v2927 = vsel %vm2563, 1, 0
    %v2928 = vsel %vm2564, 1, 0
    %v2929 = vsel %vm2565, 1, 0
    %v2930 = vsel %vm2566, 1, 0
    %v2931 = vsel %vm2567, 1, 0
    %v2932 = vsel %vm2568, 1, 0
    %vm2933 = vcmp.eq.s32.totalorder %v2901, 1
    %vm2934 = vcmp.eq.s32.totalorder %v2902, 1
    %vm2935 = vcmp.eq.s32.totalorder %v2903, 1
    %vm2936 = vcmp.eq.s32.totalorder %v2904, 1
    %vm2937 = vcmp.eq.s32.totalorder %v2905, 1
    %vm2938 = vcmp.eq.s32.totalorder %v2906, 1
    %vm2939 = vcmp.eq.s32.totalorder %v2907, 1
    %vm2940 = vcmp.eq.s32.totalorder %v2908, 1
    %vm2941 = vcmp.eq.s32.totalorder %v2909, 1
    %vm2942 = vcmp.eq.s32.totalorder %v2910, 1
    %vm2943 = vcmp.eq.s32.totalorder %v2911, 1
    %vm2944 = vcmp.eq.s32.totalorder %v2912, 1
    %vm2945 = vcmp.eq.s32.totalorder %v2913, 1
    %vm2946 = vcmp.eq.s32.totalorder %v2914, 1
    %vm2947 = vcmp.eq.s32.totalorder %v2915, 1
    %vm2948 = vcmp.eq.s32.totalorder %v2916, 1
    %vm2949 = vcmp.eq.s32.totalorder %v2917, 1
    %vm2950 = vcmp.eq.s32.totalorder %v2918, 1
    %vm2951 = vcmp.eq.s32.totalorder %v2919, 1
    %vm2952 = vcmp.eq.s32.totalorder %v2920, 1
    %vm2953 = vcmp.eq.s32.totalorder %v2921, 1
    %vm2954 = vcmp.eq.s32.totalorder %v2922, 1
    %vm2955 = vcmp.eq.s32.totalorder %v2923, 1
    %vm2956 = vcmp.eq.s32.totalorder %v2924, 1
    %vm2957 = vcmp.eq.s32.totalorder %v2925, 1
    %vm2958 = vcmp.eq.s32.totalorder %v2926, 1
    %vm2959 = vcmp.eq.s32.totalorder %v2927, 1
    %vm2960 = vcmp.eq.s32.totalorder %v2928, 1
    %vm2961 = vcmp.eq.s32.totalorder %v2929, 1
    %vm2962 = vcmp.eq.s32.totalorder %v2930, 1
    %vm2963 = vcmp.eq.s32.totalorder %v2931, 1
    %vm2964 = vcmp.eq.s32.totalorder %v2932, 1
    %v2965 = vsel %vm2933, %v2891, -1e+30
    %v2966 = vsel %vm2934, %v2897, -1e+30
    %v2967 = vsel %vm2935, %v2891, -1e+30
    %v2968 = vsel %vm2936, %v2897, -1e+30
    %v2969 = vsel %vm2937, %v2891, -1e+30
    %v2970 = vsel %vm2938, %v2897, -1e+30
    %v2971 = vsel %vm2939, %v2891, -1e+30
    %v2972 = vsel %vm2940, %v2897, -1e+30
    %v2973 = vsel %vm2941, %v2891, -1e+30
    %v2974 = vsel %vm2942, %v2897, -1e+30
    %v2975 = vsel %vm2943, %v2891, -1e+30
    %v2976 = vsel %vm2944, %v2897, -1e+30
    %v2977 = vsel %vm2945, %v2891, -1e+30
    %v2978 = vsel %vm2946, %v2897, -1e+30
    %v2979 = vsel %vm2947, %v2891, -1e+30
    %v2980 = vsel %vm2948, %v2897, -1e+30
    %v2981 = vsel %vm2949, %v2891, -1e+30
    %v2982 = vsel %vm2950, %v2897, -1e+30
    %v2983 = vsel %vm2951, %v2891, -1e+30
    %v2984 = vsel %vm2952, %v2897, -1e+30
    %v2985 = vsel %vm2953, %v2891, -1e+30
    %v2986 = vsel %vm2954, %v2897, -1e+30
    %v2987 = vsel %vm2955, %v2891, -1e+30
    %v2988 = vsel %vm2956, %v2897, -1e+30
    %v2989 = vsel %vm2957, %v2891, -1e+30
    %v2990 = vsel %vm2958, %v2897, -1e+30
    %v2991 = vsel %vm2959, %v2891, -1e+30
    %v2992 = vsel %vm2960, %v2897, -1e+30
    %v2993 = vsel %vm2961, %v2891, -1e+30
    %v2994 = vsel %vm2962, %v2897, -1e+30
    %v2995 = vsel %vm2963, %v2891, -1e+30
    %v2996 = vsel %vm2964, %v2897, -1e+30
    %v2997 = vmax.f32 %v2965, %v2966
    %v2998 = vrot.slane %v2997, 4
    %v2999 = vmax.f32 %v2997, %v2998
    %v3000 = vrot.slane %v2999, 2
    %v3001 = vmax.f32 %v2999, %v3000
    %v3002 = vrot.slane %v3001, 1
    %v3003 = vmax.f32 %v3001, %v3002
    %v3004 = vmax.f32 %v2967, %v2968
    %v3005 = vrot.slane %v3004, 4
    %v3006 = vmax.f32 %v3004, %v3005
    %v3007 = vrot.slane %v3006, 2
    %v3008 = vmax.f32 %v3006, %v3007
    %v3009 = vrot.slane %v3008, 1
    %v3010 = vmax.f32 %v3008, %v3009
    %v3011 = vmax.f32 %v2969, %v2970
    %v3012 = vrot.slane %v3011, 4
    %v3013 = vmax.f32 %v3011, %v3012
    %v3014 = vrot.slane %v3013, 2
    %v3015 = vmax.f32 %v3013, %v3014
    %v3016 = vrot.slane %v3015, 1
    %v3017 = vmax.f32 %v3015, %v3016
    %v3018 = vmax.f32 %v2971, %v2972
    %v3019 = vrot.slane %v3018, 4
    %v3020 = vmax.f32 %v3018, %v3019
    %v3021 = vrot.slane %v3020, 2
    %v3022 = vmax.f32 %v3020, %v3021
    %v3023 = vrot.slane %v3022, 1
    %v3024 = vmax.f32 %v3022, %v3023
    %v3025 = vmax.f32 %v2973, %v2974
    %v3026 = vrot.slane %v3025, 4
    %v3027 = vmax.f32 %v3025, %v3026
    %v3028 = vrot.slane %v3027, 2
    %v3029 = vmax.f32 %v3027, %v3028
    %v3030 = vrot.slane %v3029, 1
    %v3031 = vmax.f32 %v3029, %v3030
    %v3032 = vmax.f32 %v2975, %v2976
    %v3033 = vrot.slane %v3032, 4
    %v3034 = vmax.f32 %v3032, %v3033
    %v3035 = vrot.slane %v3034, 2
    %v3036 = vmax.f32 %v3034, %v3035
    %v3037 = vrot.slane %v3036, 1
    %v3038 = vmax.f32 %v3036, %v3037
    %v3039 = vmax.f32 %v2977, %v2978
    %v3040 = vrot.slane %v3039, 4
    %v3041 = vmax.f32 %v3039, %v3040
    %v3042 = vrot.slane %v3041, 2
    %v3043 = vmax.f32 %v3041, %v3042
    %v3044 = vrot.slane %v3043, 1
    %v3045 = vmax.f32 %v3043, %v3044
    %v3046 = vmax.f32 %v2979, %v2980
    %v3047 = vrot.slane %v3046, 4
    %v3048 = vmax.f32 %v3046, %v3047
    %v3049 = vrot.slane %v3048, 2
    %v3050 = vmax.f32 %v3048, %v3049
    %v3051 = vrot.slane %v3050, 1
    %v3052 = vmax.f32 %v3050, %v3051
    %v3053 = vmax.f32 %v2981, %v2982
    %v3054 = vrot.slane %v3053, 4
    %v3055 = vmax.f32 %v3053, %v3054
    %v3056 = vrot.slane %v3055, 2
    %v3057 = vmax.f32 %v3055, %v3056
    %v3058 = vrot.slane %v3057, 1
    %v3059 = vmax.f32 %v3057, %v3058
    %v3060 = vmax.f32 %v2983, %v2984
    %v3061 = vrot.slane %v3060, 4
    %v3062 = vmax.f32 %v3060, %v3061
    %v3063 = vrot.slane %v3062, 2
    %v3064 = vmax.f32 %v3062, %v3063
    %v3065 = vrot.slane %v3064, 1
    %v3066 = vmax.f32 %v3064, %v3065
    %v3067 = vmax.f32 %v2985, %v2986
    %v3068 = vrot.slane %v3067, 4
    %v3069 = vmax.f32 %v3067, %v3068
    %v3070 = vrot.slane %v3069, 2
    %v3071 = vmax.f32 %v3069, %v3070
    %v3072 = vrot.slane %v3071, 1
    %v3073 = vmax.f32 %v3071, %v3072
    %v3074 = vmax.f32 %v2987, %v2988
    %v3075 = vrot.slane %v3074, 4
    %v3076 = vmax.f32 %v3074, %v3075
    %v3077 = vrot.slane %v3076, 2
    %v3078 = vmax.f32 %v3076, %v3077
    %v3079 = vrot.slane %v3078, 1
    %v3080 = vmax.f32 %v3078, %v3079
    %v3081 = vmax.f32 %v2989, %v2990
    %v3082 = vrot.slane %v3081, 4
    %v3083 = vmax.f32 %v3081, %v3082
    %v3084 = vrot.slane %v3083, 2
    %v3085 = vmax.f32 %v3083, %v3084
    %v3086 = vrot.slane %v3085, 1
    %v3087 = vmax.f32 %v3085, %v3086
    %v3088 = vmax.f32 %v2991, %v2992
    %v3089 = vrot.slane %v3088, 4
    %v3090 = vmax.f32 %v3088, %v3089
    %v3091 = vrot.slane %v3090, 2
    %v3092 = vmax.f32 %v3090, %v3091
    %v3093 = vrot.slane %v3092, 1
    %v3094 = vmax.f32 %v3092, %v3093
    %v3095 = vmax.f32 %v2993, %v2994
    %v3096 = vrot.slane %v3095, 4
    %v3097 = vmax.f32 %v3095, %v3096
    %v3098 = vrot.slane %v3097, 2
    %v3099 = vmax.f32 %v3097, %v3098
    %v3100 = vrot.slane %v3099, 1
    %v3101 = vmax.f32 %v3099, %v3100
    %v3102 = vmax.f32 %v2995, %v2996
    %v3103 = vrot.slane %v3102, 4
    %v3104 = vmax.f32 %v3102, %v3103
    %v3105 = vrot.slane %v3104, 2
    %v3106 = vmax.f32 %v3104, %v3105
    %v3107 = vrot.slane %v3106, 1
    %v3108 = vmax.f32 %v3106, %v3107
    %v3109 = vmax.f32 %v3003, -1e+30
    %v3110 = vmax.f32 %v3010, -1e+30
    %v3111 = vmax.f32 %v3017, -1e+30
    %v3112 = vmax.f32 %v3024, -1e+30
    %v3113 = vmax.f32 %v3031, -1e+30
    %v3114 = vmax.f32 %v3038, -1e+30
    %v3115 = vmax.f32 %v3045, -1e+30
    %v3116 = vmax.f32 %v3052, -1e+30
    %v3117 = vmax.f32 %v3059, -1e+30
    %v3118 = vmax.f32 %v3066, -1e+30
    %v3119 = vmax.f32 %v3073, -1e+30
    %v3120 = vmax.f32 %v3080, -1e+30
    %v3121 = vmax.f32 %v3087, -1e+30
    %v3122 = vmax.f32 %v3094, -1e+30
    %v3123 = vmax.f32 %v3101, -1e+30
    %v3124 = vmax.f32 %v3108, -1e+30
    %v3125 = vsel %vm2745, 1, 0
    %v3126 = vsel %vm2746, 1, 0
    %v3127 = vsel %vm2747, 1, 0
    %v3128 = vsel %vm2748, 1, 0
    %v3129 = vsel %vm2749, 1, 0
    %v3130 = vsel %vm2750, 1, 0
    %v3131 = vsel %vm2751, 1, 0
    %v3132 = vsel %vm2752, 1, 0
    %v3133 = vsel %vm2753, 1, 0
    %v3134 = vsel %vm2754, 1, 0
    %v3135 = vsel %vm2755, 1, 0
    %v3136 = vsel %vm2756, 1, 0
    %v3137 = vsel %vm2757, 1, 0
    %v3138 = vsel %vm2758, 1, 0
    %v3139 = vsel %vm2759, 1, 0
    %v3140 = vsel %vm2760, 1, 0
    %v3141 = vsel %vm2761, 1, 0
    %v3142 = vsel %vm2762, 1, 0
    %v3143 = vsel %vm2763, 1, 0
    %v3144 = vsel %vm2764, 1, 0
    %v3145 = vsel %vm2765, 1, 0
    %v3146 = vsel %vm2766, 1, 0
    %v3147 = vsel %vm2767, 1, 0
    %v3148 = vsel %vm2768, 1, 0
    %v3149 = vsel %vm2769, 1, 0
    %v3150 = vsel %vm2770, 1, 0
    %v3151 = vsel %vm2771, 1, 0
    %v3152 = vsel %vm2772, 1, 0
    %v3153 = vsel %vm2773, 1, 0
    %v3154 = vsel %vm2774, 1, 0
    %v3155 = vsel %vm2775, 1, 0
    %v3156 = vsel %vm2776, 1, 0
    %vm3157 = vcmp.eq.s32.totalorder %v3125, 1
    %vm3158 = vcmp.eq.s32.totalorder %v3126, 1
    %vm3159 = vcmp.eq.s32.totalorder %v3127, 1
    %vm3160 = vcmp.eq.s32.totalorder %v3128, 1
    %vm3161 = vcmp.eq.s32.totalorder %v3129, 1
    %vm3162 = vcmp.eq.s32.totalorder %v3130, 1
    %vm3163 = vcmp.eq.s32.totalorder %v3131, 1
    %vm3164 = vcmp.eq.s32.totalorder %v3132, 1
    %vm3165 = vcmp.eq.s32.totalorder %v3133, 1
    %vm3166 = vcmp.eq.s32.totalorder %v3134, 1
    %vm3167 = vcmp.eq.s32.totalorder %v3135, 1
    %vm3168 = vcmp.eq.s32.totalorder %v3136, 1
    %vm3169 = vcmp.eq.s32.totalorder %v3137, 1
    %vm3170 = vcmp.eq.s32.totalorder %v3138, 1
    %vm3171 = vcmp.eq.s32.totalorder %v3139, 1
    %vm3172 = vcmp.eq.s32.totalorder %v3140, 1
    %vm3173 = vcmp.eq.s32.totalorder %v3141, 1
    %vm3174 = vcmp.eq.s32.totalorder %v3142, 1
    %vm3175 = vcmp.eq.s32.totalorder %v3143, 1
    %vm3176 = vcmp.eq.s32.totalorder %v3144, 1
    %vm3177 = vcmp.eq.s32.totalorder %v3145, 1
    %vm3178 = vcmp.eq.s32.totalorder %v3146, 1
    %vm3179 = vcmp.eq.s32.totalorder %v3147, 1
    %vm3180 = vcmp.eq.s32.totalorder %v3148, 1
    %vm3181 = vcmp.eq.s32.totalorder %v3149, 1
    %vm3182 = vcmp.eq.s32.totalorder %v3150, 1
    %vm3183 = vcmp.eq.s32.totalorder %v3151, 1
    %vm3184 = vcmp.eq.s32.totalorder %v3152, 1
    %vm3185 = vcmp.eq.s32.totalorder %v3153, 1
    %vm3186 = vcmp.eq.s32.totalorder %v3154, 1
    %vm3187 = vcmp.eq.s32.totalorder %v3155, 1
    %vm3188 = vcmp.eq.s32.totalorder %v3156, 1
    %v3189 = vsel %vm3157, %v2893, -1e+30
    %v3190 = vsel %vm3158, %v2899, -1e+30
    %v3191 = vsel %vm3159, %v2893, -1e+30
    %v3192 = vsel %vm3160, %v2899, -1e+30
    %v3193 = vsel %vm3161, %v2893, -1e+30
    %v3194 = vsel %vm3162, %v2899, -1e+30
    %v3195 = vsel %vm3163, %v2893, -1e+30
    %v3196 = vsel %vm3164, %v2899, -1e+30
    %v3197 = vsel %vm3165, %v2893, -1e+30
    %v3198 = vsel %vm3166, %v2899, -1e+30
    %v3199 = vsel %vm3167, %v2893, -1e+30
    %v3200 = vsel %vm3168, %v2899, -1e+30
    %v3201 = vsel %vm3169, %v2893, -1e+30
    %v3202 = vsel %vm3170, %v2899, -1e+30
    %v3203 = vsel %vm3171, %v2893, -1e+30
    %v3204 = vsel %vm3172, %v2899, -1e+30
    %v3205 = vsel %vm3173, %v2893, -1e+30
    %v3206 = vsel %vm3174, %v2899, -1e+30
    %v3207 = vsel %vm3175, %v2893, -1e+30
    %v3208 = vsel %vm3176, %v2899, -1e+30
    %v3209 = vsel %vm3177, %v2893, -1e+30
    %v3210 = vsel %vm3178, %v2899, -1e+30
    %v3211 = vsel %vm3179, %v2893, -1e+30
    %v3212 = vsel %vm3180, %v2899, -1e+30
    %v3213 = vsel %vm3181, %v2893, -1e+30
    %v3214 = vsel %vm3182, %v2899, -1e+30
    %v3215 = vsel %vm3183, %v2893, -1e+30
    %v3216 = vsel %vm3184, %v2899, -1e+30
    %v3217 = vsel %vm3185, %v2893, -1e+30
    %v3218 = vsel %vm3186, %v2899, -1e+30
    %v3219 = vsel %vm3187, %v2893, -1e+30
    %v3220 = vsel %vm3188, %v2899, -1e+30
    %v3221 = vmax.f32 %v3189, %v3190
    %v3222 = vrot.slane %v3221, 4
    %v3223 = vmax.f32 %v3221, %v3222
    %v3224 = vrot.slane %v3223, 2
    %v3225 = vmax.f32 %v3223, %v3224
    %v3226 = vrot.slane %v3225, 1
    %v3227 = vmax.f32 %v3225, %v3226
    %v3228 = vmax.f32 %v3191, %v3192
    %v3229 = vrot.slane %v3228, 4
    %v3230 = vmax.f32 %v3228, %v3229
    %v3231 = vrot.slane %v3230, 2
    %v3232 = vmax.f32 %v3230, %v3231
    %v3233 = vrot.slane %v3232, 1
    %v3234 = vmax.f32 %v3232, %v3233
    %v3235 = vmax.f32 %v3193, %v3194
    %v3236 = vrot.slane %v3235, 4
    %v3237 = vmax.f32 %v3235, %v3236
    %v3238 = vrot.slane %v3237, 2
    %v3239 = vmax.f32 %v3237, %v3238
    %v3240 = vrot.slane %v3239, 1
    %v3241 = vmax.f32 %v3239, %v3240
    %v3242 = vmax.f32 %v3195, %v3196
    %v3243 = vrot.slane %v3242, 4
    %v3244 = vmax.f32 %v3242, %v3243
    %v3245 = vrot.slane %v3244, 2
    %v3246 = vmax.f32 %v3244, %v3245
    %v3247 = vrot.slane %v3246, 1
    %v3248 = vmax.f32 %v3246, %v3247
    %v3249 = vmax.f32 %v3197, %v3198
    %v3250 = vrot.slane %v3249, 4
    %v3251 = vmax.f32 %v3249, %v3250
    %v3252 = vrot.slane %v3251, 2
    %v3253 = vmax.f32 %v3251, %v3252
    %v3254 = vrot.slane %v3253, 1
    %v3255 = vmax.f32 %v3253, %v3254
    %v3256 = vmax.f32 %v3199, %v3200
    %v3257 = vrot.slane %v3256, 4
    %v3258 = vmax.f32 %v3256, %v3257
    %v3259 = vrot.slane %v3258, 2
    %v3260 = vmax.f32 %v3258, %v3259
    %v3261 = vrot.slane %v3260, 1
    %v3262 = vmax.f32 %v3260, %v3261
    %v3263 = vmax.f32 %v3201, %v3202
    %v3264 = vrot.slane %v3263, 4
    %v3265 = vmax.f32 %v3263, %v3264
    %v3266 = vrot.slane %v3265, 2
    %v3267 = vmax.f32 %v3265, %v3266
    %v3268 = vrot.slane %v3267, 1
    %v3269 = vmax.f32 %v3267, %v3268
    %v3270 = vmax.f32 %v3203, %v3204
    %v3271 = vrot.slane %v3270, 4
    %v3272 = vmax.f32 %v3270, %v3271
    %v3273 = vrot.slane %v3272, 2
    %v3274 = vmax.f32 %v3272, %v3273
    %v3275 = vrot.slane %v3274, 1
    %v3276 = vmax.f32 %v3274, %v3275
    %v3277 = vmax.f32 %v3205, %v3206
    %v3278 = vrot.slane %v3277, 4
    %v3279 = vmax.f32 %v3277, %v3278
    %v3280 = vrot.slane %v3279, 2
    %v3281 = vmax.f32 %v3279, %v3280
    %v3282 = vrot.slane %v3281, 1
    %v3283 = vmax.f32 %v3281, %v3282
    %v3284 = vmax.f32 %v3207, %v3208
    %v3285 = vrot.slane %v3284, 4
    %v3286 = vmax.f32 %v3284, %v3285
    %v3287 = vrot.slane %v3286, 2
    %v3288 = vmax.f32 %v3286, %v3287
    %v3289 = vrot.slane %v3288, 1
    %v3290 = vmax.f32 %v3288, %v3289
    %v3291 = vmax.f32 %v3209, %v3210
    %v3292 = vrot.slane %v3291, 4
    %v3293 = vmax.f32 %v3291, %v3292
    %v3294 = vrot.slane %v3293, 2
    %v3295 = vmax.f32 %v3293, %v3294
    %v3296 = vrot.slane %v3295, 1
    %v3297 = vmax.f32 %v3295, %v3296
    %v3298 = vmax.f32 %v3211, %v3212
    %v3299 = vrot.slane %v3298, 4
    %v3300 = vmax.f32 %v3298, %v3299
    %v3301 = vrot.slane %v3300, 2
    %v3302 = vmax.f32 %v3300, %v3301
    %v3303 = vrot.slane %v3302, 1
    %v3304 = vmax.f32 %v3302, %v3303
    %v3305 = vmax.f32 %v3213, %v3214
    %v3306 = vrot.slane %v3305, 4
    %v3307 = vmax.f32 %v3305, %v3306
    %v3308 = vrot.slane %v3307, 2
    %v3309 = vmax.f32 %v3307, %v3308
    %v3310 = vrot.slane %v3309, 1
    %v3311 = vmax.f32 %v3309, %v3310
    %v3312 = vmax.f32 %v3215, %v3216
    %v3313 = vrot.slane %v3312, 4
    %v3314 = vmax.f32 %v3312, %v3313
    %v3315 = vrot.slane %v3314, 2
    %v3316 = vmax.f32 %v3314, %v3315
    %v3317 = vrot.slane %v3316, 1
    %v3318 = vmax.f32 %v3316, %v3317
    %v3319 = vmax.f32 %v3217, %v3218
    %v3320 = vrot.slane %v3319, 4
    %v3321 = vmax.f32 %v3319, %v3320
    %v3322 = vrot.slane %v3321, 2
    %v3323 = vmax.f32 %v3321, %v3322
    %v3324 = vrot.slane %v3323, 1
    %v3325 = vmax.f32 %v3323, %v3324
    %v3326 = vmax.f32 %v3219, %v3220
    %v3327 = vrot.slane %v3326, 4
    %v3328 = vmax.f32 %v3326, %v3327
    %v3329 = vrot.slane %v3328, 2
    %v3330 = vmax.f32 %v3328, %v3329
    %v3331 = vrot.slane %v3330, 1
    %v3332 = vmax.f32 %v3330, %v3331
    %v3333 = vmax.f32 %v3109, %v3227
    %v3334 = vmax.f32 %v3110, %v3234
    %v3335 = vmax.f32 %v3111, %v3241
    %v3336 = vmax.f32 %v3112, %v3248
    %v3337 = vmax.f32 %v3113, %v3255
    %v3338 = vmax.f32 %v3114, %v3262
    %v3339 = vmax.f32 %v3115, %v3269
    %v3340 = vmax.f32 %v3116, %v3276
    %v3341 = vmax.f32 %v3117, %v3283
    %v3342 = vmax.f32 %v3118, %v3290
    %v3343 = vmax.f32 %v3119, %v3297
    %v3344 = vmax.f32 %v3120, %v3304
    %v3345 = vmax.f32 %v3121, %v3311
    %v3346 = vmax.f32 %v3122, %v3318
    %v3347 = vmax.f32 %v3123, %v3325
    %v3348 = vmax.f32 %v3124, %v3332
    %v3349 = vsel %vm2790, 1, 0
    %v3350 = vsel %vm2791, 1, 0
    %vm3351 = vcmp.eq.s32.totalorder %v3349, 1
    %vm3352 = vcmp.eq.s32.totalorder %v3350, 1
    %vm3369 = vcmask 1041409
    %v3370 = vsel %vm3369, %v3334, %v3333
    %vm3371 = vcmask 1042434
    %v3372 = vsel %vm3371, %v3335, %v3370
    %vm3373 = vcmask 1043459
    %v3374 = vsel %vm3373, %v3336, %v3372
    %vm3375 = vcmask 1044484
    %v3376 = vsel %vm3375, %v3337, %v3374
    %vm3377 = vcmask 1045509
    %v3378 = vsel %vm3377, %v3338, %v3376
    %vm3379 = vcmask 1046534
    %v3380 = vsel %vm3379, %v3339, %v3378
    %vm3381 = vcmask 1047559
    %v3382 = vsel %vm3381, %v3340, %v3380
    %v3383 = vsel %vm3369, %v3342, %v3341
    %v3384 = vsel %vm3371, %v3343, %v3383
    %v3385 = vsel %vm3373, %v3344, %v3384
    %v3386 = vsel %vm3375, %v3345, %v3385
    %v3387 = vsel %vm3377, %v3346, %v3386
    %v3388 = vsel %vm3379, %v3347, %v3387
    %v3389 = vsel %vm3381, %v3348, %v3388
    %v3392 = vsel %vm3351, %v3382, 0.0
    %v3393 = vsel %vm3352, %v3389, 0.0
    %v3394 = vld [vmem:[#allocation7] sm:$0xff]
    %v3395 = vld [vmem:[#allocation7 + $0x8] sm:$0xff]
    %v3396 = vld [vmem:[#allocation7 + $0x10] sm:$0xff]
    %v3397 = vld [vmem:[#allocation7 + $0x18] sm:$0xff]
    %v3398 = vld [vmem:[#allocation7 + $0x20] sm:$0xff]
    %v3399 = vld [vmem:[#allocation7 + $0x28] sm:$0xff]
    %v3400 = vld [vmem:[#allocation7 + $0x30] sm:$0xff]
    %v3401 = vld [vmem:[#allocation7 + $0x38] sm:$0xff]
    %v3402 = vld [vmem:[#allocation7 + $0x40] sm:$0xff]
    %v3403 = vld [vmem:[#allocation7 + $0x48] sm:$0xff]
    %v3404 = vld [vmem:[#allocation7 + $0x50] sm:$0xff]
    %v3405 = vld [vmem:[#allocation7 + $0x58] sm:$0xff]
    %v3406 = vld [vmem:[#allocation7 + $0x60] sm:$0xff]
    %v3407 = vld [vmem:[#allocation7 + $0x68] sm:$0xff]
    %v3408 = vld [vmem:[#allocation7 + $0x70] sm:$0xff]
    %v3409 = vld [vmem:[#allocation7 + $0x78] sm:$0xff]
    %v3410 = vld [vmem:[#allocation9] sm:$0xff]
    %v3411 = vld [vmem:[#allocation9 + $0x8] sm:$0xff]
    %v3412 = vld [vmem:[#allocation9 + $0x10] sm:$0xff]
    %v3413 = vld [vmem:[#allocation9 + $0x18] sm:$0xff]
    %v3414 = vld [vmem:[#allocation9 + $0x20] sm:$0xff]
    %v3415 = vld [vmem:[#allocation9 + $0x28] sm:$0xff]
    %v3416 = vld [vmem:[#allocation9 + $0x30] sm:$0xff]
    %v3417 = vld [vmem:[#allocation9 + $0x38] sm:$0xff]
    %v3418 = vld [vmem:[#allocation9 + $0x40] sm:$0xff]
    %v3419 = vld [vmem:[#allocation9 + $0x48] sm:$0xff]
    %v3420 = vld [vmem:[#allocation9 + $0x50] sm:$0xff]
    %v3421 = vld [vmem:[#allocation9 + $0x58] sm:$0xff]
    %v3422 = vld [vmem:[#allocation9 + $0x60] sm:$0xff]
    %v3423 = vld [vmem:[#allocation9 + $0x68] sm:$0xff]
    %v3424 = vld [vmem:[#allocation9 + $0x70] sm:$0xff]
    %v3425 = vld [vmem:[#allocation9 + $0x78] sm:$0xff]
    %3426 = vmatprep.subr.mxu0 0.0
    %3427 = vmatpush1.msra.mxu0 %v3425
    %3428 = vmatprep.subr.mxu0 0.0
    %3429 = vmatpush1.msra.mxu0 %v3424
    %3430 = vmatprep.subr.mxu0 0.0
    %3431 = vmatpush1.msra.mxu0 %v3423
    %3432 = vmatprep.subr.mxu0 0.0
    %3433 = vmatpush1.msra.mxu0 %v3422
    %3434 = vmatprep.subr.mxu0 0.0
    %3435 = vmatpush1.msra.mxu0 %v3421
    %3436 = vmatprep.subr.mxu0 0.0
    %3437 = vmatpush1.msra.mxu0 %v3420
    %3438 = vmatprep.subr.mxu0 0.0
    %3439 = vmatpush1.msra.mxu0 %v3419
    %3440 = vmatprep.subr.mxu0 0.0
    %3441 = vmatpush1.msra.mxu0 %v3418
    %3442 = vmatprep.subr.mxu0 0.0
    %3443 = vmatpush1.msra.mxu0 %v3417
    %3444 = vmatprep.subr.mxu0 0.0
    %3445 = vmatpush1.msra.mxu0 %v3416
    %3446 = vmatprep.subr.mxu0 0.0
    %3447 = vmatpush1.msra.mxu0 %v3415
    %3448 = vmatprep.subr.mxu0 0.0
    %3449 = vmatpush1.msra.mxu0 %v3414
    %3450 = vmatprep.subr.mxu0 0.0
    %3451 = vmatpush1.msra.mxu0 %v3413
    %3452 = vmatprep.subr.mxu0 0.0
    %3453 = vmatpush1.msra.mxu0 %v3412
    %3454 = vmatprep.subr.mxu0 0.0
    %3455 = vmatpush1.msra.mxu0 %v3411
    %3456 = vmatprep.subr.mxu0 0.0
    %3457 = vmatpush1.msra.mxu0 %v3410
    %3458 = vmatprep.subr.mxu0 0.0
    %3459 = vmatpush2.msra.mxu0 0.0
    %3460 = vmatprep.subr.mxu0 0.0
    %3461 = vmatpush2.msra.mxu0 0.0
    %3462 = vmatprep.subr.mxu0 0.0
    %3463 = vmatpush2.msra.mxu0 0.0
    %3464 = vmatprep.subr.mxu0 0.0
    %3465 = vmatpush2.msra.mxu0 0.0
    %3466 = vmatprep.subr.mxu0 0.0
    %3467 = vmatpush2.msra.mxu0 0.0
    %3468 = vmatprep.subr.mxu0 0.0
    %3469 = vmatpush2.msra.mxu0 0.0
    %3470 = vmatprep.subr.mxu0 0.0
    %3471 = vmatpush2.msra.mxu0 0.0
    %3472 = vmatprep.subr.mxu0 0.0
    %3473 = vmatpush2.msra.mxu0 0.0
    %3474 = vmatprep.subr.mxu0 0.0
    %3475 = vmatpush2.msra.mxu0 0.0
    %3476 = vmatprep.subr.mxu0 0.0
    %3477 = vmatpush2.msra.mxu0 0.0
    %3478 = vmatprep.subr.mxu0 0.0
    %3479 = vmatpush2.msra.mxu0 0.0
    %3480 = vmatprep.subr.mxu0 0.0
    %3481 = vmatpush2.msra.mxu0 0.0
    %3482 = vmatprep.subr.mxu0 0.0
    %3483 = vmatpush2.msra.mxu0 0.0
    %3484 = vmatprep.subr.mxu0 0.0
    %3485 = vmatpush2.msra.mxu0 0.0
    %3486 = vmatprep.subr.mxu0 0.0
    %3487 = vmatpush2.msra.mxu0 0.0
    %3488 = vmatprep.subr.mxu0 0.0
    %3489 = vmatpush2.msra.mxu0 0.0
    %3490 = vmatprep.mubr.f32.mxu0 0.0
    %3491 = vmatmul.mubr.f32.gmra.mxu0 %v3392
    %v3492 = vpop.f32.mrf.mxu0
    %v3493 = vadd.f32 0.0, %v3492
    %v3494 = vpop.f32.mrf.mxu0
    %3495 = vmatprep.mubr.f32.mxu0 0.0
    %3496 = vmatmul.mubr.f32.gmra.mxu0 %v3393
    %v3497 = vpop.f32.mrf.mxu0
    %v3498 = vadd.f32 0.0, %v3497
    %v3499 = vpop.f32.mrf.mxu0
    %3500 = vdwg.mxu0
    %3501 = vmatprep.subr.mxu0 0.0
    %3502 = vmatpush1.msra.mxu0 %v3409
    %3503 = vmatprep.subr.mxu0 0.0
    %3504 = vmatpush1.msra.mxu0 %v3408
    %3505 = vmatprep.subr.mxu0 0.0
    %3506 = vmatpush1.msra.mxu0 %v3407
    %3507 = vmatprep.subr.mxu0 0.0
    %3508 = vmatpush1.msra.mxu0 %v3406
    %3509 = vmatprep.subr.mxu0 0.0
    %3510 = vmatpush1.msra.mxu0 %v3405
    %3511 = vmatprep.subr.mxu0 0.0
    %3512 = vmatpush1.msra.mxu0 %v3404
    %3513 = vmatprep.subr.mxu0 0.0
    %3514 = vmatpush1.msra.mxu0 %v3403
    %3515 = vmatprep.subr.mxu0 0.0
    %3516 = vmatpush1.msra.mxu0 %v3402
    %3517 = vmatprep.subr.mxu0 0.0
    %3518 = vmatpush1.msra.mxu0 %v3401
    %3519 = vmatprep.subr.mxu0 0.0
    %3520 = vmatpush1.msra.mxu0 %v3400
    %3521 = vmatprep.subr.mxu0 0.0
    %3522 = vmatpush1.msra.mxu0 %v3399
    %3523 = vmatprep.subr.mxu0 0.0
    %3524 = vmatpush1.msra.mxu0 %v3398
    %3525 = vmatprep.subr.mxu0 0.0
    %3526 = vmatpush1.msra.mxu0 %v3397
    %3527 = vmatprep.subr.mxu0 0.0
    %3528 = vmatpush1.msra.mxu0 %v3396
    %3529 = vmatprep.subr.mxu0 0.0
    %3530 = vmatpush1.msra.mxu0 %v3395
    %3531 = vmatprep.subr.mxu0 0.0
    %3532 = vmatpush1.msra.mxu0 %v3394
    %3533 = vmatprep.subr.mxu0 0.0
    %3534 = vmatpush2.msra.mxu0 0.0
    %3535 = vmatprep.subr.mxu0 0.0
    %3536 = vmatpush2.msra.mxu0 0.0
    %3537 = vmatprep.subr.mxu0 0.0
    %3538 = vmatpush2.msra.mxu0 0.0
    %3539 = vmatprep.subr.mxu0 0.0
    %3540 = vmatpush2.msra.mxu0 0.0
    %3541 = vmatprep.subr.mxu0 0.0
    %3542 = vmatpush2.msra.mxu0 0.0
    %3543 = vmatprep.subr.mxu0 0.0
    %3544 = vmatpush2.msra.mxu0 0.0
    %3545 = vmatprep.subr.mxu0 0.0
    %3546 = vmatpush2.msra.mxu0 0.0
    %3547 = vmatprep.subr.mxu0 0.0
    %3548 = vmatpush2.msra.mxu0 0.0
    %3549 = vmatprep.subr.mxu0 0.0
    %3550 = vmatpush2.msra.mxu0 0.0
    %3551 = vmatprep.subr.mxu0 0.0
    %3552 = vmatpush2.msra.mxu0 0.0
    %3553 = vmatprep.subr.mxu0 0.0
    %3554 = vmatpush2.msra.mxu0 0.0
    %3555 = vmatprep.subr.mxu0 0.0
    %3556 = vmatpush2.msra.mxu0 0.0
    %3557 = vmatprep.subr.mxu0 0.0
    %3558 = vmatpush2.msra.mxu0 0.0
    %3559 = vmatprep.subr.mxu0 0.0
    %3560 = vmatpush2.msra.mxu0 0.0
    %3561 = vmatprep.subr.mxu0 0.0
    %3562 = vmatpush2.msra.mxu0 0.0
    %3563 = vmatprep.subr.mxu0 0.0
    %3564 = vmatpush2.msra.mxu0 0.0
    %3565 = vmatprep.mubr.f32.mxu0 0.0
    %3566 = vmatmul.mubr.f32.gmra.mxu0 %v2355
    %v3567 = vpop.f32.mrf.mxu0
    %v3568 = vadd.f32 %v3493, %v3567
    %v3569 = vpop.f32.mrf.mxu0
    %3570 = vmatprep.mubr.f32.mxu0 0.0
    %3571 = vmatmul.mubr.f32.gmra.mxu0 %v2356
    %v3572 = vpop.f32.mrf.mxu0
    %v3573 = vadd.f32 %v3498, %v3572
    %v3574 = vpop.f32.mrf.mxu0
    %3575 = vdwg.mxu0
    %v3576 = vld [vmem:[#allocation10] sm:$0x1]
    %v3578 = vlaneseq
    %v3579 = vshrl.u32 %v3578, 7
    %v3580 = vsub.s32 0, %v3579
    %v3581 = vrot.slane %v3576, %v3580
    %v3583 = vadd.f32 %v3568, %v3581
    %v3584 = vadd.f32 %v3573, %v3581
    %s3585 = scalar_lea.vmem %s8, 256
    %v3586 = vld [vmem:[%s3585] sm:$0xff]
    %v3587 = vld [vmem:[%s3585 + $0x8] sm:$0xff]
    %v3588 = vld [vmem:[%s3585 + $0x10] sm:$0xff]
    %v3589 = vld [vmem:[%s3585 + $0x18] sm:$0xff]
    %v3590 = vld [vmem:[%s3585 + $0x20] sm:$0xff]
    %v3591 = vld [vmem:[%s3585 + $0x28] sm:$0xff]
    %v3592 = vld [vmem:[%s3585 + $0x30] sm:$0xff]
    %v3593 = vld [vmem:[%s3585 + $0x38] sm:$0xff]
    %v3594 = vld [vmem:[%s3585 + $0x40] sm:$0xff]
    %v3595 = vld [vmem:[%s3585 + $0x48] sm:$0xff]
    %v3596 = vld [vmem:[%s3585 + $0x50] sm:$0xff]
    %v3597 = vld [vmem:[%s3585 + $0x58] sm:$0xff]
    %v3598 = vld [vmem:[%s3585 + $0x60] sm:$0xff]
    %v3599 = vld [vmem:[%s3585 + $0x68] sm:$0xff]
    %v3600 = vld [vmem:[%s3585 + $0x70] sm:$0xff]
    %v3601 = vld [vmem:[%s3585 + $0x78] sm:$0xff]
    %v3602 = vld [vmem:[%s3585 + $0x80] sm:$0xff]
    %v3603 = vld [vmem:[%s3585 + $0x88] sm:$0xff]
    %v3604 = vld [vmem:[%s3585 + $0x90] sm:$0xff]
    %v3605 = vld [vmem:[%s3585 + $0x98] sm:$0xff]
    %v3606 = vld [vmem:[%s3585 + $0xa0] sm:$0xff]
    %v3607 = vld [vmem:[%s3585 + $0xa8] sm:$0xff]
    %v3608 = vld [vmem:[%s3585 + $0xb0] sm:$0xff]
    %v3609 = vld [vmem:[%s3585 + $0xb8] sm:$0xff]
    %v3610 = vld [vmem:[%s3585 + $0xc0] sm:$0xff]
    %v3611 = vld [vmem:[%s3585 + $0xc8] sm:$0xff]
    %v3612 = vld [vmem:[%s3585 + $0xd0] sm:$0xff]
    %v3613 = vld [vmem:[%s3585 + $0xd8] sm:$0xff]
    %v3614 = vld [vmem:[%s3585 + $0xe0] sm:$0xff]
    %v3615 = vld [vmem:[%s3585 + $0xe8] sm:$0xff]
    %v3616 = vld [vmem:[%s3585 + $0xf0] sm:$0xff]
    %v3617 = vld [vmem:[%s3585 + $0xf8] sm:$0xff]
    %3618 = vmatprep.subr.mxu0 %v3617
    %3619 = vmatpush1.msra.mxu0 %v3616
    %3620 = vmatprep.subr.mxu0 %v3615
    %3621 = vmatpush1.msra.mxu0 %v3614
    %3622 = vmatprep.subr.mxu0 %v3613
    %3623 = vmatpush1.msra.mxu0 %v3612
    %3624 = vmatprep.subr.mxu0 %v3611
    %3625 = vmatpush1.msra.mxu0 %v3610
    %3626 = vmatprep.subr.mxu0 %v3609
    %3627 = vmatpush1.msra.mxu0 %v3608
    %3628 = vmatprep.subr.mxu0 %v3607
    %3629 = vmatpush1.msra.mxu0 %v3606
    %3630 = vmatprep.subr.mxu0 %v3605
    %3631 = vmatpush1.msra.mxu0 %v3604
    %3632 = vmatprep.subr.mxu0 %v3603
    %3633 = vmatpush1.msra.mxu0 %v3602
    %3634 = vmatprep.subr.mxu0 %v3601
    %3635 = vmatpush1.msra.mxu0 %v3600
    %3636 = vmatprep.subr.mxu0 %v3599
    %3637 = vmatpush1.msra.mxu0 %v3598
    %3638 = vmatprep.subr.mxu0 %v3597
    %3639 = vmatpush1.msra.mxu0 %v3596
    %3640 = vmatprep.subr.mxu0 %v3595
    %3641 = vmatpush1.msra.mxu0 %v3594
    %3642 = vmatprep.subr.mxu0 %v3593
    %3643 = vmatpush1.msra.mxu0 %v3592
    %3644 = vmatprep.subr.mxu0 %v3591
    %3645 = vmatpush1.msra.mxu0 %v3590
    %3646 = vmatprep.subr.mxu0 %v3589
    %3647 = vmatpush1.msra.mxu0 %v3588
    %3648 = vmatprep.subr.mxu0 %v3587
    %3649 = vmatpush1.msra.mxu0 %v3586
    %3650 = vmatprep.subr.mxu0 0.0
    %3651 = vmatpush2.msra.mxu0 0.0
    %3652 = vmatprep.subr.mxu0 0.0
    %3653 = vmatpush2.msra.mxu0 0.0
    %3654 = vmatprep.subr.mxu0 0.0
    %3655 = vmatpush2.msra.mxu0 0.0
    %3656 = vmatprep.subr.mxu0 0.0
    %3657 = vmatpush2.msra.mxu0 0.0
    %3658 = vmatprep.subr.mxu0 0.0
    %3659 = vmatpush2.msra.mxu0 0.0
    %3660 = vmatprep.subr.mxu0 0.0
    %3661 = vmatpush2.msra.mxu0 0.0
    %3662 = vmatprep.subr.mxu0 0.0
    %3663 = vmatpush2.msra.mxu0 0.0
    %3664 = vmatprep.subr.mxu0 0.0
    %3665 = vmatpush2.msra.mxu0 0.0
    %3666 = vmatprep.subr.mxu0 0.0
    %3667 = vmatpush2.msra.mxu0 0.0
    %3668 = vmatprep.subr.mxu0 0.0
    %3669 = vmatpush2.msra.mxu0 0.0
    %3670 = vmatprep.subr.mxu0 0.0
    %3671 = vmatpush2.msra.mxu0 0.0
    %3672 = vmatprep.subr.mxu0 0.0
    %3673 = vmatpush2.msra.mxu0 0.0
    %3674 = vmatprep.subr.mxu0 0.0
    %3675 = vmatpush2.msra.mxu0 0.0
    %3676 = vmatprep.subr.mxu0 0.0
    %3677 = vmatpush2.msra.mxu0 0.0
    %3678 = vmatprep.subr.mxu0 0.0
    %3679 = vmatpush2.msra.mxu0 0.0
    %3680 = vmatprep.subr.mxu0 0.0
    %3681 = vmatpush2.msra.mxu0 0.0
    %3682 = vmatprep.mubr.f32.mxu0 0.0
    %3683 = vmatmul.mubr.f32.gmra.mxu0 %v3583
    %v3684 = vpop.f32.mrf.mxu0
    %v3685 = vadd.f32 0.0, %v3684
    %v3686 = vpop.f32.mrf.mxu0
    %v3687 = vadd.f32 0.0, %v3686
    %3688 = vmatprep.mubr.f32.mxu0 0.0
    %3689 = vmatmul.mubr.f32.gmra.mxu0 %v3584
    %v3690 = vpop.f32.mrf.mxu0
    %v3691 = vadd.f32 0.0, %v3690
    %v3692 = vpop.f32.mrf.mxu0
    %v3693 = vadd.f32 0.0, %v3692
    %3694 = vdwg.mxu0
    %v3695 = vsel %vm2933, %v3685, -1e+30
    %v3696 = vsel %vm2934, %v3691, -1e+30
    %v3697 = vsel %vm2935, %v3685, -1e+30
    %v3698 = vsel %vm2936, %v3691, -1e+30
    %v3699 = vsel %vm2937, %v3685, -1e+30
    %v3700 = vsel %vm2938, %v3691, -1e+30
    %v3701 = vsel %vm2939, %v3685, -1e+30
    %v3702 = vsel %vm2940, %v3691, -1e+30
    %v3703 = vsel %vm2941, %v3685, -1e+30
    %v3704 = vsel %vm2942, %v3691, -1e+30
    %v3705 = vsel %vm2943, %v3685, -1e+30
    %v3706 = vsel %vm2944, %v3691, -1e+30
    %v3707 = vsel %vm2945, %v3685, -1e+30
    %v3708 = vsel %vm2946, %v3691, -1e+30
    %v3709 = vsel %vm2947, %v3685, -1e+30
    %v3710 = vsel %vm2948, %v3691, -1e+30
    %v3711 = vsel %vm2949, %v3685, -1e+30
    %v3712 = vsel %vm2950, %v3691, -1e+30
    %v3713 = vsel %vm2951, %v3685, -1e+30
    %v3714 = vsel %vm2952, %v3691, -1e+30
    %v3715 = vsel %vm2953, %v3685, -1e+30
    %v3716 = vsel %vm2954, %v3691, -1e+30
    %v3717 = vsel %vm2955, %v3685, -1e+30
    %v3718 = vsel %vm2956, %v3691, -1e+30
    %v3719 = vsel %vm2957, %v3685, -1e+30
    %v3720 = vsel %vm2958, %v3691, -1e+30
    %v3721 = vsel %vm2959, %v3685, -1e+30
    %v3722 = vsel %vm2960, %v3691, -1e+30
    %v3723 = vsel %vm2961, %v3685, -1e+30
    %v3724 = vsel %vm2962, %v3691, -1e+30
    %v3725 = vsel %vm2963, %v3685, -1e+30
    %v3726 = vsel %vm2964, %v3691, -1e+30
    %v3727 = vmax.f32 %v3695, %v3696
    %v3728 = vrot.slane %v3727, 4
    %v3729 = vmax.f32 %v3727, %v3728
    %v3730 = vrot.slane %v3729, 2
    %v3731 = vmax.f32 %v3729, %v3730
    %v3732 = vrot.slane %v3731, 1
    %v3733 = vmax.f32 %v3731, %v3732
    %v3734 = vmax.f32 %v3697, %v3698
    %v3735 = vrot.slane %v3734, 4
    %v3736 = vmax.f32 %v3734, %v3735
    %v3737 = vrot.slane %v3736, 2
    %v3738 = vmax.f32 %v3736, %v3737
    %v3739 = vrot.slane %v3738, 1
    %v3740 = vmax.f32 %v3738, %v3739
    %v3741 = vmax.f32 %v3699, %v3700
    %v3742 = vrot.slane %v3741, 4
    %v3743 = vmax.f32 %v3741, %v3742
    %v3744 = vrot.slane %v3743, 2
    %v3745 = vmax.f32 %v3743, %v3744
    %v3746 = vrot.slane %v3745, 1
    %v3747 = vmax.f32 %v3745, %v3746
    %v3748 = vmax.f32 %v3701, %v3702
    %v3749 = vrot.slane %v3748, 4
    %v3750 = vmax.f32 %v3748, %v3749
    %v3751 = vrot.slane %v3750, 2
    %v3752 = vmax.f32 %v3750, %v3751
    %v3753 = vrot.slane %v3752, 1
    %v3754 = vmax.f32 %v3752, %v3753
    %v3755 = vmax.f32 %v3703, %v3704
    %v3756 = vrot.slane %v3755, 4
    %v3757 = vmax.f32 %v3755, %v3756
    %v3758 = vrot.slane %v3757, 2
    %v3759 = vmax.f32 %v3757, %v3758
    %v3760 = vrot.slane %v3759, 1
    %v3761 = vmax.f32 %v3759, %v3760
    %v3762 = vmax.f32 %v3705, %v3706
    %v3763 = vrot.slane %v3762, 4
    %v3764 = vmax.f32 %v3762, %v3763
    %v3765 = vrot.slane %v3764, 2
    %v3766 = vmax.f32 %v3764, %v3765
    %v3767 = vrot.slane %v3766, 1
    %v3768 = vmax.f32 %v3766, %v3767
    %v3769 = vmax.f32 %v3707, %v3708
    %v3770 = vrot.slane %v3769, 4
    %v3771 = vmax.f32 %v3769, %v3770
    %v3772 = vrot.slane %v3771, 2
    %v3773 = vmax.f32 %v3771, %v3772
    %v3774 = vrot.slane %v3773, 1
    %v3775 = vmax.f32 %v3773, %v3774
    %v3776 = vmax.f32 %v3709, %v3710
    %v3777 = vrot.slane %v3776, 4
    %v3778 = vmax.f32 %v3776, %v3777
    %v3779 = vrot.slane %v3778, 2
    %v3780 = vmax.f32 %v3778, %v3779
    %v3781 = vrot.slane %v3780, 1
    %v3782 = vmax.f32 %v3780, %v3781
    %v3783 = vmax.f32 %v3711, %v3712
    %v3784 = vrot.slane %v3783, 4
    %v3785 = vmax.f32 %v3783, %v3784
    %v3786 = vrot.slane %v3785, 2
    %v3787 = vmax.f32 %v3785, %v3786
    %v3788 = vrot.slane %v3787, 1
    %v3789 = vmax.f32 %v3787, %v3788
    %v3790 = vmax.f32 %v3713, %v3714
    %v3791 = vrot.slane %v3790, 4
    %v3792 = vmax.f32 %v3790, %v3791
    %v3793 = vrot.slane %v3792, 2
    %v3794 = vmax.f32 %v3792, %v3793
    %v3795 = vrot.slane %v3794, 1
    %v3796 = vmax.f32 %v3794, %v3795
    %v3797 = vmax.f32 %v3715, %v3716
    %v3798 = vrot.slane %v3797, 4
    %v3799 = vmax.f32 %v3797, %v3798
    %v3800 = vrot.slane %v3799, 2
    %v3801 = vmax.f32 %v3799, %v3800
    %v3802 = vrot.slane %v3801, 1
    %v3803 = vmax.f32 %v3801, %v3802
    %v3804 = vmax.f32 %v3717, %v3718
    %v3805 = vrot.slane %v3804, 4
    %v3806 = vmax.f32 %v3804, %v3805
    %v3807 = vrot.slane %v3806, 2
    %v3808 = vmax.f32 %v3806, %v3807
    %v3809 = vrot.slane %v3808, 1
    %v3810 = vmax.f32 %v3808, %v3809
    %v3811 = vmax.f32 %v3719, %v3720
    %v3812 = vrot.slane %v3811, 4
    %v3813 = vmax.f32 %v3811, %v3812
    %v3814 = vrot.slane %v3813, 2
    %v3815 = vmax.f32 %v3813, %v3814
    %v3816 = vrot.slane %v3815, 1
    %v3817 = vmax.f32 %v3815, %v3816
    %v3818 = vmax.f32 %v3721, %v3722
    %v3819 = vrot.slane %v3818, 4
    %v3820 = vmax.f32 %v3818, %v3819
    %v3821 = vrot.slane %v3820, 2
    %v3822 = vmax.f32 %v3820, %v3821
    %v3823 = vrot.slane %v3822, 1
    %v3824 = vmax.f32 %v3822, %v3823
    %v3825 = vmax.f32 %v3723, %v3724
    %v3826 = vrot.slane %v3825, 4
    %v3827 = vmax.f32 %v3825, %v3826
    %v3828 = vrot.slane %v3827, 2
    %v3829 = vmax.f32 %v3827, %v3828
    %v3830 = vrot.slane %v3829, 1
    %v3831 = vmax.f32 %v3829, %v3830
    %v3832 = vmax.f32 %v3725, %v3726
    %v3833 = vrot.slane %v3832, 4
    %v3834 = vmax.f32 %v3832, %v3833
    %v3835 = vrot.slane %v3834, 2
    %v3836 = vmax.f32 %v3834, %v3835
    %v3837 = vrot.slane %v3836, 1
    %v3838 = vmax.f32 %v3836, %v3837
    %v3839 = vmax.f32 %v3733, -1e+30
    %v3840 = vmax.f32 %v3740, -1e+30
    %v3841 = vmax.f32 %v3747, -1e+30
    %v3842 = vmax.f32 %v3754, -1e+30
    %v3843 = vmax.f32 %v3761, -1e+30
    %v3844 = vmax.f32 %v3768, -1e+30
    %v3845 = vmax.f32 %v3775, -1e+30
    %v3846 = vmax.f32 %v3782, -1e+30
    %v3847 = vmax.f32 %v3789, -1e+30
    %v3848 = vmax.f32 %v3796, -1e+30
    %v3849 = vmax.f32 %v3803, -1e+30
    %v3850 = vmax.f32 %v3810, -1e+30
    %v3851 = vmax.f32 %v3817, -1e+30
    %v3852 = vmax.f32 %v3824, -1e+30
    %v3853 = vmax.f32 %v3831, -1e+30
    %v3854 = vmax.f32 %v3838, -1e+30
    %v3855 = vsel %vm3157, %v3687, -1e+30
    %v3856 = vsel %vm3158, %v3693, -1e+30
    %v3857 = vsel %vm3159, %v3687, -1e+30
    %v3858 = vsel %vm3160, %v3693, -1e+30
    %v3859 = vsel %vm3161, %v3687, -1e+30
    %v3860 = vsel %vm3162, %v3693, -1e+30
    %v3861 = vsel %vm3163, %v3687, -1e+30
    %v3862 = vsel %vm3164, %v3693, -1e+30
    %v3863 = vsel %vm3165, %v3687, -1e+30
    %v3864 = vsel %vm3166, %v3693, -1e+30
    %v3865 = vsel %vm3167, %v3687, -1e+30
    %v3866 = vsel %vm3168, %v3693, -1e+30
    %v3867 = vsel %vm3169, %v3687, -1e+30
    %v3868 = vsel %vm3170, %v3693, -1e+30
    %v3869 = vsel %vm3171, %v3687, -1e+30
    %v3870 = vsel %vm3172, %v3693, -1e+30
    %v3871 = vsel %vm3173, %v3687, -1e+30
    %v3872 = vsel %vm3174, %v3693, -1e+30
    %v3873 = vsel %vm3175, %v3687, -1e+30
    %v3874 = vsel %vm3176, %v3693, -1e+30
    %v3875 = vsel %vm3177, %v3687, -1e+30
    %v3876 = vsel %vm3178, %v3693, -1e+30
    %v3877 = vsel %vm3179, %v3687, -1e+30
    %v3878 = vsel %vm3180, %v3693, -1e+30
    %v3879 = vsel %vm3181, %v3687, -1e+30
    %v3880 = vsel %vm3182, %v3693, -1e+30
    %v3881 = vsel %vm3183, %v3687, -1e+30
    %v3882 = vsel %vm3184, %v3693, -1e+30
    %v3883 = vsel %vm3185, %v3687, -1e+30
    %v3884 = vsel %vm3186, %v3693, -1e+30
    %v3885 = vsel %vm3187, %v3687, -1e+30
    %v3886 = vsel %vm3188, %v3693, -1e+30
    %v3887 = vmax.f32 %v3855, %v3856
    %v3888 = vrot.slane %v3887, 4
    %v3889 = vmax.f32 %v3887, %v3888
    %v3890 = vrot.slane %v3889, 2
    %v3891 = vmax.f32 %v3889, %v3890
    %v3892 = vrot.slane %v3891, 1
    %v3893 = vmax.f32 %v3891, %v3892
    %v3894 = vmax.f32 %v3857, %v3858
    %v3895 = vrot.slane %v3894, 4
    %v3896 = vmax.f32 %v3894, %v3895
    %v3897 = vrot.slane %v3896, 2
    %v3898 = vmax.f32 %v3896, %v3897
    %v3899 = vrot.slane %v3898, 1
    %v3900 = vmax.f32 %v3898, %v3899
    %v3901 = vmax.f32 %v3859, %v3860
    %v3902 = vrot.slane %v3901, 4
    %v3903 = vmax.f32 %v3901, %v3902
    %v3904 = vrot.slane %v3903, 2
    %v3905 = vmax.f32 %v3903, %v3904
    %v3906 = vrot.slane %v3905, 1
    %v3907 = vmax.f32 %v3905, %v3906
    %v3908 = vmax.f32 %v3861, %v3862
    %v3909 = vrot.slane %v3908, 4
    %v3910 = vmax.f32 %v3908, %v3909
    %v3911 = vrot.slane %v3910, 2
    %v3912 = vmax.f32 %v3910, %v3911
    %v3913 = vrot.slane %v3912, 1
    %v3914 = vmax.f32 %v3912, %v3913
    %v3915 = vmax.f32 %v3863, %v3864
    %v3916 = vrot.slane %v3915, 4
    %v3917 = vmax.f32 %v3915, %v3916
    %v3918 = vrot.slane %v3917, 2
    %v3919 = vmax.f32 %v3917, %v3918
    %v3920 = vrot.slane %v3919, 1
    %v3921 = vmax.f32 %v3919, %v3920
    %v3922 = vmax.f32 %v3865, %v3866
    %v3923 = vrot.slane %v3922, 4
    %v3924 = vmax.f32 %v3922, %v3923
    %v3925 = vrot.slane %v3924, 2
    %v3926 = vmax.f32 %v3924, %v3925
    %v3927 = vrot.slane %v3926, 1
    %v3928 = vmax.f32 %v3926, %v3927
    %v3929 = vmax.f32 %v3867, %v3868
    %v3930 = vrot.slane %v3929, 4
    %v3931 = vmax.f32 %v3929, %v3930
    %v3932 = vrot.slane %v3931, 2
    %v3933 = vmax.f32 %v3931, %v3932
    %v3934 = vrot.slane %v3933, 1
    %v3935 = vmax.f32 %v3933, %v3934
    %v3936 = vmax.f32 %v3869, %v3870
    %v3937 = vrot.slane %v3936, 4
    %v3938 = vmax.f32 %v3936, %v3937
    %v3939 = vrot.slane %v3938, 2
    %v3940 = vmax.f32 %v3938, %v3939
    %v3941 = vrot.slane %v3940, 1
    %v3942 = vmax.f32 %v3940, %v3941
    %v3943 = vmax.f32 %v3871, %v3872
    %v3944 = vrot.slane %v3943, 4
    %v3945 = vmax.f32 %v3943, %v3944
    %v3946 = vrot.slane %v3945, 2
    %v3947 = vmax.f32 %v3945, %v3946
    %v3948 = vrot.slane %v3947, 1
    %v3949 = vmax.f32 %v3947, %v3948
    %v3950 = vmax.f32 %v3873, %v3874
    %v3951 = vrot.slane %v3950, 4
    %v3952 = vmax.f32 %v3950, %v3951
    %v3953 = vrot.slane %v3952, 2
    %v3954 = vmax.f32 %v3952, %v3953
    %v3955 = vrot.slane %v3954, 1
    %v3956 = vmax.f32 %v3954, %v3955
    %v3957 = vmax.f32 %v3875, %v3876
    %v3958 = vrot.slane %v3957, 4
    %v3959 = vmax.f32 %v3957, %v3958
    %v3960 = vrot.slane %v3959, 2
    %v3961 = vmax.f32 %v3959, %v3960
    %v3962 = vrot.slane %v3961, 1
    %v3963 = vmax.f32 %v3961, %v3962
    %v3964 = vmax.f32 %v3877, %v3878
    %v3965 = vrot.slane %v3964, 4
    %v3966 = vmax.f32 %v3964, %v3965
    %v3967 = vrot.slane %v3966, 2
    %v3968 = vmax.f32 %v3966, %v3967
    %v3969 = vrot.slane %v3968, 1
    %v3970 = vmax.f32 %v3968, %v3969
    %v3971 = vmax.f32 %v3879, %v3880
    %v3972 = vrot.slane %v3971, 4
    %v3973 = vmax.f32 %v3971, %v3972
    %v3974 = vrot.slane %v3973, 2
    %v3975 = vmax.f32 %v3973, %v3974
    %v3976 = vrot.slane %v3975, 1
    %v3977 = vmax.f32 %v3975, %v3976
    %v3978 = vmax.f32 %v3881, %v3882
    %v3979 = vrot.slane %v3978, 4
    %v3980 = vmax.f32 %v3978, %v3979
    %v3981 = vrot.slane %v3980, 2
    %v3982 = vmax.f32 %v3980, %v3981
    %v3983 = vrot.slane %v3982, 1
    %v3984 = vmax.f32 %v3982, %v3983
    %v3985 = vmax.f32 %v3883, %v3884
    %v3986 = vrot.slane %v3985, 4
    %v3987 = vmax.f32 %v3985, %v3986
    %v3988 = vrot.slane %v3987, 2
    %v3989 = vmax.f32 %v3987, %v3988
    %v3990 = vrot.slane %v3989, 1
    %v3991 = vmax.f32 %v3989, %v3990
    %v3992 = vmax.f32 %v3885, %v3886
    %v3993 = vrot.slane %v3992, 4
    %v3994 = vmax.f32 %v3992, %v3993
    %v3995 = vrot.slane %v3994, 2
    %v3996 = vmax.f32 %v3994, %v3995
    %v3997 = vrot.slane %v3996, 1
    %v3998 = vmax.f32 %v3996, %v3997
    %v3999 = vmax.f32 %v3839, %v3893
    %v4000 = vmax.f32 %v3840, %v3900
    %v4001 = vmax.f32 %v3841, %v3907
    %v4002 = vmax.f32 %v3842, %v3914
    %v4003 = vmax.f32 %v3843, %v3921
    %v4004 = vmax.f32 %v3844, %v3928
    %v4005 = vmax.f32 %v3845, %v3935
    %v4006 = vmax.f32 %v3846, %v3942
    %v4007 = vmax.f32 %v3847, %v3949
    %v4008 = vmax.f32 %v3848, %v3956
    %v4009 = vmax.f32 %v3849, %v3963
    %v4010 = vmax.f32 %v3850, %v3970
    %v4011 = vmax.f32 %v3851, %v3977
    %v4012 = vmax.f32 %v3852, %v3984
    %v4013 = vmax.f32 %v3853, %v3991
    %v4014 = vmax.f32 %v3854, %v3998
    %v4031 = vsel %vm3369, %v4000, %v3999
    %v4032 = vsel %vm3371, %v4001, %v4031
    %v4033 = vsel %vm3373, %v4002, %v4032
    %v4034 = vsel %vm3375, %v4003, %v4033
    %v4035 = vsel %vm3377, %v4004, %v4034
    %v4036 = vsel %vm3379, %v4005, %v4035
    %v4037 = vsel %vm3381, %v4006, %v4036
    %v4038 = vsel %vm3369, %v4008, %v4007
    %v4039 = vsel %vm3371, %v4009, %v4038
    %v4040 = vsel %vm3373, %v4010, %v4039
    %v4041 = vsel %vm3375, %v4011, %v4040
    %v4042 = vsel %vm3377, %v4012, %v4041
    %v4043 = vsel %vm3379, %v4013, %v4042
    %v4044 = vsel %vm3381, %v4014, %v4043
    %v4047 = vsel %vm3351, %v4037, 0.0
    %v4048 = vsel %vm3352, %v4044, 0.0
    %s4049 = scalar_lea.vmem [#allocation7], 128
    %v4050 = vld [vmem:[%s4049] sm:$0xff]
    %v4051 = vld [vmem:[%s4049 + $0x8] sm:$0xff]
    %v4052 = vld [vmem:[%s4049 + $0x10] sm:$0xff]
    %v4053 = vld [vmem:[%s4049 + $0x18] sm:$0xff]
    %v4054 = vld [vmem:[%s4049 + $0x20] sm:$0xff]
    %v4055 = vld [vmem:[%s4049 + $0x28] sm:$0xff]
    %v4056 = vld [vmem:[%s4049 + $0x30] sm:$0xff]
    %v4057 = vld [vmem:[%s4049 + $0x38] sm:$0xff]
    %v4058 = vld [vmem:[%s4049 + $0x40] sm:$0xff]
    %v4059 = vld [vmem:[%s4049 + $0x48] sm:$0xff]
    %v4060 = vld [vmem:[%s4049 + $0x50] sm:$0xff]
    %v4061 = vld [vmem:[%s4049 + $0x58] sm:$0xff]
    %v4062 = vld [vmem:[%s4049 + $0x60] sm:$0xff]
    %v4063 = vld [vmem:[%s4049 + $0x68] sm:$0xff]
    %v4064 = vld [vmem:[%s4049 + $0x70] sm:$0xff]
    %v4065 = vld [vmem:[%s4049 + $0x78] sm:$0xff]
    %s4066 = scalar_lea.vmem [#allocation9], 128
    %v4067 = vld [vmem:[%s4066] sm:$0xff]
    %v4068 = vld [vmem:[%s4066 + $0x8] sm:$0xff]
    %v4069 = vld [vmem:[%s4066 + $0x10] sm:$0xff]
    %v4070 = vld [vmem:[%s4066 + $0x18] sm:$0xff]
    %v4071 = vld [vmem:[%s4066 + $0x20] sm:$0xff]
    %v4072 = vld [vmem:[%s4066 + $0x28] sm:$0xff]
    %v4073 = vld [vmem:[%s4066 + $0x30] sm:$0xff]
    %v4074 = vld [vmem:[%s4066 + $0x38] sm:$0xff]
    %v4075 = vld [vmem:[%s4066 + $0x40] sm:$0xff]
    %v4076 = vld [vmem:[%s4066 + $0x48] sm:$0xff]
    %v4077 = vld [vmem:[%s4066 + $0x50] sm:$0xff]
    %v4078 = vld [vmem:[%s4066 + $0x58] sm:$0xff]
    %v4079 = vld [vmem:[%s4066 + $0x60] sm:$0xff]
    %v4080 = vld [vmem:[%s4066 + $0x68] sm:$0xff]
    %v4081 = vld [vmem:[%s4066 + $0x70] sm:$0xff]
    %v4082 = vld [vmem:[%s4066 + $0x78] sm:$0xff]
    %4083 = vmatprep.subr.mxu0 0.0
    %4084 = vmatpush1.msra.mxu0 %v4082
    %4085 = vmatprep.subr.mxu0 0.0
    %4086 = vmatpush1.msra.mxu0 %v4081
    %4087 = vmatprep.subr.mxu0 0.0
    %4088 = vmatpush1.msra.mxu0 %v4080
    %4089 = vmatprep.subr.mxu0 0.0
    %4090 = vmatpush1.msra.mxu0 %v4079
    %4091 = vmatprep.subr.mxu0 0.0
    %4092 = vmatpush1.msra.mxu0 %v4078
    %4093 = vmatprep.subr.mxu0 0.0
    %4094 = vmatpush1.msra.mxu0 %v4077
    %4095 = vmatprep.subr.mxu0 0.0
    %4096 = vmatpush1.msra.mxu0 %v4076
    %4097 = vmatprep.subr.mxu0 0.0
    %4098 = vmatpush1.msra.mxu0 %v4075
    %4099 = vmatprep.subr.mxu0 0.0
    %4100 = vmatpush1.msra.mxu0 %v4074
    %4101 = vmatprep.subr.mxu0 0.0
    %4102 = vmatpush1.msra.mxu0 %v4073
    %4103 = vmatprep.subr.mxu0 0.0
    %4104 = vmatpush1.msra.mxu0 %v4072
    %4105 = vmatprep.subr.mxu0 0.0
    %4106 = vmatpush1.msra.mxu0 %v4071
    %4107 = vmatprep.subr.mxu0 0.0
    %4108 = vmatpush1.msra.mxu0 %v4070
    %4109 = vmatprep.subr.mxu0 0.0
    %4110 = vmatpush1.msra.mxu0 %v4069
    %4111 = vmatprep.subr.mxu0 0.0
    %4112 = vmatpush1.msra.mxu0 %v4068
    %4113 = vmatprep.subr.mxu0 0.0
    %4114 = vmatpush1.msra.mxu0 %v4067
    %4115 = vmatprep.subr.mxu0 0.0
    %4116 = vmatpush2.msra.mxu0 0.0
    %4117 = vmatprep.subr.mxu0 0.0
    %4118 = vmatpush2.msra.mxu0 0.0
    %4119 = vmatprep.subr.mxu0 0.0
    %4120 = vmatpush2.msra.mxu0 0.0
    %4121 = vmatprep.subr.mxu0 0.0
    %4122 = vmatpush2.msra.mxu0 0.0
    %4123 = vmatprep.subr.mxu0 0.0
    %4124 = vmatpush2.msra.mxu0 0.0
    %4125 = vmatprep.subr.mxu0 0.0
    %4126 = vmatpush2.msra.mxu0 0.0
    %4127 = vmatprep.subr.mxu0 0.0
    %4128 = vmatpush2.msra.mxu0 0.0
    %4129 = vmatprep.subr.mxu0 0.0
    %4130 = vmatpush2.msra.mxu0 0.0
    %4131 = vmatprep.subr.mxu0 0.0
    %4132 = vmatpush2.msra.mxu0 0.0
    %4133 = vmatprep.subr.mxu0 0.0
    %4134 = vmatpush2.msra.mxu0 0.0
    %4135 = vmatprep.subr.mxu0 0.0
    %4136 = vmatpush2.msra.mxu0 0.0
    %4137 = vmatprep.subr.mxu0 0.0
    %4138 = vmatpush2.msra.mxu0 0.0
    %4139 = vmatprep.subr.mxu0 0.0
    %4140 = vmatpush2.msra.mxu0 0.0
    %4141 = vmatprep.subr.mxu0 0.0
    %4142 = vmatpush2.msra.mxu0 0.0
    %4143 = vmatprep.subr.mxu0 0.0
    %4144 = vmatpush2.msra.mxu0 0.0
    %4145 = vmatprep.subr.mxu0 0.0
    %4146 = vmatpush2.msra.mxu0 0.0
    %4147 = vmatprep.mubr.f32.mxu0 0.0
    %4148 = vmatmul.mubr.f32.gmra.mxu0 %v4047
    %v4149 = vpop.f32.mrf.mxu0
    %v4150 = vadd.f32 0.0, %v4149
    %v4151 = vpop.f32.mrf.mxu0
    %4152 = vmatprep.mubr.f32.mxu0 0.0
    %4153 = vmatmul.mubr.f32.gmra.mxu0 %v4048
    %v4154 = vpop.f32.mrf.mxu0
    %v4155 = vadd.f32 0.0, %v4154
    %v4156 = vpop.f32.mrf.mxu0
    %4157 = vdwg.mxu0
    %4158 = vmatprep.subr.mxu0 0.0
    %4159 = vmatpush1.msra.mxu0 %v4065
    %4160 = vmatprep.subr.mxu0 0.0
    %4161 = vmatpush1.msra.mxu0 %v4064
    %4162 = vmatprep.subr.mxu0 0.0
    %4163 = vmatpush1.msra.mxu0 %v4063
    %4164 = vmatprep.subr.mxu0 0.0
    %4165 = vmatpush1.msra.mxu0 %v4062
    %4166 = vmatprep.subr.mxu0 0.0
    %4167 = vmatpush1.msra.mxu0 %v4061
    %4168 = vmatprep.subr.mxu0 0.0
    %4169 = vmatpush1.msra.mxu0 %v4060
    %4170 = vmatprep.subr.mxu0 0.0
    %4171 = vmatpush1.msra.mxu0 %v4059
    %4172 = vmatprep.subr.mxu0 0.0
    %4173 = vmatpush1.msra.mxu0 %v4058
    %4174 = vmatprep.subr.mxu0 0.0
    %4175 = vmatpush1.msra.mxu0 %v4057
    %4176 = vmatprep.subr.mxu0 0.0
    %4177 = vmatpush1.msra.mxu0 %v4056
    %4178 = vmatprep.subr.mxu0 0.0
    %4179 = vmatpush1.msra.mxu0 %v4055
    %4180 = vmatprep.subr.mxu0 0.0
    %4181 = vmatpush1.msra.mxu0 %v4054
    %4182 = vmatprep.subr.mxu0 0.0
    %4183 = vmatpush1.msra.mxu0 %v4053
    %4184 = vmatprep.subr.mxu0 0.0
    %4185 = vmatpush1.msra.mxu0 %v4052
    %4186 = vmatprep.subr.mxu0 0.0
    %4187 = vmatpush1.msra.mxu0 %v4051
    %4188 = vmatprep.subr.mxu0 0.0
    %4189 = vmatpush1.msra.mxu0 %v4050
    %4190 = vmatprep.subr.mxu0 0.0
    %4191 = vmatpush2.msra.mxu0 0.0
    %4192 = vmatprep.subr.mxu0 0.0
    %4193 = vmatpush2.msra.mxu0 0.0
    %4194 = vmatprep.subr.mxu0 0.0
    %4195 = vmatpush2.msra.mxu0 0.0
    %4196 = vmatprep.subr.mxu0 0.0
    %4197 = vmatpush2.msra.mxu0 0.0
    %4198 = vmatprep.subr.mxu0 0.0
    %4199 = vmatpush2.msra.mxu0 0.0
    %4200 = vmatprep.subr.mxu0 0.0
    %4201 = vmatpush2.msra.mxu0 0.0
    %4202 = vmatprep.subr.mxu0 0.0
    %4203 = vmatpush2.msra.mxu0 0.0
    %4204 = vmatprep.subr.mxu0 0.0
    %4205 = vmatpush2.msra.mxu0 0.0
    %4206 = vmatprep.subr.mxu0 0.0
    %4207 = vmatpush2.msra.mxu0 0.0
    %4208 = vmatprep.subr.mxu0 0.0
    %4209 = vmatpush2.msra.mxu0 0.0
    %4210 = vmatprep.subr.mxu0 0.0
    %4211 = vmatpush2.msra.mxu0 0.0
    %4212 = vmatprep.subr.mxu0 0.0
    %4213 = vmatpush2.msra.mxu0 0.0
    %4214 = vmatprep.subr.mxu0 0.0
    %4215 = vmatpush2.msra.mxu0 0.0
    %4216 = vmatprep.subr.mxu0 0.0
    %4217 = vmatpush2.msra.mxu0 0.0
    %4218 = vmatprep.subr.mxu0 0.0
    %4219 = vmatpush2.msra.mxu0 0.0
    %4220 = vmatprep.subr.mxu0 0.0
    %4221 = vmatpush2.msra.mxu0 0.0
    %4222 = vmatprep.mubr.f32.mxu0 0.0
    %4223 = vmatmul.mubr.f32.gmra.mxu0 %v3583
    %v4224 = vpop.f32.mrf.mxu0
    %v4225 = vadd.f32 %v4150, %v4224
    %v4226 = vpop.f32.mrf.mxu0
    %4227 = vmatprep.mubr.f32.mxu0 0.0
    %4228 = vmatmul.mubr.f32.gmra.mxu0 %v3584
    %v4229 = vpop.f32.mrf.mxu0
    %v4230 = vadd.f32 %v4155, %v4229
    %v4231 = vpop.f32.mrf.mxu0
    %4232 = vdwg.mxu0
    %s4233 = scalar_lea.vmem [#allocation10], 1
    %v4234 = vld [vmem:[%s4233] sm:$0x1]
    %v4236 = vlaneseq
    %v4237 = vshrl.u32 %v4236, 7
    %v4238 = vsub.s32 0, %v4237
    %v4239 = vrot.slane %v4234, %v4238
    %v4241 = vadd.f32 %v4225, %v4239
    %v4242 = vadd.f32 %v4230, %v4239
    %s4243 = scalar_lea.vmem %s8, 512
    %v4244 = vld [vmem:[%s4243] sm:$0xff]
    %v4245 = vld [vmem:[%s4243 + $0x8] sm:$0xff]
    %v4246 = vld [vmem:[%s4243 + $0x10] sm:$0xff]
    %v4247 = vld [vmem:[%s4243 + $0x18] sm:$0xff]
    %v4248 = vld [vmem:[%s4243 + $0x20] sm:$0xff]
    %v4249 = vld [vmem:[%s4243 + $0x28] sm:$0xff]
    %v4250 = vld [vmem:[%s4243 + $0x30] sm:$0xff]
    %v4251 = vld [vmem:[%s4243 + $0x38] sm:$0xff]
    %v4252 = vld [vmem:[%s4243 + $0x40] sm:$0xff]
    %v4253 = vld [vmem:[%s4243 + $0x48] sm:$0xff]
    %v4254 = vld [vmem:[%s4243 + $0x50] sm:$0xff]
    %v4255 = vld [vmem:[%s4243 + $0x58] sm:$0xff]
    %v4256 = vld [vmem:[%s4243 + $0x60] sm:$0xff]
    %v4257 = vld [vmem:[%s4243 + $0x68] sm:$0xff]
    %v4258 = vld [vmem:[%s4243 + $0x70] sm:$0xff]
    %v4259 = vld [vmem:[%s4243 + $0x78] sm:$0xff]
    %v4260 = vld [vmem:[%s4243 + $0x80] sm:$0xff]
    %v4261 = vld [vmem:[%s4243 + $0x88] sm:$0xff]
    %v4262 = vld [vmem:[%s4243 + $0x90] sm:$0xff]
    %v4263 = vld [vmem:[%s4243 + $0x98] sm:$0xff]
    %v4264 = vld [vmem:[%s4243 + $0xa0] sm:$0xff]
    %v4265 = vld [vmem:[%s4243 + $0xa8] sm:$0xff]
    %v4266 = vld [vmem:[%s4243 + $0xb0] sm:$0xff]
    %v4267 = vld [vmem:[%s4243 + $0xb8] sm:$0xff]
    %v4268 = vld [vmem:[%s4243 + $0xc0] sm:$0xff]
    %v4269 = vld [vmem:[%s4243 + $0xc8] sm:$0xff]
    %v4270 = vld [vmem:[%s4243 + $0xd0] sm:$0xff]
    %v4271 = vld [vmem:[%s4243 + $0xd8] sm:$0xff]
    %v4272 = vld [vmem:[%s4243 + $0xe0] sm:$0xff]
    %v4273 = vld [vmem:[%s4243 + $0xe8] sm:$0xff]
    %v4274 = vld [vmem:[%s4243 + $0xf0] sm:$0xff]
    %v4275 = vld [vmem:[%s4243 + $0xf8] sm:$0xff]
    %4276 = vmatprep.subr.mxu0 %v4275
    %4277 = vmatpush1.msra.mxu0 %v4274
    %4278 = vmatprep.subr.mxu0 %v4273
    %4279 = vmatpush1.msra.mxu0 %v4272
    %4280 = vmatprep.subr.mxu0 %v4271
    %4281 = vmatpush1.msra.mxu0 %v4270
    %4282 = vmatprep.subr.mxu0 %v4269
    %4283 = vmatpush1.msra.mxu0 %v4268
    %4284 = vmatprep.subr.mxu0 %v4267
    %4285 = vmatpush1.msra.mxu0 %v4266
    %4286 = vmatprep.subr.mxu0 %v4265
    %4287 = vmatpush1.msra.mxu0 %v4264
    %4288 = vmatprep.subr.mxu0 %v4263
    %4289 = vmatpush1.msra.mxu0 %v4262
    %4290 = vmatprep.subr.mxu0 %v4261
    %4291 = vmatpush1.msra.mxu0 %v4260
    %4292 = vmatprep.subr.mxu0 %v4259
    %4293 = vmatpush1.msra.mxu0 %v4258
    %4294 = vmatprep.subr.mxu0 %v4257
    %4295 = vmatpush1.msra.mxu0 %v4256
    %4296 = vmatprep.subr.mxu0 %v4255
    %4297 = vmatpush1.msra.mxu0 %v4254
    %4298 = vmatprep.subr.mxu0 %v4253
    %4299 = vmatpush1.msra.mxu0 %v4252
    %4300 = vmatprep.subr.mxu0 %v4251
    %4301 = vmatpush1.msra.mxu0 %v4250
    %4302 = vmatprep.subr.mxu0 %v4249
    %4303 = vmatpush1.msra.mxu0 %v4248
    %4304 = vmatprep.subr.mxu0 %v4247
    %4305 = vmatpush1.msra.mxu0 %v4246
    %4306 = vmatprep.subr.mxu0 %v4245
    %4307 = vmatpush1.msra.mxu0 %v4244
    %4308 = vmatprep.subr.mxu0 0.0
    %4309 = vmatpush2.msra.mxu0 0.0
    %4310 = vmatprep.subr.mxu0 0.0
    %4311 = vmatpush2.msra.mxu0 0.0
    %4312 = vmatprep.subr.mxu0 0.0
    %4313 = vmatpush2.msra.mxu0 0.0
    %4314 = vmatprep.subr.mxu0 0.0
    %4315 = vmatpush2.msra.mxu0 0.0
    %4316 = vmatprep.subr.mxu0 0.0
    %4317 = vmatpush2.msra.mxu0 0.0
    %4318 = vmatprep.subr.mxu0 0.0
    %4319 = vmatpush2.msra.mxu0 0.0
    %4320 = vmatprep.subr.mxu0 0.0
    %4321 = vmatpush2.msra.mxu0 0.0
    %4322 = vmatprep.subr.mxu0 0.0
    %4323 = vmatpush2.msra.mxu0 0.0
    %4324 = vmatprep.subr.mxu0 0.0
    %4325 = vmatpush2.msra.mxu0 0.0
    %4326 = vmatprep.subr.mxu0 0.0
    %4327 = vmatpush2.msra.mxu0 0.0
    %4328 = vmatprep.subr.mxu0 0.0
    %4329 = vmatpush2.msra.mxu0 0.0
    %4330 = vmatprep.subr.mxu0 0.0
    %4331 = vmatpush2.msra.mxu0 0.0
    %4332 = vmatprep.subr.mxu0 0.0
    %4333 = vmatpush2.msra.mxu0 0.0
    %4334 = vmatprep.subr.mxu0 0.0
    %4335 = vmatpush2.msra.mxu0 0.0
    %4336 = vmatprep.subr.mxu0 0.0
    %4337 = vmatpush2.msra.mxu0 0.0
    %4338 = vmatprep.subr.mxu0 0.0
    %4339 = vmatpush2.msra.mxu0 0.0
    %4340 = vmatprep.mubr.f32.mxu0 0.0
    %4341 = vmatmul.mubr.f32.gmra.mxu0 %v4241
    %v4342 = vpop.f32.mrf.mxu0
    %v4343 = vadd.f32 0.0, %v4342
    %v4344 = vpop.f32.mrf.mxu0
    %v4345 = vadd.f32 0.0, %v4344
    %4346 = vmatprep.mubr.f32.mxu0 0.0
    %4347 = vmatmul.mubr.f32.gmra.mxu0 %v4242
    %v4348 = vpop.f32.mrf.mxu0
    %v4349 = vadd.f32 0.0, %v4348
    %v4350 = vpop.f32.mrf.mxu0
    %v4351 = vadd.f32 0.0, %v4350
    %4352 = vdwg.mxu0
    %v4353 = vsel %vm2933, %v4343, -1e+30
    %v4354 = vsel %vm2934, %v4349, -1e+30
    %v4355 = vsel %vm2935, %v4343, -1e+30
    %v4356 = vsel %vm2936, %v4349, -1e+30
    %v4357 = vsel %vm2937, %v4343, -1e+30
    %v4358 = vsel %vm2938, %v4349, -1e+30
    %v4359 = vsel %vm2939, %v4343, -1e+30
    %v4360 = vsel %vm2940, %v4349, -1e+30
    %v4361 = vsel %vm2941, %v4343, -1e+30
    %v4362 = vsel %vm2942, %v4349, -1e+30
    %v4363 = vsel %vm2943, %v4343, -1e+30
    %v4364 = vsel %vm2944, %v4349, -1e+30
    %v4365 = vsel %vm2945, %v4343, -1e+30
    %v4366 = vsel %vm2946, %v4349, -1e+30
    %v4367 = vsel %vm2947, %v4343, -1e+30
    %v4368 = vsel %vm2948, %v4349, -1e+30
    %v4369 = vsel %vm2949, %v4343, -1e+30
    %v4370 = vsel %vm2950, %v4349, -1e+30
    %v4371 = vsel %vm2951, %v4343, -1e+30
    %v4372 = vsel %vm2952, %v4349, -1e+30
    %v4373 = vsel %vm2953, %v4343, -1e+30
    %v4374 = vsel %vm2954, %v4349, -1e+30
    %v4375 = vsel %vm2955, %v4343, -1e+30
    %v4376 = vsel %vm2956, %v4349, -1e+30
    %v4377 = vsel %vm2957, %v4343, -1e+30
    %v4378 = vsel %vm2958, %v4349, -1e+30
    %v4379 = vsel %vm2959, %v4343, -1e+30
    %v4380 = vsel %vm2960, %v4349, -1e+30
    %v4381 = vsel %vm2961, %v4343, -1e+30
    %v4382 = vsel %vm2962, %v4349, -1e+30
    %v4383 = vsel %vm2963, %v4343, -1e+30
    %v4384 = vsel %vm2964, %v4349, -1e+30
    %v4385 = vmax.f32 %v4353, %v4354
    %v4386 = vrot.slane %v4385, 4
    %v4387 = vmax.f32 %v4385, %v4386
    %v4388 = vrot.slane %v4387, 2
    %v4389 = vmax.f32 %v4387, %v4388
    %v4390 = vrot.slane %v4389, 1
    %v4391 = vmax.f32 %v4389, %v4390
    %v4392 = vmax.f32 %v4355, %v4356
    %v4393 = vrot.slane %v4392, 4
    %v4394 = vmax.f32 %v4392, %v4393
    %v4395 = vrot.slane %v4394, 2
    %v4396 = vmax.f32 %v4394, %v4395
    %v4397 = vrot.slane %v4396, 1
    %v4398 = vmax.f32 %v4396, %v4397
    %v4399 = vmax.f32 %v4357, %v4358
    %v4400 = vrot.slane %v4399, 4
    %v4401 = vmax.f32 %v4399, %v4400
    %v4402 = vrot.slane %v4401, 2
    %v4403 = vmax.f32 %v4401, %v4402
    %v4404 = vrot.slane %v4403, 1
    %v4405 = vmax.f32 %v4403, %v4404
    %v4406 = vmax.f32 %v4359, %v4360
    %v4407 = vrot.slane %v4406, 4
    %v4408 = vmax.f32 %v4406, %v4407
    %v4409 = vrot.slane %v4408, 2
    %v4410 = vmax.f32 %v4408, %v4409
    %v4411 = vrot.slane %v4410, 1
    %v4412 = vmax.f32 %v4410, %v4411
    %v4413 = vmax.f32 %v4361, %v4362
    %v4414 = vrot.slane %v4413, 4
    %v4415 = vmax.f32 %v4413, %v4414
    %v4416 = vrot.slane %v4415, 2
    %v4417 = vmax.f32 %v4415, %v4416
    %v4418 = vrot.slane %v4417, 1
    %v4419 = vmax.f32 %v4417, %v4418
    %v4420 = vmax.f32 %v4363, %v4364
    %v4421 = vrot.slane %v4420, 4
    %v4422 = vmax.f32 %v4420, %v4421
    %v4423 = vrot.slane %v4422, 2
    %v4424 = vmax.f32 %v4422, %v4423
    %v4425 = vrot.slane %v4424, 1
    %v4426 = vmax.f32 %v4424, %v4425
    %v4427 = vmax.f32 %v4365, %v4366
    %v4428 = vrot.slane %v4427, 4
    %v4429 = vmax.f32 %v4427, %v4428
    %v4430 = vrot.slane %v4429, 2
    %v4431 = vmax.f32 %v4429, %v4430
    %v4432 = vrot.slane %v4431, 1
    %v4433 = vmax.f32 %v4431, %v4432
    %v4434 = vmax.f32 %v4367, %v4368
    %v4435 = vrot.slane %v4434, 4
    %v4436 = vmax.f32 %v4434, %v4435
    %v4437 = vrot.slane %v4436, 2
    %v4438 = vmax.f32 %v4436, %v4437
    %v4439 = vrot.slane %v4438, 1
    %v4440 = vmax.f32 %v4438, %v4439
    %v4441 = vmax.f32 %v4369, %v4370
    %v4442 = vrot.slane %v4441, 4
    %v4443 = vmax.f32 %v4441, %v4442
    %v4444 = vrot.slane %v4443, 2
    %v4445 = vmax.f32 %v4443, %v4444
    %v4446 = vrot.slane %v4445, 1
    %v4447 = vmax.f32 %v4445, %v4446
    %v4448 = vmax.f32 %v4371, %v4372
    %v4449 = vrot.slane %v4448, 4
    %v4450 = vmax.f32 %v4448, %v4449
    %v4451 = vrot.slane %v4450, 2
    %v4452 = vmax.f32 %v4450, %v4451
    %v4453 = vrot.slane %v4452, 1
    %v4454 = vmax.f32 %v4452, %v4453
    %v4455 = vmax.f32 %v4373, %v4374
    %v4456 = vrot.slane %v4455, 4
    %v4457 = vmax.f32 %v4455, %v4456
    %v4458 = vrot.slane %v4457, 2
    %v4459 = vmax.f32 %v4457, %v4458
    %v4460 = vrot.slane %v4459, 1
    %v4461 = vmax.f32 %v4459, %v4460
    %v4462 = vmax.f32 %v4375, %v4376
    %v4463 = vrot.slane %v4462, 4
    %v4464 = vmax.f32 %v4462, %v4463
    %v4465 = vrot.slane %v4464, 2
    %v4466 = vmax.f32 %v4464, %v4465
    %v4467 = vrot.slane %v4466, 1
    %v4468 = vmax.f32 %v4466, %v4467
    %v4469 = vmax.f32 %v4377, %v4378
    %v4470 = vrot.slane %v4469, 4
    %v4471 = vmax.f32 %v4469, %v4470
    %v4472 = vrot.slane %v4471, 2
    %v4473 = vmax.f32 %v4471, %v4472
    %v4474 = vrot.slane %v4473, 1
    %v4475 = vmax.f32 %v4473, %v4474
    %v4476 = vmax.f32 %v4379, %v4380
    %v4477 = vrot.slane %v4476, 4
    %v4478 = vmax.f32 %v4476, %v4477
    %v4479 = vrot.slane %v4478, 2
    %v4480 = vmax.f32 %v4478, %v4479
    %v4481 = vrot.slane %v4480, 1
    %v4482 = vmax.f32 %v4480, %v4481
    %v4483 = vmax.f32 %v4381, %v4382
    %v4484 = vrot.slane %v4483, 4
    %v4485 = vmax.f32 %v4483, %v4484
    %v4486 = vrot.slane %v4485, 2
    %v4487 = vmax.f32 %v4485, %v4486
    %v4488 = vrot.slane %v4487, 1
    %v4489 = vmax.f32 %v4487, %v4488
    %v4490 = vmax.f32 %v4383, %v4384
    %v4491 = vrot.slane %v4490, 4
    %v4492 = vmax.f32 %v4490, %v4491
    %v4493 = vrot.slane %v4492, 2
    %v4494 = vmax.f32 %v4492, %v4493
    %v4495 = vrot.slane %v4494, 1
    %v4496 = vmax.f32 %v4494, %v4495
    %v4497 = vmax.f32 %v4391, -1e+30
    %v4498 = vmax.f32 %v4398, -1e+30
    %v4499 = vmax.f32 %v4405, -1e+30
    %v4500 = vmax.f32 %v4412, -1e+30
    %v4501 = vmax.f32 %v4419, -1e+30
    %v4502 = vmax.f32 %v4426, -1e+30
    %v4503 = vmax.f32 %v4433, -1e+30
    %v4504 = vmax.f32 %v4440, -1e+30
    %v4505 = vmax.f32 %v4447, -1e+30
    %v4506 = vmax.f32 %v4454, -1e+30
    %v4507 = vmax.f32 %v4461, -1e+30
    %v4508 = vmax.f32 %v4468, -1e+30
    %v4509 = vmax.f32 %v4475, -1e+30
    %v4510 = vmax.f32 %v4482, -1e+30
    %v4511 = vmax.f32 %v4489, -1e+30
    %v4512 = vmax.f32 %v4496, -1e+30
    %v4513 = vsel %vm3157, %v4345, -1e+30
    %v4514 = vsel %vm3158, %v4351, -1e+30
    %v4515 = vsel %vm3159, %v4345, -1e+30
    %v4516 = vsel %vm3160, %v4351, -1e+30
    %v4517 = vsel %vm3161, %v4345, -1e+30
    %v4518 = vsel %vm3162, %v4351, -1e+30
    %v4519 = vsel %vm3163, %v4345, -1e+30
    %v4520 = vsel %vm3164, %v4351, -1e+30
    %v4521 = vsel %vm3165, %v4345, -1e+30
    %v4522 = vsel %vm3166, %v4351, -1e+30
    %v4523 = vsel %vm3167, %v4345, -1e+30
    %v4524 = vsel %vm3168, %v4351, -1e+30
    %v4525 = vsel %vm3169, %v4345, -1e+30
    %v4526 = vsel %vm3170, %v4351, -1e+30
    %v4527 = vsel %vm3171, %v4345, -1e+30
    %v4528 = vsel %vm3172, %v4351, -1e+30
    %v4529 = vsel %vm3173, %v4345, -1e+30
    %v4530 = vsel %vm3174, %v4351, -1e+30
    %v4531 = vsel %vm3175, %v4345, -1e+30
    %v4532 = vsel %vm3176, %v4351, -1e+30
    %v4533 = vsel %vm3177, %v4345, -1e+30
    %v4534 = vsel %vm3178, %v4351, -1e+30
    %v4535 = vsel %vm3179, %v4345, -1e+30
    %v4536 = vsel %vm3180, %v4351, -1e+30
    %v4537 = vsel %vm3181, %v4345, -1e+30
    %v4538 = vsel %vm3182, %v4351, -1e+30
    %v4539 = vsel %vm3183, %v4345, -1e+30
    %v4540 = vsel %vm3184, %v4351, -1e+30
    %v4541 = vsel %vm3185, %v4345, -1e+30
    %v4542 = vsel %vm3186, %v4351, -1e+30
    %v4543 = vsel %vm3187, %v4345, -1e+30
    %v4544 = vsel %vm3188, %v4351, -1e+30
    %v4545 = vmax.f32 %v4513, %v4514
    %v4546 = vrot.slane %v4545, 4
    %v4547 = vmax.f32 %v4545, %v4546
    %v4548 = vrot.slane %v4547, 2
    %v4549 = vmax.f32 %v4547, %v4548
    %v4550 = vrot.slane %v4549, 1
    %v4551 = vmax.f32 %v4549, %v4550
    %v4552 = vmax.f32 %v4515, %v4516
    %v4553 = vrot.slane %v4552, 4
    %v4554 = vmax.f32 %v4552, %v4553
    %v4555 = vrot.slane %v4554, 2
    %v4556 = vmax.f32 %v4554, %v4555
    %v4557 = vrot.slane %v4556, 1
    %v4558 = vmax.f32 %v4556, %v4557
    %v4559 = vmax.f32 %v4517, %v4518
    %v4560 = vrot.slane %v4559, 4
    %v4561 = vmax.f32 %v4559, %v4560
    %v4562 = vrot.slane %v4561, 2
    %v4563 = vmax.f32 %v4561, %v4562
    %v4564 = vrot.slane %v4563, 1
    %v4565 = vmax.f32 %v4563, %v4564
    %v4566 = vmax.f32 %v4519, %v4520
    %v4567 = vrot.slane %v4566, 4
    %v4568 = vmax.f32 %v4566, %v4567
    %v4569 = vrot.slane %v4568, 2
    %v4570 = vmax.f32 %v4568, %v4569
    %v4571 = vrot.slane %v4570, 1
    %v4572 = vmax.f32 %v4570, %v4571
    %v4573 = vmax.f32 %v4521, %v4522
    %v4574 = vrot.slane %v4573, 4
    %v4575 = vmax.f32 %v4573, %v4574
    %v4576 = vrot.slane %v4575, 2
    %v4577 = vmax.f32 %v4575, %v4576
    %v4578 = vrot.slane %v4577, 1
    %v4579 = vmax.f32 %v4577, %v4578
    %v4580 = vmax.f32 %v4523, %v4524
    %v4581 = vrot.slane %v4580, 4
    %v4582 = vmax.f32 %v4580, %v4581
    %v4583 = vrot.slane %v4582, 2
    %v4584 = vmax.f32 %v4582, %v4583
    %v4585 = vrot.slane %v4584, 1
    %v4586 = vmax.f32 %v4584, %v4585
    %v4587 = vmax.f32 %v4525, %v4526
    %v4588 = vrot.slane %v4587, 4
    %v4589 = vmax.f32 %v4587, %v4588
    %v4590 = vrot.slane %v4589, 2
    %v4591 = vmax.f32 %v4589, %v4590
    %v4592 = vrot.slane %v4591, 1
    %v4593 = vmax.f32 %v4591, %v4592
    %v4594 = vmax.f32 %v4527, %v4528
    %v4595 = vrot.slane %v4594, 4
    %v4596 = vmax.f32 %v4594, %v4595
    %v4597 = vrot.slane %v4596, 2
    %v4598 = vmax.f32 %v4596, %v4597
    %v4599 = vrot.slane %v4598, 1
    %v4600 = vmax.f32 %v4598, %v4599
    %v4601 = vmax.f32 %v4529, %v4530
    %v4602 = vrot.slane %v4601, 4
    %v4603 = vmax.f32 %v4601, %v4602
    %v4604 = vrot.slane %v4603, 2
    %v4605 = vmax.f32 %v4603, %v4604
    %v4606 = vrot.slane %v4605, 1
    %v4607 = vmax.f32 %v4605, %v4606
    %v4608 = vmax.f32 %v4531, %v4532
    %v4609 = vrot.slane %v4608, 4
    %v4610 = vmax.f32 %v4608, %v4609
    %v4611 = vrot.slane %v4610, 2
    %v4612 = vmax.f32 %v4610, %v4611
    %v4613 = vrot.slane %v4612, 1
    %v4614 = vmax.f32 %v4612, %v4613
    %v4615 = vmax.f32 %v4533, %v4534
    %v4616 = vrot.slane %v4615, 4
    %v4617 = vmax.f32 %v4615, %v4616
    %v4618 = vrot.slane %v4617, 2
    %v4619 = vmax.f32 %v4617, %v4618
    %v4620 = vrot.slane %v4619, 1
    %v4621 = vmax.f32 %v4619, %v4620
    %v4622 = vmax.f32 %v4535, %v4536
    %v4623 = vrot.slane %v4622, 4
    %v4624 = vmax.f32 %v4622, %v4623
    %v4625 = vrot.slane %v4624, 2
    %v4626 = vmax.f32 %v4624, %v4625
    %v4627 = vrot.slane %v4626, 1
    %v4628 = vmax.f32 %v4626, %v4627
    %v4629 = vmax.f32 %v4537, %v4538
    %v4630 = vrot.slane %v4629, 4
    %v4631 = vmax.f32 %v4629, %v4630
    %v4632 = vrot.slane %v4631, 2
    %v4633 = vmax.f32 %v4631, %v4632
    %v4634 = vrot.slane %v4633, 1
    %v4635 = vmax.f32 %v4633, %v4634
    %v4636 = vmax.f32 %v4539, %v4540
    %v4637 = vrot.slane %v4636, 4
    %v4638 = vmax.f32 %v4636, %v4637
    %v4639 = vrot.slane %v4638, 2
    %v4640 = vmax.f32 %v4638, %v4639
    %v4641 = vrot.slane %v4640, 1
    %v4642 = vmax.f32 %v4640, %v4641
    %v4643 = vmax.f32 %v4541, %v4542
    %v4644 = vrot.slane %v4643, 4
    %v4645 = vmax.f32 %v4643, %v4644
    %v4646 = vrot.slane %v4645, 2
    %v4647 = vmax.f32 %v4645, %v4646
    %v4648 = vrot.slane %v4647, 1
    %v4649 = vmax.f32 %v4647, %v4648
    %v4650 = vmax.f32 %v4543, %v4544
    %v4651 = vrot.slane %v4650, 4
    %v4652 = vmax.f32 %v4650, %v4651
    %v4653 = vrot.slane %v4652, 2
    %v4654 = vmax.f32 %v4652, %v4653
    %v4655 = vrot.slane %v4654, 1
    %v4656 = vmax.f32 %v4654, %v4655
    %v4657 = vmax.f32 %v4497, %v4551
    %v4658 = vmax.f32 %v4498, %v4558
    %v4659 = vmax.f32 %v4499, %v4565
    %v4660 = vmax.f32 %v4500, %v4572
    %v4661 = vmax.f32 %v4501, %v4579
    %v4662 = vmax.f32 %v4502, %v4586
    %v4663 = vmax.f32 %v4503, %v4593
    %v4664 = vmax.f32 %v4504, %v4600
    %v4665 = vmax.f32 %v4505, %v4607
    %v4666 = vmax.f32 %v4506, %v4614
    %v4667 = vmax.f32 %v4507, %v4621
    %v4668 = vmax.f32 %v4508, %v4628
    %v4669 = vmax.f32 %v4509, %v4635
    %v4670 = vmax.f32 %v4510, %v4642
    %v4671 = vmax.f32 %v4511, %v4649
    %v4672 = vmax.f32 %v4512, %v4656
    %v4689 = vsel %vm3369, %v4658, %v4657
    %v4690 = vsel %vm3371, %v4659, %v4689
    %v4691 = vsel %vm3373, %v4660, %v4690
    %v4692 = vsel %vm3375, %v4661, %v4691
    %v4693 = vsel %vm3377, %v4662, %v4692
    %v4694 = vsel %vm3379, %v4663, %v4693
    %v4695 = vsel %vm3381, %v4664, %v4694
    %v4696 = vsel %vm3369, %v4666, %v4665
    %v4697 = vsel %vm3371, %v4667, %v4696
    %v4698 = vsel %vm3373, %v4668, %v4697
    %v4699 = vsel %vm3375, %v4669, %v4698
    %v4700 = vsel %vm3377, %v4670, %v4699
    %v4701 = vsel %vm3379, %v4671, %v4700
    %v4702 = vsel %vm3381, %v4672, %v4701
    %v4705 = vsel %vm3351, %v4695, 0.0
    %v4706 = vsel %vm3352, %v4702, 0.0
    %s4707 = scalar_lea.vmem [#allocation7], 256
    %v4708 = vld [vmem:[%s4707] sm:$0xff]
    %v4709 = vld [vmem:[%s4707 + $0x8] sm:$0xff]
    %v4710 = vld [vmem:[%s4707 + $0x10] sm:$0xff]
    %v4711 = vld [vmem:[%s4707 + $0x18] sm:$0xff]
    %v4712 = vld [vmem:[%s4707 + $0x20] sm:$0xff]
    %v4713 = vld [vmem:[%s4707 + $0x28] sm:$0xff]
    %v4714 = vld [vmem:[%s4707 + $0x30] sm:$0xff]
    %v4715 = vld [vmem:[%s4707 + $0x38] sm:$0xff]
    %v4716 = vld [vmem:[%s4707 + $0x40] sm:$0xff]
    %v4717 = vld [vmem:[%s4707 + $0x48] sm:$0xff]
    %v4718 = vld [vmem:[%s4707 + $0x50] sm:$0xff]
    %v4719 = vld [vmem:[%s4707 + $0x58] sm:$0xff]
    %v4720 = vld [vmem:[%s4707 + $0x60] sm:$0xff]
    %v4721 = vld [vmem:[%s4707 + $0x68] sm:$0xff]
    %v4722 = vld [vmem:[%s4707 + $0x70] sm:$0xff]
    %v4723 = vld [vmem:[%s4707 + $0x78] sm:$0xff]
    %s4724 = scalar_lea.vmem [#allocation9], 256
    %v4725 = vld [vmem:[%s4724] sm:$0xff]
    %v4726 = vld [vmem:[%s4724 + $0x8] sm:$0xff]
    %v4727 = vld [vmem:[%s4724 + $0x10] sm:$0xff]
    %v4728 = vld [vmem:[%s4724 + $0x18] sm:$0xff]
    %v4729 = vld [vmem:[%s4724 + $0x20] sm:$0xff]
    %v4730 = vld [vmem:[%s4724 + $0x28] sm:$0xff]
    %v4731 = vld [vmem:[%s4724 + $0x30] sm:$0xff]
    %v4732 = vld [vmem:[%s4724 + $0x38] sm:$0xff]
    %v4733 = vld [vmem:[%s4724 + $0x40] sm:$0xff]
    %v4734 = vld [vmem:[%s4724 + $0x48] sm:$0xff]
    %v4735 = vld [vmem:[%s4724 + $0x50] sm:$0xff]
    %v4736 = vld [vmem:[%s4724 + $0x58] sm:$0xff]
    %v4737 = vld [vmem:[%s4724 + $0x60] sm:$0xff]
    %v4738 = vld [vmem:[%s4724 + $0x68] sm:$0xff]
    %v4739 = vld [vmem:[%s4724 + $0x70] sm:$0xff]
    %v4740 = vld [vmem:[%s4724 + $0x78] sm:$0xff]
    %4741 = vmatprep.subr.mxu0 0.0
    %4742 = vmatpush1.msra.mxu0 %v4740
    %4743 = vmatprep.subr.mxu0 0.0
    %4744 = vmatpush1.msra.mxu0 %v4739
    %4745 = vmatprep.subr.mxu0 0.0
    %4746 = vmatpush1.msra.mxu0 %v4738
    %4747 = vmatprep.subr.mxu0 0.0
    %4748 = vmatpush1.msra.mxu0 %v4737
    %4749 = vmatprep.subr.mxu0 0.0
    %4750 = vmatpush1.msra.mxu0 %v4736
    %4751 = vmatprep.subr.mxu0 0.0
    %4752 = vmatpush1.msra.mxu0 %v4735
    %4753 = vmatprep.subr.mxu0 0.0
    %4754 = vmatpush1.msra.mxu0 %v4734
    %4755 = vmatprep.subr.mxu0 0.0
    %4756 = vmatpush1.msra.mxu0 %v4733
    %4757 = vmatprep.subr.mxu0 0.0
    %4758 = vmatpush1.msra.mxu0 %v4732
    %4759 = vmatprep.subr.mxu0 0.0
    %4760 = vmatpush1.msra.mxu0 %v4731
    %4761 = vmatprep.subr.mxu0 0.0
    %4762 = vmatpush1.msra.mxu0 %v4730
    %4763 = vmatprep.subr.mxu0 0.0
    %4764 = vmatpush1.msra.mxu0 %v4729
    %4765 = vmatprep.subr.mxu0 0.0
    %4766 = vmatpush1.msra.mxu0 %v4728
    %4767 = vmatprep.subr.mxu0 0.0
    %4768 = vmatpush1.msra.mxu0 %v4727
    %4769 = vmatprep.subr.mxu0 0.0
    %4770 = vmatpush1.msra.mxu0 %v4726
    %4771 = vmatprep.subr.mxu0 0.0
    %4772 = vmatpush1.msra.mxu0 %v4725
    %4773 = vmatprep.subr.mxu0 0.0
    %4774 = vmatpush2.msra.mxu0 0.0
    %4775 = vmatprep.subr.mxu0 0.0
    %4776 = vmatpush2.msra.mxu0 0.0
    %4777 = vmatprep.subr.mxu0 0.0
    %4778 = vmatpush2.msra.mxu0 0.0
    %4779 = vmatprep.subr.mxu0 0.0
    %4780 = vmatpush2.msra.mxu0 0.0
    %4781 = vmatprep.subr.mxu0 0.0
    %4782 = vmatpush2.msra.mxu0 0.0
    %4783 = vmatprep.subr.mxu0 0.0
    %4784 = vmatpush2.msra.mxu0 0.0
    %4785 = vmatprep.subr.mxu0 0.0
    %4786 = vmatpush2.msra.mxu0 0.0
    %4787 = vmatprep.subr.mxu0 0.0
    %4788 = vmatpush2.msra.mxu0 0.0
    %4789 = vmatprep.subr.mxu0 0.0
    %4790 = vmatpush2.msra.mxu0 0.0
    %4791 = vmatprep.subr.mxu0 0.0
    %4792 = vmatpush2.msra.mxu0 0.0
    %4793 = vmatprep.subr.mxu0 0.0
    %4794 = vmatpush2.msra.mxu0 0.0
    %4795 = vmatprep.subr.mxu0 0.0
    %4796 = vmatpush2.msra.mxu0 0.0
    %4797 = vmatprep.subr.mxu0 0.0
    %4798 = vmatpush2.msra.mxu0 0.0
    %4799 = vmatprep.subr.mxu0 0.0
    %4800 = vmatpush2.msra.mxu0 0.0
    %4801 = vmatprep.subr.mxu0 0.0
    %4802 = vmatpush2.msra.mxu0 0.0
    %4803 = vmatprep.subr.mxu0 0.0
    %4804 = vmatpush2.msra.mxu0 0.0
    %4805 = vmatprep.mubr.f32.mxu0 0.0
    %4806 = vmatmul.mubr.f32.gmra.mxu0 %v4705
    %v4807 = vpop.f32.mrf.mxu0
    %v4808 = vadd.f32 0.0, %v4807
    %v4809 = vpop.f32.mrf.mxu0
    %4810 = vmatprep.mubr.f32.mxu0 0.0
    %4811 = vmatmul.mubr.f32.gmra.mxu0 %v4706
    %v4812 = vpop.f32.mrf.mxu0
    %v4813 = vadd.f32 0.0, %v4812
    %v4814 = vpop.f32.mrf.mxu0
    %4815 = vdwg.mxu0
    %4816 = vmatprep.subr.mxu0 0.0
    %4817 = vmatpush1.msra.mxu0 %v4723
    %4818 = vmatprep.subr.mxu0 0.0
    %4819 = vmatpush1.msra.mxu0 %v4722
    %4820 = vmatprep.subr.mxu0 0.0
    %4821 = vmatpush1.msra.mxu0 %v4721
    %4822 = vmatprep.subr.mxu0 0.0
    %4823 = vmatpush1.msra.mxu0 %v4720
    %4824 = vmatprep.subr.mxu0 0.0
    %4825 = vmatpush1.msra.mxu0 %v4719
    %4826 = vmatprep.subr.mxu0 0.0
    %4827 = vmatpush1.msra.mxu0 %v4718
    %4828 = vmatprep.subr.mxu0 0.0
    %4829 = vmatpush1.msra.mxu0 %v4717
    %4830 = vmatprep.subr.mxu0 0.0
    %4831 = vmatpush1.msra.mxu0 %v4716
    %4832 = vmatprep.subr.mxu0 0.0
    %4833 = vmatpush1.msra.mxu0 %v4715
    %4834 = vmatprep.subr.mxu0 0.0
    %4835 = vmatpush1.msra.mxu0 %v4714
    %4836 = vmatprep.subr.mxu0 0.0
    %4837 = vmatpush1.msra.mxu0 %v4713
    %4838 = vmatprep.subr.mxu0 0.0
    %4839 = vmatpush1.msra.mxu0 %v4712
    %4840 = vmatprep.subr.mxu0 0.0
    %4841 = vmatpush1.msra.mxu0 %v4711
    %4842 = vmatprep.subr.mxu0 0.0
    %4843 = vmatpush1.msra.mxu0 %v4710
    %4844 = vmatprep.subr.mxu0 0.0
    %4845 = vmatpush1.msra.mxu0 %v4709
    %4846 = vmatprep.subr.mxu0 0.0
    %4847 = vmatpush1.msra.mxu0 %v4708
    %4848 = vmatprep.subr.mxu0 0.0
    %4849 = vmatpush2.msra.mxu0 0.0
    %4850 = vmatprep.subr.mxu0 0.0
    %4851 = vmatpush2.msra.mxu0 0.0
    %4852 = vmatprep.subr.mxu0 0.0
    %4853 = vmatpush2.msra.mxu0 0.0
    %4854 = vmatprep.subr.mxu0 0.0
    %4855 = vmatpush2.msra.mxu0 0.0
    %4856 = vmatprep.subr.mxu0 0.0
    %4857 = vmatpush2.msra.mxu0 0.0
    %4858 = vmatprep.subr.mxu0 0.0
    %4859 = vmatpush2.msra.mxu0 0.0
    %4860 = vmatprep.subr.mxu0 0.0
    %4861 = vmatpush2.msra.mxu0 0.0
    %4862 = vmatprep.subr.mxu0 0.0
    %4863 = vmatpush2.msra.mxu0 0.0
    %4864 = vmatprep.subr.mxu0 0.0
    %4865 = vmatpush2.msra.mxu0 0.0
    %4866 = vmatprep.subr.mxu0 0.0
    %4867 = vmatpush2.msra.mxu0 0.0
    %4868 = vmatprep.subr.mxu0 0.0
    %4869 = vmatpush2.msra.mxu0 0.0
    %4870 = vmatprep.subr.mxu0 0.0
    %4871 = vmatpush2.msra.mxu0 0.0
    %4872 = vmatprep.subr.mxu0 0.0
    %4873 = vmatpush2.msra.mxu0 0.0
    %4874 = vmatprep.subr.mxu0 0.0
    %4875 = vmatpush2.msra.mxu0 0.0
    %4876 = vmatprep.subr.mxu0 0.0
    %4877 = vmatpush2.msra.mxu0 0.0
    %4878 = vmatprep.subr.mxu0 0.0
    %4879 = vmatpush2.msra.mxu0 0.0
    %4880 = vmatprep.mubr.f32.mxu0 0.0
    %4881 = vmatmul.mubr.f32.gmra.mxu0 %v4241
    %v4882 = vpop.f32.mrf.mxu0
    %v4883 = vadd.f32 %v4808, %v4882
    %v4884 = vpop.f32.mrf.mxu0
    %4885 = vmatprep.mubr.f32.mxu0 0.0
    %4886 = vmatmul.mubr.f32.gmra.mxu0 %v4242
    %v4887 = vpop.f32.mrf.mxu0
    %v4888 = vadd.f32 %v4813, %v4887
    %v4889 = vpop.f32.mrf.mxu0
    %4890 = vdwg.mxu0
    %s4891 = scalar_lea.vmem [#allocation10], 2
    %v4892 = vld [vmem:[%s4891] sm:$0x1]
    %v4894 = vlaneseq
    %v4895 = vshrl.u32 %v4894, 7
    %v4896 = vsub.s32 0, %v4895
    %v4897 = vrot.slane %v4892, %v4896
    %v4899 = vadd.f32 %v4883, %v4897
    %v4900 = vadd.f32 %v4888, %v4897
    %v4901 = vld [vmem:[#allocation12] sm:$0xff]
    %v4902 = vld [vmem:[#allocation12 + $0x8] sm:$0xff]
    %v4903 = vld [vmem:[#allocation12 + $0x10] sm:$0xff]
    %v4904 = vld [vmem:[#allocation12 + $0x18] sm:$0xff]
    %v4905 = vld [vmem:[#allocation12 + $0x20] sm:$0xff]
    %v4906 = vld [vmem:[#allocation12 + $0x28] sm:$0xff]
    %v4907 = vld [vmem:[#allocation12 + $0x30] sm:$0xff]
    %v4908 = vld [vmem:[#allocation12 + $0x38] sm:$0xff]
    %v4909 = vld [vmem:[#allocation12 + $0x40] sm:$0xff]
    %v4910 = vld [vmem:[#allocation12 + $0x48] sm:$0xff]
    %v4911 = vld [vmem:[#allocation12 + $0x50] sm:$0xff]
    %v4912 = vld [vmem:[#allocation12 + $0x58] sm:$0xff]
    %v4913 = vld [vmem:[#allocation12 + $0x60] sm:$0xff]
    %v4914 = vld [vmem:[#allocation12 + $0x68] sm:$0xff]
    %v4915 = vld [vmem:[#allocation12 + $0x70] sm:$0xff]
    %v4916 = vld [vmem:[#allocation12 + $0x78] sm:$0xff]
    %v4917 = vld [vmem:[#allocation12 + $0x80] sm:$0xff]
    %v4918 = vld [vmem:[#allocation12 + $0x88] sm:$0xff]
    %v4919 = vld [vmem:[#allocation12 + $0x90] sm:$0xff]
    %v4920 = vld [vmem:[#allocation12 + $0x98] sm:$0xff]
    %v4921 = vld [vmem:[#allocation12 + $0xa0] sm:$0xff]
    %v4922 = vld [vmem:[#allocation12 + $0xa8] sm:$0xff]
    %v4923 = vld [vmem:[#allocation12 + $0xb0] sm:$0xff]
    %v4924 = vld [vmem:[#allocation12 + $0xb8] sm:$0xff]
    %v4925 = vld [vmem:[#allocation12 + $0xc0] sm:$0xff]
    %v4926 = vld [vmem:[#allocation12 + $0xc8] sm:$0xff]
    %v4927 = vld [vmem:[#allocation12 + $0xd0] sm:$0xff]
    %v4928 = vld [vmem:[#allocation12 + $0xd8] sm:$0xff]
    %v4929 = vld [vmem:[#allocation12 + $0xe0] sm:$0xff]
    %v4930 = vld [vmem:[#allocation12 + $0xe8] sm:$0xff]
    %v4931 = vld [vmem:[#allocation12 + $0xf0] sm:$0xff]
    %v4932 = vld [vmem:[#allocation12 + $0xf8] sm:$0xff]
    %v4933 = vld [vmem:[#allocation13] sm:$0xff]
    %v4934 = vld [vmem:[#allocation13 + $0x8] sm:$0xff]
    %v4935 = vld [vmem:[#allocation13 + $0x10] sm:$0xff]
    %v4936 = vld [vmem:[#allocation13 + $0x18] sm:$0xff]
    %v4937 = vld [vmem:[#allocation13 + $0x20] sm:$0xff]
    %v4938 = vld [vmem:[#allocation13 + $0x28] sm:$0xff]
    %v4939 = vld [vmem:[#allocation13 + $0x30] sm:$0xff]
    %v4940 = vld [vmem:[#allocation13 + $0x38] sm:$0xff]
    %v4941 = vld [vmem:[#allocation13 + $0x40] sm:$0xff]
    %v4942 = vld [vmem:[#allocation13 + $0x48] sm:$0xff]
    %v4943 = vld [vmem:[#allocation13 + $0x50] sm:$0xff]
    %v4944 = vld [vmem:[#allocation13 + $0x58] sm:$0xff]
    %v4945 = vld [vmem:[#allocation13 + $0x60] sm:$0xff]
    %v4946 = vld [vmem:[#allocation13 + $0x68] sm:$0xff]
    %v4947 = vld [vmem:[#allocation13 + $0x70] sm:$0xff]
    %v4948 = vld [vmem:[#allocation13 + $0x78] sm:$0xff]
    %v4949 = vld [vmem:[#allocation13 + $0x80] sm:$0xff]
    %v4950 = vld [vmem:[#allocation13 + $0x88] sm:$0xff]
    %v4951 = vld [vmem:[#allocation13 + $0x90] sm:$0xff]
    %v4952 = vld [vmem:[#allocation13 + $0x98] sm:$0xff]
    %v4953 = vld [vmem:[#allocation13 + $0xa0] sm:$0xff]
    %v4954 = vld [vmem:[#allocation13 + $0xa8] sm:$0xff]
    %v4955 = vld [vmem:[#allocation13 + $0xb0] sm:$0xff]
    %v4956 = vld [vmem:[#allocation13 + $0xb8] sm:$0xff]
    %v4957 = vld [vmem:[#allocation13 + $0xc0] sm:$0xff]
    %v4958 = vld [vmem:[#allocation13 + $0xc8] sm:$0xff]
    %v4959 = vld [vmem:[#allocation13 + $0xd0] sm:$0xff]
    %v4960 = vld [vmem:[#allocation13 + $0xd8] sm:$0xff]
    %v4961 = vld [vmem:[#allocation13 + $0xe0] sm:$0xff]
    %v4962 = vld [vmem:[#allocation13 + $0xe8] sm:$0xff]
    %v4963 = vld [vmem:[#allocation13 + $0xf0] sm:$0xff]
    %v4964 = vld [vmem:[#allocation13 + $0xf8] sm:$0xff]
    %4965 = vmatprep.subr.mxu0 %v4964
    %4966 = vmatpush1.msra.mxu0 %v4963
    %4967 = vmatprep.subr.mxu0 %v4962
    %4968 = vmatpush1.msra.mxu0 %v4961
    %4969 = vmatprep.subr.mxu0 %v4960
    %4970 = vmatpush1.msra.mxu0 %v4959
    %4971 = vmatprep.subr.mxu0 %v4958
    %4972 = vmatpush1.msra.mxu0 %v4957
    %4973 = vmatprep.subr.mxu0 %v4956
    %4974 = vmatpush1.msra.mxu0 %v4955
    %4975 = vmatprep.subr.mxu0 %v4954
    %4976 = vmatpush1.msra.mxu0 %v4953
    %4977 = vmatprep.subr.mxu0 %v4952
    %4978 = vmatpush1.msra.mxu0 %v4951
    %4979 = vmatprep.subr.mxu0 %v4950
    %4980 = vmatpush1.msra.mxu0 %v4949
    %4981 = vmatprep.subr.mxu0 %v4948
    %4982 = vmatpush1.msra.mxu0 %v4947
    %4983 = vmatprep.subr.mxu0 %v4946
    %4984 = vmatpush1.msra.mxu0 %v4945
    %4985 = vmatprep.subr.mxu0 %v4944
    %4986 = vmatpush1.msra.mxu0 %v4943
    %4987 = vmatprep.subr.mxu0 %v4942
    %4988 = vmatpush1.msra.mxu0 %v4941
    %4989 = vmatprep.subr.mxu0 %v4940
    %4990 = vmatpush1.msra.mxu0 %v4939
    %4991 = vmatprep.subr.mxu0 %v4938
    %4992 = vmatpush1.msra.mxu0 %v4937
    %4993 = vmatprep.subr.mxu0 %v4936
    %4994 = vmatpush1.msra.mxu0 %v4935
    %4995 = vmatprep.subr.mxu0 %v4934
    %4996 = vmatpush1.msra.mxu0 %v4933
    %4997 = vmatprep.subr.mxu0 0.0
    %4998 = vmatpush2.msra.mxu0 0.0
    %4999 = vmatprep.subr.mxu0 0.0
    %5000 = vmatpush2.msra.mxu0 0.0
    %5001 = vmatprep.subr.mxu0 0.0
    %5002 = vmatpush2.msra.mxu0 0.0
    %5003 = vmatprep.subr.mxu0 0.0
    %5004 = vmatpush2.msra.mxu0 0.0
    %5005 = vmatprep.subr.mxu0 0.0
    %5006 = vmatpush2.msra.mxu0 0.0
    %5007 = vmatprep.subr.mxu0 0.0
    %5008 = vmatpush2.msra.mxu0 0.0
    %5009 = vmatprep.subr.mxu0 0.0
    %5010 = vmatpush2.msra.mxu0 0.0
    %5011 = vmatprep.subr.mxu0 0.0
    %5012 = vmatpush2.msra.mxu0 0.0
    %5013 = vmatprep.subr.mxu0 0.0
    %5014 = vmatpush2.msra.mxu0 0.0
    %5015 = vmatprep.subr.mxu0 0.0
    %5016 = vmatpush2.msra.mxu0 0.0
    %5017 = vmatprep.subr.mxu0 0.0
    %5018 = vmatpush2.msra.mxu0 0.0
    %5019 = vmatprep.subr.mxu0 0.0
    %5020 = vmatpush2.msra.mxu0 0.0
    %5021 = vmatprep.subr.mxu0 0.0
    %5022 = vmatpush2.msra.mxu0 0.0
    %5023 = vmatprep.subr.mxu0 0.0
    %5024 = vmatpush2.msra.mxu0 0.0
    %5025 = vmatprep.subr.mxu0 0.0
    %5026 = vmatpush2.msra.mxu0 0.0
    %5027 = vmatprep.subr.mxu0 0.0
    %5028 = vmatpush2.msra.mxu0 0.0
    %5029 = vmatprep.mubr.f32.mxu0 0.0
    %5030 = vmatmul.mubr.f32.gmra.mxu0 %v4899
    %v5031 = vpop.f32.mrf.mxu0
    %v5032 = vadd.f32 0.0, %v5031
    %v5033 = vpop.f32.mrf.mxu0
    %v5034 = vadd.f32 0.0, %v5033
    %5035 = vmatprep.mubr.f32.mxu0 0.0
    %5036 = vmatmul.mubr.f32.gmra.mxu0 %v4900
    %v5037 = vpop.f32.mrf.mxu0
    %v5038 = vadd.f32 0.0, %v5037
    %v5039 = vpop.f32.mrf.mxu0
    %v5040 = vadd.f32 0.0, %v5039
    %5041 = vdwg.mxu0
    %5042 = vmatprep.subr.mxu0 %v4932
    %5043 = vmatpush1.msra.mxu0 %v4931
    %5044 = vmatprep.subr.mxu0 %v4930
    %5045 = vmatpush1.msra.mxu0 %v4929
    %5046 = vmatprep.subr.mxu0 %v4928
    %5047 = vmatpush1.msra.mxu0 %v4927
    %5048 = vmatprep.subr.mxu0 %v4926
    %5049 = vmatpush1.msra.mxu0 %v4925
    %5050 = vmatprep.subr.mxu0 %v4924
    %5051 = vmatpush1.msra.mxu0 %v4923
    %5052 = vmatprep.subr.mxu0 %v4922
    %5053 = vmatpush1.msra.mxu0 %v4921
    %5054 = vmatprep.subr.mxu0 %v4920
    %5055 = vmatpush1.msra.mxu0 %v4919
    %5056 = vmatprep.subr.mxu0 %v4918
    %5057 = vmatpush1.msra.mxu0 %v4917
    %5058 = vmatprep.subr.mxu0 %v4916
    %5059 = vmatpush1.msra.mxu0 %v4915
    %5060 = vmatprep.subr.mxu0 %v4914
    %5061 = vmatpush1.msra.mxu0 %v4913
    %5062 = vmatprep.subr.mxu0 %v4912
    %5063 = vmatpush1.msra.mxu0 %v4911
    %5064 = vmatprep.subr.mxu0 %v4910
    %5065 = vmatpush1.msra.mxu0 %v4909
    %5066 = vmatprep.subr.mxu0 %v4908
    %5067 = vmatpush1.msra.mxu0 %v4907
    %5068 = vmatprep.subr.mxu0 %v4906
    %5069 = vmatpush1.msra.mxu0 %v4905
    %5070 = vmatprep.subr.mxu0 %v4904
    %5071 = vmatpush1.msra.mxu0 %v4903
    %5072 = vmatprep.subr.mxu0 %v4902
    %5073 = vmatpush1.msra.mxu0 %v4901
    %5074 = vmatprep.subr.mxu0 0.0
    %5075 = vmatpush2.msra.mxu0 0.0
    %5076 = vmatprep.subr.mxu0 0.0
    %5077 = vmatpush2.msra.mxu0 0.0
    %5078 = vmatprep.subr.mxu0 0.0
    %5079 = vmatpush2.msra.mxu0 0.0
    %5080 = vmatprep.subr.mxu0 0.0
    %5081 = vmatpush2.msra.mxu0 0.0
    %5082 = vmatprep.subr.mxu0 0.0
    %5083 = vmatpush2.msra.mxu0 0.0
    %5084 = vmatprep.subr.mxu0 0.0
    %5085 = vmatpush2.msra.mxu0 0.0
    %5086 = vmatprep.subr.mxu0 0.0
    %5087 = vmatpush2.msra.mxu0 0.0
    %5088 = vmatprep.subr.mxu0 0.0
    %5089 = vmatpush2.msra.mxu0 0.0
    %5090 = vmatprep.subr.mxu0 0.0
    %5091 = vmatpush2.msra.mxu0 0.0
    %5092 = vmatprep.subr.mxu0 0.0
    %5093 = vmatpush2.msra.mxu0 0.0
    %5094 = vmatprep.subr.mxu0 0.0
    %5095 = vmatpush2.msra.mxu0 0.0
    %5096 = vmatprep.subr.mxu0 0.0
    %5097 = vmatpush2.msra.mxu0 0.0
    %5098 = vmatprep.subr.mxu0 0.0
    %5099 = vmatpush2.msra.mxu0 0.0
    %5100 = vmatprep.subr.mxu0 0.0
    %5101 = vmatpush2.msra.mxu0 0.0
    %5102 = vmatprep.subr.mxu0 0.0
    %5103 = vmatpush2.msra.mxu0 0.0
    %5104 = vmatprep.subr.mxu0 0.0
    %5105 = vmatpush2.msra.mxu0 0.0
    %5106 = vmatprep.mubr.f32.mxu0 0.0
    %5107 = vmatmul.mubr.f32.gmra.mxu0 %v2355
    %v5108 = vpop.f32.mrf.mxu0
    %v5109 = vadd.f32 %v5032, %v5108
    %v5110 = vpop.f32.mrf.mxu0
    %v5111 = vadd.f32 %v5034, %v5110
    %5112 = vmatprep.mubr.f32.mxu0 0.0
    %5113 = vmatmul.mubr.f32.gmra.mxu0 %v2356
    %v5114 = vpop.f32.mrf.mxu0
    %v5115 = vadd.f32 %v5038, %v5114
    %v5116 = vpop.f32.mrf.mxu0
    %v5117 = vadd.f32 %v5040, %v5116
    %5118 = vdwg.mxu0
    %v5119 = vsel %vm2933, %v5109, -1e+30
    %v5120 = vsel %vm2934, %v5115, -1e+30
    %v5121 = vsel %vm2935, %v5109, -1e+30
    %v5122 = vsel %vm2936, %v5115, -1e+30
    %v5123 = vsel %vm2937, %v5109, -1e+30
    %v5124 = vsel %vm2938, %v5115, -1e+30
    %v5125 = vsel %vm2939, %v5109, -1e+30
    %v5126 = vsel %vm2940, %v5115, -1e+30
    %v5127 = vsel %vm2941, %v5109, -1e+30
    %v5128 = vsel %vm2942, %v5115, -1e+30
    %v5129 = vsel %vm2943, %v5109, -1e+30
    %v5130 = vsel %vm2944, %v5115, -1e+30
    %v5131 = vsel %vm2945, %v5109, -1e+30
    %v5132 = vsel %vm2946, %v5115, -1e+30
    %v5133 = vsel %vm2947, %v5109, -1e+30
    %v5134 = vsel %vm2948, %v5115, -1e+30
    %v5135 = vsel %vm2949, %v5109, -1e+30
    %v5136 = vsel %vm2950, %v5115, -1e+30
    %v5137 = vsel %vm2951, %v5109, -1e+30
    %v5138 = vsel %vm2952, %v5115, -1e+30
    %v5139 = vsel %vm2953, %v5109, -1e+30
    %v5140 = vsel %vm2954, %v5115, -1e+30
    %v5141 = vsel %vm2955, %v5109, -1e+30
    %v5142 = vsel %vm2956, %v5115, -1e+30
    %v5143 = vsel %vm2957, %v5109, -1e+30
    %v5144 = vsel %vm2958, %v5115, -1e+30
    %v5145 = vsel %vm2959, %v5109, -1e+30
    %v5146 = vsel %vm2960, %v5115, -1e+30
    %v5147 = vsel %vm2961, %v5109, -1e+30
    %v5148 = vsel %vm2962, %v5115, -1e+30
    %v5149 = vsel %vm2963, %v5109, -1e+30
    %v5150 = vsel %vm2964, %v5115, -1e+30
    %v5151 = vmax.f32 %v5119, %v5120
    %v5152 = vrot.slane %v5151, 4
    %v5153 = vmax.f32 %v5151, %v5152
    %v5154 = vrot.slane %v5153, 2
    %v5155 = vmax.f32 %v5153, %v5154
    %v5156 = vrot.slane %v5155, 1
    %v5157 = vmax.f32 %v5155, %v5156
    %v5158 = vmax.f32 %v5121, %v5122
    %v5159 = vrot.slane %v5158, 4
    %v5160 = vmax.f32 %v5158, %v5159
    %v5161 = vrot.slane %v5160, 2
    %v5162 = vmax.f32 %v5160, %v5161
    %v5163 = vrot.slane %v5162, 1
    %v5164 = vmax.f32 %v5162, %v5163
    %v5165 = vmax.f32 %v5123, %v5124
    %v5166 = vrot.slane %v5165, 4
    %v5167 = vmax.f32 %v5165, %v5166
    %v5168 = vrot.slane %v5167, 2
    %v5169 = vmax.f32 %v5167, %v5168
    %v5170 = vrot.slane %v5169, 1
    %v5171 = vmax.f32 %v5169, %v5170
    %v5172 = vmax.f32 %v5125, %v5126
    %v5173 = vrot.slane %v5172, 4
    %v5174 = vmax.f32 %v5172, %v5173
    %v5175 = vrot.slane %v5174, 2
    %v5176 = vmax.f32 %v5174, %v5175
    %v5177 = vrot.slane %v5176, 1
    %v5178 = vmax.f32 %v5176, %v5177
    %v5179 = vmax.f32 %v5127, %v5128
    %v5180 = vrot.slane %v5179, 4
    %v5181 = vmax.f32 %v5179, %v5180
    %v5182 = vrot.slane %v5181, 2
    %v5183 = vmax.f32 %v5181, %v5182
    %v5184 = vrot.slane %v5183, 1
    %v5185 = vmax.f32 %v5183, %v5184
    %v5186 = vmax.f32 %v5129, %v5130
    %v5187 = vrot.slane %v5186, 4
    %v5188 = vmax.f32 %v5186, %v5187
    %v5189 = vrot.slane %v5188, 2
    %v5190 = vmax.f32 %v5188, %v5189
    %v5191 = vrot.slane %v5190, 1
    %v5192 = vmax.f32 %v5190, %v5191
    %v5193 = vmax.f32 %v5131, %v5132
    %v5194 = vrot.slane %v5193, 4
    %v5195 = vmax.f32 %v5193, %v5194
    %v5196 = vrot.slane %v5195, 2
    %v5197 = vmax.f32 %v5195, %v5196
    %v5198 = vrot.slane %v5197, 1
    %v5199 = vmax.f32 %v5197, %v5198
    %v5200 = vmax.f32 %v5133, %v5134
    %v5201 = vrot.slane %v5200, 4
    %v5202 = vmax.f32 %v5200, %v5201
    %v5203 = vrot.slane %v5202, 2
    %v5204 = vmax.f32 %v5202, %v5203
    %v5205 = vrot.slane %v5204, 1
    %v5206 = vmax.f32 %v5204, %v5205
    %v5207 = vmax.f32 %v5135, %v5136
    %v5208 = vrot.slane %v5207, 4
    %v5209 = vmax.f32 %v5207, %v5208
    %v5210 = vrot.slane %v5209, 2
    %v5211 = vmax.f32 %v5209, %v5210
    %v5212 = vrot.slane %v5211, 1
    %v5213 = vmax.f32 %v5211, %v5212
    %v5214 = vmax.f32 %v5137, %v5138
    %v5215 = vrot.slane %v5214, 4
    %v5216 = vmax.f32 %v5214, %v5215
    %v5217 = vrot.slane %v5216, 2
    %v5218 = vmax.f32 %v5216, %v5217
    %v5219 = vrot.slane %v5218, 1
    %v5220 = vmax.f32 %v5218, %v5219
    %v5221 = vmax.f32 %v5139, %v5140
    %v5222 = vrot.slane %v5221, 4
    %v5223 = vmax.f32 %v5221, %v5222
    %v5224 = vrot.slane %v5223, 2
    %v5225 = vmax.f32 %v5223, %v5224
    %v5226 = vrot.slane %v5225, 1
    %v5227 = vmax.f32 %v5225, %v5226
    %v5228 = vmax.f32 %v5141, %v5142
    %v5229 = vrot.slane %v5228, 4
    %v5230 = vmax.f32 %v5228, %v5229
    %v5231 = vrot.slane %v5230, 2
    %v5232 = vmax.f32 %v5230, %v5231
    %v5233 = vrot.slane %v5232, 1
    %v5234 = vmax.f32 %v5232, %v5233
    %v5235 = vmax.f32 %v5143, %v5144
    %v5236 = vrot.slane %v5235, 4
    %v5237 = vmax.f32 %v5235, %v5236
    %v5238 = vrot.slane %v5237, 2
    %v5239 = vmax.f32 %v5237, %v5238
    %v5240 = vrot.slane %v5239, 1
    %v5241 = vmax.f32 %v5239, %v5240
    %v5242 = vmax.f32 %v5145, %v5146
    %v5243 = vrot.slane %v5242, 4
    %v5244 = vmax.f32 %v5242, %v5243
    %v5245 = vrot.slane %v5244, 2
    %v5246 = vmax.f32 %v5244, %v5245
    %v5247 = vrot.slane %v5246, 1
    %v5248 = vmax.f32 %v5246, %v5247
    %v5249 = vmax.f32 %v5147, %v5148
    %v5250 = vrot.slane %v5249, 4
    %v5251 = vmax.f32 %v5249, %v5250
    %v5252 = vrot.slane %v5251, 2
    %v5253 = vmax.f32 %v5251, %v5252
    %v5254 = vrot.slane %v5253, 1
    %v5255 = vmax.f32 %v5253, %v5254
    %v5256 = vmax.f32 %v5149, %v5150
    %v5257 = vrot.slane %v5256, 4
    %v5258 = vmax.f32 %v5256, %v5257
    %v5259 = vrot.slane %v5258, 2
    %v5260 = vmax.f32 %v5258, %v5259
    %v5261 = vrot.slane %v5260, 1
    %v5262 = vmax.f32 %v5260, %v5261
    %v5263 = vmax.f32 %v5157, -1e+30
    %v5264 = vmax.f32 %v5164, -1e+30
    %v5265 = vmax.f32 %v5171, -1e+30
    %v5266 = vmax.f32 %v5178, -1e+30
    %v5267 = vmax.f32 %v5185, -1e+30
    %v5268 = vmax.f32 %v5192, -1e+30
    %v5269 = vmax.f32 %v5199, -1e+30
    %v5270 = vmax.f32 %v5206, -1e+30
    %v5271 = vmax.f32 %v5213, -1e+30
    %v5272 = vmax.f32 %v5220, -1e+30
    %v5273 = vmax.f32 %v5227, -1e+30
    %v5274 = vmax.f32 %v5234, -1e+30
    %v5275 = vmax.f32 %v5241, -1e+30
    %v5276 = vmax.f32 %v5248, -1e+30
    %v5277 = vmax.f32 %v5255, -1e+30
    %v5278 = vmax.f32 %v5262, -1e+30
    %v5279 = vsel %vm3157, %v5111, -1e+30
    %v5280 = vsel %vm3158, %v5117, -1e+30
    %v5281 = vsel %vm3159, %v5111, -1e+30
    %v5282 = vsel %vm3160, %v5117, -1e+30
    %v5283 = vsel %vm3161, %v5111, -1e+30
    %v5284 = vsel %vm3162, %v5117, -1e+30
    %v5285 = vsel %vm3163, %v5111, -1e+30
    %v5286 = vsel %vm3164, %v5117, -1e+30
    %v5287 = vsel %vm3165, %v5111, -1e+30
    %v5288 = vsel %vm3166, %v5117, -1e+30
    %v5289 = vsel %vm3167, %v5111, -1e+30
    %v5290 = vsel %vm3168, %v5117, -1e+30
    %v5291 = vsel %vm3169, %v5111, -1e+30
    %v5292 = vsel %vm3170, %v5117, -1e+30
    %v5293 = vsel %vm3171, %v5111, -1e+30
    %v5294 = vsel %vm3172, %v5117, -1e+30
    %v5295 = vsel %vm3173, %v5111, -1e+30
    %v5296 = vsel %vm3174, %v5117, -1e+30
    %v5297 = vsel %vm3175, %v5111, -1e+30
    %v5298 = vsel %vm3176, %v5117, -1e+30
    %v5299 = vsel %vm3177, %v5111, -1e+30
    %v5300 = vsel %vm3178, %v5117, -1e+30
    %v5301 = vsel %vm3179, %v5111, -1e+30
    %v5302 = vsel %vm3180, %v5117, -1e+30
    %v5303 = vsel %vm3181, %v5111, -1e+30
    %v5304 = vsel %vm3182, %v5117, -1e+30
    %v5305 = vsel %vm3183, %v5111, -1e+30
    %v5306 = vsel %vm3184, %v5117, -1e+30
    %v5307 = vsel %vm3185, %v5111, -1e+30
    %v5308 = vsel %vm3186, %v5117, -1e+30
    %v5309 = vsel %vm3187, %v5111, -1e+30
    %v5310 = vsel %vm3188, %v5117, -1e+30
    %v5311 = vmax.f32 %v5279, %v5280
    %v5312 = vrot.slane %v5311, 4
    %v5313 = vmax.f32 %v5311, %v5312
    %v5314 = vrot.slane %v5313, 2
    %v5315 = vmax.f32 %v5313, %v5314
    %v5316 = vrot.slane %v5315, 1
    %v5317 = vmax.f32 %v5315, %v5316
    %v5318 = vmax.f32 %v5281, %v5282
    %v5319 = vrot.slane %v5318, 4
    %v5320 = vmax.f32 %v5318, %v5319
    %v5321 = vrot.slane %v5320, 2
    %v5322 = vmax.f32 %v5320, %v5321
    %v5323 = vrot.slane %v5322, 1
    %v5324 = vmax.f32 %v5322, %v5323
    %v5325 = vmax.f32 %v5283, %v5284
    %v5326 = vrot.slane %v5325, 4
    %v5327 = vmax.f32 %v5325, %v5326
    %v5328 = vrot.slane %v5327, 2
    %v5329 = vmax.f32 %v5327, %v5328
    %v5330 = vrot.slane %v5329, 1
    %v5331 = vmax.f32 %v5329, %v5330
    %v5332 = vmax.f32 %v5285, %v5286
    %v5333 = vrot.slane %v5332, 4
    %v5334 = vmax.f32 %v5332, %v5333
    %v5335 = vrot.slane %v5334, 2
    %v5336 = vmax.f32 %v5334, %v5335
    %v5337 = vrot.slane %v5336, 1
    %v5338 = vmax.f32 %v5336, %v5337
    %v5339 = vmax.f32 %v5287, %v5288
    %v5340 = vrot.slane %v5339, 4
    %v5341 = vmax.f32 %v5339, %v5340
    %v5342 = vrot.slane %v5341, 2
    %v5343 = vmax.f32 %v5341, %v5342
    %v5344 = vrot.slane %v5343, 1
    %v5345 = vmax.f32 %v5343, %v5344
    %v5346 = vmax.f32 %v5289, %v5290
    %v5347 = vrot.slane %v5346, 4
    %v5348 = vmax.f32 %v5346, %v5347
    %v5349 = vrot.slane %v5348, 2
    %v5350 = vmax.f32 %v5348, %v5349
    %v5351 = vrot.slane %v5350, 1
    %v5352 = vmax.f32 %v5350, %v5351
    %v5353 = vmax.f32 %v5291, %v5292
    %v5354 = vrot.slane %v5353, 4
    %v5355 = vmax.f32 %v5353, %v5354
    %v5356 = vrot.slane %v5355, 2
    %v5357 = vmax.f32 %v5355, %v5356
    %v5358 = vrot.slane %v5357, 1
    %v5359 = vmax.f32 %v5357, %v5358
    %v5360 = vmax.f32 %v5293, %v5294
    %v5361 = vrot.slane %v5360, 4
    %v5362 = vmax.f32 %v5360, %v5361
    %v5363 = vrot.slane %v5362, 2
    %v5364 = vmax.f32 %v5362, %v5363
    %v5365 = vrot.slane %v5364, 1
    %v5366 = vmax.f32 %v5364, %v5365
    %v5367 = vmax.f32 %v5295, %v5296
    %v5368 = vrot.slane %v5367, 4
    %v5369 = vmax.f32 %v5367, %v5368
    %v5370 = vrot.slane %v5369, 2
    %v5371 = vmax.f32 %v5369, %v5370
    %v5372 = vrot.slane %v5371, 1
    %v5373 = vmax.f32 %v5371, %v5372
    %v5374 = vmax.f32 %v5297, %v5298
    %v5375 = vrot.slane %v5374, 4
    %v5376 = vmax.f32 %v5374, %v5375
    %v5377 = vrot.slane %v5376, 2
    %v5378 = vmax.f32 %v5376, %v5377
    %v5379 = vrot.slane %v5378, 1
    %v5380 = vmax.f32 %v5378, %v5379
    %v5381 = vmax.f32 %v5299, %v5300
    %v5382 = vrot.slane %v5381, 4
    %v5383 = vmax.f32 %v5381, %v5382
    %v5384 = vrot.slane %v5383, 2
    %v5385 = vmax.f32 %v5383, %v5384
    %v5386 = vrot.slane %v5385, 1
    %v5387 = vmax.f32 %v5385, %v5386
    %v5388 = vmax.f32 %v5301, %v5302
    %v5389 = vrot.slane %v5388, 4
    %v5390 = vmax.f32 %v5388, %v5389
    %v5391 = vrot.slane %v5390, 2
    %v5392 = vmax.f32 %v5390, %v5391
    %v5393 = vrot.slane %v5392, 1
    %v5394 = vmax.f32 %v5392, %v5393
    %v5395 = vmax.f32 %v5303, %v5304
    %v5396 = vrot.slane %v5395, 4
    %v5397 = vmax.f32 %v5395, %v5396
    %v5398 = vrot.slane %v5397, 2
    %v5399 = vmax.f32 %v5397, %v5398
    %v5400 = vrot.slane %v5399, 1
    %v5401 = vmax.f32 %v5399, %v5400
    %v5402 = vmax.f32 %v5305, %v5306
    %v5403 = vrot.slane %v5402, 4
    %v5404 = vmax.f32 %v5402, %v5403
    %v5405 = vrot.slane %v5404, 2
    %v5406 = vmax.f32 %v5404, %v5405
    %v5407 = vrot.slane %v5406, 1
    %v5408 = vmax.f32 %v5406, %v5407
    %v5409 = vmax.f32 %v5307, %v5308
    %v5410 = vrot.slane %v5409, 4
    %v5411 = vmax.f32 %v5409, %v5410
    %v5412 = vrot.slane %v5411, 2
    %v5413 = vmax.f32 %v5411, %v5412
    %v5414 = vrot.slane %v5413, 1
    %v5415 = vmax.f32 %v5413, %v5414
    %v5416 = vmax.f32 %v5309, %v5310
    %v5417 = vrot.slane %v5416, 4
    %v5418 = vmax.f32 %v5416, %v5417
    %v5419 = vrot.slane %v5418, 2
    %v5420 = vmax.f32 %v5418, %v5419
    %v5421 = vrot.slane %v5420, 1
    %v5422 = vmax.f32 %v5420, %v5421
    %v5423 = vmax.f32 %v5263, %v5317
    %v5424 = vmax.f32 %v5264, %v5324
    %v5425 = vmax.f32 %v5265, %v5331
    %v5426 = vmax.f32 %v5266, %v5338
    %v5427 = vmax.f32 %v5267, %v5345
    %v5428 = vmax.f32 %v5268, %v5352
    %v5429 = vmax.f32 %v5269, %v5359
    %v5430 = vmax.f32 %v5270, %v5366
    %v5431 = vmax.f32 %v5271, %v5373
    %v5432 = vmax.f32 %v5272, %v5380
    %v5433 = vmax.f32 %v5273, %v5387
    %v5434 = vmax.f32 %v5274, %v5394
    %v5435 = vmax.f32 %v5275, %v5401
    %v5436 = vmax.f32 %v5276, %v5408
    %v5437 = vmax.f32 %v5277, %v5415
    %v5438 = vmax.f32 %v5278, %v5422
    %v5455 = vsel %vm3369, %v5424, %v5423
    %v5456 = vsel %vm3371, %v5425, %v5455
    %v5457 = vsel %vm3373, %v5426, %v5456
    %v5458 = vsel %vm3375, %v5427, %v5457
    %v5459 = vsel %vm3377, %v5428, %v5458
    %v5460 = vsel %vm3379, %v5429, %v5459
    %v5461 = vsel %vm3381, %v5430, %v5460
    %v5462 = vsel %vm3369, %v5432, %v5431
    %v5463 = vsel %vm3371, %v5433, %v5462
    %v5464 = vsel %vm3373, %v5434, %v5463
    %v5465 = vsel %vm3375, %v5435, %v5464
    %v5466 = vsel %vm3377, %v5436, %v5465
    %v5467 = vsel %vm3379, %v5437, %v5466
    %v5468 = vsel %vm3381, %v5438, %v5467
    %v5471 = vsel %vm3351, %v5461, 0.0
    %v5472 = vsel %vm3352, %v5468, 0.0
    %v5473 = vld [vmem:[#allocation15] sm:$0xff]
    %v5474 = vld [vmem:[#allocation15 + $0x8] sm:$0xff]
    %v5475 = vld [vmem:[#allocation15 + $0x10] sm:$0xff]
    %v5476 = vld [vmem:[#allocation15 + $0x18] sm:$0xff]
    %v5477 = vld [vmem:[#allocation15 + $0x20] sm:$0xff]
    %v5478 = vld [vmem:[#allocation15 + $0x28] sm:$0xff]
    %v5479 = vld [vmem:[#allocation15 + $0x30] sm:$0xff]
    %v5480 = vld [vmem:[#allocation15 + $0x38] sm:$0xff]
    %v5481 = vld [vmem:[#allocation15 + $0x40] sm:$0xff]
    %v5482 = vld [vmem:[#allocation15 + $0x48] sm:$0xff]
    %v5483 = vld [vmem:[#allocation15 + $0x50] sm:$0xff]
    %v5484 = vld [vmem:[#allocation15 + $0x58] sm:$0xff]
    %v5485 = vld [vmem:[#allocation15 + $0x60] sm:$0xff]
    %v5486 = vld [vmem:[#allocation15 + $0x68] sm:$0xff]
    %v5487 = vld [vmem:[#allocation15 + $0x70] sm:$0xff]
    %v5488 = vld [vmem:[#allocation15 + $0x78] sm:$0xff]
    %v5489 = vld [vmem:[#allocation16] sm:$0xff]
    %v5490 = vld [vmem:[#allocation16 + $0x8] sm:$0xff]
    %v5491 = vld [vmem:[#allocation16 + $0x10] sm:$0xff]
    %v5492 = vld [vmem:[#allocation16 + $0x18] sm:$0xff]
    %v5493 = vld [vmem:[#allocation16 + $0x20] sm:$0xff]
    %v5494 = vld [vmem:[#allocation16 + $0x28] sm:$0xff]
    %v5495 = vld [vmem:[#allocation16 + $0x30] sm:$0xff]
    %v5496 = vld [vmem:[#allocation16 + $0x38] sm:$0xff]
    %v5497 = vld [vmem:[#allocation16 + $0x40] sm:$0xff]
    %v5498 = vld [vmem:[#allocation16 + $0x48] sm:$0xff]
    %v5499 = vld [vmem:[#allocation16 + $0x50] sm:$0xff]
    %v5500 = vld [vmem:[#allocation16 + $0x58] sm:$0xff]
    %v5501 = vld [vmem:[#allocation16 + $0x60] sm:$0xff]
    %v5502 = vld [vmem:[#allocation16 + $0x68] sm:$0xff]
    %v5503 = vld [vmem:[#allocation16 + $0x70] sm:$0xff]
    %v5504 = vld [vmem:[#allocation16 + $0x78] sm:$0xff]
    %5505 = vmatprep.subr.mxu0 0.0
    %5506 = vmatpush1.msra.mxu0 %v5504
    %5507 = vmatprep.subr.mxu0 0.0
    %5508 = vmatpush1.msra.mxu0 %v5503
    %5509 = vmatprep.subr.mxu0 0.0
    %5510 = vmatpush1.msra.mxu0 %v5502
    %5511 = vmatprep.subr.mxu0 0.0
    %5512 = vmatpush1.msra.mxu0 %v5501
    %5513 = vmatprep.subr.mxu0 0.0
    %5514 = vmatpush1.msra.mxu0 %v5500
    %5515 = vmatprep.subr.mxu0 0.0
    %5516 = vmatpush1.msra.mxu0 %v5499
    %5517 = vmatprep.subr.mxu0 0.0
    %5518 = vmatpush1.msra.mxu0 %v5498
    %5519 = vmatprep.subr.mxu0 0.0
    %5520 = vmatpush1.msra.mxu0 %v5497
    %5521 = vmatprep.subr.mxu0 0.0
    %5522 = vmatpush1.msra.mxu0 %v5496
    %5523 = vmatprep.subr.mxu0 0.0
    %5524 = vmatpush1.msra.mxu0 %v5495
    %5525 = vmatprep.subr.mxu0 0.0
    %5526 = vmatpush1.msra.mxu0 %v5494
    %5527 = vmatprep.subr.mxu0 0.0
    %5528 = vmatpush1.msra.mxu0 %v5493
    %5529 = vmatprep.subr.mxu0 0.0
    %5530 = vmatpush1.msra.mxu0 %v5492
    %5531 = vmatprep.subr.mxu0 0.0
    %5532 = vmatpush1.msra.mxu0 %v5491
    %5533 = vmatprep.subr.mxu0 0.0
    %5534 = vmatpush1.msra.mxu0 %v5490
    %5535 = vmatprep.subr.mxu0 0.0
    %5536 = vmatpush1.msra.mxu0 %v5489
    %5537 = vmatprep.subr.mxu0 0.0
    %5538 = vmatpush2.msra.mxu0 0.0
    %5539 = vmatprep.subr.mxu0 0.0
    %5540 = vmatpush2.msra.mxu0 0.0
    %5541 = vmatprep.subr.mxu0 0.0
    %5542 = vmatpush2.msra.mxu0 0.0
    %5543 = vmatprep.subr.mxu0 0.0
    %5544 = vmatpush2.msra.mxu0 0.0
    %5545 = vmatprep.subr.mxu0 0.0
    %5546 = vmatpush2.msra.mxu0 0.0
    %5547 = vmatprep.subr.mxu0 0.0
    %5548 = vmatpush2.msra.mxu0 0.0
    %5549 = vmatprep.subr.mxu0 0.0
    %5550 = vmatpush2.msra.mxu0 0.0
    %5551 = vmatprep.subr.mxu0 0.0
    %5552 = vmatpush2.msra.mxu0 0.0
    %5553 = vmatprep.subr.mxu0 0.0
    %5554 = vmatpush2.msra.mxu0 0.0
    %5555 = vmatprep.subr.mxu0 0.0
    %5556 = vmatpush2.msra.mxu0 0.0
    %5557 = vmatprep.subr.mxu0 0.0
    %5558 = vmatpush2.msra.mxu0 0.0
    %5559 = vmatprep.subr.mxu0 0.0
    %5560 = vmatpush2.msra.mxu0 0.0
    %5561 = vmatprep.subr.mxu0 0.0
    %5562 = vmatpush2.msra.mxu0 0.0
    %5563 = vmatprep.subr.mxu0 0.0
    %5564 = vmatpush2.msra.mxu0 0.0
    %5565 = vmatprep.subr.mxu0 0.0
    %5566 = vmatpush2.msra.mxu0 0.0
    %5567 = vmatprep.subr.mxu0 0.0
    %5568 = vmatpush2.msra.mxu0 0.0
    %5569 = vmatprep.mubr.f32.mxu0 0.0
    %5570 = vmatmul.mubr.f32.gmra.mxu0 %v4899
    %v5571 = vpop.f32.mrf.mxu0
    %v5572 = vadd.f32 0.0, %v5571
    %v5573 = vpop.f32.mrf.mxu0
    %5574 = vmatprep.mubr.f32.mxu0 0.0
    %5575 = vmatmul.mubr.f32.gmra.mxu0 %v4900
    %v5576 = vpop.f32.mrf.mxu0
    %v5577 = vadd.f32 0.0, %v5576
    %v5578 = vpop.f32.mrf.mxu0
    %5579 = vdwg.mxu0
    %5580 = vmatprep.subr.mxu0 0.0
    %5581 = vmatpush1.msra.mxu0 %v5488
    %5582 = vmatprep.subr.mxu0 0.0
    %5583 = vmatpush1.msra.mxu0 %v5487
    %5584 = vmatprep.subr.mxu0 0.0
    %5585 = vmatpush1.msra.mxu0 %v5486
    %5586 = vmatprep.subr.mxu0 0.0
    %5587 = vmatpush1.msra.mxu0 %v5485
    %5588 = vmatprep.subr.mxu0 0.0
    %5589 = vmatpush1.msra.mxu0 %v5484
    %5590 = vmatprep.subr.mxu0 0.0
    %5591 = vmatpush1.msra.mxu0 %v5483
    %5592 = vmatprep.subr.mxu0 0.0
    %5593 = vmatpush1.msra.mxu0 %v5482
    %5594 = vmatprep.subr.mxu0 0.0
    %5595 = vmatpush1.msra.mxu0 %v5481
    %5596 = vmatprep.subr.mxu0 0.0
    %5597 = vmatpush1.msra.mxu0 %v5480
    %5598 = vmatprep.subr.mxu0 0.0
    %5599 = vmatpush1.msra.mxu0 %v5479
    %5600 = vmatprep.subr.mxu0 0.0
    %5601 = vmatpush1.msra.mxu0 %v5478
    %5602 = vmatprep.subr.mxu0 0.0
    %5603 = vmatpush1.msra.mxu0 %v5477
    %5604 = vmatprep.subr.mxu0 0.0
    %5605 = vmatpush1.msra.mxu0 %v5476
    %5606 = vmatprep.subr.mxu0 0.0
    %5607 = vmatpush1.msra.mxu0 %v5475
    %5608 = vmatprep.subr.mxu0 0.0
    %5609 = vmatpush1.msra.mxu0 %v5474
    %5610 = vmatprep.subr.mxu0 0.0
    %5611 = vmatpush1.msra.mxu0 %v5473
    %5612 = vmatprep.subr.mxu0 0.0
    %5613 = vmatpush2.msra.mxu0 0.0
    %5614 = vmatprep.subr.mxu0 0.0
    %5615 = vmatpush2.msra.mxu0 0.0
    %5616 = vmatprep.subr.mxu0 0.0
    %5617 = vmatpush2.msra.mxu0 0.0
    %5618 = vmatprep.subr.mxu0 0.0
    %5619 = vmatpush2.msra.mxu0 0.0
    %5620 = vmatprep.subr.mxu0 0.0
    %5621 = vmatpush2.msra.mxu0 0.0
    %5622 = vmatprep.subr.mxu0 0.0
    %5623 = vmatpush2.msra.mxu0 0.0
    %5624 = vmatprep.subr.mxu0 0.0
    %5625 = vmatpush2.msra.mxu0 0.0
    %5626 = vmatprep.subr.mxu0 0.0
    %5627 = vmatpush2.msra.mxu0 0.0
    %5628 = vmatprep.subr.mxu0 0.0
    %5629 = vmatpush2.msra.mxu0 0.0
    %5630 = vmatprep.subr.mxu0 0.0
    %5631 = vmatpush2.msra.mxu0 0.0
    %5632 = vmatprep.subr.mxu0 0.0
    %5633 = vmatpush2.msra.mxu0 0.0
    %5634 = vmatprep.subr.mxu0 0.0
    %5635 = vmatpush2.msra.mxu0 0.0
    %5636 = vmatprep.subr.mxu0 0.0
    %5637 = vmatpush2.msra.mxu0 0.0
    %5638 = vmatprep.subr.mxu0 0.0
    %5639 = vmatpush2.msra.mxu0 0.0
    %5640 = vmatprep.subr.mxu0 0.0
    %5641 = vmatpush2.msra.mxu0 0.0
    %5642 = vmatprep.subr.mxu0 0.0
    %5643 = vmatpush2.msra.mxu0 0.0
    %5644 = vmatprep.mubr.f32.mxu0 0.0
    %5645 = vmatmul.mubr.f32.gmra.mxu0 %v2355
    %v5646 = vpop.f32.mrf.mxu0
    %v5647 = vadd.f32 %v5572, %v5646
    %v5648 = vpop.f32.mrf.mxu0
    %5649 = vmatprep.mubr.f32.mxu0 0.0
    %5650 = vmatmul.mubr.f32.gmra.mxu0 %v2356
    %v5651 = vpop.f32.mrf.mxu0
    %v5652 = vadd.f32 %v5577, %v5651
    %v5653 = vpop.f32.mrf.mxu0
    %5654 = vdwg.mxu0
    %v5655 = vld [vmem:[#allocation18] sm:$0xff]
    %v5656 = vld [vmem:[#allocation18 + $0x8] sm:$0xff]
    %v5657 = vld [vmem:[#allocation18 + $0x10] sm:$0xff]
    %v5658 = vld [vmem:[#allocation18 + $0x18] sm:$0xff]
    %v5659 = vld [vmem:[#allocation18 + $0x20] sm:$0xff]
    %v5660 = vld [vmem:[#allocation18 + $0x28] sm:$0xff]
    %v5661 = vld [vmem:[#allocation18 + $0x30] sm:$0xff]
    %v5662 = vld [vmem:[#allocation18 + $0x38] sm:$0xff]
    %v5663 = vld [vmem:[#allocation18 + $0x40] sm:$0xff]
    %v5664 = vld [vmem:[#allocation18 + $0x48] sm:$0xff]
    %v5665 = vld [vmem:[#allocation18 + $0x50] sm:$0xff]
    %v5666 = vld [vmem:[#allocation18 + $0x58] sm:$0xff]
    %v5667 = vld [vmem:[#allocation18 + $0x60] sm:$0xff]
    %v5668 = vld [vmem:[#allocation18 + $0x68] sm:$0xff]
    %v5669 = vld [vmem:[#allocation18 + $0x70] sm:$0xff]
    %v5670 = vld [vmem:[#allocation18 + $0x78] sm:$0xff]
    %5671 = vmatprep.subr.mxu0 0.0
    %5672 = vmatpush1.msra.mxu0 %v5670
    %5673 = vmatprep.subr.mxu0 0.0
    %5674 = vmatpush1.msra.mxu0 %v5669
    %5675 = vmatprep.subr.mxu0 0.0
    %5676 = vmatpush1.msra.mxu0 %v5668
    %5677 = vmatprep.subr.mxu0 0.0
    %5678 = vmatpush1.msra.mxu0 %v5667
    %5679 = vmatprep.subr.mxu0 0.0
    %5680 = vmatpush1.msra.mxu0 %v5666
    %5681 = vmatprep.subr.mxu0 0.0
    %5682 = vmatpush1.msra.mxu0 %v5665
    %5683 = vmatprep.subr.mxu0 0.0
    %5684 = vmatpush1.msra.mxu0 %v5664
    %5685 = vmatprep.subr.mxu0 0.0
    %5686 = vmatpush1.msra.mxu0 %v5663
    %5687 = vmatprep.subr.mxu0 0.0
    %5688 = vmatpush1.msra.mxu0 %v5662
    %5689 = vmatprep.subr.mxu0 0.0
    %5690 = vmatpush1.msra.mxu0 %v5661
    %5691 = vmatprep.subr.mxu0 0.0
    %5692 = vmatpush1.msra.mxu0 %v5660
    %5693 = vmatprep.subr.mxu0 0.0
    %5694 = vmatpush1.msra.mxu0 %v5659
    %5695 = vmatprep.subr.mxu0 0.0
    %5696 = vmatpush1.msra.mxu0 %v5658
    %5697 = vmatprep.subr.mxu0 0.0
    %5698 = vmatpush1.msra.mxu0 %v5657
    %5699 = vmatprep.subr.mxu0 0.0
    %5700 = vmatpush1.msra.mxu0 %v5656
    %5701 = vmatprep.subr.mxu0 0.0
    %5702 = vmatpush1.msra.mxu0 %v5655
    %5703 = vmatprep.subr.mxu0 0.0
    %5704 = vmatpush2.msra.mxu0 0.0
    %5705 = vmatprep.subr.mxu0 0.0
    %5706 = vmatpush2.msra.mxu0 0.0
    %5707 = vmatprep.subr.mxu0 0.0
    %5708 = vmatpush2.msra.mxu0 0.0
    %5709 = vmatprep.subr.mxu0 0.0
    %5710 = vmatpush2.msra.mxu0 0.0
    %5711 = vmatprep.subr.mxu0 0.0
    %5712 = vmatpush2.msra.mxu0 0.0
    %5713 = vmatprep.subr.mxu0 0.0
    %5714 = vmatpush2.msra.mxu0 0.0
    %5715 = vmatprep.subr.mxu0 0.0
    %5716 = vmatpush2.msra.mxu0 0.0
    %5717 = vmatprep.subr.mxu0 0.0
    %5718 = vmatpush2.msra.mxu0 0.0
    %5719 = vmatprep.subr.mxu0 0.0
    %5720 = vmatpush2.msra.mxu0 0.0
    %5721 = vmatprep.subr.mxu0 0.0
    %5722 = vmatpush2.msra.mxu0 0.0
    %5723 = vmatprep.subr.mxu0 0.0
    %5724 = vmatpush2.msra.mxu0 0.0
    %5725 = vmatprep.subr.mxu0 0.0
    %5726 = vmatpush2.msra.mxu0 0.0
    %5727 = vmatprep.subr.mxu0 0.0
    %5728 = vmatpush2.msra.mxu0 0.0
    %5729 = vmatprep.subr.mxu0 0.0
    %5730 = vmatpush2.msra.mxu0 0.0
    %5731 = vmatprep.subr.mxu0 0.0
    %5732 = vmatpush2.msra.mxu0 0.0
    %5733 = vmatprep.subr.mxu0 0.0
    %5734 = vmatpush2.msra.mxu0 0.0
    %5735 = vmatprep.mubr.f32.mxu0 0.0
    %5736 = vmatmul.mubr.f32.gmra.mxu0 %v5471
    %v5737 = vpop.f32.mrf.mxu0
    %v5738 = vadd.f32 0.0, %v5737
    %v5739 = vpop.f32.mrf.mxu0
    %5740 = vmatprep.mubr.f32.mxu0 0.0
    %5741 = vmatmul.mubr.f32.gmra.mxu0 %v5472
    %v5742 = vpop.f32.mrf.mxu0
    %v5743 = vadd.f32 0.0, %v5742
    %v5744 = vpop.f32.mrf.mxu0
    %5745 = vdwg.mxu0
    %v5746 = vadd.f32 %v5647, %v5738
    %v5747 = vadd.f32 %v5652, %v5743
    %v5748 = vld [vmem:[%s17] sm:$0x1]
    %v5750 = vlaneseq
    %v5751 = vshrl.u32 %v5750, 7
    %v5752 = vsub.s32 0, %v5751
    %v5753 = vrot.slane %v5748, %v5752
    %v5755 = vadd.f32 %v5746, %v5753
    %v5756 = vadd.f32 %v5747, %v5753
    %v5757 = vtanh.pop %v5755
    %v5758 = vtanh.pop %v5756
    %s5759 = scalar_lea.vmem %s8, 768
    %v5760 = vld [vmem:[%s5759] sm:$0xff]
    %v5761 = vld [vmem:[%s5759 + $0x8] sm:$0xff]
    %v5762 = vld [vmem:[%s5759 + $0x10] sm:$0xff]
    %v5763 = vld [vmem:[%s5759 + $0x18] sm:$0xff]
    %v5764 = vld [vmem:[%s5759 + $0x20] sm:$0xff]
    %v5765 = vld [vmem:[%s5759 + $0x28] sm:$0xff]
    %v5766 = vld [vmem:[%s5759 + $0x30] sm:$0xff]
    %v5767 = vld [vmem:[%s5759 + $0x38] sm:$0xff]
    %v5768 = vld [vmem:[%s5759 + $0x40] sm:$0xff]
    %v5769 = vld [vmem:[%s5759 + $0x48] sm:$0xff]
    %v5770 = vld [vmem:[%s5759 + $0x50] sm:$0xff]
    %v5771 = vld [vmem:[%s5759 + $0x58] sm:$0xff]
    %v5772 = vld [vmem:[%s5759 + $0x60] sm:$0xff]
    %v5773 = vld [vmem:[%s5759 + $0x68] sm:$0xff]
    %v5774 = vld [vmem:[%s5759 + $0x70] sm:$0xff]
    %v5775 = vld [vmem:[%s5759 + $0x78] sm:$0xff]
    %v5776 = vld [vmem:[%s5759 + $0x80] sm:$0xff]
    %v5777 = vld [vmem:[%s5759 + $0x88] sm:$0xff]
    %v5778 = vld [vmem:[%s5759 + $0x90] sm:$0xff]
    %v5779 = vld [vmem:[%s5759 + $0x98] sm:$0xff]
    %v5780 = vld [vmem:[%s5759 + $0xa0] sm:$0xff]
    %v5781 = vld [vmem:[%s5759 + $0xa8] sm:$0xff]
    %v5782 = vld [vmem:[%s5759 + $0xb0] sm:$0xff]
    %v5783 = vld [vmem:[%s5759 + $0xb8] sm:$0xff]
    %v5784 = vld [vmem:[%s5759 + $0xc0] sm:$0xff]
    %v5785 = vld [vmem:[%s5759 + $0xc8] sm:$0xff]
    %v5786 = vld [vmem:[%s5759 + $0xd0] sm:$0xff]
    %v5787 = vld [vmem:[%s5759 + $0xd8] sm:$0xff]
    %v5788 = vld [vmem:[%s5759 + $0xe0] sm:$0xff]
    %v5789 = vld [vmem:[%s5759 + $0xe8] sm:$0xff]
    %v5790 = vld [vmem:[%s5759 + $0xf0] sm:$0xff]
    %v5791 = vld [vmem:[%s5759 + $0xf8] sm:$0xff]
    %5792 = vmatprep.subr.mxu0 %v5791
    %5793 = vmatpush1.msra.mxu0 %v5790
    %5794 = vmatprep.subr.mxu0 %v5789
    %5795 = vmatpush1.msra.mxu0 %v5788
    %5796 = vmatprep.subr.mxu0 %v5787
    %5797 = vmatpush1.msra.mxu0 %v5786
    %5798 = vmatprep.subr.mxu0 %v5785
    %5799 = vmatpush1.msra.mxu0 %v5784
    %5800 = vmatprep.subr.mxu0 %v5783
    %5801 = vmatpush1.msra.mxu0 %v5782
    %5802 = vmatprep.subr.mxu0 %v5781
    %5803 = vmatpush1.msra.mxu0 %v5780
    %5804 = vmatprep.subr.mxu0 %v5779
    %5805 = vmatpush1.msra.mxu0 %v5778
    %5806 = vmatprep.subr.mxu0 %v5777
    %5807 = vmatpush1.msra.mxu0 %v5776
    %5808 = vmatprep.subr.mxu0 %v5775
    %5809 = vmatpush1.msra.mxu0 %v5774
    %5810 = vmatprep.subr.mxu0 %v5773
    %5811 = vmatpush1.msra.mxu0 %v5772
    %5812 = vmatprep.subr.mxu0 %v5771
    %5813 = vmatpush1.msra.mxu0 %v5770
    %5814 = vmatprep.subr.mxu0 %v5769
    %5815 = vmatpush1.msra.mxu0 %v5768
    %5816 = vmatprep.subr.mxu0 %v5767
    %5817 = vmatpush1.msra.mxu0 %v5766
    %5818 = vmatprep.subr.mxu0 %v5765
    %5819 = vmatpush1.msra.mxu0 %v5764
    %5820 = vmatprep.subr.mxu0 %v5763
    %5821 = vmatpush1.msra.mxu0 %v5762
    %5822 = vmatprep.subr.mxu0 %v5761
    %5823 = vmatpush1.msra.mxu0 %v5760
    %5824 = vmatprep.subr.mxu0 0.0
    %5825 = vmatpush2.msra.mxu0 0.0
    %5826 = vmatprep.subr.mxu0 0.0
    %5827 = vmatpush2.msra.mxu0 0.0
    %5828 = vmatprep.subr.mxu0 0.0
    %5829 = vmatpush2.msra.mxu0 0.0
    %5830 = vmatprep.subr.mxu0 0.0
    %5831 = vmatpush2.msra.mxu0 0.0
    %5832 = vmatprep.subr.mxu0 0.0
    %5833 = vmatpush2.msra.mxu0 0.0
    %5834 = vmatprep.subr.mxu0 0.0
    %5835 = vmatpush2.msra.mxu0 0.0
    %5836 = vmatprep.subr.mxu0 0.0
    %5837 = vmatpush2.msra.mxu0 0.0
    %5838 = vmatprep.subr.mxu0 0.0
    %5839 = vmatpush2.msra.mxu0 0.0
    %5840 = vmatprep.subr.mxu0 0.0
    %5841 = vmatpush2.msra.mxu0 0.0
    %5842 = vmatprep.subr.mxu0 0.0
    %5843 = vmatpush2.msra.mxu0 0.0
    %5844 = vmatprep.subr.mxu0 0.0
    %5845 = vmatpush2.msra.mxu0 0.0
    %5846 = vmatprep.subr.mxu0 0.0
    %5847 = vmatpush2.msra.mxu0 0.0
    %5848 = vmatprep.subr.mxu0 0.0
    %5849 = vmatpush2.msra.mxu0 0.0
    %5850 = vmatprep.subr.mxu0 0.0
    %5851 = vmatpush2.msra.mxu0 0.0
    %5852 = vmatprep.subr.mxu0 0.0
    %5853 = vmatpush2.msra.mxu0 0.0
    %5854 = vmatprep.subr.mxu0 0.0
    %5855 = vmatpush2.msra.mxu0 0.0
    %5856 = vmatprep.mubr.f32.mxu0 0.0
    %5857 = vmatmul.mubr.f32.gmra.mxu0 %v5757
    %v5858 = vpop.f32.mrf.mxu0
    %v5859 = vadd.f32 0.0, %v5858
    %v5860 = vpop.f32.mrf.mxu0
    %v5861 = vadd.f32 0.0, %v5860
    %5862 = vmatprep.mubr.f32.mxu0 0.0
    %5863 = vmatmul.mubr.f32.gmra.mxu0 %v5758
    %v5864 = vpop.f32.mrf.mxu0
    %v5865 = vadd.f32 0.0, %v5864
    %v5866 = vpop.f32.mrf.mxu0
    %v5867 = vadd.f32 0.0, %v5866
    %5868 = vdwg.mxu0
    %v5869 = vsel %vm2933, %v5859, -1e+30
    %v5870 = vsel %vm2934, %v5865, -1e+30
    %v5871 = vsel %vm2935, %v5859, -1e+30
    %v5872 = vsel %vm2936, %v5865, -1e+30
    %v5873 = vsel %vm2937, %v5859, -1e+30
    %v5874 = vsel %vm2938, %v5865, -1e+30
    %v5875 = vsel %vm2939, %v5859, -1e+30
    %v5876 = vsel %vm2940, %v5865, -1e+30
    %v5877 = vsel %vm2941, %v5859, -1e+30
    %v5878 = vsel %vm2942, %v5865, -1e+30
    %v5879 = vsel %vm2943, %v5859, -1e+30
    %v5880 = vsel %vm2944, %v5865, -1e+30
    %v5881 = vsel %vm2945, %v5859, -1e+30
    %v5882 = vsel %vm2946, %v5865, -1e+30
    %v5883 = vsel %vm2947, %v5859, -1e+30
    %v5884 = vsel %vm2948, %v5865, -1e+30
    %v5885 = vsel %vm2949, %v5859, -1e+30
    %v5886 = vsel %vm2950, %v5865, -1e+30
    %v5887 = vsel %vm2951, %v5859, -1e+30
    %v5888 = vsel %vm2952, %v5865, -1e+30
    %v5889 = vsel %vm2953, %v5859, -1e+30
    %v5890 = vsel %vm2954, %v5865, -1e+30
    %v5891 = vsel %vm2955, %v5859, -1e+30
    %v5892 = vsel %vm2956, %v5865, -1e+30
    %v5893 = vsel %vm2957, %v5859, -1e+30
    %v5894 = vsel %vm2958, %v5865, -1e+30
    %v5895 = vsel %vm2959, %v5859, -1e+30
    %v5896 = vsel %vm2960, %v5865, -1e+30
    %v5897 = vsel %vm2961, %v5859, -1e+30
    %v5898 = vsel %vm2962, %v5865, -1e+30
    %v5899 = vsel %vm2963, %v5859, -1e+30
    %v5900 = vsel %vm2964, %v5865, -1e+30
    %v5901 = vmax.f32 %v5869, %v5870
    %v5902 = vrot.slane %v5901, 4
    %v5903 = vmax.f32 %v5901, %v5902
    %v5904 = vrot.slane %v5903, 2
    %v5905 = vmax.f32 %v5903, %v5904
    %v5906 = vrot.slane %v5905, 1
    %v5907 = vmax.f32 %v5905, %v5906
    %v5908 = vmax.f32 %v5871, %v5872
    %v5909 = vrot.slane %v5908, 4
    %v5910 = vmax.f32 %v5908, %v5909
    %v5911 = vrot.slane %v5910, 2
    %v5912 = vmax.f32 %v5910, %v5911
    %v5913 = vrot.slane %v5912, 1
    %v5914 = vmax.f32 %v5912, %v5913
    %v5915 = vmax.f32 %v5873, %v5874
    %v5916 = vrot.slane %v5915, 4
    %v5917 = vmax.f32 %v5915, %v5916
    %v5918 = vrot.slane %v5917, 2
    %v5919 = vmax.f32 %v5917, %v5918
    %v5920 = vrot.slane %v5919, 1
    %v5921 = vmax.f32 %v5919, %v5920
    %v5922 = vmax.f32 %v5875, %v5876
    %v5923 = vrot.slane %v5922, 4
    %v5924 = vmax.f32 %v5922, %v5923
    %v5925 = vrot.slane %v5924, 2
    %v5926 = vmax.f32 %v5924, %v5925
    %v5927 = vrot.slane %v5926, 1
    %v5928 = vmax.f32 %v5926, %v5927
    %v5929 = vmax.f32 %v5877, %v5878
    %v5930 = vrot.slane %v5929, 4
    %v5931 = vmax.f32 %v5929, %v5930
    %v5932 = vrot.slane %v5931, 2
    %v5933 = vmax.f32 %v5931, %v5932
    %v5934 = vrot.slane %v5933, 1
    %v5935 = vmax.f32 %v5933, %v5934
    %v5936 = vmax.f32 %v5879, %v5880
    %v5937 = vrot.slane %v5936, 4
    %v5938 = vmax.f32 %v5936, %v5937
    %v5939 = vrot.slane %v5938, 2
    %v5940 = vmax.f32 %v5938, %v5939
    %v5941 = vrot.slane %v5940, 1
    %v5942 = vmax.f32 %v5940, %v5941
    %v5943 = vmax.f32 %v5881, %v5882
    %v5944 = vrot.slane %v5943, 4
    %v5945 = vmax.f32 %v5943, %v5944
    %v5946 = vrot.slane %v5945, 2
    %v5947 = vmax.f32 %v5945, %v5946
    %v5948 = vrot.slane %v5947, 1
    %v5949 = vmax.f32 %v5947, %v5948
    %v5950 = vmax.f32 %v5883, %v5884
    %v5951 = vrot.slane %v5950, 4
    %v5952 = vmax.f32 %v5950, %v5951
    %v5953 = vrot.slane %v5952, 2
    %v5954 = vmax.f32 %v5952, %v5953
    %v5955 = vrot.slane %v5954, 1
    %v5956 = vmax.f32 %v5954, %v5955
    %v5957 = vmax.f32 %v5885, %v5886
    %v5958 = vrot.slane %v5957, 4
    %v5959 = vmax.f32 %v5957, %v5958
    %v5960 = vrot.slane %v5959, 2
    %v5961 = vmax.f32 %v5959, %v5960
    %v5962 = vrot.slane %v5961, 1
    %v5963 = vmax.f32 %v5961, %v5962
    %v5964 = vmax.f32 %v5887, %v5888
    %v5965 = vrot.slane %v5964, 4
    %v5966 = vmax.f32 %v5964, %v5965
    %v5967 = vrot.slane %v5966, 2
    %v5968 = vmax.f32 %v5966, %v5967
    %v5969 = vrot.slane %v5968, 1
    %v5970 = vmax.f32 %v5968, %v5969
    %v5971 = vmax.f32 %v5889, %v5890
    %v5972 = vrot.slane %v5971, 4
    %v5973 = vmax.f32 %v5971, %v5972
    %v5974 = vrot.slane %v5973, 2
    %v5975 = vmax.f32 %v5973, %v5974
    %v5976 = vrot.slane %v5975, 1
    %v5977 = vmax.f32 %v5975, %v5976
    %v5978 = vmax.f32 %v5891, %v5892
    %v5979 = vrot.slane %v5978, 4
    %v5980 = vmax.f32 %v5978, %v5979
    %v5981 = vrot.slane %v5980, 2
    %v5982 = vmax.f32 %v5980, %v5981
    %v5983 = vrot.slane %v5982, 1
    %v5984 = vmax.f32 %v5982, %v5983
    %v5985 = vmax.f32 %v5893, %v5894
    %v5986 = vrot.slane %v5985, 4
    %v5987 = vmax.f32 %v5985, %v5986
    %v5988 = vrot.slane %v5987, 2
    %v5989 = vmax.f32 %v5987, %v5988
    %v5990 = vrot.slane %v5989, 1
    %v5991 = vmax.f32 %v5989, %v5990
    %v5992 = vmax.f32 %v5895, %v5896
    %v5993 = vrot.slane %v5992, 4
    %v5994 = vmax.f32 %v5992, %v5993
    %v5995 = vrot.slane %v5994, 2
    %v5996 = vmax.f32 %v5994, %v5995
    %v5997 = vrot.slane %v5996, 1
    %v5998 = vmax.f32 %v5996, %v5997
    %v5999 = vmax.f32 %v5897, %v5898
    %v6000 = vrot.slane %v5999, 4
    %v6001 = vmax.f32 %v5999, %v6000
    %v6002 = vrot.slane %v6001, 2
    %v6003 = vmax.f32 %v6001, %v6002
    %v6004 = vrot.slane %v6003, 1
    %v6005 = vmax.f32 %v6003, %v6004
    %v6006 = vmax.f32 %v5899, %v5900
    %v6007 = vrot.slane %v6006, 4
    %v6008 = vmax.f32 %v6006, %v6007
    %v6009 = vrot.slane %v6008, 2
    %v6010 = vmax.f32 %v6008, %v6009
    %v6011 = vrot.slane %v6010, 1
    %v6012 = vmax.f32 %v6010, %v6011
    %v6013 = vmax.f32 %v5907, -1e+30
    %v6014 = vmax.f32 %v5914, -1e+30
    %v6015 = vmax.f32 %v5921, -1e+30
    %v6016 = vmax.f32 %v5928, -1e+30
    %v6017 = vmax.f32 %v5935, -1e+30
    %v6018 = vmax.f32 %v5942, -1e+30
    %v6019 = vmax.f32 %v5949, -1e+30
    %v6020 = vmax.f32 %v5956, -1e+30
    %v6021 = vmax.f32 %v5963, -1e+30
    %v6022 = vmax.f32 %v5970, -1e+30
    %v6023 = vmax.f32 %v5977, -1e+30
    %v6024 = vmax.f32 %v5984, -1e+30
    %v6025 = vmax.f32 %v5991, -1e+30
    %v6026 = vmax.f32 %v5998, -1e+30
    %v6027 = vmax.f32 %v6005, -1e+30
    %v6028 = vmax.f32 %v6012, -1e+30
    %v6029 = vsel %vm3157, %v5861, -1e+30
    %v6030 = vsel %vm3158, %v5867, -1e+30
    %v6031 = vsel %vm3159, %v5861, -1e+30
    %v6032 = vsel %vm3160, %v5867, -1e+30
    %v6033 = vsel %vm3161, %v5861, -1e+30
    %v6034 = vsel %vm3162, %v5867, -1e+30
    %v6035 = vsel %vm3163, %v5861, -1e+30
    %v6036 = vsel %vm3164, %v5867, -1e+30
    %v6037 = vsel %vm3165, %v5861, -1e+30
    %v6038 = vsel %vm3166, %v5867, -1e+30
    %v6039 = vsel %vm3167, %v5861, -1e+30
    %v6040 = vsel %vm3168, %v5867, -1e+30
    %v6041 = vsel %vm3169, %v5861, -1e+30
    %v6042 = vsel %vm3170, %v5867, -1e+30
    %v6043 = vsel %vm3171, %v5861, -1e+30
    %v6044 = vsel %vm3172, %v5867, -1e+30
    %v6045 = vsel %vm3173, %v5861, -1e+30
    %v6046 = vsel %vm3174, %v5867, -1e+30
    %v6047 = vsel %vm3175, %v5861, -1e+30
    %v6048 = vsel %vm3176, %v5867, -1e+30
    %v6049 = vsel %vm3177, %v5861, -1e+30
    %v6050 = vsel %vm3178, %v5867, -1e+30
    %v6051 = vsel %vm3179, %v5861, -1e+30
    %v6052 = vsel %vm3180, %v5867, -1e+30
    %v6053 = vsel %vm3181, %v5861, -1e+30
    %v6054 = vsel %vm3182, %v5867, -1e+30
    %v6055 = vsel %vm3183, %v5861, -1e+30
    %v6056 = vsel %vm3184, %v5867, -1e+30
    %v6057 = vsel %vm3185, %v5861, -1e+30
    %v6058 = vsel %vm3186, %v5867, -1e+30
    %v6059 = vsel %vm3187, %v5861, -1e+30
    %v6060 = vsel %vm3188, %v5867, -1e+30
    %v6061 = vmax.f32 %v6029, %v6030
    %v6062 = vrot.slane %v6061, 4
    %v6063 = vmax.f32 %v6061, %v6062
    %v6064 = vrot.slane %v6063, 2
    %v6065 = vmax.f32 %v6063, %v6064
    %v6066 = vrot.slane %v6065, 1
    %v6067 = vmax.f32 %v6065, %v6066
    %v6068 = vmax.f32 %v6031, %v6032
    %v6069 = vrot.slane %v6068, 4
    %v6070 = vmax.f32 %v6068, %v6069
    %v6071 = vrot.slane %v6070, 2
    %v6072 = vmax.f32 %v6070, %v6071
    %v6073 = vrot.slane %v6072, 1
    %v6074 = vmax.f32 %v6072, %v6073
    %v6075 = vmax.f32 %v6033, %v6034
    %v6076 = vrot.slane %v6075, 4
    %v6077 = vmax.f32 %v6075, %v6076
    %v6078 = vrot.slane %v6077, 2
    %v6079 = vmax.f32 %v6077, %v6078
    %v6080 = vrot.slane %v6079, 1
    %v6081 = vmax.f32 %v6079, %v6080
    %v6082 = vmax.f32 %v6035, %v6036
    %v6083 = vrot.slane %v6082, 4
    %v6084 = vmax.f32 %v6082, %v6083
    %v6085 = vrot.slane %v6084, 2
    %v6086 = vmax.f32 %v6084, %v6085
    %v6087 = vrot.slane %v6086, 1
    %v6088 = vmax.f32 %v6086, %v6087
    %v6089 = vmax.f32 %v6037, %v6038
    %v6090 = vrot.slane %v6089, 4
    %v6091 = vmax.f32 %v6089, %v6090
    %v6092 = vrot.slane %v6091, 2
    %v6093 = vmax.f32 %v6091, %v6092
    %v6094 = vrot.slane %v6093, 1
    %v6095 = vmax.f32 %v6093, %v6094
    %v6096 = vmax.f32 %v6039, %v6040
    %v6097 = vrot.slane %v6096, 4
    %v6098 = vmax.f32 %v6096, %v6097
    %v6099 = vrot.slane %v6098, 2
    %v6100 = vmax.f32 %v6098, %v6099
    %v6101 = vrot.slane %v6100, 1
    %v6102 = vmax.f32 %v6100, %v6101
    %v6103 = vmax.f32 %v6041, %v6042
    %v6104 = vrot.slane %v6103, 4
    %v6105 = vmax.f32 %v6103, %v6104
    %v6106 = vrot.slane %v6105, 2
    %v6107 = vmax.f32 %v6105, %v6106
    %v6108 = vrot.slane %v6107, 1
    %v6109 = vmax.f32 %v6107, %v6108
    %v6110 = vmax.f32 %v6043, %v6044
    %v6111 = vrot.slane %v6110, 4
    %v6112 = vmax.f32 %v6110, %v6111
    %v6113 = vrot.slane %v6112, 2
    %v6114 = vmax.f32 %v6112, %v6113
    %v6115 = vrot.slane %v6114, 1
    %v6116 = vmax.f32 %v6114, %v6115
    %v6117 = vmax.f32 %v6045, %v6046
    %v6118 = vrot.slane %v6117, 4
    %v6119 = vmax.f32 %v6117, %v6118
    %v6120 = vrot.slane %v6119, 2
    %v6121 = vmax.f32 %v6119, %v6120
    %v6122 = vrot.slane %v6121, 1
    %v6123 = vmax.f32 %v6121, %v6122
    %v6124 = vmax.f32 %v6047, %v6048
    %v6125 = vrot.slane %v6124, 4
    %v6126 = vmax.f32 %v6124, %v6125
    %v6127 = vrot.slane %v6126, 2
    %v6128 = vmax.f32 %v6126, %v6127
    %v6129 = vrot.slane %v6128, 1
    %v6130 = vmax.f32 %v6128, %v6129
    %v6131 = vmax.f32 %v6049, %v6050
    %v6132 = vrot.slane %v6131, 4
    %v6133 = vmax.f32 %v6131, %v6132
    %v6134 = vrot.slane %v6133, 2
    %v6135 = vmax.f32 %v6133, %v6134
    %v6136 = vrot.slane %v6135, 1
    %v6137 = vmax.f32 %v6135, %v6136
    %v6138 = vmax.f32 %v6051, %v6052
    %v6139 = vrot.slane %v6138, 4
    %v6140 = vmax.f32 %v6138, %v6139
    %v6141 = vrot.slane %v6140, 2
    %v6142 = vmax.f32 %v6140, %v6141
    %v6143 = vrot.slane %v6142, 1
    %v6144 = vmax.f32 %v6142, %v6143
    %v6145 = vmax.f32 %v6053, %v6054
    %v6146 = vrot.slane %v6145, 4
    %v6147 = vmax.f32 %v6145, %v6146
    %v6148 = vrot.slane %v6147, 2
    %v6149 = vmax.f32 %v6147, %v6148
    %v6150 = vrot.slane %v6149, 1
    %v6151 = vmax.f32 %v6149, %v6150
    %v6152 = vmax.f32 %v6055, %v6056
    %v6153 = vrot.slane %v6152, 4
    %v6154 = vmax.f32 %v6152, %v6153
    %v6155 = vrot.slane %v6154, 2
    %v6156 = vmax.f32 %v6154, %v6155
    %v6157 = vrot.slane %v6156, 1
    %v6158 = vmax.f32 %v6156, %v6157
    %v6159 = vmax.f32 %v6057, %v6058
    %v6160 = vrot.slane %v6159, 4
    %v6161 = vmax.f32 %v6159, %v6160
    %v6162 = vrot.slane %v6161, 2
    %v6163 = vmax.f32 %v6161, %v6162
    %v6164 = vrot.slane %v6163, 1
    %v6165 = vmax.f32 %v6163, %v6164
    %v6166 = vmax.f32 %v6059, %v6060
    %v6167 = vrot.slane %v6166, 4
    %v6168 = vmax.f32 %v6166, %v6167
    %v6169 = vrot.slane %v6168, 2
    %v6170 = vmax.f32 %v6168, %v6169
    %v6171 = vrot.slane %v6170, 1
    %v6172 = vmax.f32 %v6170, %v6171
    %v6173 = vmax.f32 %v6013, %v6067
    %v6174 = vmax.f32 %v6014, %v6074
    %v6175 = vmax.f32 %v6015, %v6081
    %v6176 = vmax.f32 %v6016, %v6088
    %v6177 = vmax.f32 %v6017, %v6095
    %v6178 = vmax.f32 %v6018, %v6102
    %v6179 = vmax.f32 %v6019, %v6109
    %v6180 = vmax.f32 %v6020, %v6116
    %v6181 = vmax.f32 %v6021, %v6123
    %v6182 = vmax.f32 %v6022, %v6130
    %v6183 = vmax.f32 %v6023, %v6137
    %v6184 = vmax.f32 %v6024, %v6144
    %v6185 = vmax.f32 %v6025, %v6151
    %v6186 = vmax.f32 %v6026, %v6158
    %v6187 = vmax.f32 %v6027, %v6165
    %v6188 = vmax.f32 %v6028, %v6172
    %v6205 = vsel %vm3369, %v6174, %v6173
    %v6206 = vsel %vm3371, %v6175, %v6205
    %v6207 = vsel %vm3373, %v6176, %v6206
    %v6208 = vsel %vm3375, %v6177, %v6207
    %v6209 = vsel %vm3377, %v6178, %v6208
    %v6210 = vsel %vm3379, %v6179, %v6209
    %v6211 = vsel %vm3381, %v6180, %v6210
    %v6212 = vsel %vm3369, %v6182, %v6181
    %v6213 = vsel %vm3371, %v6183, %v6212
    %v6214 = vsel %vm3373, %v6184, %v6213
    %v6215 = vsel %vm3375, %v6185, %v6214
    %v6216 = vsel %vm3377, %v6186, %v6215
    %v6217 = vsel %vm3379, %v6187, %v6216
    %v6218 = vsel %vm3381, %v6188, %v6217
    %v6221 = vsel %vm3351, %v6211, 0.0
    %v6222 = vsel %vm3352, %v6218, 0.0
    %s6223 = scalar_lea.vmem [#allocation7], 384
    %v6224 = vld [vmem:[%s6223] sm:$0xff]
    %v6225 = vld [vmem:[%s6223 + $0x8] sm:$0xff]
    %v6226 = vld [vmem:[%s6223 + $0x10] sm:$0xff]
    %v6227 = vld [vmem:[%s6223 + $0x18] sm:$0xff]
    %v6228 = vld [vmem:[%s6223 + $0x20] sm:$0xff]
    %v6229 = vld [vmem:[%s6223 + $0x28] sm:$0xff]
    %v6230 = vld [vmem:[%s6223 + $0x30] sm:$0xff]
    %v6231 = vld [vmem:[%s6223 + $0x38] sm:$0xff]
    %v6232 = vld [vmem:[%s6223 + $0x40] sm:$0xff]
    %v6233 = vld [vmem:[%s6223 + $0x48] sm:$0xff]
    %v6234 = vld [vmem:[%s6223 + $0x50] sm:$0xff]
    %v6235 = vld [vmem:[%s6223 + $0x58] sm:$0xff]
    %v6236 = vld [vmem:[%s6223 + $0x60] sm:$0xff]
    %v6237 = vld [vmem:[%s6223 + $0x68] sm:$0xff]
    %v6238 = vld [vmem:[%s6223 + $0x70] sm:$0xff]
    %v6239 = vld [vmem:[%s6223 + $0x78] sm:$0xff]
    %s6240 = scalar_lea.vmem [#allocation9], 384
    %v6241 = vld [vmem:[%s6240] sm:$0xff]
    %v6242 = vld [vmem:[%s6240 + $0x8] sm:$0xff]
    %v6243 = vld [vmem:[%s6240 + $0x10] sm:$0xff]
    %v6244 = vld [vmem:[%s6240 + $0x18] sm:$0xff]
    %v6245 = vld [vmem:[%s6240 + $0x20] sm:$0xff]
    %v6246 = vld [vmem:[%s6240 + $0x28] sm:$0xff]
    %v6247 = vld [vmem:[%s6240 + $0x30] sm:$0xff]
    %v6248 = vld [vmem:[%s6240 + $0x38] sm:$0xff]
    %v6249 = vld [vmem:[%s6240 + $0x40] sm:$0xff]
    %v6250 = vld [vmem:[%s6240 + $0x48] sm:$0xff]
    %v6251 = vld [vmem:[%s6240 + $0x50] sm:$0xff]
    %v6252 = vld [vmem:[%s6240 + $0x58] sm:$0xff]
    %v6253 = vld [vmem:[%s6240 + $0x60] sm:$0xff]
    %v6254 = vld [vmem:[%s6240 + $0x68] sm:$0xff]
    %v6255 = vld [vmem:[%s6240 + $0x70] sm:$0xff]
    %v6256 = vld [vmem:[%s6240 + $0x78] sm:$0xff]
    %6257 = vmatprep.subr.mxu0 0.0
    %6258 = vmatpush1.msra.mxu0 %v6256
    %6259 = vmatprep.subr.mxu0 0.0
    %6260 = vmatpush1.msra.mxu0 %v6255
    %6261 = vmatprep.subr.mxu0 0.0
    %6262 = vmatpush1.msra.mxu0 %v6254
    %6263 = vmatprep.subr.mxu0 0.0
    %6264 = vmatpush1.msra.mxu0 %v6253
    %6265 = vmatprep.subr.mxu0 0.0
    %6266 = vmatpush1.msra.mxu0 %v6252
    %6267 = vmatprep.subr.mxu0 0.0
    %6268 = vmatpush1.msra.mxu0 %v6251
    %6269 = vmatprep.subr.mxu0 0.0
    %6270 = vmatpush1.msra.mxu0 %v6250
    %6271 = vmatprep.subr.mxu0 0.0
    %6272 = vmatpush1.msra.mxu0 %v6249
    %6273 = vmatprep.subr.mxu0 0.0
    %6274 = vmatpush1.msra.mxu0 %v6248
    %6275 = vmatprep.subr.mxu0 0.0
    %6276 = vmatpush1.msra.mxu0 %v6247
    %6277 = vmatprep.subr.mxu0 0.0
    %6278 = vmatpush1.msra.mxu0 %v6246
    %6279 = vmatprep.subr.mxu0 0.0
    %6280 = vmatpush1.msra.mxu0 %v6245
    %6281 = vmatprep.subr.mxu0 0.0
    %6282 = vmatpush1.msra.mxu0 %v6244
    %6283 = vmatprep.subr.mxu0 0.0
    %6284 = vmatpush1.msra.mxu0 %v6243
    %6285 = vmatprep.subr.mxu0 0.0
    %6286 = vmatpush1.msra.mxu0 %v6242
    %6287 = vmatprep.subr.mxu0 0.0
    %6288 = vmatpush1.msra.mxu0 %v6241
    %6289 = vmatprep.subr.mxu0 0.0
    %6290 = vmatpush2.msra.mxu0 0.0
    %6291 = vmatprep.subr.mxu0 0.0
    %6292 = vmatpush2.msra.mxu0 0.0
    %6293 = vmatprep.subr.mxu0 0.0
    %6294 = vmatpush2.msra.mxu0 0.0
    %6295 = vmatprep.subr.mxu0 0.0
    %6296 = vmatpush2.msra.mxu0 0.0
    %6297 = vmatprep.subr.mxu0 0.0
    %6298 = vmatpush2.msra.mxu0 0.0
    %6299 = vmatprep.subr.mxu0 0.0
    %6300 = vmatpush2.msra.mxu0 0.0
    %6301 = vmatprep.subr.mxu0 0.0
    %6302 = vmatpush2.msra.mxu0 0.0
    %6303 = vmatprep.subr.mxu0 0.0
    %6304 = vmatpush2.msra.mxu0 0.0
    %6305 = vmatprep.subr.mxu0 0.0
    %6306 = vmatpush2.msra.mxu0 0.0
    %6307 = vmatprep.subr.mxu0 0.0
    %6308 = vmatpush2.msra.mxu0 0.0
    %6309 = vmatprep.subr.mxu0 0.0
    %6310 = vmatpush2.msra.mxu0 0.0
    %6311 = vmatprep.subr.mxu0 0.0
    %6312 = vmatpush2.msra.mxu0 0.0
    %6313 = vmatprep.subr.mxu0 0.0
    %6314 = vmatpush2.msra.mxu0 0.0
    %6315 = vmatprep.subr.mxu0 0.0
    %6316 = vmatpush2.msra.mxu0 0.0
    %6317 = vmatprep.subr.mxu0 0.0
    %6318 = vmatpush2.msra.mxu0 0.0
    %6319 = vmatprep.subr.mxu0 0.0
    %6320 = vmatpush2.msra.mxu0 0.0
    %6321 = vmatprep.mubr.f32.mxu0 0.0
    %6322 = vmatmul.mubr.f32.gmra.mxu0 %v6221
    %v6323 = vpop.f32.mrf.mxu0
    %v6324 = vadd.f32 0.0, %v6323
    %v6325 = vpop.f32.mrf.mxu0
    %6326 = vmatprep.mubr.f32.mxu0 0.0
    %6327 = vmatmul.mubr.f32.gmra.mxu0 %v6222
    %v6328 = vpop.f32.mrf.mxu0
    %v6329 = vadd.f32 0.0, %v6328
    %v6330 = vpop.f32.mrf.mxu0
    %6331 = vdwg.mxu0
    %6332 = vmatprep.subr.mxu0 0.0
    %6333 = vmatpush1.msra.mxu0 %v6239
    %6334 = vmatprep.subr.mxu0 0.0
    %6335 = vmatpush1.msra.mxu0 %v6238
    %6336 = vmatprep.subr.mxu0 0.0
    %6337 = vmatpush1.msra.mxu0 %v6237
    %6338 = vmatprep.subr.mxu0 0.0
    %6339 = vmatpush1.msra.mxu0 %v6236
    %6340 = vmatprep.subr.mxu0 0.0
    %6341 = vmatpush1.msra.mxu0 %v6235
    %6342 = vmatprep.subr.mxu0 0.0
    %6343 = vmatpush1.msra.mxu0 %v6234
    %6344 = vmatprep.subr.mxu0 0.0
    %6345 = vmatpush1.msra.mxu0 %v6233
    %6346 = vmatprep.subr.mxu0 0.0
    %6347 = vmatpush1.msra.mxu0 %v6232
    %6348 = vmatprep.subr.mxu0 0.0
    %6349 = vmatpush1.msra.mxu0 %v6231
    %6350 = vmatprep.subr.mxu0 0.0
    %6351 = vmatpush1.msra.mxu0 %v6230
    %6352 = vmatprep.subr.mxu0 0.0
    %6353 = vmatpush1.msra.mxu0 %v6229
    %6354 = vmatprep.subr.mxu0 0.0
    %6355 = vmatpush1.msra.mxu0 %v6228
    %6356 = vmatprep.subr.mxu0 0.0
    %6357 = vmatpush1.msra.mxu0 %v6227
    %6358 = vmatprep.subr.mxu0 0.0
    %6359 = vmatpush1.msra.mxu0 %v6226
    %6360 = vmatprep.subr.mxu0 0.0
    %6361 = vmatpush1.msra.mxu0 %v6225
    %6362 = vmatprep.subr.mxu0 0.0
    %6363 = vmatpush1.msra.mxu0 %v6224
    %6364 = vmatprep.subr.mxu0 0.0
    %6365 = vmatpush2.msra.mxu0 0.0
    %6366 = vmatprep.subr.mxu0 0.0
    %6367 = vmatpush2.msra.mxu0 0.0
    %6368 = vmatprep.subr.mxu0 0.0
    %6369 = vmatpush2.msra.mxu0 0.0
    %6370 = vmatprep.subr.mxu0 0.0
    %6371 = vmatpush2.msra.mxu0 0.0
    %6372 = vmatprep.subr.mxu0 0.0
    %6373 = vmatpush2.msra.mxu0 0.0
    %6374 = vmatprep.subr.mxu0 0.0
    %6375 = vmatpush2.msra.mxu0 0.0
    %6376 = vmatprep.subr.mxu0 0.0
    %6377 = vmatpush2.msra.mxu0 0.0
    %6378 = vmatprep.subr.mxu0 0.0
    %6379 = vmatpush2.msra.mxu0 0.0
    %6380 = vmatprep.subr.mxu0 0.0
    %6381 = vmatpush2.msra.mxu0 0.0
    %6382 = vmatprep.subr.mxu0 0.0
    %6383 = vmatpush2.msra.mxu0 0.0
    %6384 = vmatprep.subr.mxu0 0.0
    %6385 = vmatpush2.msra.mxu0 0.0
    %6386 = vmatprep.subr.mxu0 0.0
    %6387 = vmatpush2.msra.mxu0 0.0
    %6388 = vmatprep.subr.mxu0 0.0
    %6389 = vmatpush2.msra.mxu0 0.0
    %6390 = vmatprep.subr.mxu0 0.0
    %6391 = vmatpush2.msra.mxu0 0.0
    %6392 = vmatprep.subr.mxu0 0.0
    %6393 = vmatpush2.msra.mxu0 0.0
    %6394 = vmatprep.subr.mxu0 0.0
    %6395 = vmatpush2.msra.mxu0 0.0
    %6396 = vmatprep.mubr.f32.mxu0 0.0
    %6397 = vmatmul.mubr.f32.gmra.mxu0 %v5757
    %v6398 = vpop.f32.mrf.mxu0
    %v6399 = vadd.f32 %v6324, %v6398
    %v6400 = vpop.f32.mrf.mxu0
    %6401 = vmatprep.mubr.f32.mxu0 0.0
    %6402 = vmatmul.mubr.f32.gmra.mxu0 %v5758
    %v6403 = vpop.f32.mrf.mxu0
    %v6404 = vadd.f32 %v6329, %v6403
    %v6405 = vpop.f32.mrf.mxu0
    %6406 = vdwg.mxu0
    %s6407 = scalar_lea.vmem [#allocation10], 3
    %v6408 = vld [vmem:[%s6407] sm:$0x1]
    %v6410 = vlaneseq
    %v6411 = vshrl.u32 %v6410, 7
    %v6412 = vsub.s32 0, %v6411
    %v6413 = vrot.slane %v6408, %v6412
    %v6415 = vadd.f32 %v6399, %v6413
    %v6416 = vadd.f32 %v6404, %v6413
    %s6417 = scalar_lea.vmem %s8, 1024
    %v6418 = vld [vmem:[%s6417] sm:$0xff]
    %v6419 = vld [vmem:[%s6417 + $0x8] sm:$0xff]
    %v6420 = vld [vmem:[%s6417 + $0x10] sm:$0xff]
    %v6421 = vld [vmem:[%s6417 + $0x18] sm:$0xff]
    %v6422 = vld [vmem:[%s6417 + $0x20] sm:$0xff]
    %v6423 = vld [vmem:[%s6417 + $0x28] sm:$0xff]
    %v6424 = vld [vmem:[%s6417 + $0x30] sm:$0xff]
    %v6425 = vld [vmem:[%s6417 + $0x38] sm:$0xff]
    %v6426 = vld [vmem:[%s6417 + $0x40] sm:$0xff]
    %v6427 = vld [vmem:[%s6417 + $0x48] sm:$0xff]
    %v6428 = vld [vmem:[%s6417 + $0x50] sm:$0xff]
    %v6429 = vld [vmem:[%s6417 + $0x58] sm:$0xff]
    %v6430 = vld [vmem:[%s6417 + $0x60] sm:$0xff]
    %v6431 = vld [vmem:[%s6417 + $0x68] sm:$0xff]
    %v6432 = vld [vmem:[%s6417 + $0x70] sm:$0xff]
    %v6433 = vld [vmem:[%s6417 + $0x78] sm:$0xff]
    %v6434 = vld [vmem:[%s6417 + $0x80] sm:$0xff]
    %v6435 = vld [vmem:[%s6417 + $0x88] sm:$0xff]
    %v6436 = vld [vmem:[%s6417 + $0x90] sm:$0xff]
    %v6437 = vld [vmem:[%s6417 + $0x98] sm:$0xff]
    %v6438 = vld [vmem:[%s6417 + $0xa0] sm:$0xff]
    %v6439 = vld [vmem:[%s6417 + $0xa8] sm:$0xff]
    %v6440 = vld [vmem:[%s6417 + $0xb0] sm:$0xff]
    %v6441 = vld [vmem:[%s6417 + $0xb8] sm:$0xff]
    %v6442 = vld [vmem:[%s6417 + $0xc0] sm:$0xff]
    %v6443 = vld [vmem:[%s6417 + $0xc8] sm:$0xff]
    %v6444 = vld [vmem:[%s6417 + $0xd0] sm:$0xff]
    %v6445 = vld [vmem:[%s6417 + $0xd8] sm:$0xff]
    %v6446 = vld [vmem:[%s6417 + $0xe0] sm:$0xff]
    %v6447 = vld [vmem:[%s6417 + $0xe8] sm:$0xff]
    %v6448 = vld [vmem:[%s6417 + $0xf0] sm:$0xff]
    %v6449 = vld [vmem:[%s6417 + $0xf8] sm:$0xff]
    %6450 = vmatprep.subr.mxu0 %v6449
    %6451 = vmatpush1.msra.mxu0 %v6448
    %6452 = vmatprep.subr.mxu0 %v6447
    %6453 = vmatpush1.msra.mxu0 %v6446
    %6454 = vmatprep.subr.mxu0 %v6445
    %6455 = vmatpush1.msra.mxu0 %v6444
    %6456 = vmatprep.subr.mxu0 %v6443
    %6457 = vmatpush1.msra.mxu0 %v6442
    %6458 = vmatprep.subr.mxu0 %v6441
    %6459 = vmatpush1.msra.mxu0 %v6440
    %6460 = vmatprep.subr.mxu0 %v6439
    %6461 = vmatpush1.msra.mxu0 %v6438
    %6462 = vmatprep.subr.mxu0 %v6437
    %6463 = vmatpush1.msra.mxu0 %v6436
    %6464 = vmatprep.subr.mxu0 %v6435
    %6465 = vmatpush1.msra.mxu0 %v6434
    %6466 = vmatprep.subr.mxu0 %v6433
    %6467 = vmatpush1.msra.mxu0 %v6432
    %6468 = vmatprep.subr.mxu0 %v6431
    %6469 = vmatpush1.msra.mxu0 %v6430
    %6470 = vmatprep.subr.mxu0 %v6429
    %6471 = vmatpush1.msra.mxu0 %v6428
    %6472 = vmatprep.subr.mxu0 %v6427
    %6473 = vmatpush1.msra.mxu0 %v6426
    %6474 = vmatprep.subr.mxu0 %v6425
    %6475 = vmatpush1.msra.mxu0 %v6424
    %6476 = vmatprep.subr.mxu0 %v6423
    %6477 = vmatpush1.msra.mxu0 %v6422
    %6478 = vmatprep.subr.mxu0 %v6421
    %6479 = vmatpush1.msra.mxu0 %v6420
    %6480 = vmatprep.subr.mxu0 %v6419
    %6481 = vmatpush1.msra.mxu0 %v6418
    %6482 = vmatprep.subr.mxu0 0.0
    %6483 = vmatpush2.msra.mxu0 0.0
    %6484 = vmatprep.subr.mxu0 0.0
    %6485 = vmatpush2.msra.mxu0 0.0
    %6486 = vmatprep.subr.mxu0 0.0
    %6487 = vmatpush2.msra.mxu0 0.0
    %6488 = vmatprep.subr.mxu0 0.0
    %6489 = vmatpush2.msra.mxu0 0.0
    %6490 = vmatprep.subr.mxu0 0.0
    %6491 = vmatpush2.msra.mxu0 0.0
    %6492 = vmatprep.subr.mxu0 0.0
    %6493 = vmatpush2.msra.mxu0 0.0
    %6494 = vmatprep.subr.mxu0 0.0
    %6495 = vmatpush2.msra.mxu0 0.0
    %6496 = vmatprep.subr.mxu0 0.0
    %6497 = vmatpush2.msra.mxu0 0.0
    %6498 = vmatprep.subr.mxu0 0.0
    %6499 = vmatpush2.msra.mxu0 0.0
    %6500 = vmatprep.subr.mxu0 0.0
    %6501 = vmatpush2.msra.mxu0 0.0
    %6502 = vmatprep.subr.mxu0 0.0
    %6503 = vmatpush2.msra.mxu0 0.0
    %6504 = vmatprep.subr.mxu0 0.0
    %6505 = vmatpush2.msra.mxu0 0.0
    %6506 = vmatprep.subr.mxu0 0.0
    %6507 = vmatpush2.msra.mxu0 0.0
    %6508 = vmatprep.subr.mxu0 0.0
    %6509 = vmatpush2.msra.mxu0 0.0
    %6510 = vmatprep.subr.mxu0 0.0
    %6511 = vmatpush2.msra.mxu0 0.0
    %6512 = vmatprep.subr.mxu0 0.0
    %6513 = vmatpush2.msra.mxu0 0.0
    %6514 = vmatprep.mubr.f32.mxu0 0.0
    %6515 = vmatmul.mubr.f32.gmra.mxu0 %v6415
    %v6516 = vpop.f32.mrf.mxu0
    %v6517 = vadd.f32 0.0, %v6516
    %v6518 = vpop.f32.mrf.mxu0
    %v6519 = vadd.f32 0.0, %v6518
    %6520 = vmatprep.mubr.f32.mxu0 0.0
    %6521 = vmatmul.mubr.f32.gmra.mxu0 %v6416
    %v6522 = vpop.f32.mrf.mxu0
    %v6523 = vadd.f32 0.0, %v6522
    %v6524 = vpop.f32.mrf.mxu0
    %v6525 = vadd.f32 0.0, %v6524
    %6526 = vdwg.mxu0
    %v6527 = vsel %vm2933, %v6517, -1e+30
    %v6528 = vsel %vm2934, %v6523, -1e+30
    %v6529 = vsel %vm2935, %v6517, -1e+30
    %v6530 = vsel %vm2936, %v6523, -1e+30
    %v6531 = vsel %vm2937, %v6517, -1e+30
    %v6532 = vsel %vm2938, %v6523, -1e+30
    %v6533 = vsel %vm2939, %v6517, -1e+30
    %v6534 = vsel %vm2940, %v6523, -1e+30
    %v6535 = vsel %vm2941, %v6517, -1e+30
    %v6536 = vsel %vm2942, %v6523, -1e+30
    %v6537 = vsel %vm2943, %v6517, -1e+30
    %v6538 = vsel %vm2944, %v6523, -1e+30
    %v6539 = vsel %vm2945, %v6517, -1e+30
    %v6540 = vsel %vm2946, %v6523, -1e+30
    %v6541 = vsel %vm2947, %v6517, -1e+30
    %v6542 = vsel %vm2948, %v6523, -1e+30
    %v6543 = vsel %vm2949, %v6517, -1e+30
    %v6544 = vsel %vm2950, %v6523, -1e+30
    %v6545 = vsel %vm2951, %v6517, -1e+30
    %v6546 = vsel %vm2952, %v6523, -1e+30
    %v6547 = vsel %vm2953, %v6517, -1e+30
    %v6548 = vsel %vm2954, %v6523, -1e+30
    %v6549 = vsel %vm2955, %v6517, -1e+30
    %v6550 = vsel %vm2956, %v6523, -1e+30
    %v6551 = vsel %vm2957, %v6517, -1e+30
    %v6552 = vsel %vm2958, %v6523, -1e+30
    %v6553 = vsel %vm2959, %v6517, -1e+30
    %v6554 = vsel %vm2960, %v6523, -1e+30
    %v6555 = vsel %vm2961, %v6517, -1e+30
    %v6556 = vsel %vm2962, %v6523, -1e+30
    %v6557 = vsel %vm2963, %v6517, -1e+30
    %v6558 = vsel %vm2964, %v6523, -1e+30
    %v6559 = vmax.f32 %v6527, %v6528
    %v6560 = vrot.slane %v6559, 4
    %v6561 = vmax.f32 %v6559, %v6560
    %v6562 = vrot.slane %v6561, 2
    %v6563 = vmax.f32 %v6561, %v6562
    %v6564 = vrot.slane %v6563, 1
    %v6565 = vmax.f32 %v6563, %v6564
    %v6566 = vmax.f32 %v6529, %v6530
    %v6567 = vrot.slane %v6566, 4
    %v6568 = vmax.f32 %v6566, %v6567
    %v6569 = vrot.slane %v6568, 2
    %v6570 = vmax.f32 %v6568, %v6569
    %v6571 = vrot.slane %v6570, 1
    %v6572 = vmax.f32 %v6570, %v6571
    %v6573 = vmax.f32 %v6531, %v6532
    %v6574 = vrot.slane %v6573, 4
    %v6575 = vmax.f32 %v6573, %v6574
    %v6576 = vrot.slane %v6575, 2
    %v6577 = vmax.f32 %v6575, %v6576
    %v6578 = vrot.slane %v6577, 1
    %v6579 = vmax.f32 %v6577, %v6578
    %v6580 = vmax.f32 %v6533, %v6534
    %v6581 = vrot.slane %v6580, 4
    %v6582 = vmax.f32 %v6580, %v6581
    %v6583 = vrot.slane %v6582, 2
    %v6584 = vmax.f32 %v6582, %v6583
    %v6585 = vrot.slane %v6584, 1
    %v6586 = vmax.f32 %v6584, %v6585
    %v6587 = vmax.f32 %v6535, %v6536
    %v6588 = vrot.slane %v6587, 4
    %v6589 = vmax.f32 %v6587, %v6588
    %v6590 = vrot.slane %v6589, 2
    %v6591 = vmax.f32 %v6589, %v6590
    %v6592 = vrot.slane %v6591, 1
    %v6593 = vmax.f32 %v6591, %v6592
    %v6594 = vmax.f32 %v6537, %v6538
    %v6595 = vrot.slane %v6594, 4
    %v6596 = vmax.f32 %v6594, %v6595
    %v6597 = vrot.slane %v6596, 2
    %v6598 = vmax.f32 %v6596, %v6597
    %v6599 = vrot.slane %v6598, 1
    %v6600 = vmax.f32 %v6598, %v6599
    %v6601 = vmax.f32 %v6539, %v6540
    %v6602 = vrot.slane %v6601, 4
    %v6603 = vmax.f32 %v6601, %v6602
    %v6604 = vrot.slane %v6603, 2
    %v6605 = vmax.f32 %v6603, %v6604
    %v6606 = vrot.slane %v6605, 1
    %v6607 = vmax.f32 %v6605, %v6606
    %v6608 = vmax.f32 %v6541, %v6542
    %v6609 = vrot.slane %v6608, 4
    %v6610 = vmax.f32 %v6608, %v6609
    %v6611 = vrot.slane %v6610, 2
    %v6612 = vmax.f32 %v6610, %v6611
    %v6613 = vrot.slane %v6612, 1
    %v6614 = vmax.f32 %v6612, %v6613
    %v6615 = vmax.f32 %v6543, %v6544
    %v6616 = vrot.slane %v6615, 4
    %v6617 = vmax.f32 %v6615, %v6616
    %v6618 = vrot.slane %v6617, 2
    %v6619 = vmax.f32 %v6617, %v6618
    %v6620 = vrot.slane %v6619, 1
    %v6621 = vmax.f32 %v6619, %v6620
    %v6622 = vmax.f32 %v6545, %v6546
    %v6623 = vrot.slane %v6622, 4
    %v6624 = vmax.f32 %v6622, %v6623
    %v6625 = vrot.slane %v6624, 2
    %v6626 = vmax.f32 %v6624, %v6625
    %v6627 = vrot.slane %v6626, 1
    %v6628 = vmax.f32 %v6626, %v6627
    %v6629 = vmax.f32 %v6547, %v6548
    %v6630 = vrot.slane %v6629, 4
    %v6631 = vmax.f32 %v6629, %v6630
    %v6632 = vrot.slane %v6631, 2
    %v6633 = vmax.f32 %v6631, %v6632
    %v6634 = vrot.slane %v6633, 1
    %v6635 = vmax.f32 %v6633, %v6634
    %v6636 = vmax.f32 %v6549, %v6550
    %v6637 = vrot.slane %v6636, 4
    %v6638 = vmax.f32 %v6636, %v6637
    %v6639 = vrot.slane %v6638, 2
    %v6640 = vmax.f32 %v6638, %v6639
    %v6641 = vrot.slane %v6640, 1
    %v6642 = vmax.f32 %v6640, %v6641
    %v6643 = vmax.f32 %v6551, %v6552
    %v6644 = vrot.slane %v6643, 4
    %v6645 = vmax.f32 %v6643, %v6644
    %v6646 = vrot.slane %v6645, 2
    %v6647 = vmax.f32 %v6645, %v6646
    %v6648 = vrot.slane %v6647, 1
    %v6649 = vmax.f32 %v6647, %v6648
    %v6650 = vmax.f32 %v6553, %v6554
    %v6651 = vrot.slane %v6650, 4
    %v6652 = vmax.f32 %v6650, %v6651
    %v6653 = vrot.slane %v6652, 2
    %v6654 = vmax.f32 %v6652, %v6653
    %v6655 = vrot.slane %v6654, 1
    %v6656 = vmax.f32 %v6654, %v6655
    %v6657 = vmax.f32 %v6555, %v6556
    %v6658 = vrot.slane %v6657, 4
    %v6659 = vmax.f32 %v6657, %v6658
    %v6660 = vrot.slane %v6659, 2
    %v6661 = vmax.f32 %v6659, %v6660
    %v6662 = vrot.slane %v6661, 1
    %v6663 = vmax.f32 %v6661, %v6662
    %v6664 = vmax.f32 %v6557, %v6558
    %v6665 = vrot.slane %v6664, 4
    %v6666 = vmax.f32 %v6664, %v6665
    %v6667 = vrot.slane %v6666, 2
    %v6668 = vmax.f32 %v6666, %v6667
    %v6669 = vrot.slane %v6668, 1
    %v6670 = vmax.f32 %v6668, %v6669
    %v6671 = vmax.f32 %v6565, -1e+30
    %v6672 = vmax.f32 %v6572, -1e+30
    %v6673 = vmax.f32 %v6579, -1e+30
    %v6674 = vmax.f32 %v6586, -1e+30
    %v6675 = vmax.f32 %v6593, -1e+30
    %v6676 = vmax.f32 %v6600, -1e+30
    %v6677 = vmax.f32 %v6607, -1e+30
    %v6678 = vmax.f32 %v6614, -1e+30
    %v6679 = vmax.f32 %v6621, -1e+30
    %v6680 = vmax.f32 %v6628, -1e+30
    %v6681 = vmax.f32 %v6635, -1e+30
    %v6682 = vmax.f32 %v6642, -1e+30
    %v6683 = vmax.f32 %v6649, -1e+30
    %v6684 = vmax.f32 %v6656, -1e+30
    %v6685 = vmax.f32 %v6663, -1e+30
    %v6686 = vmax.f32 %v6670, -1e+30
    %v6687 = vsel %vm3157, %v6519, -1e+30
    %v6688 = vsel %vm3158, %v6525, -1e+30
    %v6689 = vsel %vm3159, %v6519, -1e+30
    %v6690 = vsel %vm3160, %v6525, -1e+30
    %v6691 = vsel %vm3161, %v6519, -1e+30
    %v6692 = vsel %vm3162, %v6525, -1e+30
    %v6693 = vsel %vm3163, %v6519, -1e+30
    %v6694 = vsel %vm3164, %v6525, -1e+30
    %v6695 = vsel %vm3165, %v6519, -1e+30
    %v6696 = vsel %vm3166, %v6525, -1e+30
    %v6697 = vsel %vm3167, %v6519, -1e+30
    %v6698 = vsel %vm3168, %v6525, -1e+30
    %v6699 = vsel %vm3169, %v6519, -1e+30
    %v6700 = vsel %vm3170, %v6525, -1e+30
    %v6701 = vsel %vm3171, %v6519, -1e+30
    %v6702 = vsel %vm3172, %v6525, -1e+30
    %v6703 = vsel %vm3173, %v6519, -1e+30
    %v6704 = vsel %vm3174, %v6525, -1e+30
    %v6705 = vsel %vm3175, %v6519, -1e+30
    %v6706 = vsel %vm3176, %v6525, -1e+30
    %v6707 = vsel %vm3177, %v6519, -1e+30
    %v6708 = vsel %vm3178, %v6525, -1e+30
    %v6709 = vsel %vm3179, %v6519, -1e+30
    %v6710 = vsel %vm3180, %v6525, -1e+30
    %v6711 = vsel %vm3181, %v6519, -1e+30
    %v6712 = vsel %vm3182, %v6525, -1e+30
    %v6713 = vsel %vm3183, %v6519, -1e+30
    %v6714 = vsel %vm3184, %v6525, -1e+30
    %v6715 = vsel %vm3185, %v6519, -1e+30
    %v6716 = vsel %vm3186, %v6525, -1e+30
    %v6717 = vsel %vm3187, %v6519, -1e+30
    %v6718 = vsel %vm3188, %v6525, -1e+30
    %v6719 = vmax.f32 %v6687, %v6688
    %v6720 = vrot.slane %v6719, 4
    %v6721 = vmax.f32 %v6719, %v6720
    %v6722 = vrot.slane %v6721, 2
    %v6723 = vmax.f32 %v6721, %v6722
    %v6724 = vrot.slane %v6723, 1
    %v6725 = vmax.f32 %v6723, %v6724
    %v6726 = vmax.f32 %v6689, %v6690
    %v6727 = vrot.slane %v6726, 4
    %v6728 = vmax.f32 %v6726, %v6727
    %v6729 = vrot.slane %v6728, 2
    %v6730 = vmax.f32 %v6728, %v6729
    %v6731 = vrot.slane %v6730, 1
    %v6732 = vmax.f32 %v6730, %v6731
    %v6733 = vmax.f32 %v6691, %v6692
    %v6734 = vrot.slane %v6733, 4
    %v6735 = vmax.f32 %v6733, %v6734
    %v6736 = vrot.slane %v6735, 2
    %v6737 = vmax.f32 %v6735, %v6736
    %v6738 = vrot.slane %v6737, 1
    %v6739 = vmax.f32 %v6737, %v6738
    %v6740 = vmax.f32 %v6693, %v6694
    %v6741 = vrot.slane %v6740, 4
    %v6742 = vmax.f32 %v6740, %v6741
    %v6743 = vrot.slane %v6742, 2
    %v6744 = vmax.f32 %v6742, %v6743
    %v6745 = vrot.slane %v6744, 1
    %v6746 = vmax.f32 %v6744, %v6745
    %v6747 = vmax.f32 %v6695, %v6696
    %v6748 = vrot.slane %v6747, 4
    %v6749 = vmax.f32 %v6747, %v6748
    %v6750 = vrot.slane %v6749, 2
    %v6751 = vmax.f32 %v6749, %v6750
    %v6752 = vrot.slane %v6751, 1
    %v6753 = vmax.f32 %v6751, %v6752
    %v6754 = vmax.f32 %v6697, %v6698
    %v6755 = vrot.slane %v6754, 4
    %v6756 = vmax.f32 %v6754, %v6755
    %v6757 = vrot.slane %v6756, 2
    %v6758 = vmax.f32 %v6756, %v6757
    %v6759 = vrot.slane %v6758, 1
    %v6760 = vmax.f32 %v6758, %v6759
    %v6761 = vmax.f32 %v6699, %v6700
    %v6762 = vrot.slane %v6761, 4
    %v6763 = vmax.f32 %v6761, %v6762
    %v6764 = vrot.slane %v6763, 2
    %v6765 = vmax.f32 %v6763, %v6764
    %v6766 = vrot.slane %v6765, 1
    %v6767 = vmax.f32 %v6765, %v6766
    %v6768 = vmax.f32 %v6701, %v6702
    %v6769 = vrot.slane %v6768, 4
    %v6770 = vmax.f32 %v6768, %v6769
    %v6771 = vrot.slane %v6770, 2
    %v6772 = vmax.f32 %v6770, %v6771
    %v6773 = vrot.slane %v6772, 1
    %v6774 = vmax.f32 %v6772, %v6773
    %v6775 = vmax.f32 %v6703, %v6704
    %v6776 = vrot.slane %v6775, 4
    %v6777 = vmax.f32 %v6775, %v6776
    %v6778 = vrot.slane %v6777, 2
    %v6779 = vmax.f32 %v6777, %v6778
    %v6780 = vrot.slane %v6779, 1
    %v6781 = vmax.f32 %v6779, %v6780
    %v6782 = vmax.f32 %v6705, %v6706
    %v6783 = vrot.slane %v6782, 4
    %v6784 = vmax.f32 %v6782, %v6783
    %v6785 = vrot.slane %v6784, 2
    %v6786 = vmax.f32 %v6784, %v6785
    %v6787 = vrot.slane %v6786, 1
    %v6788 = vmax.f32 %v6786, %v6787
    %v6789 = vmax.f32 %v6707, %v6708
    %v6790 = vrot.slane %v6789, 4
    %v6791 = vmax.f32 %v6789, %v6790
    %v6792 = vrot.slane %v6791, 2
    %v6793 = vmax.f32 %v6791, %v6792
    %v6794 = vrot.slane %v6793, 1
    %v6795 = vmax.f32 %v6793, %v6794
    %v6796 = vmax.f32 %v6709, %v6710
    %v6797 = vrot.slane %v6796, 4
    %v6798 = vmax.f32 %v6796, %v6797
    %v6799 = vrot.slane %v6798, 2
    %v6800 = vmax.f32 %v6798, %v6799
    %v6801 = vrot.slane %v6800, 1
    %v6802 = vmax.f32 %v6800, %v6801
    %v6803 = vmax.f32 %v6711, %v6712
    %v6804 = vrot.slane %v6803, 4
    %v6805 = vmax.f32 %v6803, %v6804
    %v6806 = vrot.slane %v6805, 2
    %v6807 = vmax.f32 %v6805, %v6806
    %v6808 = vrot.slane %v6807, 1
    %v6809 = vmax.f32 %v6807, %v6808
    %v6810 = vmax.f32 %v6713, %v6714
    %v6811 = vrot.slane %v6810, 4
    %v6812 = vmax.f32 %v6810, %v6811
    %v6813 = vrot.slane %v6812, 2
    %v6814 = vmax.f32 %v6812, %v6813
    %v6815 = vrot.slane %v6814, 1
    %v6816 = vmax.f32 %v6814, %v6815
    %v6817 = vmax.f32 %v6715, %v6716
    %v6818 = vrot.slane %v6817, 4
    %v6819 = vmax.f32 %v6817, %v6818
    %v6820 = vrot.slane %v6819, 2
    %v6821 = vmax.f32 %v6819, %v6820
    %v6822 = vrot.slane %v6821, 1
    %v6823 = vmax.f32 %v6821, %v6822
    %v6824 = vmax.f32 %v6717, %v6718
    %v6825 = vrot.slane %v6824, 4
    %v6826 = vmax.f32 %v6824, %v6825
    %v6827 = vrot.slane %v6826, 2
    %v6828 = vmax.f32 %v6826, %v6827
    %v6829 = vrot.slane %v6828, 1
    %v6830 = vmax.f32 %v6828, %v6829
    %v6831 = vmax.f32 %v6671, %v6725
    %v6832 = vmax.f32 %v6672, %v6732
    %v6833 = vmax.f32 %v6673, %v6739
    %v6834 = vmax.f32 %v6674, %v6746
    %v6835 = vmax.f32 %v6675, %v6753
    %v6836 = vmax.f32 %v6676, %v6760
    %v6837 = vmax.f32 %v6677, %v6767
    %v6838 = vmax.f32 %v6678, %v6774
    %v6839 = vmax.f32 %v6679, %v6781
    %v6840 = vmax.f32 %v6680, %v6788
    %v6841 = vmax.f32 %v6681, %v6795
    %v6842 = vmax.f32 %v6682, %v6802
    %v6843 = vmax.f32 %v6683, %v6809
    %v6844 = vmax.f32 %v6684, %v6816
    %v6845 = vmax.f32 %v6685, %v6823
    %v6846 = vmax.f32 %v6686, %v6830
    %v6863 = vsel %vm3369, %v6832, %v6831
    %v6864 = vsel %vm3371, %v6833, %v6863
    %v6865 = vsel %vm3373, %v6834, %v6864
    %v6866 = vsel %vm3375, %v6835, %v6865
    %v6867 = vsel %vm3377, %v6836, %v6866
    %v6868 = vsel %vm3379, %v6837, %v6867
    %v6869 = vsel %vm3381, %v6838, %v6868
    %v6870 = vsel %vm3369, %v6840, %v6839
    %v6871 = vsel %vm3371, %v6841, %v6870
    %v6872 = vsel %vm3373, %v6842, %v6871
    %v6873 = vsel %vm3375, %v6843, %v6872
    %v6874 = vsel %vm3377, %v6844, %v6873
    %v6875 = vsel %vm3379, %v6845, %v6874
    %v6876 = vsel %vm3381, %v6846, %v6875
    %v6879 = vsel %vm3351, %v6869, 0.0
    %v6880 = vsel %vm3352, %v6876, 0.0
    %s6881 = scalar_lea.vmem [#allocation7], 512
    %v6882 = vld [vmem:[%s6881] sm:$0xff]
    %v6883 = vld [vmem:[%s6881 + $0x8] sm:$0xff]
    %v6884 = vld [vmem:[%s6881 + $0x10] sm:$0xff]
    %v6885 = vld [vmem:[%s6881 + $0x18] sm:$0xff]
    %v6886 = vld [vmem:[%s6881 + $0x20] sm:$0xff]
    %v6887 = vld [vmem:[%s6881 + $0x28] sm:$0xff]
    %v6888 = vld [vmem:[%s6881 + $0x30] sm:$0xff]
    %v6889 = vld [vmem:[%s6881 + $0x38] sm:$0xff]
    %v6890 = vld [vmem:[%s6881 + $0x40] sm:$0xff]
    %v6891 = vld [vmem:[%s6881 + $0x48] sm:$0xff]
    %v6892 = vld [vmem:[%s6881 + $0x50] sm:$0xff]
    %v6893 = vld [vmem:[%s6881 + $0x58] sm:$0xff]
    %v6894 = vld [vmem:[%s6881 + $0x60] sm:$0xff]
    %v6895 = vld [vmem:[%s6881 + $0x68] sm:$0xff]
    %v6896 = vld [vmem:[%s6881 + $0x70] sm:$0xff]
    %v6897 = vld [vmem:[%s6881 + $0x78] sm:$0xff]
    %s6898 = scalar_lea.vmem [#allocation9], 512
    %v6899 = vld [vmem:[%s6898] sm:$0xff]
    %v6900 = vld [vmem:[%s6898 + $0x8] sm:$0xff]
    %v6901 = vld [vmem:[%s6898 + $0x10] sm:$0xff]
    %v6902 = vld [vmem:[%s6898 + $0x18] sm:$0xff]
    %v6903 = vld [vmem:[%s6898 + $0x20] sm:$0xff]
    %v6904 = vld [vmem:[%s6898 + $0x28] sm:$0xff]
    %v6905 = vld [vmem:[%s6898 + $0x30] sm:$0xff]
    %v6906 = vld [vmem:[%s6898 + $0x38] sm:$0xff]
    %v6907 = vld [vmem:[%s6898 + $0x40] sm:$0xff]
    %v6908 = vld [vmem:[%s6898 + $0x48] sm:$0xff]
    %v6909 = vld [vmem:[%s6898 + $0x50] sm:$0xff]
    %v6910 = vld [vmem:[%s6898 + $0x58] sm:$0xff]
    %v6911 = vld [vmem:[%s6898 + $0x60] sm:$0xff]
    %v6912 = vld [vmem:[%s6898 + $0x68] sm:$0xff]
    %v6913 = vld [vmem:[%s6898 + $0x70] sm:$0xff]
    %v6914 = vld [vmem:[%s6898 + $0x78] sm:$0xff]
    %6915 = vmatprep.subr.mxu0 0.0
    %6916 = vmatpush1.msra.mxu0 %v6914
    %6917 = vmatprep.subr.mxu0 0.0
    %6918 = vmatpush1.msra.mxu0 %v6913
    %6919 = vmatprep.subr.mxu0 0.0
    %6920 = vmatpush1.msra.mxu0 %v6912
    %6921 = vmatprep.subr.mxu0 0.0
    %6922 = vmatpush1.msra.mxu0 %v6911
    %6923 = vmatprep.subr.mxu0 0.0
    %6924 = vmatpush1.msra.mxu0 %v6910
    %6925 = vmatprep.subr.mxu0 0.0
    %6926 = vmatpush1.msra.mxu0 %v6909
    %6927 = vmatprep.subr.mxu0 0.0
    %6928 = vmatpush1.msra.mxu0 %v6908
    %6929 = vmatprep.subr.mxu0 0.0
    %6930 = vmatpush1.msra.mxu0 %v6907
    %6931 = vmatprep.subr.mxu0 0.0
    %6932 = vmatpush1.msra.mxu0 %v6906
    %6933 = vmatprep.subr.mxu0 0.0
    %6934 = vmatpush1.msra.mxu0 %v6905
    %6935 = vmatprep.subr.mxu0 0.0
    %6936 = vmatpush1.msra.mxu0 %v6904
    %6937 = vmatprep.subr.mxu0 0.0
    %6938 = vmatpush1.msra.mxu0 %v6903
    %6939 = vmatprep.subr.mxu0 0.0
    %6940 = vmatpush1.msra.mxu0 %v6902
    %6941 = vmatprep.subr.mxu0 0.0
    %6942 = vmatpush1.msra.mxu0 %v6901
    %6943 = vmatprep.subr.mxu0 0.0
    %6944 = vmatpush1.msra.mxu0 %v6900
    %6945 = vmatprep.subr.mxu0 0.0
    %6946 = vmatpush1.msra.mxu0 %v6899
    %6947 = vmatprep.subr.mxu0 0.0
    %6948 = vmatpush2.msra.mxu0 0.0
    %6949 = vmatprep.subr.mxu0 0.0
    %6950 = vmatpush2.msra.mxu0 0.0
    %6951 = vmatprep.subr.mxu0 0.0
    %6952 = vmatpush2.msra.mxu0 0.0
    %6953 = vmatprep.subr.mxu0 0.0
    %6954 = vmatpush2.msra.mxu0 0.0
    %6955 = vmatprep.subr.mxu0 0.0
    %6956 = vmatpush2.msra.mxu0 0.0
    %6957 = vmatprep.subr.mxu0 0.0
    %6958 = vmatpush2.msra.mxu0 0.0
    %6959 = vmatprep.subr.mxu0 0.0
    %6960 = vmatpush2.msra.mxu0 0.0
    %6961 = vmatprep.subr.mxu0 0.0
    %6962 = vmatpush2.msra.mxu0 0.0
    %6963 = vmatprep.subr.mxu0 0.0
    %6964 = vmatpush2.msra.mxu0 0.0
    %6965 = vmatprep.subr.mxu0 0.0
    %6966 = vmatpush2.msra.mxu0 0.0
    %6967 = vmatprep.subr.mxu0 0.0
    %6968 = vmatpush2.msra.mxu0 0.0
    %6969 = vmatprep.subr.mxu0 0.0
    %6970 = vmatpush2.msra.mxu0 0.0
    %6971 = vmatprep.subr.mxu0 0.0
    %6972 = vmatpush2.msra.mxu0 0.0
    %6973 = vmatprep.subr.mxu0 0.0
    %6974 = vmatpush2.msra.mxu0 0.0
    %6975 = vmatprep.subr.mxu0 0.0
    %6976 = vmatpush2.msra.mxu0 0.0
    %6977 = vmatprep.subr.mxu0 0.0
    %6978 = vmatpush2.msra.mxu0 0.0
    %6979 = vmatprep.mubr.f32.mxu0 0.0
    %6980 = vmatmul.mubr.f32.gmra.mxu0 %v6879
    %v6981 = vpop.f32.mrf.mxu0
    %v6982 = vadd.f32 0.0, %v6981
    %v6983 = vpop.f32.mrf.mxu0
    %6984 = vmatprep.mubr.f32.mxu0 0.0
    %6985 = vmatmul.mubr.f32.gmra.mxu0 %v6880
    %v6986 = vpop.f32.mrf.mxu0
    %v6987 = vadd.f32 0.0, %v6986
    %v6988 = vpop.f32.mrf.mxu0
    %6989 = vdwg.mxu0
    %6990 = vmatprep.subr.mxu0 0.0
    %6991 = vmatpush1.msra.mxu0 %v6897
    %6992 = vmatprep.subr.mxu0 0.0
    %6993 = vmatpush1.msra.mxu0 %v6896
    %6994 = vmatprep.subr.mxu0 0.0
    %6995 = vmatpush1.msra.mxu0 %v6895
    %6996 = vmatprep.subr.mxu0 0.0
    %6997 = vmatpush1.msra.mxu0 %v6894
    %6998 = vmatprep.subr.mxu0 0.0
    %6999 = vmatpush1.msra.mxu0 %v6893
    %7000 = vmatprep.subr.mxu0 0.0
    %7001 = vmatpush1.msra.mxu0 %v6892
    %7002 = vmatprep.subr.mxu0 0.0
    %7003 = vmatpush1.msra.mxu0 %v6891
    %7004 = vmatprep.subr.mxu0 0.0
    %7005 = vmatpush1.msra.mxu0 %v6890
    %7006 = vmatprep.subr.mxu0 0.0
    %7007 = vmatpush1.msra.mxu0 %v6889
    %7008 = vmatprep.subr.mxu0 0.0
    %7009 = vmatpush1.msra.mxu0 %v6888
    %7010 = vmatprep.subr.mxu0 0.0
    %7011 = vmatpush1.msra.mxu0 %v6887
    %7012 = vmatprep.subr.mxu0 0.0
    %7013 = vmatpush1.msra.mxu0 %v6886
    %7014 = vmatprep.subr.mxu0 0.0
    %7015 = vmatpush1.msra.mxu0 %v6885
    %7016 = vmatprep.subr.mxu0 0.0
    %7017 = vmatpush1.msra.mxu0 %v6884
    %7018 = vmatprep.subr.mxu0 0.0
    %7019 = vmatpush1.msra.mxu0 %v6883
    %7020 = vmatprep.subr.mxu0 0.0
    %7021 = vmatpush1.msra.mxu0 %v6882
    %7022 = vmatprep.subr.mxu0 0.0
    %7023 = vmatpush2.msra.mxu0 0.0
    %7024 = vmatprep.subr.mxu0 0.0
    %7025 = vmatpush2.msra.mxu0 0.0
    %7026 = vmatprep.subr.mxu0 0.0
    %7027 = vmatpush2.msra.mxu0 0.0
    %7028 = vmatprep.subr.mxu0 0.0
    %7029 = vmatpush2.msra.mxu0 0.0
    %7030 = vmatprep.subr.mxu0 0.0
    %7031 = vmatpush2.msra.mxu0 0.0
    %7032 = vmatprep.subr.mxu0 0.0
    %7033 = vmatpush2.msra.mxu0 0.0
    %7034 = vmatprep.subr.mxu0 0.0
    %7035 = vmatpush2.msra.mxu0 0.0
    %7036 = vmatprep.subr.mxu0 0.0
    %7037 = vmatpush2.msra.mxu0 0.0
    %7038 = vmatprep.subr.mxu0 0.0
    %7039 = vmatpush2.msra.mxu0 0.0
    %7040 = vmatprep.subr.mxu0 0.0
    %7041 = vmatpush2.msra.mxu0 0.0
    %7042 = vmatprep.subr.mxu0 0.0
    %7043 = vmatpush2.msra.mxu0 0.0
    %7044 = vmatprep.subr.mxu0 0.0
    %7045 = vmatpush2.msra.mxu0 0.0
    %7046 = vmatprep.subr.mxu0 0.0
    %7047 = vmatpush2.msra.mxu0 0.0
    %7048 = vmatprep.subr.mxu0 0.0
    %7049 = vmatpush2.msra.mxu0 0.0
    %7050 = vmatprep.subr.mxu0 0.0
    %7051 = vmatpush2.msra.mxu0 0.0
    %7052 = vmatprep.subr.mxu0 0.0
    %7053 = vmatpush2.msra.mxu0 0.0
    %7054 = vmatprep.mubr.f32.mxu0 0.0
    %7055 = vmatmul.mubr.f32.gmra.mxu0 %v6415
    %v7056 = vpop.f32.mrf.mxu0
    %v7057 = vadd.f32 %v6982, %v7056
    %v7058 = vpop.f32.mrf.mxu0
    %7059 = vmatprep.mubr.f32.mxu0 0.0
    %7060 = vmatmul.mubr.f32.gmra.mxu0 %v6416
    %v7061 = vpop.f32.mrf.mxu0
    %v7062 = vadd.f32 %v6987, %v7061
    %v7063 = vpop.f32.mrf.mxu0
    %7064 = vdwg.mxu0
    %s7065 = scalar_lea.vmem [#allocation10], 4
    %v7066 = vld [vmem:[%s7065] sm:$0x1]
    %v7068 = vlaneseq
    %v7069 = vshrl.u32 %v7068, 7
    %v7070 = vsub.s32 0, %v7069
    %v7071 = vrot.slane %v7066, %v7070
    %v7073 = vadd.f32 %v7057, %v7071
    %v7074 = vadd.f32 %v7062, %v7071
    %s7075 = scalar_lea.vmem %s8, 1280
    %v7076 = vld [vmem:[%s7075] sm:$0xff]
    %v7077 = vld [vmem:[%s7075 + $0x8] sm:$0xff]
    %v7078 = vld [vmem:[%s7075 + $0x10] sm:$0xff]
    %v7079 = vld [vmem:[%s7075 + $0x18] sm:$0xff]
    %v7080 = vld [vmem:[%s7075 + $0x20] sm:$0xff]
    %v7081 = vld [vmem:[%s7075 + $0x28] sm:$0xff]
    %v7082 = vld [vmem:[%s7075 + $0x30] sm:$0xff]
    %v7083 = vld [vmem:[%s7075 + $0x38] sm:$0xff]
    %v7084 = vld [vmem:[%s7075 + $0x40] sm:$0xff]
    %v7085 = vld [vmem:[%s7075 + $0x48] sm:$0xff]
    %v7086 = vld [vmem:[%s7075 + $0x50] sm:$0xff]
    %v7087 = vld [vmem:[%s7075 + $0x58] sm:$0xff]
    %v7088 = vld [vmem:[%s7075 + $0x60] sm:$0xff]
    %v7089 = vld [vmem:[%s7075 + $0x68] sm:$0xff]
    %v7090 = vld [vmem:[%s7075 + $0x70] sm:$0xff]
    %v7091 = vld [vmem:[%s7075 + $0x78] sm:$0xff]
    %v7092 = vld [vmem:[%s7075 + $0x80] sm:$0xff]
    %v7093 = vld [vmem:[%s7075 + $0x88] sm:$0xff]
    %v7094 = vld [vmem:[%s7075 + $0x90] sm:$0xff]
    %v7095 = vld [vmem:[%s7075 + $0x98] sm:$0xff]
    %v7096 = vld [vmem:[%s7075 + $0xa0] sm:$0xff]
    %v7097 = vld [vmem:[%s7075 + $0xa8] sm:$0xff]
    %v7098 = vld [vmem:[%s7075 + $0xb0] sm:$0xff]
    %v7099 = vld [vmem:[%s7075 + $0xb8] sm:$0xff]
    %v7100 = vld [vmem:[%s7075 + $0xc0] sm:$0xff]
    %v7101 = vld [vmem:[%s7075 + $0xc8] sm:$0xff]
    %v7102 = vld [vmem:[%s7075 + $0xd0] sm:$0xff]
    %v7103 = vld [vmem:[%s7075 + $0xd8] sm:$0xff]
    %v7104 = vld [vmem:[%s7075 + $0xe0] sm:$0xff]
    %v7105 = vld [vmem:[%s7075 + $0xe8] sm:$0xff]
    %v7106 = vld [vmem:[%s7075 + $0xf0] sm:$0xff]
    %v7107 = vld [vmem:[%s7075 + $0xf8] sm:$0xff]
    %7108 = vmatprep.subr.mxu0 %v7107
    %7109 = vmatpush1.msra.mxu0 %v7106
    %7110 = vmatprep.subr.mxu0 %v7105
    %7111 = vmatpush1.msra.mxu0 %v7104
    %7112 = vmatprep.subr.mxu0 %v7103
    %7113 = vmatpush1.msra.mxu0 %v7102
    %7114 = vmatprep.subr.mxu0 %v7101
    %7115 = vmatpush1.msra.mxu0 %v7100
    %7116 = vmatprep.subr.mxu0 %v7099
    %7117 = vmatpush1.msra.mxu0 %v7098
    %7118 = vmatprep.subr.mxu0 %v7097
    %7119 = vmatpush1.msra.mxu0 %v7096
    %7120 = vmatprep.subr.mxu0 %v7095
    %7121 = vmatpush1.msra.mxu0 %v7094
    %7122 = vmatprep.subr.mxu0 %v7093
    %7123 = vmatpush1.msra.mxu0 %v7092
    %7124 = vmatprep.subr.mxu0 %v7091
    %7125 = vmatpush1.msra.mxu0 %v7090
    %7126 = vmatprep.subr.mxu0 %v7089
    %7127 = vmatpush1.msra.mxu0 %v7088
    %7128 = vmatprep.subr.mxu0 %v7087
    %7129 = vmatpush1.msra.mxu0 %v7086
    %7130 = vmatprep.subr.mxu0 %v7085
    %7131 = vmatpush1.msra.mxu0 %v7084
    %7132 = vmatprep.subr.mxu0 %v7083
    %7133 = vmatpush1.msra.mxu0 %v7082
    %7134 = vmatprep.subr.mxu0 %v7081
    %7135 = vmatpush1.msra.mxu0 %v7080
    %7136 = vmatprep.subr.mxu0 %v7079
    %7137 = vmatpush1.msra.mxu0 %v7078
    %7138 = vmatprep.subr.mxu0 %v7077
    %7139 = vmatpush1.msra.mxu0 %v7076
    %7140 = vmatprep.subr.mxu0 0.0
    %7141 = vmatpush2.msra.mxu0 0.0
    %7142 = vmatprep.subr.mxu0 0.0
    %7143 = vmatpush2.msra.mxu0 0.0
    %7144 = vmatprep.subr.mxu0 0.0
    %7145 = vmatpush2.msra.mxu0 0.0
    %7146 = vmatprep.subr.mxu0 0.0
    %7147 = vmatpush2.msra.mxu0 0.0
    %7148 = vmatprep.subr.mxu0 0.0
    %7149 = vmatpush2.msra.mxu0 0.0
    %7150 = vmatprep.subr.mxu0 0.0
    %7151 = vmatpush2.msra.mxu0 0.0
    %7152 = vmatprep.subr.mxu0 0.0
    %7153 = vmatpush2.msra.mxu0 0.0
    %7154 = vmatprep.subr.mxu0 0.0
    %7155 = vmatpush2.msra.mxu0 0.0
    %7156 = vmatprep.subr.mxu0 0.0
    %7157 = vmatpush2.msra.mxu0 0.0
    %7158 = vmatprep.subr.mxu0 0.0
    %7159 = vmatpush2.msra.mxu0 0.0
    %7160 = vmatprep.subr.mxu0 0.0
    %7161 = vmatpush2.msra.mxu0 0.0
    %7162 = vmatprep.subr.mxu0 0.0
    %7163 = vmatpush2.msra.mxu0 0.0
    %7164 = vmatprep.subr.mxu0 0.0
    %7165 = vmatpush2.msra.mxu0 0.0
    %7166 = vmatprep.subr.mxu0 0.0
    %7167 = vmatpush2.msra.mxu0 0.0
    %7168 = vmatprep.subr.mxu0 0.0
    %7169 = vmatpush2.msra.mxu0 0.0
    %7170 = vmatprep.subr.mxu0 0.0
    %7171 = vmatpush2.msra.mxu0 0.0
    %7172 = vmatprep.mubr.f32.mxu0 0.0
    %7173 = vmatmul.mubr.f32.gmra.mxu0 %v7073
    %v7174 = vpop.f32.mrf.mxu0
    %v7175 = vadd.f32 0.0, %v7174
    %v7176 = vpop.f32.mrf.mxu0
    %v7177 = vadd.f32 0.0, %v7176
    %7178 = vmatprep.mubr.f32.mxu0 0.0
    %7179 = vmatmul.mubr.f32.gmra.mxu0 %v7074
    %v7180 = vpop.f32.mrf.mxu0
    %v7181 = vadd.f32 0.0, %v7180
    %v7182 = vpop.f32.mrf.mxu0
    %v7183 = vadd.f32 0.0, %v7182
    %7184 = vdwg.mxu0
    %v7185 = vsel %vm2933, %v7175, -1e+30
    %v7186 = vsel %vm2934, %v7181, -1e+30
    %v7187 = vsel %vm2935, %v7175, -1e+30
    %v7188 = vsel %vm2936, %v7181, -1e+30
    %v7189 = vsel %vm2937, %v7175, -1e+30
    %v7190 = vsel %vm2938, %v7181, -1e+30
    %v7191 = vsel %vm2939, %v7175, -1e+30
    %v7192 = vsel %vm2940, %v7181, -1e+30
    %v7193 = vsel %vm2941, %v7175, -1e+30
    %v7194 = vsel %vm2942, %v7181, -1e+30
    %v7195 = vsel %vm2943, %v7175, -1e+30
    %v7196 = vsel %vm2944, %v7181, -1e+30
    %v7197 = vsel %vm2945, %v7175, -1e+30
    %v7198 = vsel %vm2946, %v7181, -1e+30
    %v7199 = vsel %vm2947, %v7175, -1e+30
    %v7200 = vsel %vm2948, %v7181, -1e+30
    %v7201 = vsel %vm2949, %v7175, -1e+30
    %v7202 = vsel %vm2950, %v7181, -1e+30
    %v7203 = vsel %vm2951, %v7175, -1e+30
    %v7204 = vsel %vm2952, %v7181, -1e+30
    %v7205 = vsel %vm2953, %v7175, -1e+30
    %v7206 = vsel %vm2954, %v7181, -1e+30
    %v7207 = vsel %vm2955, %v7175, -1e+30
    %v7208 = vsel %vm2956, %v7181, -1e+30
    %v7209 = vsel %vm2957, %v7175, -1e+30
    %v7210 = vsel %vm2958, %v7181, -1e+30
    %v7211 = vsel %vm2959, %v7175, -1e+30
    %v7212 = vsel %vm2960, %v7181, -1e+30
    %v7213 = vsel %vm2961, %v7175, -1e+30
    %v7214 = vsel %vm2962, %v7181, -1e+30
    %v7215 = vsel %vm2963, %v7175, -1e+30
    %v7216 = vsel %vm2964, %v7181, -1e+30
    %v7217 = vmax.f32 %v7185, %v7186
    %v7218 = vrot.slane %v7217, 4
    %v7219 = vmax.f32 %v7217, %v7218
    %v7220 = vrot.slane %v7219, 2
    %v7221 = vmax.f32 %v7219, %v7220
    %v7222 = vrot.slane %v7221, 1
    %v7223 = vmax.f32 %v7221, %v7222
    %v7224 = vmax.f32 %v7187, %v7188
    %v7225 = vrot.slane %v7224, 4
    %v7226 = vmax.f32 %v7224, %v7225
    %v7227 = vrot.slane %v7226, 2
    %v7228 = vmax.f32 %v7226, %v7227
    %v7229 = vrot.slane %v7228, 1
    %v7230 = vmax.f32 %v7228, %v7229
    %v7231 = vmax.f32 %v7189, %v7190
    %v7232 = vrot.slane %v7231, 4
    %v7233 = vmax.f32 %v7231, %v7232
    %v7234 = vrot.slane %v7233, 2
    %v7235 = vmax.f32 %v7233, %v7234
    %v7236 = vrot.slane %v7235, 1
    %v7237 = vmax.f32 %v7235, %v7236
    %v7238 = vmax.f32 %v7191, %v7192
    %v7239 = vrot.slane %v7238, 4
    %v7240 = vmax.f32 %v7238, %v7239
    %v7241 = vrot.slane %v7240, 2
    %v7242 = vmax.f32 %v7240, %v7241
    %v7243 = vrot.slane %v7242, 1
    %v7244 = vmax.f32 %v7242, %v7243
    %v7245 = vmax.f32 %v7193, %v7194
    %v7246 = vrot.slane %v7245, 4
    %v7247 = vmax.f32 %v7245, %v7246
    %v7248 = vrot.slane %v7247, 2
    %v7249 = vmax.f32 %v7247, %v7248
    %v7250 = vrot.slane %v7249, 1
    %v7251 = vmax.f32 %v7249, %v7250
    %v7252 = vmax.f32 %v7195, %v7196
    %v7253 = vrot.slane %v7252, 4
    %v7254 = vmax.f32 %v7252, %v7253
    %v7255 = vrot.slane %v7254, 2
    %v7256 = vmax.f32 %v7254, %v7255
    %v7257 = vrot.slane %v7256, 1
    %v7258 = vmax.f32 %v7256, %v7257
    %v7259 = vmax.f32 %v7197, %v7198
    %v7260 = vrot.slane %v7259, 4
    %v7261 = vmax.f32 %v7259, %v7260
    %v7262 = vrot.slane %v7261, 2
    %v7263 = vmax.f32 %v7261, %v7262
    %v7264 = vrot.slane %v7263, 1
    %v7265 = vmax.f32 %v7263, %v7264
    %v7266 = vmax.f32 %v7199, %v7200
    %v7267 = vrot.slane %v7266, 4
    %v7268 = vmax.f32 %v7266, %v7267
    %v7269 = vrot.slane %v7268, 2
    %v7270 = vmax.f32 %v7268, %v7269
    %v7271 = vrot.slane %v7270, 1
    %v7272 = vmax.f32 %v7270, %v7271
    %v7273 = vmax.f32 %v7201, %v7202
    %v7274 = vrot.slane %v7273, 4
    %v7275 = vmax.f32 %v7273, %v7274
    %v7276 = vrot.slane %v7275, 2
    %v7277 = vmax.f32 %v7275, %v7276
    %v7278 = vrot.slane %v7277, 1
    %v7279 = vmax.f32 %v7277, %v7278
    %v7280 = vmax.f32 %v7203, %v7204
    %v7281 = vrot.slane %v7280, 4
    %v7282 = vmax.f32 %v7280, %v7281
    %v7283 = vrot.slane %v7282, 2
    %v7284 = vmax.f32 %v7282, %v7283
    %v7285 = vrot.slane %v7284, 1
    %v7286 = vmax.f32 %v7284, %v7285
    %v7287 = vmax.f32 %v7205, %v7206
    %v7288 = vrot.slane %v7287, 4
    %v7289 = vmax.f32 %v7287, %v7288
    %v7290 = vrot.slane %v7289, 2
    %v7291 = vmax.f32 %v7289, %v7290
    %v7292 = vrot.slane %v7291, 1
    %v7293 = vmax.f32 %v7291, %v7292
    %v7294 = vmax.f32 %v7207, %v7208
    %v7295 = vrot.slane %v7294, 4
    %v7296 = vmax.f32 %v7294, %v7295
    %v7297 = vrot.slane %v7296, 2
    %v7298 = vmax.f32 %v7296, %v7297
    %v7299 = vrot.slane %v7298, 1
    %v7300 = vmax.f32 %v7298, %v7299
    %v7301 = vmax.f32 %v7209, %v7210
    %v7302 = vrot.slane %v7301, 4
    %v7303 = vmax.f32 %v7301, %v7302
    %v7304 = vrot.slane %v7303, 2
    %v7305 = vmax.f32 %v7303, %v7304
    %v7306 = vrot.slane %v7305, 1
    %v7307 = vmax.f32 %v7305, %v7306
    %v7308 = vmax.f32 %v7211, %v7212
    %v7309 = vrot.slane %v7308, 4
    %v7310 = vmax.f32 %v7308, %v7309
    %v7311 = vrot.slane %v7310, 2
    %v7312 = vmax.f32 %v7310, %v7311
    %v7313 = vrot.slane %v7312, 1
    %v7314 = vmax.f32 %v7312, %v7313
    %v7315 = vmax.f32 %v7213, %v7214
    %v7316 = vrot.slane %v7315, 4
    %v7317 = vmax.f32 %v7315, %v7316
    %v7318 = vrot.slane %v7317, 2
    %v7319 = vmax.f32 %v7317, %v7318
    %v7320 = vrot.slane %v7319, 1
    %v7321 = vmax.f32 %v7319, %v7320
    %v7322 = vmax.f32 %v7215, %v7216
    %v7323 = vrot.slane %v7322, 4
    %v7324 = vmax.f32 %v7322, %v7323
    %v7325 = vrot.slane %v7324, 2
    %v7326 = vmax.f32 %v7324, %v7325
    %v7327 = vrot.slane %v7326, 1
    %v7328 = vmax.f32 %v7326, %v7327
    %v7329 = vmax.f32 %v7223, -1e+30
    %v7330 = vmax.f32 %v7230, -1e+30
    %v7331 = vmax.f32 %v7237, -1e+30
    %v7332 = vmax.f32 %v7244, -1e+30
    %v7333 = vmax.f32 %v7251, -1e+30
    %v7334 = vmax.f32 %v7258, -1e+30
    %v7335 = vmax.f32 %v7265, -1e+30
    %v7336 = vmax.f32 %v7272, -1e+30
    %v7337 = vmax.f32 %v7279, -1e+30
    %v7338 = vmax.f32 %v7286, -1e+30
    %v7339 = vmax.f32 %v7293, -1e+30
    %v7340 = vmax.f32 %v7300, -1e+30
    %v7341 = vmax.f32 %v7307, -1e+30
    %v7342 = vmax.f32 %v7314, -1e+30
    %v7343 = vmax.f32 %v7321, -1e+30
    %v7344 = vmax.f32 %v7328, -1e+30
    %v7345 = vsel %vm3157, %v7177, -1e+30
    %v7346 = vsel %vm3158, %v7183, -1e+30
    %v7347 = vsel %vm3159, %v7177, -1e+30
    %v7348 = vsel %vm3160, %v7183, -1e+30
    %v7349 = vsel %vm3161, %v7177, -1e+30
    %v7350 = vsel %vm3162, %v7183, -1e+30
    %v7351 = vsel %vm3163, %v7177, -1e+30
    %v7352 = vsel %vm3164, %v7183, -1e+30
    %v7353 = vsel %vm3165, %v7177, -1e+30
    %v7354 = vsel %vm3166, %v7183, -1e+30
    %v7355 = vsel %vm3167, %v7177, -1e+30
    %v7356 = vsel %vm3168, %v7183, -1e+30
    %v7357 = vsel %vm3169, %v7177, -1e+30
    %v7358 = vsel %vm3170, %v7183, -1e+30
    %v7359 = vsel %vm3171, %v7177, -1e+30
    %v7360 = vsel %vm3172, %v7183, -1e+30
    %v7361 = vsel %vm3173, %v7177, -1e+30
    %v7362 = vsel %vm3174, %v7183, -1e+30
    %v7363 = vsel %vm3175, %v7177, -1e+30
    %v7364 = vsel %vm3176, %v7183, -1e+30
    %v7365 = vsel %vm3177, %v7177, -1e+30
    %v7366 = vsel %vm3178, %v7183, -1e+30
    %v7367 = vsel %vm3179, %v7177, -1e+30
    %v7368 = vsel %vm3180, %v7183, -1e+30
    %v7369 = vsel %vm3181, %v7177, -1e+30
    %v7370 = vsel %vm3182, %v7183, -1e+30
    %v7371 = vsel %vm3183, %v7177, -1e+30
    %v7372 = vsel %vm3184, %v7183, -1e+30
    %v7373 = vsel %vm3185, %v7177, -1e+30
    %v7374 = vsel %vm3186, %v7183, -1e+30
    %v7375 = vsel %vm3187, %v7177, -1e+30
    %v7376 = vsel %vm3188, %v7183, -1e+30
    %v7377 = vmax.f32 %v7345, %v7346
    %v7378 = vrot.slane %v7377, 4
    %v7379 = vmax.f32 %v7377, %v7378
    %v7380 = vrot.slane %v7379, 2
    %v7381 = vmax.f32 %v7379, %v7380
    %v7382 = vrot.slane %v7381, 1
    %v7383 = vmax.f32 %v7381, %v7382
    %v7384 = vmax.f32 %v7347, %v7348
    %v7385 = vrot.slane %v7384, 4
    %v7386 = vmax.f32 %v7384, %v7385
    %v7387 = vrot.slane %v7386, 2
    %v7388 = vmax.f32 %v7386, %v7387
    %v7389 = vrot.slane %v7388, 1
    %v7390 = vmax.f32 %v7388, %v7389
    %v7391 = vmax.f32 %v7349, %v7350
    %v7392 = vrot.slane %v7391, 4
    %v7393 = vmax.f32 %v7391, %v7392
    %v7394 = vrot.slane %v7393, 2
    %v7395 = vmax.f32 %v7393, %v7394
    %v7396 = vrot.slane %v7395, 1
    %v7397 = vmax.f32 %v7395, %v7396
    %v7398 = vmax.f32 %v7351, %v7352
    %v7399 = vrot.slane %v7398, 4
    %v7400 = vmax.f32 %v7398, %v7399
    %v7401 = vrot.slane %v7400, 2
    %v7402 = vmax.f32 %v7400, %v7401
    %v7403 = vrot.slane %v7402, 1
    %v7404 = vmax.f32 %v7402, %v7403
    %v7405 = vmax.f32 %v7353, %v7354
    %v7406 = vrot.slane %v7405, 4
    %v7407 = vmax.f32 %v7405, %v7406
    %v7408 = vrot.slane %v7407, 2
    %v7409 = vmax.f32 %v7407, %v7408
    %v7410 = vrot.slane %v7409, 1
    %v7411 = vmax.f32 %v7409, %v7410
    %v7412 = vmax.f32 %v7355, %v7356
    %v7413 = vrot.slane %v7412, 4
    %v7414 = vmax.f32 %v7412, %v7413
    %v7415 = vrot.slane %v7414, 2
    %v7416 = vmax.f32 %v7414, %v7415
    %v7417 = vrot.slane %v7416, 1
    %v7418 = vmax.f32 %v7416, %v7417
    %v7419 = vmax.f32 %v7357, %v7358
    %v7420 = vrot.slane %v7419, 4
    %v7421 = vmax.f32 %v7419, %v7420
    %v7422 = vrot.slane %v7421, 2
    %v7423 = vmax.f32 %v7421, %v7422
    %v7424 = vrot.slane %v7423, 1
    %v7425 = vmax.f32 %v7423, %v7424
    %v7426 = vmax.f32 %v7359, %v7360
    %v7427 = vrot.slane %v7426, 4
    %v7428 = vmax.f32 %v7426, %v7427
    %v7429 = vrot.slane %v7428, 2
    %v7430 = vmax.f32 %v7428, %v7429
    %v7431 = vrot.slane %v7430, 1
    %v7432 = vmax.f32 %v7430, %v7431
    %v7433 = vmax.f32 %v7361, %v7362
    %v7434 = vrot.slane %v7433, 4
    %v7435 = vmax.f32 %v7433, %v7434
    %v7436 = vrot.slane %v7435, 2
    %v7437 = vmax.f32 %v7435, %v7436
    %v7438 = vrot.slane %v7437, 1
    %v7439 = vmax.f32 %v7437, %v7438
    %v7440 = vmax.f32 %v7363, %v7364
    %v7441 = vrot.slane %v7440, 4
    %v7442 = vmax.f32 %v7440, %v7441
    %v7443 = vrot.slane %v7442, 2
    %v7444 = vmax.f32 %v7442, %v7443
    %v7445 = vrot.slane %v7444, 1
    %v7446 = vmax.f32 %v7444, %v7445
    %v7447 = vmax.f32 %v7365, %v7366
    %v7448 = vrot.slane %v7447, 4
    %v7449 = vmax.f32 %v7447, %v7448
    %v7450 = vrot.slane %v7449, 2
    %v7451 = vmax.f32 %v7449, %v7450
    %v7452 = vrot.slane %v7451, 1
    %v7453 = vmax.f32 %v7451, %v7452
    %v7454 = vmax.f32 %v7367, %v7368
    %v7455 = vrot.slane %v7454, 4
    %v7456 = vmax.f32 %v7454, %v7455
    %v7457 = vrot.slane %v7456, 2
    %v7458 = vmax.f32 %v7456, %v7457
    %v7459 = vrot.slane %v7458, 1
    %v7460 = vmax.f32 %v7458, %v7459
    %v7461 = vmax.f32 %v7369, %v7370
    %v7462 = vrot.slane %v7461, 4
    %v7463 = vmax.f32 %v7461, %v7462
    %v7464 = vrot.slane %v7463, 2
    %v7465 = vmax.f32 %v7463, %v7464
    %v7466 = vrot.slane %v7465, 1
    %v7467 = vmax.f32 %v7465, %v7466
    %v7468 = vmax.f32 %v7371, %v7372
    %v7469 = vrot.slane %v7468, 4
    %v7470 = vmax.f32 %v7468, %v7469
    %v7471 = vrot.slane %v7470, 2
    %v7472 = vmax.f32 %v7470, %v7471
    %v7473 = vrot.slane %v7472, 1
    %v7474 = vmax.f32 %v7472, %v7473
    %v7475 = vmax.f32 %v7373, %v7374
    %v7476 = vrot.slane %v7475, 4
    %v7477 = vmax.f32 %v7475, %v7476
    %v7478 = vrot.slane %v7477, 2
    %v7479 = vmax.f32 %v7477, %v7478
    %v7480 = vrot.slane %v7479, 1
    %v7481 = vmax.f32 %v7479, %v7480
    %v7482 = vmax.f32 %v7375, %v7376
    %v7483 = vrot.slane %v7482, 4
    %v7484 = vmax.f32 %v7482, %v7483
    %v7485 = vrot.slane %v7484, 2
    %v7486 = vmax.f32 %v7484, %v7485
    %v7487 = vrot.slane %v7486, 1
    %v7488 = vmax.f32 %v7486, %v7487
    %v7489 = vmax.f32 %v7329, %v7383
    %v7490 = vmax.f32 %v7330, %v7390
    %v7491 = vmax.f32 %v7331, %v7397
    %v7492 = vmax.f32 %v7332, %v7404
    %v7493 = vmax.f32 %v7333, %v7411
    %v7494 = vmax.f32 %v7334, %v7418
    %v7495 = vmax.f32 %v7335, %v7425
    %v7496 = vmax.f32 %v7336, %v7432
    %v7497 = vmax.f32 %v7337, %v7439
    %v7498 = vmax.f32 %v7338, %v7446
    %v7499 = vmax.f32 %v7339, %v7453
    %v7500 = vmax.f32 %v7340, %v7460
    %v7501 = vmax.f32 %v7341, %v7467
    %v7502 = vmax.f32 %v7342, %v7474
    %v7503 = vmax.f32 %v7343, %v7481
    %v7504 = vmax.f32 %v7344, %v7488
    %v7521 = vsel %vm3369, %v7490, %v7489
    %v7522 = vsel %vm3371, %v7491, %v7521
    %v7523 = vsel %vm3373, %v7492, %v7522
    %v7524 = vsel %vm3375, %v7493, %v7523
    %v7525 = vsel %vm3377, %v7494, %v7524
    %v7526 = vsel %vm3379, %v7495, %v7525
    %v7527 = vsel %vm3381, %v7496, %v7526
    %v7528 = vsel %vm3369, %v7498, %v7497
    %v7529 = vsel %vm3371, %v7499, %v7528
    %v7530 = vsel %vm3373, %v7500, %v7529
    %v7531 = vsel %vm3375, %v7501, %v7530
    %v7532 = vsel %vm3377, %v7502, %v7531
    %v7533 = vsel %vm3379, %v7503, %v7532
    %v7534 = vsel %vm3381, %v7504, %v7533
    %v7537 = vsel %vm3351, %v7527, 0.0
    %v7538 = vsel %vm3352, %v7534, 0.0
    %s7539 = scalar_lea.vmem [#allocation7], 640
    %v7540 = vld [vmem:[%s7539] sm:$0xff]
    %v7541 = vld [vmem:[%s7539 + $0x8] sm:$0xff]
    %v7542 = vld [vmem:[%s7539 + $0x10] sm:$0xff]
    %v7543 = vld [vmem:[%s7539 + $0x18] sm:$0xff]
    %v7544 = vld [vmem:[%s7539 + $0x20] sm:$0xff]
    %v7545 = vld [vmem:[%s7539 + $0x28] sm:$0xff]
    %v7546 = vld [vmem:[%s7539 + $0x30] sm:$0xff]
    %v7547 = vld [vmem:[%s7539 + $0x38] sm:$0xff]
    %v7548 = vld [vmem:[%s7539 + $0x40] sm:$0xff]
    %v7549 = vld [vmem:[%s7539 + $0x48] sm:$0xff]
    %v7550 = vld [vmem:[%s7539 + $0x50] sm:$0xff]
    %v7551 = vld [vmem:[%s7539 + $0x58] sm:$0xff]
    %v7552 = vld [vmem:[%s7539 + $0x60] sm:$0xff]
    %v7553 = vld [vmem:[%s7539 + $0x68] sm:$0xff]
    %v7554 = vld [vmem:[%s7539 + $0x70] sm:$0xff]
    %v7555 = vld [vmem:[%s7539 + $0x78] sm:$0xff]
    %s7556 = scalar_lea.vmem [#allocation9], 640
    %v7557 = vld [vmem:[%s7556] sm:$0xff]
    %v7558 = vld [vmem:[%s7556 + $0x8] sm:$0xff]
    %v7559 = vld [vmem:[%s7556 + $0x10] sm:$0xff]
    %v7560 = vld [vmem:[%s7556 + $0x18] sm:$0xff]
    %v7561 = vld [vmem:[%s7556 + $0x20] sm:$0xff]
    %v7562 = vld [vmem:[%s7556 + $0x28] sm:$0xff]
    %v7563 = vld [vmem:[%s7556 + $0x30] sm:$0xff]
    %v7564 = vld [vmem:[%s7556 + $0x38] sm:$0xff]
    %v7565 = vld [vmem:[%s7556 + $0x40] sm:$0xff]
    %v7566 = vld [vmem:[%s7556 + $0x48] sm:$0xff]
    %v7567 = vld [vmem:[%s7556 + $0x50] sm:$0xff]
    %v7568 = vld [vmem:[%s7556 + $0x58] sm:$0xff]
    %v7569 = vld [vmem:[%s7556 + $0x60] sm:$0xff]
    %v7570 = vld [vmem:[%s7556 + $0x68] sm:$0xff]
    %v7571 = vld [vmem:[%s7556 + $0x70] sm:$0xff]
    %v7572 = vld [vmem:[%s7556 + $0x78] sm:$0xff]
    %7573 = vmatprep.subr.mxu0 0.0
    %7574 = vmatpush1.msra.mxu0 %v7572
    %7575 = vmatprep.subr.mxu0 0.0
    %7576 = vmatpush1.msra.mxu0 %v7571
    %7577 = vmatprep.subr.mxu0 0.0
    %7578 = vmatpush1.msra.mxu0 %v7570
    %7579 = vmatprep.subr.mxu0 0.0
    %7580 = vmatpush1.msra.mxu0 %v7569
    %7581 = vmatprep.subr.mxu0 0.0
    %7582 = vmatpush1.msra.mxu0 %v7568
    %7583 = vmatprep.subr.mxu0 0.0
    %7584 = vmatpush1.msra.mxu0 %v7567
    %7585 = vmatprep.subr.mxu0 0.0
    %7586 = vmatpush1.msra.mxu0 %v7566
    %7587 = vmatprep.subr.mxu0 0.0
    %7588 = vmatpush1.msra.mxu0 %v7565
    %7589 = vmatprep.subr.mxu0 0.0
    %7590 = vmatpush1.msra.mxu0 %v7564
    %7591 = vmatprep.subr.mxu0 0.0
    %7592 = vmatpush1.msra.mxu0 %v7563
    %7593 = vmatprep.subr.mxu0 0.0
    %7594 = vmatpush1.msra.mxu0 %v7562
    %7595 = vmatprep.subr.mxu0 0.0
    %7596 = vmatpush1.msra.mxu0 %v7561
    %7597 = vmatprep.subr.mxu0 0.0
    %7598 = vmatpush1.msra.mxu0 %v7560
    %7599 = vmatprep.subr.mxu0 0.0
    %7600 = vmatpush1.msra.mxu0 %v7559
    %7601 = vmatprep.subr.mxu0 0.0
    %7602 = vmatpush1.msra.mxu0 %v7558
    %7603 = vmatprep.subr.mxu0 0.0
    %7604 = vmatpush1.msra.mxu0 %v7557
    %7605 = vmatprep.subr.mxu0 0.0
    %7606 = vmatpush2.msra.mxu0 0.0
    %7607 = vmatprep.subr.mxu0 0.0
    %7608 = vmatpush2.msra.mxu0 0.0
    %7609 = vmatprep.subr.mxu0 0.0
    %7610 = vmatpush2.msra.mxu0 0.0
    %7611 = vmatprep.subr.mxu0 0.0
    %7612 = vmatpush2.msra.mxu0 0.0
    %7613 = vmatprep.subr.mxu0 0.0
    %7614 = vmatpush2.msra.mxu0 0.0
    %7615 = vmatprep.subr.mxu0 0.0
    %7616 = vmatpush2.msra.mxu0 0.0
    %7617 = vmatprep.subr.mxu0 0.0
    %7618 = vmatpush2.msra.mxu0 0.0
    %7619 = vmatprep.subr.mxu0 0.0
    %7620 = vmatpush2.msra.mxu0 0.0
    %7621 = vmatprep.subr.mxu0 0.0
    %7622 = vmatpush2.msra.mxu0 0.0
    %7623 = vmatprep.subr.mxu0 0.0
    %7624 = vmatpush2.msra.mxu0 0.0
    %7625 = vmatprep.subr.mxu0 0.0
    %7626 = vmatpush2.msra.mxu0 0.0
    %7627 = vmatprep.subr.mxu0 0.0
    %7628 = vmatpush2.msra.mxu0 0.0
    %7629 = vmatprep.subr.mxu0 0.0
    %7630 = vmatpush2.msra.mxu0 0.0
    %7631 = vmatprep.subr.mxu0 0.0
    %7632 = vmatpush2.msra.mxu0 0.0
    %7633 = vmatprep.subr.mxu0 0.0
    %7634 = vmatpush2.msra.mxu0 0.0
    %7635 = vmatprep.subr.mxu0 0.0
    %7636 = vmatpush2.msra.mxu0 0.0
    %7637 = vmatprep.mubr.f32.mxu0 0.0
    %7638 = vmatmul.mubr.f32.gmra.mxu0 %v7537
    %v7639 = vpop.f32.mrf.mxu0
    %v7640 = vadd.f32 0.0, %v7639
    %v7641 = vpop.f32.mrf.mxu0
    %7642 = vmatprep.mubr.f32.mxu0 0.0
    %7643 = vmatmul.mubr.f32.gmra.mxu0 %v7538
    %v7644 = vpop.f32.mrf.mxu0
    %v7645 = vadd.f32 0.0, %v7644
    %v7646 = vpop.f32.mrf.mxu0
    %7647 = vdwg.mxu0
    %7648 = vmatprep.subr.mxu0 0.0
    %7649 = vmatpush1.msra.mxu0 %v7555
    %7650 = vmatprep.subr.mxu0 0.0
    %7651 = vmatpush1.msra.mxu0 %v7554
    %7652 = vmatprep.subr.mxu0 0.0
    %7653 = vmatpush1.msra.mxu0 %v7553
    %7654 = vmatprep.subr.mxu0 0.0
    %7655 = vmatpush1.msra.mxu0 %v7552
    %7656 = vmatprep.subr.mxu0 0.0
    %7657 = vmatpush1.msra.mxu0 %v7551
    %7658 = vmatprep.subr.mxu0 0.0
    %7659 = vmatpush1.msra.mxu0 %v7550
    %7660 = vmatprep.subr.mxu0 0.0
    %7661 = vmatpush1.msra.mxu0 %v7549
    %7662 = vmatprep.subr.mxu0 0.0
    %7663 = vmatpush1.msra.mxu0 %v7548
    %7664 = vmatprep.subr.mxu0 0.0
    %7665 = vmatpush1.msra.mxu0 %v7547
    %7666 = vmatprep.subr.mxu0 0.0
    %7667 = vmatpush1.msra.mxu0 %v7546
    %7668 = vmatprep.subr.mxu0 0.0
    %7669 = vmatpush1.msra.mxu0 %v7545
    %7670 = vmatprep.subr.mxu0 0.0
    %7671 = vmatpush1.msra.mxu0 %v7544
    %7672 = vmatprep.subr.mxu0 0.0
    %7673 = vmatpush1.msra.mxu0 %v7543
    %7674 = vmatprep.subr.mxu0 0.0
    %7675 = vmatpush1.msra.mxu0 %v7542
    %7676 = vmatprep.subr.mxu0 0.0
    %7677 = vmatpush1.msra.mxu0 %v7541
    %7678 = vmatprep.subr.mxu0 0.0
    %7679 = vmatpush1.msra.mxu0 %v7540
    %7680 = vmatprep.subr.mxu0 0.0
    %7681 = vmatpush2.msra.mxu0 0.0
    %7682 = vmatprep.subr.mxu0 0.0
    %7683 = vmatpush2.msra.mxu0 0.0
    %7684 = vmatprep.subr.mxu0 0.0
    %7685 = vmatpush2.msra.mxu0 0.0
    %7686 = vmatprep.subr.mxu0 0.0
    %7687 = vmatpush2.msra.mxu0 0.0
    %7688 = vmatprep.subr.mxu0 0.0
    %7689 = vmatpush2.msra.mxu0 0.0
    %7690 = vmatprep.subr.mxu0 0.0
    %7691 = vmatpush2.msra.mxu0 0.0
    %7692 = vmatprep.subr.mxu0 0.0
    %7693 = vmatpush2.msra.mxu0 0.0
    %7694 = vmatprep.subr.mxu0 0.0
    %7695 = vmatpush2.msra.mxu0 0.0
    %7696 = vmatprep.subr.mxu0 0.0
    %7697 = vmatpush2.msra.mxu0 0.0
    %7698 = vmatprep.subr.mxu0 0.0
    %7699 = vmatpush2.msra.mxu0 0.0
    %7700 = vmatprep.subr.mxu0 0.0
    %7701 = vmatpush2.msra.mxu0 0.0
    %7702 = vmatprep.subr.mxu0 0.0
    %7703 = vmatpush2.msra.mxu0 0.0
    %7704 = vmatprep.subr.mxu0 0.0
    %7705 = vmatpush2.msra.mxu0 0.0
    %7706 = vmatprep.subr.mxu0 0.0
    %7707 = vmatpush2.msra.mxu0 0.0
    %7708 = vmatprep.subr.mxu0 0.0
    %7709 = vmatpush2.msra.mxu0 0.0
    %7710 = vmatprep.subr.mxu0 0.0
    %7711 = vmatpush2.msra.mxu0 0.0
    %7712 = vmatprep.mubr.f32.mxu0 0.0
    %7713 = vmatmul.mubr.f32.gmra.mxu0 %v7073
    %v7714 = vpop.f32.mrf.mxu0
    %v7715 = vadd.f32 %v7640, %v7714
    %v7716 = vpop.f32.mrf.mxu0
    %7717 = vmatprep.mubr.f32.mxu0 0.0
    %7718 = vmatmul.mubr.f32.gmra.mxu0 %v7074
    %v7719 = vpop.f32.mrf.mxu0
    %v7720 = vadd.f32 %v7645, %v7719
    %v7721 = vpop.f32.mrf.mxu0
    %7722 = vdwg.mxu0
    %s7723 = scalar_lea.vmem [#allocation10], 5
    %v7724 = vld [vmem:[%s7723] sm:$0x1]
    %v7726 = vlaneseq
    %v7727 = vshrl.u32 %v7726, 7
    %v7728 = vsub.s32 0, %v7727
    %v7729 = vrot.slane %v7724, %v7728
    %v7731 = vadd.f32 %v7715, %v7729
    %v7732 = vadd.f32 %v7720, %v7729
    %s7733 = scalar_lea.vmem [#allocation12], 256
    %v7734 = vld [vmem:[%s7733] sm:$0xff]
    %v7735 = vld [vmem:[%s7733 + $0x8] sm:$0xff]
    %v7736 = vld [vmem:[%s7733 + $0x10] sm:$0xff]
    %v7737 = vld [vmem:[%s7733 + $0x18] sm:$0xff]
    %v7738 = vld [vmem:[%s7733 + $0x20] sm:$0xff]
    %v7739 = vld [vmem:[%s7733 + $0x28] sm:$0xff]
    %v7740 = vld [vmem:[%s7733 + $0x30] sm:$0xff]
    %v7741 = vld [vmem:[%s7733 + $0x38] sm:$0xff]
    %v7742 = vld [vmem:[%s7733 + $0x40] sm:$0xff]
    %v7743 = vld [vmem:[%s7733 + $0x48] sm:$0xff]
    %v7744 = vld [vmem:[%s7733 + $0x50] sm:$0xff]
    %v7745 = vld [vmem:[%s7733 + $0x58] sm:$0xff]
    %v7746 = vld [vmem:[%s7733 + $0x60] sm:$0xff]
    %v7747 = vld [vmem:[%s7733 + $0x68] sm:$0xff]
    %v7748 = vld [vmem:[%s7733 + $0x70] sm:$0xff]
    %v7749 = vld [vmem:[%s7733 + $0x78] sm:$0xff]
    %v7750 = vld [vmem:[%s7733 + $0x80] sm:$0xff]
    %v7751 = vld [vmem:[%s7733 + $0x88] sm:$0xff]
    %v7752 = vld [vmem:[%s7733 + $0x90] sm:$0xff]
    %v7753 = vld [vmem:[%s7733 + $0x98] sm:$0xff]
    %v7754 = vld [vmem:[%s7733 + $0xa0] sm:$0xff]
    %v7755 = vld [vmem:[%s7733 + $0xa8] sm:$0xff]
    %v7756 = vld [vmem:[%s7733 + $0xb0] sm:$0xff]
    %v7757 = vld [vmem:[%s7733 + $0xb8] sm:$0xff]
    %v7758 = vld [vmem:[%s7733 + $0xc0] sm:$0xff]
    %v7759 = vld [vmem:[%s7733 + $0xc8] sm:$0xff]
    %v7760 = vld [vmem:[%s7733 + $0xd0] sm:$0xff]
    %v7761 = vld [vmem:[%s7733 + $0xd8] sm:$0xff]
    %v7762 = vld [vmem:[%s7733 + $0xe0] sm:$0xff]
    %v7763 = vld [vmem:[%s7733 + $0xe8] sm:$0xff]
    %v7764 = vld [vmem:[%s7733 + $0xf0] sm:$0xff]
    %v7765 = vld [vmem:[%s7733 + $0xf8] sm:$0xff]
    %s7766 = scalar_lea.vmem [#allocation13], 256
    %v7767 = vld [vmem:[%s7766] sm:$0xff]
    %v7768 = vld [vmem:[%s7766 + $0x8] sm:$0xff]
    %v7769 = vld [vmem:[%s7766 + $0x10] sm:$0xff]
    %v7770 = vld [vmem:[%s7766 + $0x18] sm:$0xff]
    %v7771 = vld [vmem:[%s7766 + $0x20] sm:$0xff]
    %v7772 = vld [vmem:[%s7766 + $0x28] sm:$0xff]
    %v7773 = vld [vmem:[%s7766 + $0x30] sm:$0xff]
    %v7774 = vld [vmem:[%s7766 + $0x38] sm:$0xff]
    %v7775 = vld [vmem:[%s7766 + $0x40] sm:$0xff]
    %v7776 = vld [vmem:[%s7766 + $0x48] sm:$0xff]
    %v7777 = vld [vmem:[%s7766 + $0x50] sm:$0xff]
    %v7778 = vld [vmem:[%s7766 + $0x58] sm:$0xff]
    %v7779 = vld [vmem:[%s7766 + $0x60] sm:$0xff]
    %v7780 = vld [vmem:[%s7766 + $0x68] sm:$0xff]
    %v7781 = vld [vmem:[%s7766 + $0x70] sm:$0xff]
    %v7782 = vld [vmem:[%s7766 + $0x78] sm:$0xff]
    %v7783 = vld [vmem:[%s7766 + $0x80] sm:$0xff]
    %v7784 = vld [vmem:[%s7766 + $0x88] sm:$0xff]
    %v7785 = vld [vmem:[%s7766 + $0x90] sm:$0xff]
    %v7786 = vld [vmem:[%s7766 + $0x98] sm:$0xff]
    %v7787 = vld [vmem:[%s7766 + $0xa0] sm:$0xff]
    %v7788 = vld [vmem:[%s7766 + $0xa8] sm:$0xff]
    %v7789 = vld [vmem:[%s7766 + $0xb0] sm:$0xff]
    %v7790 = vld [vmem:[%s7766 + $0xb8] sm:$0xff]
    %v7791 = vld [vmem:[%s7766 + $0xc0] sm:$0xff]
    %v7792 = vld [vmem:[%s7766 + $0xc8] sm:$0xff]
    %v7793 = vld [vmem:[%s7766 + $0xd0] sm:$0xff]
    %v7794 = vld [vmem:[%s7766 + $0xd8] sm:$0xff]
    %v7795 = vld [vmem:[%s7766 + $0xe0] sm:$0xff]
    %v7796 = vld [vmem:[%s7766 + $0xe8] sm:$0xff]
    %v7797 = vld [vmem:[%s7766 + $0xf0] sm:$0xff]
    %v7798 = vld [vmem:[%s7766 + $0xf8] sm:$0xff]
    %7799 = vmatprep.subr.mxu0 %v7798
    %7800 = vmatpush1.msra.mxu0 %v7797
    %7801 = vmatprep.subr.mxu0 %v7796
    %7802 = vmatpush1.msra.mxu0 %v7795
    %7803 = vmatprep.subr.mxu0 %v7794
    %7804 = vmatpush1.msra.mxu0 %v7793
    %7805 = vmatprep.subr.mxu0 %v7792
    %7806 = vmatpush1.msra.mxu0 %v7791
    %7807 = vmatprep.subr.mxu0 %v7790
    %7808 = vmatpush1.msra.mxu0 %v7789
    %7809 = vmatprep.subr.mxu0 %v7788
    %7810 = vmatpush1.msra.mxu0 %v7787
    %7811 = vmatprep.subr.mxu0 %v7786
    %7812 = vmatpush1.msra.mxu0 %v7785
    %7813 = vmatprep.subr.mxu0 %v7784
    %7814 = vmatpush1.msra.mxu0 %v7783
    %7815 = vmatprep.subr.mxu0 %v7782
    %7816 = vmatpush1.msra.mxu0 %v7781
    %7817 = vmatprep.subr.mxu0 %v7780
    %7818 = vmatpush1.msra.mxu0 %v7779
    %7819 = vmatprep.subr.mxu0 %v7778
    %7820 = vmatpush1.msra.mxu0 %v7777
    %7821 = vmatprep.subr.mxu0 %v7776
    %7822 = vmatpush1.msra.mxu0 %v7775
    %7823 = vmatprep.subr.mxu0 %v7774
    %7824 = vmatpush1.msra.mxu0 %v7773
    %7825 = vmatprep.subr.mxu0 %v7772
    %7826 = vmatpush1.msra.mxu0 %v7771
    %7827 = vmatprep.subr.mxu0 %v7770
    %7828 = vmatpush1.msra.mxu0 %v7769
    %7829 = vmatprep.subr.mxu0 %v7768
    %7830 = vmatpush1.msra.mxu0 %v7767
    %7831 = vmatprep.subr.mxu0 0.0
    %7832 = vmatpush2.msra.mxu0 0.0
    %7833 = vmatprep.subr.mxu0 0.0
    %7834 = vmatpush2.msra.mxu0 0.0
    %7835 = vmatprep.subr.mxu0 0.0
    %7836 = vmatpush2.msra.mxu0 0.0
    %7837 = vmatprep.subr.mxu0 0.0
    %7838 = vmatpush2.msra.mxu0 0.0
    %7839 = vmatprep.subr.mxu0 0.0
    %7840 = vmatpush2.msra.mxu0 0.0
    %7841 = vmatprep.subr.mxu0 0.0
    %7842 = vmatpush2.msra.mxu0 0.0
    %7843 = vmatprep.subr.mxu0 0.0
    %7844 = vmatpush2.msra.mxu0 0.0
    %7845 = vmatprep.subr.mxu0 0.0
    %7846 = vmatpush2.msra.mxu0 0.0
    %7847 = vmatprep.subr.mxu0 0.0
    %7848 = vmatpush2.msra.mxu0 0.0
    %7849 = vmatprep.subr.mxu0 0.0
    %7850 = vmatpush2.msra.mxu0 0.0
    %7851 = vmatprep.subr.mxu0 0.0
    %7852 = vmatpush2.msra.mxu0 0.0
    %7853 = vmatprep.subr.mxu0 0.0
    %7854 = vmatpush2.msra.mxu0 0.0
    %7855 = vmatprep.subr.mxu0 0.0
    %7856 = vmatpush2.msra.mxu0 0.0
    %7857 = vmatprep.subr.mxu0 0.0
    %7858 = vmatpush2.msra.mxu0 0.0
    %7859 = vmatprep.subr.mxu0 0.0
    %7860 = vmatpush2.msra.mxu0 0.0
    %7861 = vmatprep.subr.mxu0 0.0
    %7862 = vmatpush2.msra.mxu0 0.0
    %7863 = vmatprep.mubr.f32.mxu0 0.0
    %7864 = vmatmul.mubr.f32.gmra.mxu0 %v7731
    %v7865 = vpop.f32.mrf.mxu0
    %v7866 = vadd.f32 0.0, %v7865
    %v7867 = vpop.f32.mrf.mxu0
    %v7868 = vadd.f32 0.0, %v7867
    %7869 = vmatprep.mubr.f32.mxu0 0.0
    %7870 = vmatmul.mubr.f32.gmra.mxu0 %v7732
    %v7871 = vpop.f32.mrf.mxu0
    %v7872 = vadd.f32 0.0, %v7871
    %v7873 = vpop.f32.mrf.mxu0
    %v7874 = vadd.f32 0.0, %v7873
    %7875 = vdwg.mxu0
    %7876 = vmatprep.subr.mxu0 %v7765
    %7877 = vmatpush1.msra.mxu0 %v7764
    %7878 = vmatprep.subr.mxu0 %v7763
    %7879 = vmatpush1.msra.mxu0 %v7762
    %7880 = vmatprep.subr.mxu0 %v7761
    %7881 = vmatpush1.msra.mxu0 %v7760
    %7882 = vmatprep.subr.mxu0 %v7759
    %7883 = vmatpush1.msra.mxu0 %v7758
    %7884 = vmatprep.subr.mxu0 %v7757
    %7885 = vmatpush1.msra.mxu0 %v7756
    %7886 = vmatprep.subr.mxu0 %v7755
    %7887 = vmatpush1.msra.mxu0 %v7754
    %7888 = vmatprep.subr.mxu0 %v7753
    %7889 = vmatpush1.msra.mxu0 %v7752
    %7890 = vmatprep.subr.mxu0 %v7751
    %7891 = vmatpush1.msra.mxu0 %v7750
    %7892 = vmatprep.subr.mxu0 %v7749
    %7893 = vmatpush1.msra.mxu0 %v7748
    %7894 = vmatprep.subr.mxu0 %v7747
    %7895 = vmatpush1.msra.mxu0 %v7746
    %7896 = vmatprep.subr.mxu0 %v7745
    %7897 = vmatpush1.msra.mxu0 %v7744
    %7898 = vmatprep.subr.mxu0 %v7743
    %7899 = vmatpush1.msra.mxu0 %v7742
    %7900 = vmatprep.subr.mxu0 %v7741
    %7901 = vmatpush1.msra.mxu0 %v7740
    %7902 = vmatprep.subr.mxu0 %v7739
    %7903 = vmatpush1.msra.mxu0 %v7738
    %7904 = vmatprep.subr.mxu0 %v7737
    %7905 = vmatpush1.msra.mxu0 %v7736
    %7906 = vmatprep.subr.mxu0 %v7735
    %7907 = vmatpush1.msra.mxu0 %v7734
    %7908 = vmatprep.subr.mxu0 0.0
    %7909 = vmatpush2.msra.mxu0 0.0
    %7910 = vmatprep.subr.mxu0 0.0
    %7911 = vmatpush2.msra.mxu0 0.0
    %7912 = vmatprep.subr.mxu0 0.0
    %7913 = vmatpush2.msra.mxu0 0.0
    %7914 = vmatprep.subr.mxu0 0.0
    %7915 = vmatpush2.msra.mxu0 0.0
    %7916 = vmatprep.subr.mxu0 0.0
    %7917 = vmatpush2.msra.mxu0 0.0
    %7918 = vmatprep.subr.mxu0 0.0
    %7919 = vmatpush2.msra.mxu0 0.0
    %7920 = vmatprep.subr.mxu0 0.0
    %7921 = vmatpush2.msra.mxu0 0.0
    %7922 = vmatprep.subr.mxu0 0.0
    %7923 = vmatpush2.msra.mxu0 0.0
    %7924 = vmatprep.subr.mxu0 0.0
    %7925 = vmatpush2.msra.mxu0 0.0
    %7926 = vmatprep.subr.mxu0 0.0
    %7927 = vmatpush2.msra.mxu0 0.0
    %7928 = vmatprep.subr.mxu0 0.0
    %7929 = vmatpush2.msra.mxu0 0.0
    %7930 = vmatprep.subr.mxu0 0.0
    %7931 = vmatpush2.msra.mxu0 0.0
    %7932 = vmatprep.subr.mxu0 0.0
    %7933 = vmatpush2.msra.mxu0 0.0
    %7934 = vmatprep.subr.mxu0 0.0
    %7935 = vmatpush2.msra.mxu0 0.0
    %7936 = vmatprep.subr.mxu0 0.0
    %7937 = vmatpush2.msra.mxu0 0.0
    %7938 = vmatprep.subr.mxu0 0.0
    %7939 = vmatpush2.msra.mxu0 0.0
    %7940 = vmatprep.mubr.f32.mxu0 0.0
    %7941 = vmatmul.mubr.f32.gmra.mxu0 %v5757
    %v7942 = vpop.f32.mrf.mxu0
    %v7943 = vadd.f32 %v7866, %v7942
    %v7944 = vpop.f32.mrf.mxu0
    %v7945 = vadd.f32 %v7868, %v7944
    %7946 = vmatprep.mubr.f32.mxu0 0.0
    %7947 = vmatmul.mubr.f32.gmra.mxu0 %v5758
    %v7948 = vpop.f32.mrf.mxu0
    %v7949 = vadd.f32 %v7872, %v7948
    %v7950 = vpop.f32.mrf.mxu0
    %v7951 = vadd.f32 %v7874, %v7950
    %7952 = vdwg.mxu0
    %v7953 = vsel %vm2933, %v7943, -1e+30
    %v7954 = vsel %vm2934, %v7949, -1e+30
    %v7955 = vsel %vm2935, %v7943, -1e+30
    %v7956 = vsel %vm2936, %v7949, -1e+30
    %v7957 = vsel %vm2937, %v7943, -1e+30
    %v7958 = vsel %vm2938, %v7949, -1e+30
    %v7959 = vsel %vm2939, %v7943, -1e+30
    %v7960 = vsel %vm2940, %v7949, -1e+30
    %v7961 = vsel %vm2941, %v7943, -1e+30
    %v7962 = vsel %vm2942, %v7949, -1e+30
    %v7963 = vsel %vm2943, %v7943, -1e+30
    %v7964 = vsel %vm2944, %v7949, -1e+30
    %v7965 = vsel %vm2945, %v7943, -1e+30
    %v7966 = vsel %vm2946, %v7949, -1e+30
    %v7967 = vsel %vm2947, %v7943, -1e+30
    %v7968 = vsel %vm2948, %v7949, -1e+30
    %v7969 = vsel %vm2949, %v7943, -1e+30
    %v7970 = vsel %vm2950, %v7949, -1e+30
    %v7971 = vsel %vm2951, %v7943, -1e+30
    %v7972 = vsel %vm2952, %v7949, -1e+30
    %v7973 = vsel %vm2953, %v7943, -1e+30
    %v7974 = vsel %vm2954, %v7949, -1e+30
    %v7975 = vsel %vm2955, %v7943, -1e+30
    %v7976 = vsel %vm2956, %v7949, -1e+30
    %v7977 = vsel %vm2957, %v7943, -1e+30
    %v7978 = vsel %vm2958, %v7949, -1e+30
    %v7979 = vsel %vm2959, %v7943, -1e+30
    %v7980 = vsel %vm2960, %v7949, -1e+30
    %v7981 = vsel %vm2961, %v7943, -1e+30
    %v7982 = vsel %vm2962, %v7949, -1e+30
    %v7983 = vsel %vm2963, %v7943, -1e+30
    %v7984 = vsel %vm2964, %v7949, -1e+30
    %v7985 = vmax.f32 %v7953, %v7954
    %v7986 = vrot.slane %v7985, 4
    %v7987 = vmax.f32 %v7985, %v7986
    %v7988 = vrot.slane %v7987, 2
    %v7989 = vmax.f32 %v7987, %v7988
    %v7990 = vrot.slane %v7989, 1
    %v7991 = vmax.f32 %v7989, %v7990
    %v7992 = vmax.f32 %v7955, %v7956
    %v7993 = vrot.slane %v7992, 4
    %v7994 = vmax.f32 %v7992, %v7993
    %v7995 = vrot.slane %v7994, 2
    %v7996 = vmax.f32 %v7994, %v7995
    %v7997 = vrot.slane %v7996, 1
    %v7998 = vmax.f32 %v7996, %v7997
    %v7999 = vmax.f32 %v7957, %v7958
    %v8000 = vrot.slane %v7999, 4
    %v8001 = vmax.f32 %v7999, %v8000
    %v8002 = vrot.slane %v8001, 2
    %v8003 = vmax.f32 %v8001, %v8002
    %v8004 = vrot.slane %v8003, 1
    %v8005 = vmax.f32 %v8003, %v8004
    %v8006 = vmax.f32 %v7959, %v7960
    %v8007 = vrot.slane %v8006, 4
    %v8008 = vmax.f32 %v8006, %v8007
    %v8009 = vrot.slane %v8008, 2
    %v8010 = vmax.f32 %v8008, %v8009
    %v8011 = vrot.slane %v8010, 1
    %v8012 = vmax.f32 %v8010, %v8011
    %v8013 = vmax.f32 %v7961, %v7962
    %v8014 = vrot.slane %v8013, 4
    %v8015 = vmax.f32 %v8013, %v8014
    %v8016 = vrot.slane %v8015, 2
    %v8017 = vmax.f32 %v8015, %v8016
    %v8018 = vrot.slane %v8017, 1
    %v8019 = vmax.f32 %v8017, %v8018
    %v8020 = vmax.f32 %v7963, %v7964
    %v8021 = vrot.slane %v8020, 4
    %v8022 = vmax.f32 %v8020, %v8021
    %v8023 = vrot.slane %v8022, 2
    %v8024 = vmax.f32 %v8022, %v8023
    %v8025 = vrot.slane %v8024, 1
    %v8026 = vmax.f32 %v8024, %v8025
    %v8027 = vmax.f32 %v7965, %v7966
    %v8028 = vrot.slane %v8027, 4
    %v8029 = vmax.f32 %v8027, %v8028
    %v8030 = vrot.slane %v8029, 2
    %v8031 = vmax.f32 %v8029, %v8030
    %v8032 = vrot.slane %v8031, 1
    %v8033 = vmax.f32 %v8031, %v8032
    %v8034 = vmax.f32 %v7967, %v7968
    %v8035 = vrot.slane %v8034, 4
    %v8036 = vmax.f32 %v8034, %v8035
    %v8037 = vrot.slane %v8036, 2
    %v8038 = vmax.f32 %v8036, %v8037
    %v8039 = vrot.slane %v8038, 1
    %v8040 = vmax.f32 %v8038, %v8039
    %v8041 = vmax.f32 %v7969, %v7970
    %v8042 = vrot.slane %v8041, 4
    %v8043 = vmax.f32 %v8041, %v8042
    %v8044 = vrot.slane %v8043, 2
    %v8045 = vmax.f32 %v8043, %v8044
    %v8046 = vrot.slane %v8045, 1
    %v8047 = vmax.f32 %v8045, %v8046
    %v8048 = vmax.f32 %v7971, %v7972
    %v8049 = vrot.slane %v8048, 4
    %v8050 = vmax.f32 %v8048, %v8049
    %v8051 = vrot.slane %v8050, 2
    %v8052 = vmax.f32 %v8050, %v8051
    %v8053 = vrot.slane %v8052, 1
    %v8054 = vmax.f32 %v8052, %v8053
    %v8055 = vmax.f32 %v7973, %v7974
    %v8056 = vrot.slane %v8055, 4
    %v8057 = vmax.f32 %v8055, %v8056
    %v8058 = vrot.slane %v8057, 2
    %v8059 = vmax.f32 %v8057, %v8058
    %v8060 = vrot.slane %v8059, 1
    %v8061 = vmax.f32 %v8059, %v8060
    %v8062 = vmax.f32 %v7975, %v7976
    %v8063 = vrot.slane %v8062, 4
    %v8064 = vmax.f32 %v8062, %v8063
    %v8065 = vrot.slane %v8064, 2
    %v8066 = vmax.f32 %v8064, %v8065
    %v8067 = vrot.slane %v8066, 1
    %v8068 = vmax.f32 %v8066, %v8067
    %v8069 = vmax.f32 %v7977, %v7978
    %v8070 = vrot.slane %v8069, 4
    %v8071 = vmax.f32 %v8069, %v8070
    %v8072 = vrot.slane %v8071, 2
    %v8073 = vmax.f32 %v8071, %v8072
    %v8074 = vrot.slane %v8073, 1
    %v8075 = vmax.f32 %v8073, %v8074
    %v8076 = vmax.f32 %v7979, %v7980
    %v8077 = vrot.slane %v8076, 4
    %v8078 = vmax.f32 %v8076, %v8077
    %v8079 = vrot.slane %v8078, 2
    %v8080 = vmax.f32 %v8078, %v8079
    %v8081 = vrot.slane %v8080, 1
    %v8082 = vmax.f32 %v8080, %v8081
    %v8083 = vmax.f32 %v7981, %v7982
    %v8084 = vrot.slane %v8083, 4
    %v8085 = vmax.f32 %v8083, %v8084
    %v8086 = vrot.slane %v8085, 2
    %v8087 = vmax.f32 %v8085, %v8086
    %v8088 = vrot.slane %v8087, 1
    %v8089 = vmax.f32 %v8087, %v8088
    %v8090 = vmax.f32 %v7983, %v7984
    %v8091 = vrot.slane %v8090, 4
    %v8092 = vmax.f32 %v8090, %v8091
    %v8093 = vrot.slane %v8092, 2
    %v8094 = vmax.f32 %v8092, %v8093
    %v8095 = vrot.slane %v8094, 1
    %v8096 = vmax.f32 %v8094, %v8095
    %v8097 = vmax.f32 %v7991, -1e+30
    %v8098 = vmax.f32 %v7998, -1e+30
    %v8099 = vmax.f32 %v8005, -1e+30
    %v8100 = vmax.f32 %v8012, -1e+30
    %v8101 = vmax.f32 %v8019, -1e+30
    %v8102 = vmax.f32 %v8026, -1e+30
    %v8103 = vmax.f32 %v8033, -1e+30
    %v8104 = vmax.f32 %v8040, -1e+30
    %v8105 = vmax.f32 %v8047, -1e+30
    %v8106 = vmax.f32 %v8054, -1e+30
    %v8107 = vmax.f32 %v8061, -1e+30
    %v8108 = vmax.f32 %v8068, -1e+30
    %v8109 = vmax.f32 %v8075, -1e+30
    %v8110 = vmax.f32 %v8082, -1e+30
    %v8111 = vmax.f32 %v8089, -1e+30
    %v8112 = vmax.f32 %v8096, -1e+30
    %v8113 = vsel %vm3157, %v7945, -1e+30
    %v8114 = vsel %vm3158, %v7951, -1e+30
    %v8115 = vsel %vm3159, %v7945, -1e+30
    %v8116 = vsel %vm3160, %v7951, -1e+30
    %v8117 = vsel %vm3161, %v7945, -1e+30
    %v8118 = vsel %vm3162, %v7951, -1e+30
    %v8119 = vsel %vm3163, %v7945, -1e+30
    %v8120 = vsel %vm3164, %v7951, -1e+30
    %v8121 = vsel %vm3165, %v7945, -1e+30
    %v8122 = vsel %vm3166, %v7951, -1e+30
    %v8123 = vsel %vm3167, %v7945, -1e+30
    %v8124 = vsel %vm3168, %v7951, -1e+30
    %v8125 = vsel %vm3169, %v7945, -1e+30
    %v8126 = vsel %vm3170, %v7951, -1e+30
    %v8127 = vsel %vm3171, %v7945, -1e+30
    %v8128 = vsel %vm3172, %v7951, -1e+30
    %v8129 = vsel %vm3173, %v7945, -1e+30
    %v8130 = vsel %vm3174, %v7951, -1e+30
    %v8131 = vsel %vm3175, %v7945, -1e+30
    %v8132 = vsel %vm3176, %v7951, -1e+30
    %v8133 = vsel %vm3177, %v7945, -1e+30
    %v8134 = vsel %vm3178, %v7951, -1e+30
    %v8135 = vsel %vm3179, %v7945, -1e+30
    %v8136 = vsel %vm3180, %v7951, -1e+30
    %v8137 = vsel %vm3181, %v7945, -1e+30
    %v8138 = vsel %vm3182, %v7951, -1e+30
    %v8139 = vsel %vm3183, %v7945, -1e+30
    %v8140 = vsel %vm3184, %v7951, -1e+30
    %v8141 = vsel %vm3185, %v7945, -1e+30
    %v8142 = vsel %vm3186, %v7951, -1e+30
    %v8143 = vsel %vm3187, %v7945, -1e+30
    %v8144 = vsel %vm3188, %v7951, -1e+30
    %v8145 = vmax.f32 %v8113, %v8114
    %v8146 = vrot.slane %v8145, 4
    %v8147 = vmax.f32 %v8145, %v8146
    %v8148 = vrot.slane %v8147, 2
    %v8149 = vmax.f32 %v8147, %v8148
    %v8150 = vrot.slane %v8149, 1
    %v8151 = vmax.f32 %v8149, %v8150
    %v8152 = vmax.f32 %v8115, %v8116
    %v8153 = vrot.slane %v8152, 4
    %v8154 = vmax.f32 %v8152, %v8153
    %v8155 = vrot.slane %v8154, 2
    %v8156 = vmax.f32 %v8154, %v8155
    %v8157 = vrot.slane %v8156, 1
    %v8158 = vmax.f32 %v8156, %v8157
    %v8159 = vmax.f32 %v8117, %v8118
    %v8160 = vrot.slane %v8159, 4
    %v8161 = vmax.f32 %v8159, %v8160
    %v8162 = vrot.slane %v8161, 2
    %v8163 = vmax.f32 %v8161, %v8162
    %v8164 = vrot.slane %v8163, 1
    %v8165 = vmax.f32 %v8163, %v8164
    %v8166 = vmax.f32 %v8119, %v8120
    %v8167 = vrot.slane %v8166, 4
    %v8168 = vmax.f32 %v8166, %v8167
    %v8169 = vrot.slane %v8168, 2
    %v8170 = vmax.f32 %v8168, %v8169
    %v8171 = vrot.slane %v8170, 1
    %v8172 = vmax.f32 %v8170, %v8171
    %v8173 = vmax.f32 %v8121, %v8122
    %v8174 = vrot.slane %v8173, 4
    %v8175 = vmax.f32 %v8173, %v8174
    %v8176 = vrot.slane %v8175, 2
    %v8177 = vmax.f32 %v8175, %v8176
    %v8178 = vrot.slane %v8177, 1
    %v8179 = vmax.f32 %v8177, %v8178
    %v8180 = vmax.f32 %v8123, %v8124
    %v8181 = vrot.slane %v8180, 4
    %v8182 = vmax.f32 %v8180, %v8181
    %v8183 = vrot.slane %v8182, 2
    %v8184 = vmax.f32 %v8182, %v8183
    %v8185 = vrot.slane %v8184, 1
    %v8186 = vmax.f32 %v8184, %v8185
    %v8187 = vmax.f32 %v8125, %v8126
    %v8188 = vrot.slane %v8187, 4
    %v8189 = vmax.f32 %v8187, %v8188
    %v8190 = vrot.slane %v8189, 2
    %v8191 = vmax.f32 %v8189, %v8190
    %v8192 = vrot.slane %v8191, 1
    %v8193 = vmax.f32 %v8191, %v8192
    %v8194 = vmax.f32 %v8127, %v8128
    %v8195 = vrot.slane %v8194, 4
    %v8196 = vmax.f32 %v8194, %v8195
    %v8197 = vrot.slane %v8196, 2
    %v8198 = vmax.f32 %v8196, %v8197
    %v8199 = vrot.slane %v8198, 1
    %v8200 = vmax.f32 %v8198, %v8199
    %v8201 = vmax.f32 %v8129, %v8130
    %v8202 = vrot.slane %v8201, 4
    %v8203 = vmax.f32 %v8201, %v8202
    %v8204 = vrot.slane %v8203, 2
    %v8205 = vmax.f32 %v8203, %v8204
    %v8206 = vrot.slane %v8205, 1
    %v8207 = vmax.f32 %v8205, %v8206
    %v8208 = vmax.f32 %v8131, %v8132
    %v8209 = vrot.slane %v8208, 4
    %v8210 = vmax.f32 %v8208, %v8209
    %v8211 = vrot.slane %v8210, 2
    %v8212 = vmax.f32 %v8210, %v8211
    %v8213 = vrot.slane %v8212, 1
    %v8214 = vmax.f32 %v8212, %v8213
    %v8215 = vmax.f32 %v8133, %v8134
    %v8216 = vrot.slane %v8215, 4
    %v8217 = vmax.f32 %v8215, %v8216
    %v8218 = vrot.slane %v8217, 2
    %v8219 = vmax.f32 %v8217, %v8218
    %v8220 = vrot.slane %v8219, 1
    %v8221 = vmax.f32 %v8219, %v8220
    %v8222 = vmax.f32 %v8135, %v8136
    %v8223 = vrot.slane %v8222, 4
    %v8224 = vmax.f32 %v8222, %v8223
    %v8225 = vrot.slane %v8224, 2
    %v8226 = vmax.f32 %v8224, %v8225
    %v8227 = vrot.slane %v8226, 1
    %v8228 = vmax.f32 %v8226, %v8227
    %v8229 = vmax.f32 %v8137, %v8138
    %v8230 = vrot.slane %v8229, 4
    %v8231 = vmax.f32 %v8229, %v8230
    %v8232 = vrot.slane %v8231, 2
    %v8233 = vmax.f32 %v8231, %v8232
    %v8234 = vrot.slane %v8233, 1
    %v8235 = vmax.f32 %v8233, %v8234
    %v8236 = vmax.f32 %v8139, %v8140
    %v8237 = vrot.slane %v8236, 4
    %v8238 = vmax.f32 %v8236, %v8237
    %v8239 = vrot.slane %v8238, 2
    %v8240 = vmax.f32 %v8238, %v8239
    %v8241 = vrot.slane %v8240, 1
    %v8242 = vmax.f32 %v8240, %v8241
    %v8243 = vmax.f32 %v8141, %v8142
    %v8244 = vrot.slane %v8243, 4
    %v8245 = vmax.f32 %v8243, %v8244
    %v8246 = vrot.slane %v8245, 2
    %v8247 = vmax.f32 %v8245, %v8246
    %v8248 = vrot.slane %v8247, 1
    %v8249 = vmax.f32 %v8247, %v8248
    %v8250 = vmax.f32 %v8143, %v8144
    %v8251 = vrot.slane %v8250, 4
    %v8252 = vmax.f32 %v8250, %v8251
    %v8253 = vrot.slane %v8252, 2
    %v8254 = vmax.f32 %v8252, %v8253
    %v8255 = vrot.slane %v8254, 1
    %v8256 = vmax.f32 %v8254, %v8255
    %v8257 = vmax.f32 %v8097, %v8151
    %v8258 = vmax.f32 %v8098, %v8158
    %v8259 = vmax.f32 %v8099, %v8165
    %v8260 = vmax.f32 %v8100, %v8172
    %v8261 = vmax.f32 %v8101, %v8179
    %v8262 = vmax.f32 %v8102, %v8186
    %v8263 = vmax.f32 %v8103, %v8193
    %v8264 = vmax.f32 %v8104, %v8200
    %v8265 = vmax.f32 %v8105, %v8207
    %v8266 = vmax.f32 %v8106, %v8214
    %v8267 = vmax.f32 %v8107, %v8221
    %v8268 = vmax.f32 %v8108, %v8228
    %v8269 = vmax.f32 %v8109, %v8235
    %v8270 = vmax.f32 %v8110, %v8242
    %v8271 = vmax.f32 %v8111, %v8249
    %v8272 = vmax.f32 %v8112, %v8256
    %v8289 = vsel %vm3369, %v8258, %v8257
    %v8290 = vsel %vm3371, %v8259, %v8289
    %v8291 = vsel %vm3373, %v8260, %v8290
    %v8292 = vsel %vm3375, %v8261, %v8291
    %v8293 = vsel %vm3377, %v8262, %v8292
    %v8294 = vsel %vm3379, %v8263, %v8293
    %v8295 = vsel %vm3381, %v8264, %v8294
    %v8296 = vsel %vm3369, %v8266, %v8265
    %v8297 = vsel %vm3371, %v8267, %v8296
    %v8298 = vsel %vm3373, %v8268, %v8297
    %v8299 = vsel %vm3375, %v8269, %v8298
    %v8300 = vsel %vm3377, %v8270, %v8299
    %v8301 = vsel %vm3379, %v8271, %v8300
    %v8302 = vsel %vm3381, %v8272, %v8301
    %v8305 = vsel %vm3351, %v8295, 0.0
    %v8306 = vsel %vm3352, %v8302, 0.0
    %s8307 = scalar_lea.vmem [#allocation15], 128
    %v8308 = vld [vmem:[%s8307] sm:$0xff]
    %v8309 = vld [vmem:[%s8307 + $0x8] sm:$0xff]
    %v8310 = vld [vmem:[%s8307 + $0x10] sm:$0xff]
    %v8311 = vld [vmem:[%s8307 + $0x18] sm:$0xff]
    %v8312 = vld [vmem:[%s8307 + $0x20] sm:$0xff]
    %v8313 = vld [vmem:[%s8307 + $0x28] sm:$0xff]
    %v8314 = vld [vmem:[%s8307 + $0x30] sm:$0xff]
    %v8315 = vld [vmem:[%s8307 + $0x38] sm:$0xff]
    %v8316 = vld [vmem:[%s8307 + $0x40] sm:$0xff]
    %v8317 = vld [vmem:[%s8307 + $0x48] sm:$0xff]
    %v8318 = vld [vmem:[%s8307 + $0x50] sm:$0xff]
    %v8319 = vld [vmem:[%s8307 + $0x58] sm:$0xff]
    %v8320 = vld [vmem:[%s8307 + $0x60] sm:$0xff]
    %v8321 = vld [vmem:[%s8307 + $0x68] sm:$0xff]
    %v8322 = vld [vmem:[%s8307 + $0x70] sm:$0xff]
    %v8323 = vld [vmem:[%s8307 + $0x78] sm:$0xff]
    %s8324 = scalar_lea.vmem [#allocation16], 128
    %v8325 = vld [vmem:[%s8324] sm:$0xff]
    %v8326 = vld [vmem:[%s8324 + $0x8] sm:$0xff]
    %v8327 = vld [vmem:[%s8324 + $0x10] sm:$0xff]
    %v8328 = vld [vmem:[%s8324 + $0x18] sm:$0xff]
    %v8329 = vld [vmem:[%s8324 + $0x20] sm:$0xff]
    %v8330 = vld [vmem:[%s8324 + $0x28] sm:$0xff]
    %v8331 = vld [vmem:[%s8324 + $0x30] sm:$0xff]
    %v8332 = vld [vmem:[%s8324 + $0x38] sm:$0xff]
    %v8333 = vld [vmem:[%s8324 + $0x40] sm:$0xff]
    %v8334 = vld [vmem:[%s8324 + $0x48] sm:$0xff]
    %v8335 = vld [vmem:[%s8324 + $0x50] sm:$0xff]
    %v8336 = vld [vmem:[%s8324 + $0x58] sm:$0xff]
    %v8337 = vld [vmem:[%s8324 + $0x60] sm:$0xff]
    %v8338 = vld [vmem:[%s8324 + $0x68] sm:$0xff]
    %v8339 = vld [vmem:[%s8324 + $0x70] sm:$0xff]
    %v8340 = vld [vmem:[%s8324 + $0x78] sm:$0xff]
    %8341 = vmatprep.subr.mxu0 0.0
    %8342 = vmatpush1.msra.mxu0 %v8340
    %8343 = vmatprep.subr.mxu0 0.0
    %8344 = vmatpush1.msra.mxu0 %v8339
    %8345 = vmatprep.subr.mxu0 0.0
    %8346 = vmatpush1.msra.mxu0 %v8338
    %8347 = vmatprep.subr.mxu0 0.0
    %8348 = vmatpush1.msra.mxu0 %v8337
    %8349 = vmatprep.subr.mxu0 0.0
    %8350 = vmatpush1.msra.mxu0 %v8336
    %8351 = vmatprep.subr.mxu0 0.0
    %8352 = vmatpush1.msra.mxu0 %v8335
    %8353 = vmatprep.subr.mxu0 0.0
    %8354 = vmatpush1.msra.mxu0 %v8334
    %8355 = vmatprep.subr.mxu0 0.0
    %8356 = vmatpush1.msra.mxu0 %v8333
    %8357 = vmatprep.subr.mxu0 0.0
    %8358 = vmatpush1.msra.mxu0 %v8332
    %8359 = vmatprep.subr.mxu0 0.0
    %8360 = vmatpush1.msra.mxu0 %v8331
    %8361 = vmatprep.subr.mxu0 0.0
    %8362 = vmatpush1.msra.mxu0 %v8330
    %8363 = vmatprep.subr.mxu0 0.0
    %8364 = vmatpush1.msra.mxu0 %v8329
    %8365 = vmatprep.subr.mxu0 0.0
    %8366 = vmatpush1.msra.mxu0 %v8328
    %8367 = vmatprep.subr.mxu0 0.0
    %8368 = vmatpush1.msra.mxu0 %v8327
    %8369 = vmatprep.subr.mxu0 0.0
    %8370 = vmatpush1.msra.mxu0 %v8326
    %8371 = vmatprep.subr.mxu0 0.0
    %8372 = vmatpush1.msra.mxu0 %v8325
    %8373 = vmatprep.subr.mxu0 0.0
    %8374 = vmatpush2.msra.mxu0 0.0
    %8375 = vmatprep.subr.mxu0 0.0
    %8376 = vmatpush2.msra.mxu0 0.0
    %8377 = vmatprep.subr.mxu0 0.0
    %8378 = vmatpush2.msra.mxu0 0.0
    %8379 = vmatprep.subr.mxu0 0.0
    %8380 = vmatpush2.msra.mxu0 0.0
    %8381 = vmatprep.subr.mxu0 0.0
    %8382 = vmatpush2.msra.mxu0 0.0
    %8383 = vmatprep.subr.mxu0 0.0
    %8384 = vmatpush2.msra.mxu0 0.0
    %8385 = vmatprep.subr.mxu0 0.0
    %8386 = vmatpush2.msra.mxu0 0.0
    %8387 = vmatprep.subr.mxu0 0.0
    %8388 = vmatpush2.msra.mxu0 0.0
    %8389 = vmatprep.subr.mxu0 0.0
    %8390 = vmatpush2.msra.mxu0 0.0
    %8391 = vmatprep.subr.mxu0 0.0
    %8392 = vmatpush2.msra.mxu0 0.0
    %8393 = vmatprep.subr.mxu0 0.0
    %8394 = vmatpush2.msra.mxu0 0.0
    %8395 = vmatprep.subr.mxu0 0.0
    %8396 = vmatpush2.msra.mxu0 0.0
    %8397 = vmatprep.subr.mxu0 0.0
    %8398 = vmatpush2.msra.mxu0 0.0
    %8399 = vmatprep.subr.mxu0 0.0
    %8400 = vmatpush2.msra.mxu0 0.0
    %8401 = vmatprep.subr.mxu0 0.0
    %8402 = vmatpush2.msra.mxu0 0.0
    %8403 = vmatprep.subr.mxu0 0.0
    %8404 = vmatpush2.msra.mxu0 0.0
    %8405 = vmatprep.mubr.f32.mxu0 0.0
    %8406 = vmatmul.mubr.f32.gmra.mxu0 %v7731
    %v8407 = vpop.f32.mrf.mxu0
    %v8408 = vadd.f32 0.0, %v8407
    %v8409 = vpop.f32.mrf.mxu0
    %8410 = vmatprep.mubr.f32.mxu0 0.0
    %8411 = vmatmul.mubr.f32.gmra.mxu0 %v7732
    %v8412 = vpop.f32.mrf.mxu0
    %v8413 = vadd.f32 0.0, %v8412
    %v8414 = vpop.f32.mrf.mxu0
    %8415 = vdwg.mxu0
    %8416 = vmatprep.subr.mxu0 0.0
    %8417 = vmatpush1.msra.mxu0 %v8323
    %8418 = vmatprep.subr.mxu0 0.0
    %8419 = vmatpush1.msra.mxu0 %v8322
    %8420 = vmatprep.subr.mxu0 0.0
    %8421 = vmatpush1.msra.mxu0 %v8321
    %8422 = vmatprep.subr.mxu0 0.0
    %8423 = vmatpush1.msra.mxu0 %v8320
    %8424 = vmatprep.subr.mxu0 0.0
    %8425 = vmatpush1.msra.mxu0 %v8319
    %8426 = vmatprep.subr.mxu0 0.0
    %8427 = vmatpush1.msra.mxu0 %v8318
    %8428 = vmatprep.subr.mxu0 0.0
    %8429 = vmatpush1.msra.mxu0 %v8317
    %8430 = vmatprep.subr.mxu0 0.0
    %8431 = vmatpush1.msra.mxu0 %v8316
    %8432 = vmatprep.subr.mxu0 0.0
    %8433 = vmatpush1.msra.mxu0 %v8315
    %8434 = vmatprep.subr.mxu0 0.0
    %8435 = vmatpush1.msra.mxu0 %v8314
    %8436 = vmatprep.subr.mxu0 0.0
    %8437 = vmatpush1.msra.mxu0 %v8313
    %8438 = vmatprep.subr.mxu0 0.0
    %8439 = vmatpush1.msra.mxu0 %v8312
    %8440 = vmatprep.subr.mxu0 0.0
    %8441 = vmatpush1.msra.mxu0 %v8311
    %8442 = vmatprep.subr.mxu0 0.0
    %8443 = vmatpush1.msra.mxu0 %v8310
    %8444 = vmatprep.subr.mxu0 0.0
    %8445 = vmatpush1.msra.mxu0 %v8309
    %8446 = vmatprep.subr.mxu0 0.0
    %8447 = vmatpush1.msra.mxu0 %v8308
    %8448 = vmatprep.subr.mxu0 0.0
    %8449 = vmatpush2.msra.mxu0 0.0
    %8450 = vmatprep.subr.mxu0 0.0
    %8451 = vmatpush2.msra.mxu0 0.0
    %8452 = vmatprep.subr.mxu0 0.0
    %8453 = vmatpush2.msra.mxu0 0.0
    %8454 = vmatprep.subr.mxu0 0.0
    %8455 = vmatpush2.msra.mxu0 0.0
    %8456 = vmatprep.subr.mxu0 0.0
    %8457 = vmatpush2.msra.mxu0 0.0
    %8458 = vmatprep.subr.mxu0 0.0
    %8459 = vmatpush2.msra.mxu0 0.0
    %8460 = vmatprep.subr.mxu0 0.0
    %8461 = vmatpush2.msra.mxu0 0.0
    %8462 = vmatprep.subr.mxu0 0.0
    %8463 = vmatpush2.msra.mxu0 0.0
    %8464 = vmatprep.subr.mxu0 0.0
    %8465 = vmatpush2.msra.mxu0 0.0
    %8466 = vmatprep.subr.mxu0 0.0
    %8467 = vmatpush2.msra.mxu0 0.0
    %8468 = vmatprep.subr.mxu0 0.0
    %8469 = vmatpush2.msra.mxu0 0.0
    %8470 = vmatprep.subr.mxu0 0.0
    %8471 = vmatpush2.msra.mxu0 0.0
    %8472 = vmatprep.subr.mxu0 0.0
    %8473 = vmatpush2.msra.mxu0 0.0
    %8474 = vmatprep.subr.mxu0 0.0
    %8475 = vmatpush2.msra.mxu0 0.0
    %8476 = vmatprep.subr.mxu0 0.0
    %8477 = vmatpush2.msra.mxu0 0.0
    %8478 = vmatprep.subr.mxu0 0.0
    %8479 = vmatpush2.msra.mxu0 0.0
    %8480 = vmatprep.mubr.f32.mxu0 0.0
    %8481 = vmatmul.mubr.f32.gmra.mxu0 %v5757
    %v8482 = vpop.f32.mrf.mxu0
    %v8483 = vadd.f32 %v8408, %v8482
    %v8484 = vpop.f32.mrf.mxu0
    %8485 = vmatprep.mubr.f32.mxu0 0.0
    %8486 = vmatmul.mubr.f32.gmra.mxu0 %v5758
    %v8487 = vpop.f32.mrf.mxu0
    %v8488 = vadd.f32 %v8413, %v8487
    %v8489 = vpop.f32.mrf.mxu0
    %8490 = vdwg.mxu0
    %s8491 = scalar_lea.vmem [#allocation18], 128
    %v8492 = vld [vmem:[%s8491] sm:$0xff]
    %v8493 = vld [vmem:[%s8491 + $0x8] sm:$0xff]
    %v8494 = vld [vmem:[%s8491 + $0x10] sm:$0xff]
    %v8495 = vld [vmem:[%s8491 + $0x18] sm:$0xff]
    %v8496 = vld [vmem:[%s8491 + $0x20] sm:$0xff]
    %v8497 = vld [vmem:[%s8491 + $0x28] sm:$0xff]
    %v8498 = vld [vmem:[%s8491 + $0x30] sm:$0xff]
    %v8499 = vld [vmem:[%s8491 + $0x38] sm:$0xff]
    %v8500 = vld [vmem:[%s8491 + $0x40] sm:$0xff]
    %v8501 = vld [vmem:[%s8491 + $0x48] sm:$0xff]
    %v8502 = vld [vmem:[%s8491 + $0x50] sm:$0xff]
    %v8503 = vld [vmem:[%s8491 + $0x58] sm:$0xff]
    %v8504 = vld [vmem:[%s8491 + $0x60] sm:$0xff]
    %v8505 = vld [vmem:[%s8491 + $0x68] sm:$0xff]
    %v8506 = vld [vmem:[%s8491 + $0x70] sm:$0xff]
    %v8507 = vld [vmem:[%s8491 + $0x78] sm:$0xff]
    %8508 = vmatprep.subr.mxu0 0.0
    %8509 = vmatpush1.msra.mxu0 %v8507
    %8510 = vmatprep.subr.mxu0 0.0
    %8511 = vmatpush1.msra.mxu0 %v8506
    %8512 = vmatprep.subr.mxu0 0.0
    %8513 = vmatpush1.msra.mxu0 %v8505
    %8514 = vmatprep.subr.mxu0 0.0
    %8515 = vmatpush1.msra.mxu0 %v8504
    %8516 = vmatprep.subr.mxu0 0.0
    %8517 = vmatpush1.msra.mxu0 %v8503
    %8518 = vmatprep.subr.mxu0 0.0
    %8519 = vmatpush1.msra.mxu0 %v8502
    %8520 = vmatprep.subr.mxu0 0.0
    %8521 = vmatpush1.msra.mxu0 %v8501
    %8522 = vmatprep.subr.mxu0 0.0
    %8523 = vmatpush1.msra.mxu0 %v8500
    %8524 = vmatprep.subr.mxu0 0.0
    %8525 = vmatpush1.msra.mxu0 %v8499
    %8526 = vmatprep.subr.mxu0 0.0
    %8527 = vmatpush1.msra.mxu0 %v8498
    %8528 = vmatprep.subr.mxu0 0.0
    %8529 = vmatpush1.msra.mxu0 %v8497
    %8530 = vmatprep.subr.mxu0 0.0
    %8531 = vmatpush1.msra.mxu0 %v8496
    %8532 = vmatprep.subr.mxu0 0.0
    %8533 = vmatpush1.msra.mxu0 %v8495
    %8534 = vmatprep.subr.mxu0 0.0
    %8535 = vmatpush1.msra.mxu0 %v8494
    %8536 = vmatprep.subr.mxu0 0.0
    %8537 = vmatpush1.msra.mxu0 %v8493
    %8538 = vmatprep.subr.mxu0 0.0
    %8539 = vmatpush1.msra.mxu0 %v8492
    %8540 = vmatprep.subr.mxu0 0.0
    %8541 = vmatpush2.msra.mxu0 0.0
    %8542 = vmatprep.subr.mxu0 0.0
    %8543 = vmatpush2.msra.mxu0 0.0
    %8544 = vmatprep.subr.mxu0 0.0
    %8545 = vmatpush2.msra.mxu0 0.0
    %8546 = vmatprep.subr.mxu0 0.0
    %8547 = vmatpush2.msra.mxu0 0.0
    %8548 = vmatprep.subr.mxu0 0.0
    %8549 = vmatpush2.msra.mxu0 0.0
    %8550 = vmatprep.subr.mxu0 0.0
    %8551 = vmatpush2.msra.mxu0 0.0
    %8552 = vmatprep.subr.mxu0 0.0
    %8553 = vmatpush2.msra.mxu0 0.0
    %8554 = vmatprep.subr.mxu0 0.0
    %8555 = vmatpush2.msra.mxu0 0.0
    %8556 = vmatprep.subr.mxu0 0.0
    %8557 = vmatpush2.msra.mxu0 0.0
    %8558 = vmatprep.subr.mxu0 0.0
    %8559 = vmatpush2.msra.mxu0 0.0
    %8560 = vmatprep.subr.mxu0 0.0
    %8561 = vmatpush2.msra.mxu0 0.0
    %8562 = vmatprep.subr.mxu0 0.0
    %8563 = vmatpush2.msra.mxu0 0.0
    %8564 = vmatprep.subr.mxu0 0.0
    %8565 = vmatpush2.msra.mxu0 0.0
    %8566 = vmatprep.subr.mxu0 0.0
    %8567 = vmatpush2.msra.mxu0 0.0
    %8568 = vmatprep.subr.mxu0 0.0
    %8569 = vmatpush2.msra.mxu0 0.0
    %8570 = vmatprep.subr.mxu0 0.0
    %8571 = vmatpush2.msra.mxu0 0.0
    %8572 = vmatprep.mubr.f32.mxu0 0.0
    %8573 = vmatmul.mubr.f32.gmra.mxu0 %v8305
    %v8574 = vpop.f32.mrf.mxu0
    %v8575 = vadd.f32 0.0, %v8574
    %v8576 = vpop.f32.mrf.mxu0
    %8577 = vmatprep.mubr.f32.mxu0 0.0
    %8578 = vmatmul.mubr.f32.gmra.mxu0 %v8306
    %v8579 = vpop.f32.mrf.mxu0
    %v8580 = vadd.f32 0.0, %v8579
    %v8581 = vpop.f32.mrf.mxu0
    %8582 = vdwg.mxu0
    %v8583 = vadd.f32 %v8483, %v8575
    %v8584 = vadd.f32 %v8488, %v8580
    %s8585 = scalar_lea.vmem %s17, 1
    %v8586 = vld [vmem:[%s8585] sm:$0x1]
    %v8588 = vlaneseq
    %v8589 = vshrl.u32 %v8588, 7
    %v8590 = vsub.s32 0, %v8589
    %v8591 = vrot.slane %v8586, %v8590
    %v8593 = vadd.f32 %v8583, %v8591
    %v8594 = vadd.f32 %v8584, %v8591
    %v8595 = vtanh.pop %v8593
    %v8596 = vtanh.pop %v8594
    %8597 = vst [vmem:[%s18] sm:$0xff] %v8595
    %8598 = vst [vmem:[%s18 + $0x8] sm:$0xff] %v8596
    // Predicated region
    $region118: #{gnn_forward.1} parent=1 // pred_check
      _
    $region119: #{gnn_forward.1} parent=1 // pred_check_branch
      %8600 = sbr.rel (0) target = $region121
    $region120: #{gnn_forward.1} parent=1 // pred_region
      _
    $region121: #{gnn_forward.1} parent=1 // pred_fallthru
      _
    // Predicated region
    $region122: #{gnn_forward.1} parent=1 // pred_check
      _
    $region123: #{gnn_forward.1} parent=1 // pred_check_branch
      %8602 = sbr.rel (0) target = $region125
    $region124: #{gnn_forward.1} parent=1 // pred_region
      _
    $region125: #{gnn_forward.1} parent=1 // pred_fallthru
      _
    %8603 = vsyncpa [#allocation3], 1
    %8604 = vsyncpa [#allocation5], 1
    %8605 = vsyncpa [#allocation8], 1
    %8606 = vsyncpa [#allocation11], 1
    %8607 = vsyncpa [#allocation14], 1
    %8608 = vsyncpa [#allocation17], 1

</llo_original>
